<compile_context>
chip_gen: v6e
topology: v6e:2x2x1
jax: 0.10.0
libtpu: 0.0.40
codegen_flags: <defaults>
</compile_context>

<pallas_src>
import jax
import jax.numpy as jnp
from jax.experimental import pallas as pl
from jax.experimental.pallas import tpu as pltpu


def _log_sigmoid(x):
    # numerically-stable log(sigmoid(x)) = min(x, 0) - log1p(exp(-|x|))
    return jnp.minimum(x, 0.0) - jnp.log1p(jnp.exp(-jnp.abs(x)))


def _skipgram_kernel(cw_ref, xw_ref, ncw_ref, nxw_ref,   # (1, TB) int32 index tiles (VMEM)
                     wc_t_ref, wx_t_ref,                 # (D, V) resident transposed tables
                     out_ref):                           # (1, TB) lane-dense score tile
    TB = out_ref.shape[1]
    V = wc_t_ref.shape[1]

    # vocab id on the sublane axis, batch on the lane axis
    iota_v = jax.lax.broadcasted_iota(jnp.int32, (V, TB), 0)

    def one_hot(idx_ref):
        # (1, TB) int32 -> (V, TB) f32 one-hot selection matrix
        return (iota_v == idx_ref[...]).astype(jnp.float32)

    # Stack [pos | neg] along lanes so each table feeds the MXU once per step.
    oh_central = jnp.concatenate([one_hot(cw_ref), one_hot(ncw_ref)], axis=1)   # (V, 2*TB)
    oh_context = jnp.concatenate([one_hot(xw_ref), one_hot(nxw_ref)], axis=1)   # (V, 2*TB)

    # One-hot MXU gather: (D, V) @ (V, 2*TB) -> (D, 2*TB) gathered embeddings.
    emb_central = jnp.dot(wc_t_ref[...], oh_central,
                          preferred_element_type=jnp.float32,
                          precision=jax.lax.Precision.HIGHEST)
    emb_context = jnp.dot(wx_t_ref[...], oh_context,
                          preferred_element_type=jnp.float32,
                          precision=jax.lax.Precision.HIGHEST)

    # Single fused reduction over the embedding dim -> (1, 2*TB), already lane-major.
    scores = jnp.sum(emb_central * emb_context, axis=0, keepdims=True)
    scores = jnp.clip(scores, -10.0, 10.0)
    pos = scores[:, :TB]
    neg = scores[:, TB:]

    out_ref[...] = -(_log_sigmoid(pos) + _log_sigmoid(-neg))


def skip_gram_hard_neg_forward(central_W, context_W,
                               central_word, context_word,
                               neg_central_word, neg_context_word,
                               *, tb=128):
    """Pallas equivalent of SkipGramModelHardNeg.forward. Returns score of shape (B,)."""
    B = central_word.shape[0]
    V, D = central_W.shape
    assert context_W.shape == (V, D)
    assert tb % 128 == 0, "tile must be lane-dense (multiple of 128)"

    b_pad = pl.cdiv(B, tb) * tb

    def prep_idx(idx):
        idx = idx.astype(jnp.int32)
        idx = jnp.pad(idx, (0, b_pad - B))
        return idx.reshape(1, b_pad)

    cw, xw, ncw, nxw = (prep_idx(a) for a in
                        (central_word, context_word, neg_central_word, neg_context_word))

    # Transposed tables (D, V): embedding dim on sublanes, vocab on lanes.
    wc_t = central_W.T.astype(jnp.float32)
    wx_t = context_W.T.astype(jnp.float32)

    idx_spec = pl.BlockSpec((1, tb), lambda i: (0, i))
    tbl_spec = pl.BlockSpec((D, V), lambda i: (0, 0))   # resident across the grid

    out = pl.pallas_call(
        _skipgram_kernel,
        out_shape=jax.ShapeDtypeStruct((1, b_pad), jnp.float32),
        grid_spec=pltpu.PrefetchScalarGridSpec(
            num_scalar_prefetch=0,
            grid=(b_pad // tb,),
            in_specs=[idx_spec, idx_spec, idx_spec, idx_spec, tbl_spec, tbl_spec],
            out_specs=pl.BlockSpec((1, tb), lambda i: (0, i)),
        ),
        compiler_params=pltpu.CompilerParams(
            dimension_semantics=("parallel",)),   # disjoint output tiles -> megacore OK
    )(cw, xw, ncw, nxw, wc_t, wx_t)

    return out[0, :B]


def reference_forward(central_W, context_W, cw, xw, ncw, nxw):
    ec = central_W[cw]
    ex = context_W[xw]
    nec = central_W[ncw]
    nex = context_W[nxw]
    pos = jnp.clip(jnp.sum(ec * ex, axis=1), -10.0, 10.0)
    neg = jnp.clip(jnp.sum(nec * nex, axis=1), -10.0, 10.0)
    return -(jax.nn.log_sigmoid(pos) + jax.nn.log_sigmoid(-neg))


if __name__ == "__main__":
    vocab_size = 512
    embed_dim = 128
    batch = 256

    key = jax.random.PRNGKey(0)
    k_cen, k_ctx, k_i0, k_i1, k_i2, k_i3 = jax.random.split(key, 6)

    # nn.Embedding weights: uniform(-1/embed_dim, 1/embed_dim), deterministic init
    initrange = 1.0 / embed_dim
    central_W = jax.random.uniform(
        k_cen, (vocab_size, embed_dim), jnp.float32, -initrange, initrange)
    context_W = jax.random.uniform(
        k_ctx, (vocab_size, embed_dim), jnp.float32, -initrange, initrange)

    central_word = jax.random.randint(k_i0, (batch,), 0, vocab_size, jnp.int32)
    context_word = jax.random.randint(k_i1, (batch,), 0, vocab_size, jnp.int32)
    neg_central_word = jax.random.randint(k_i2, (batch,), 0, vocab_size, jnp.int32)
    neg_context_word = jax.random.randint(k_i3, (batch,), 0, vocab_size, jnp.int32)

    score = skip_gram_hard_neg_forward(
        central_W, context_W,
        central_word, context_word, neg_central_word, neg_context_word)
    score = jax.block_until_ready(score)

    ref = reference_forward(
        central_W, context_W,
        central_word, context_word, neg_central_word, neg_context_word)
    assert score.shape == (batch,)
    assert jnp.allclose(score, ref, atol=1e-5, rtol=1e-5), (score, ref)

    print("KERNEL_OK")
</pallas_src>

<mosaic_0001>
module attributes {stable_mosaic.version = 11 : i64} {
  func.func @_skipgram_kernel(%arg0: i32, %arg1: memref<1x128xi32, #tpu.memory_space<vmem>>, %arg2: memref<1x128xi32, #tpu.memory_space<vmem>>, %arg3: memref<1x128xi32, #tpu.memory_space<vmem>>, %arg4: memref<1x128xi32, #tpu.memory_space<vmem>>, %arg5: memref<128x512xf32, #tpu.memory_space<vmem>>, %arg6: memref<128x512xf32, #tpu.memory_space<vmem>>, %arg7: memref<1x128xf32, #tpu.memory_space<vmem>>) attributes {dimension_semantics = [#tpu.dimension_semantics<parallel>], iteration_bounds = array<i64: 2>, scalar_prefetch = 0 : i64, scratch_operands = 0 : i64, tpu.core_type = #tpu.core_type<tc>, window_params = [{transform_indices = @transform_0, window_bounds = array<i64: 1, 128>}, {transform_indices = @transform_1, window_bounds = array<i64: 1, 128>}, {transform_indices = @transform_2, window_bounds = array<i64: 1, 128>}, {transform_indices = @transform_3, window_bounds = array<i64: 1, 128>}, {pipeline_mode = #tpu.pipeline_mode<synchronous>, transform_indices = @transform_4, window_bounds = array<i64: 128, 512>}, {pipeline_mode = #tpu.pipeline_mode<synchronous>, transform_indices = @transform_5, window_bounds = array<i64: 128, 512>}, {transform_indices = @transform_6, window_bounds = array<i64: 1, 128>}]} {
    %0 = tpu.iota {dimensions = array<i32: 0>} : vector<512x128xi32>
    %c0 = arith.constant 0 : index
    %c0_0 = arith.constant 0 : index
    %1 = vector.load %arg1[%c0, %c0_0] : memref<1x128xi32, #tpu.memory_space<vmem>>, vector<1x128xi32>
    %2 = vector.broadcast %1 : vector<1x128xi32> to vector<512x128xi32>
    %3 = arith.cmpi eq, %0, %2 : vector<512x128xi32>
    %4 = arith.extui %3 : vector<512x128xi1> to vector<512x128xi32>
    %5 = arith.sitofp %4 : vector<512x128xi32> to vector<512x128xf32>
    %c0_1 = arith.constant 0 : index
    %c0_2 = arith.constant 0 : index
    %6 = vector.load %arg3[%c0_1, %c0_2] : memref<1x128xi32, #tpu.memory_space<vmem>>, vector<1x128xi32>
    %7 = vector.broadcast %6 : vector<1x128xi32> to vector<512x128xi32>
    %8 = arith.cmpi eq, %0, %7 : vector<512x128xi32>
    %9 = arith.extui %8 : vector<512x128xi1> to vector<512x128xi32>
    %10 = arith.sitofp %9 : vector<512x128xi32> to vector<512x128xf32>
    %11 = tpu.concatenate %5, %10 in 1 : vector<512x128xf32>, vector<512x128xf32> -> vector<512x256xf32>
    %c0_3 = arith.constant 0 : index
    %c0_4 = arith.constant 0 : index
    %12 = vector.load %arg2[%c0_3, %c0_4] : memref<1x128xi32, #tpu.memory_space<vmem>>, vector<1x128xi32>
    %13 = vector.broadcast %12 : vector<1x128xi32> to vector<512x128xi32>
    %14 = arith.cmpi eq, %0, %13 : vector<512x128xi32>
    %15 = arith.extui %14 : vector<512x128xi1> to vector<512x128xi32>
    %16 = arith.sitofp %15 : vector<512x128xi32> to vector<512x128xf32>
    %c0_5 = arith.constant 0 : index
    %c0_6 = arith.constant 0 : index
    %17 = vector.load %arg4[%c0_5, %c0_6] : memref<1x128xi32, #tpu.memory_space<vmem>>, vector<1x128xi32>
    %18 = vector.broadcast %17 : vector<1x128xi32> to vector<512x128xi32>
    %19 = arith.cmpi eq, %0, %18 : vector<512x128xi32>
    %20 = arith.extui %19 : vector<512x128xi1> to vector<512x128xi32>
    %21 = arith.sitofp %20 : vector<512x128xi32> to vector<512x128xf32>
    %22 = tpu.concatenate %16, %21 in 1 : vector<512x128xf32>, vector<512x128xf32> -> vector<512x256xf32>
    %c0_7 = arith.constant 0 : index
    %c0_8 = arith.constant 0 : index
    %23 = vector.load %arg5[%c0_7, %c0_8] : memref<128x512xf32, #tpu.memory_space<vmem>>, vector<128x512xf32>
    %cst = arith.constant dense<0.000000e+00> : vector<128x256xf32>
    %24 = tpu.matmul %23, %11, %cst {dimension_numbers = #tpu.dot_dimension_numbers<[1], [0], [0], [1], [0, 0, 1, 1], [], []>, precision = #tpu.contract_precision<fp32>} : vector<128x512xf32>, vector<512x256xf32>, vector<128x256xf32> -> vector<128x256xf32>
    %c0_9 = arith.constant 0 : index
    %c0_10 = arith.constant 0 : index
    %25 = vector.load %arg6[%c0_9, %c0_10] : memref<128x512xf32, #tpu.memory_space<vmem>>, vector<128x512xf32>
    %cst_11 = arith.constant dense<0.000000e+00> : vector<128x256xf32>
    %26 = tpu.matmul %25, %22, %cst_11 {dimension_numbers = #tpu.dot_dimension_numbers<[1], [0], [0], [1], [0, 0, 1, 1], [], []>, precision = #tpu.contract_precision<fp32>} : vector<128x512xf32>, vector<512x256xf32>, vector<128x256xf32> -> vector<128x256xf32>
    %27 = arith.mulf %24, %26 : vector<128x256xf32>
    %cst_12 = arith.constant dense<0.000000e+00> : vector<256xf32>
    %28 = vector.multi_reduction <add>, %27, %cst_12 [0] : vector<128x256xf32> to vector<256xf32>
    %29 = vector.shape_cast %28 : vector<256xf32> to vector<1x256xf32>
    %cst_13 = arith.constant -1.000000e+01 : f32
    %cst_14 = arith.constant 1.000000e+01 : f32
    %30 = vector.broadcast %cst_13 : f32 to vector<1x256xf32>
    %31 = arith.maximumf %30, %29 : vector<1x256xf32>
    %32 = vector.broadcast %cst_14 : f32 to vector<1x256xf32>
    %33 = arith.minimumf %32, %31 : vector<1x256xf32>
    %34 = vector.extract_strided_slice %33 {offsets = [0, 0], sizes = [1, 128], strides = [1, 1]} : vector<1x256xf32> to vector<1x128xf32>
    %35 = vector.extract_strided_slice %33 {offsets = [0, 128], sizes = [1, 128], strides = [1, 1]} : vector<1x256xf32> to vector<1x128xf32>
    %cst_15 = arith.constant 0.000000e+00 : f32
    %36 = vector.broadcast %cst_15 : f32 to vector<1x128xf32>
    %37 = arith.minimumf %34, %36 : vector<1x128xf32>
    %38 = math.absf %34 : vector<1x128xf32>
    %cst_16 = arith.constant 0.000000e+00 : f32
    %39 = vector.broadcast %cst_16 : f32 to vector<1x128xf32>
    %40 = arith.subf %39, %38 : vector<1x128xf32>
    %41 = math.exp %40 : vector<1x128xf32>
    %42 = math.log1p %41 : vector<1x128xf32>
    %43 = arith.subf %37, %42 : vector<1x128xf32>
    %cst_17 = arith.constant 0.000000e+00 : f32
    %44 = vector.broadcast %cst_17 : f32 to vector<1x128xf32>
    %45 = arith.subf %44, %35 : vector<1x128xf32>
    %cst_18 = arith.constant 0.000000e+00 : f32
    %46 = vector.broadcast %cst_18 : f32 to vector<1x128xf32>
    %47 = arith.minimumf %45, %46 : vector<1x128xf32>
    %48 = math.absf %45 : vector<1x128xf32>
    %cst_19 = arith.constant 0.000000e+00 : f32
    %49 = vector.broadcast %cst_19 : f32 to vector<1x128xf32>
    %50 = arith.subf %49, %48 : vector<1x128xf32>
    %51 = math.exp %50 : vector<1x128xf32>
    %52 = math.log1p %51 : vector<1x128xf32>
    %53 = arith.subf %47, %52 : vector<1x128xf32>
    %54 = arith.addf %43, %53 : vector<1x128xf32>
    %cst_20 = arith.constant 0.000000e+00 : f32
    %55 = vector.broadcast %cst_20 : f32 to vector<1x128xf32>
    %56 = arith.subf %55, %54 : vector<1x128xf32>
    %c0_21 = arith.constant 0 : index
    %c0_22 = arith.constant 0 : index
    %57 = vector.load %arg7[%c0_21, %c0_22] : memref<1x128xf32, #tpu.memory_space<vmem>>, vector<1x128xf32>
    tpu.vector_store %arg7[%c0_21, %c0_22], %56 {strides = array<i32>} : memref<1x128xf32, #tpu.memory_space<vmem>>, vector<1x128xf32>,
    return
  }
  func.func @transform_0(%arg0: i32) -> (i32, i32) {
    %c0_i32 = arith.constant 0 : i32
    %c0_i32_0 = arith.constant 0 : i32
    return %c0_i32, %arg0 : i32, i32
  }
  func.func @transform_1(%arg0: i32) -> (i32, i32) {
    %c0_i32 = arith.constant 0 : i32
    %c0_i32_0 = arith.constant 0 : i32
    return %c0_i32, %arg0 : i32, i32
  }
  func.func @transform_2(%arg0: i32) -> (i32, i32) {
    %c0_i32 = arith.constant 0 : i32
    %c0_i32_0 = arith.constant 0 : i32
    return %c0_i32, %arg0 : i32, i32
  }
  func.func @transform_3(%arg0: i32) -> (i32, i32) {
    %c0_i32 = arith.constant 0 : i32
    %c0_i32_0 = arith.constant 0 : i32
    return %c0_i32, %arg0 : i32, i32
  }
  func.func @transform_4(%arg0: i32) -> (i32, i32) {
    %c0_i32 = arith.constant 0 : i32
    %c0_i32_0 = arith.constant 0 : i32
    %c0_i32_1 = arith.constant 0 : i32
    return %c0_i32, %c0_i32_0 : i32, i32
  }
  func.func @transform_5(%arg0: i32) -> (i32, i32) {
    %c0_i32 = arith.constant 0 : i32
    %c0_i32_0 = arith.constant 0 : i32
    %c0_i32_1 = arith.constant 0 : i32
    return %c0_i32, %c0_i32_0 : i32, i32
  }
  func.func @transform_6(%arg0: i32) -> (i32, i32) {
    %c0_i32 = arith.constant 0 : i32
    %c0_i32_0 = arith.constant 0 : i32
    return %c0_i32, %arg0 : i32, i32
  }
}

</mosaic_0001>

<llo_original>
// kernel: tpu_custom_call.1
$region0: #{tpu_custom_call.1}
  #allocation0 [shape = 'u32[]', space=smem, size = 0x4, offset = 0x4, fixed_abs, tag = 'smem constant byte address 0x4 - core index']
  #allocation1 [shape = 'u32[144,128]{1,0:T(1,128)}', space=vmem, size = 0x12000, scoped, tag = 'internal scratch']
  %s0 = inlined_call_operand.hbm [shape: s32[1,256], index: 0, kind: input, shape index: {}]
  %s1 = inlined_call_operand.hbm [shape: s32[1,256], index: 1, kind: input, shape index: {}]
  %s2 = inlined_call_operand.vmem [shape: s32[1,256], index: 2, kind: input, shape index: {}]
  %s3 = inlined_call_operand.vmem [shape: s32[1,256], index: 3, kind: input, shape index: {}]
  %s4 = inlined_call_operand.hbm [shape: f32[128,512], index: 4, kind: input, shape index: {}]
  %s5 = inlined_call_operand.hbm [shape: f32[128,512], index: 5, kind: input, shape index: {}]
  %s6 = inlined_call_operand.hbm [shape: f32[1,256], index: 6, kind: output, shape index: {}]
  %s7 = sld [smem:[#allocation0]]
  $region73: #{tpu_custom_call.1} parent=0
    _
  %s9 = ssub.s32 1, %s7
  %s10 = scalar_select 0, %s9, %s7
  $region1: #{tpu_custom_call.1} parent=0
    #allocation2 [shape = 'u8[1024]{0}', space=vmem, size = 0x400, scoped, tag = 'input window, operand 0']
    #allocation3 [shape = 's32[2]{0}', space=sflag, size = 0x8, scoped, tag = 'scoped memory for tpu_custom_call.1']
    #allocation4 [shape = 's32[2]{0}', space=sflag, size = 0x8, scoped, tag = 'scoped memory for tpu_custom_call.1']
    #allocation5 [shape = 'u8[1024]{0}', space=vmem, size = 0x400, scoped, tag = 'input window, operand 1']
    #allocation6 [shape = 's32[2]{0}', space=sflag, size = 0x8, scoped, tag = 'scoped memory for tpu_custom_call.1']
    #allocation7 [shape = 'u8[262144]{0}', space=vmem, size = 0x40000, scoped, tag = 'input window, operand 4, single buffered']
    #allocation8 [shape = 'u8[262144]{0}', space=vmem, size = 0x40000, scoped, tag = 'input window, operand 5, single buffered']
    #allocation9 [shape = 's32[1]{0}', space=sflag, size = 0x4, scoped, tag = 'scoped memory for tpu_custom_call.1']
    #allocation10 [shape = 'u8[1024]{0}', space=vmem, size = 0x400, scoped, tag = 'output window, operand 0']
    %11 = vsyncpa [#allocation3], 0
    %s12 = scalar_lea.sflag [#allocation3], 1
    %13 = vsyncpa %s12, 0
    %14 = vsyncpa [#allocation6], 0
    %s15 = scalar_lea.sflag [#allocation6], 1
    %16 = vsyncpa %s15, 0
    %17 = vsyncpa [#allocation9], 0
    %18 = vsyncpa [#allocation4], 0
    %s19 = scalar_lea.sflag [#allocation4], 1
    %20 = vsyncpa %s19, 0
    loop: start=0, step=1, limit=4
    $region2: #{tpu_custom_call.1} parent=1 // loop_pre_header
      _
    $region3: #{tpu_custom_call.1} parent=1 // loop_header
      %s22 = sphi 0, %s26
      %p23 = scmp.ge.s32.totalorder %s22, 4
      %s32 = sphi 0, %s34
      %s35 = sphi 0, %s32
      %s36 = sphi 0, %s35
      %s52 = sphi 0, %s36
      %s58 = sphi 0, %s60
      %s61 = sphi 0, %s58
      %s62 = sphi 0, %s61
      %s78 = sphi 0, %s62
      %s84 = sphi 0, %s86
      %s87 = sphi 0, %s84
      %s88 = sphi 0, %s87
      %s104 = sphi 0, %s88
      %s110 = sphi 0, %s112
      %s113 = sphi 0, %s110
      %s114 = sphi 0, %s113
      %s130 = sphi 0, %s114
      %s134 = sphi 0, %s134
      %s136 = sphi 0, %s134
      %s137 = sphi 0, %s136
      %s151 = sphi 0, %s137
      %s155 = sphi 0, %s155
      %s157 = sphi 0, %s155
      %s158 = sphi 0, %s157
      %s172 = sphi 0, %s158
      %s178 = sphi 0, %s180
      %s181 = sphi 0, %s178
      %s182 = sphi 0, %s181
      %s198 = sphi 0, %s182
    $region4: #{tpu_custom_call.1} parent=1 // loop_header_branch
      %25 = sbr.rel (%p23) target = $region8
    $region5: #{tpu_custom_call.1} parent=1 // loop_body
      %s27 = ssub.s32 %s22, 1
      %s28 = ssub.s32 %s22, 2
      %s29 = sadd.s32 %s22, 1
      %s30 = ssub.s32 %s22, %s29
      %p31 = scmp.eq.s32.totalorder %s30, 0
      %s33 = sadd.s32 %s32, 1
      %s34 = scalar_select %p31, %s32, %s33
      %p37 = pneg %p31
      %p38 = scmp.eq.s32.totalorder %s22, 1
      %p39 = por %p37, %p38
      %p40 = scmp.ne.s32.totalorder %s32, %s35
      %p41 = scmp.eq.s32.totalorder %s22, 0
      %p42 = por %p40, %p41
      %p43 = scmp.ne.s32.totalorder %s32, %s35
      %p44 = scmp.eq.s32.totalorder %s27, 1
      %p45 = por %p43, %p44
      %p46 = scmp.ne.s32.totalorder %s35, %s36
      %p47 = scmp.eq.s32.totalorder %s27, 0
      %p48 = por %p46, %p47
      %p49 = scmp.ne.s32.totalorder %s35, %s36
      %p50 = scmp.eq.s32.totalorder %s28, 1
      %p51 = por %p49, %p50
      %p53 = scmp.ne.s32.totalorder %s36, %s52
      %p54 = scmp.eq.s32.totalorder %s28, 0
      %p55 = por %p53, %p54
      %s56 = ssub.s32 %s22, %s29
      %p57 = scmp.eq.s32.totalorder %s56, 0
      %s59 = sadd.s32 %s58, 1
      %s60 = scalar_select %p57, %s58, %s59
      %p63 = pneg %p57
      %p64 = scmp.eq.s32.totalorder %s22, 1
      %p65 = por %p63, %p64
      %p66 = scmp.ne.s32.totalorder %s58, %s61
      %p67 = scmp.eq.s32.totalorder %s22, 0
      %p68 = por %p66, %p67
      %p69 = scmp.ne.s32.totalorder %s58, %s61
      %p70 = scmp.eq.s32.totalorder %s27, 1
      %p71 = por %p69, %p70
      %p72 = scmp.ne.s32.totalorder %s61, %s62
      %p73 = scmp.eq.s32.totalorder %s27, 0
      %p74 = por %p72, %p73
      %p75 = scmp.ne.s32.totalorder %s61, %s62
      %p76 = scmp.eq.s32.totalorder %s28, 1
      %p77 = por %p75, %p76
      %p79 = scmp.ne.s32.totalorder %s62, %s78
      %p80 = scmp.eq.s32.totalorder %s28, 0
      %p81 = por %p79, %p80
      %s82 = ssub.s32 %s22, %s29
      %p83 = scmp.eq.s32.totalorder %s82, 0
      %s85 = sadd.s32 %s84, 1
      %s86 = scalar_select %p83, %s84, %s85
      %p89 = pneg %p83
      %p90 = scmp.eq.s32.totalorder %s22, 1
      %p91 = por %p89, %p90
      %p92 = scmp.ne.s32.totalorder %s84, %s87
      %p93 = scmp.eq.s32.totalorder %s22, 0
      %p94 = por %p92, %p93
      %p95 = scmp.ne.s32.totalorder %s84, %s87
      %p96 = scmp.eq.s32.totalorder %s27, 1
      %p97 = por %p95, %p96
      %p98 = scmp.ne.s32.totalorder %s87, %s88
      %p99 = scmp.eq.s32.totalorder %s27, 0
      %p100 = por %p98, %p99
      %p101 = scmp.ne.s32.totalorder %s87, %s88
      %p102 = scmp.eq.s32.totalorder %s28, 1
      %p103 = por %p101, %p102
      %p105 = scmp.ne.s32.totalorder %s88, %s104
      %p106 = scmp.eq.s32.totalorder %s28, 0
      %p107 = por %p105, %p106
      %s108 = ssub.s32 %s22, %s29
      %p109 = scmp.eq.s32.totalorder %s108, 0
      %s111 = sadd.s32 %s110, 1
      %s112 = scalar_select %p109, %s110, %s111
      %p115 = pneg %p109
      %p116 = scmp.eq.s32.totalorder %s22, 1
      %p117 = por %p115, %p116
      %p118 = scmp.ne.s32.totalorder %s110, %s113
      %p119 = scmp.eq.s32.totalorder %s22, 0
      %p120 = por %p118, %p119
      %p121 = scmp.ne.s32.totalorder %s110, %s113
      %p122 = scmp.eq.s32.totalorder %s27, 1
      %p123 = por %p121, %p122
      %p124 = scmp.ne.s32.totalorder %s113, %s114
      %p125 = scmp.eq.s32.totalorder %s27, 0
      %p126 = por %p124, %p125
      %p127 = scmp.ne.s32.totalorder %s113, %s114
      %p128 = scmp.eq.s32.totalorder %s28, 1
      %p129 = por %p127, %p128
      %p131 = scmp.ne.s32.totalorder %s114, %s130
      %p132 = scmp.eq.s32.totalorder %s28, 0
      %p133 = por %p131, %p132
      %s135 = sadd.s32 %s134, 1
      %p138 = scmp.eq.s32.totalorder %s22, 1
      %p139 = scmp.ne.s32.totalorder %s134, %s136
      %p140 = scmp.eq.s32.totalorder %s22, 0
      %p141 = por %p139, %p140
      %p142 = scmp.ne.s32.totalorder %s134, %s136
      %p143 = scmp.eq.s32.totalorder %s27, 1
      %p144 = por %p142, %p143
      %p145 = scmp.ne.s32.totalorder %s136, %s137
      %p146 = scmp.eq.s32.totalorder %s27, 0
      %p147 = por %p145, %p146
      %p148 = scmp.ne.s32.totalorder %s136, %s137
      %p149 = scmp.eq.s32.totalorder %s28, 1
      %p150 = por %p148, %p149
      %p152 = scmp.ne.s32.totalorder %s137, %s151
      %p153 = scmp.eq.s32.totalorder %s28, 0
      %p154 = por %p152, %p153
      %s156 = sadd.s32 %s155, 1
      %p159 = scmp.eq.s32.totalorder %s22, 1
      %p160 = scmp.ne.s32.totalorder %s155, %s157
      %p161 = scmp.eq.s32.totalorder %s22, 0
      %p162 = por %p160, %p161
      %p163 = scmp.ne.s32.totalorder %s155, %s157
      %p164 = scmp.eq.s32.totalorder %s27, 1
      %p165 = por %p163, %p164
      %p166 = scmp.ne.s32.totalorder %s157, %s158
      %p167 = scmp.eq.s32.totalorder %s27, 0
      %p168 = por %p166, %p167
      %p169 = scmp.ne.s32.totalorder %s157, %s158
      %p170 = scmp.eq.s32.totalorder %s28, 1
      %p171 = por %p169, %p170
      %p173 = scmp.ne.s32.totalorder %s158, %s172
      %p174 = scmp.eq.s32.totalorder %s28, 0
      %p175 = por %p173, %p174
      %s176 = ssub.s32 %s22, %s29
      %p177 = scmp.eq.s32.totalorder %s176, 0
      %s179 = sadd.s32 %s178, 1
      %s180 = scalar_select %p177, %s178, %s179
      %p183 = pneg %p177
      %p184 = scmp.eq.s32.totalorder %s22, 1
      %p185 = por %p183, %p184
      %p186 = scmp.ne.s32.totalorder %s178, %s181
      %p187 = scmp.eq.s32.totalorder %s22, 0
      %p188 = por %p186, %p187
      %p189 = scmp.ne.s32.totalorder %s178, %s181
      %p190 = scmp.eq.s32.totalorder %s27, 1
      %p191 = por %p189, %p190
      %p192 = scmp.ne.s32.totalorder %s181, %s182
      %p193 = scmp.eq.s32.totalorder %s27, 0
      %p194 = por %p192, %p193
      %p195 = scmp.ne.s32.totalorder %s181, %s182
      %p196 = scmp.eq.s32.totalorder %s28, 1
      %p197 = por %p195, %p196
      %p199 = scmp.ne.s32.totalorder %s182, %s198
      %p200 = scmp.eq.s32.totalorder %s28, 0
      %p201 = por %p199, %p200
      %p202 = scmp.le.s32.totalorder 1, %s22
      %p203 = scmp.lt.s32.totalorder %s22, 3
      %p204 = pnand %p202, %p203
      %p205 = pneg %p204
      // Predicated region
      $region9: #{tpu_custom_call.1} parent=5 // pred_check
        _
      $region10: #{tpu_custom_call.1} parent=5 // pred_check_branch
        %207 = sbr.rel (%p204) target = $region12
      $region11: #{tpu_custom_call.1} parent=5 // pred_region
        %s208 = ssub.s32 %s22, 1
        // Predicated region
        $region13: #{tpu_custom_call.1} parent=11 // pred_check
          %p209 = pneg %p147
        $region14: #{tpu_custom_call.1} parent=11 // pred_check_branch
          %211 = sbr.rel (%p209) target = $region16
        $region15: #{tpu_custom_call.1} parent=11 // pred_region
          %s213 = ssub.s32 8192, 8192
          %214 = vsyncadd [#allocation6], %s213
          %s215 = sshll.u32 [#allocation7], 4
          %s216 = int_to_ptr.vmem [resolvable:$true] %s215
          %221 = dma.hbm_to_vmem [thread:$0]  %s4, 8192, %s216, [#allocation6], 512, 512, 32
        $region16: #{tpu_custom_call.1} parent=11 // pred_fallthru
          _
        // Predicated region
        $region17: #{tpu_custom_call.1} parent=11 // pred_check
          %p222 = pneg %p168
        $region18: #{tpu_custom_call.1} parent=11 // pred_check_branch
          %224 = sbr.rel (%p222) target = $region20
        $region19: #{tpu_custom_call.1} parent=11 // pred_region
          %s226 = ssub.s32 8192, 8192
          %227 = vsyncadd [#allocation9], %s226
          %s228 = sshll.u32 [#allocation8], 4
          %s229 = int_to_ptr.vmem [resolvable:$true] %s228
          %234 = dma.hbm_to_vmem [thread:$0]  %s5, 8192, %s229, [#allocation9], 512, 512, 32
        $region20: #{tpu_custom_call.1} parent=11 // pred_fallthru
          _
      $region12: #{tpu_custom_call.1} parent=5 // pred_fallthru
        _
      %p235 = scmp.lt.s32.totalorder %s22, 2
      // Predicated region
      $region21: #{tpu_custom_call.1} parent=5 // pred_check
        %p236 = pneg %p235
      $region22: #{tpu_custom_call.1} parent=5 // pred_check_branch
        %238 = sbr.rel (%p236) target = $region24
      $region23: #{tpu_custom_call.1} parent=5 // pred_region
        // Predicated region
        $region25: #{tpu_custom_call.1} parent=23 // pred_check
          %p239 = pneg %p42
        $region26: #{tpu_custom_call.1} parent=23 // pred_check_branch
          %241 = sbr.rel (%p239) target = $region28
        $region27: #{tpu_custom_call.1} parent=23 // pred_region
          %s242 = sand.u32 %s32, 1
          %s243 = scalar_lea.sflag [#allocation3], %s242
          %s244 = sand.u32 %s32, 1
          %s245 = scalar_lea.vmem [#allocation2], %s244
          %s247 = ssub.s32 16, 16
          %248 = vsyncadd %s243, %s247
          %s249 = smul.addr %s22, 16
          %s250 = scalar_lea.hbm %s0, %s249
          %s252 = sshll.u32 %s245, 4
          %s253 = int_to_ptr.vmem [resolvable:$true] %s252
          %255 = dma.hbm_to_vmem [thread:$0]  %s250, 16, %s253, %s243
        $region28: #{tpu_custom_call.1} parent=23 // pred_fallthru
          _
        // Predicated region
        $region29: #{tpu_custom_call.1} parent=23 // pred_check
          %p256 = pneg %p68
        $region30: #{tpu_custom_call.1} parent=23 // pred_check_branch
          %258 = sbr.rel (%p256) target = $region32
        $region31: #{tpu_custom_call.1} parent=23 // pred_region
          %s259 = sand.u32 %s22, 1
          %s260 = scalar_lea.sflag [#allocation6], %s259
          %s261 = sand.u32 %s58, 1
          %s262 = scalar_lea.vmem [#allocation5], %s261
          %s264 = ssub.s32 16, 16
          %265 = vsyncadd %s260, %s264
          %s266 = smul.addr %s22, 16
          %s267 = scalar_lea.hbm %s1, %s266
          %s269 = sshll.u32 %s262, 4
          %s270 = int_to_ptr.vmem [resolvable:$true] %s269
          %272 = dma.hbm_to_vmem [thread:$0]  %s267, 16, %s270, %s260
        $region32: #{tpu_custom_call.1} parent=23 // pred_fallthru
          _
        // Predicated region
        $region33: #{tpu_custom_call.1} parent=23 // pred_check
          %p273 = pneg %p94
        $region34: #{tpu_custom_call.1} parent=23 // pred_check_branch
          %275 = sbr.rel (%p273) target = $region36
        $region35: #{tpu_custom_call.1} parent=23 // pred_region
          %p276 = scmp.lt.s32.totalorder %s22, 1
          %s277 = scalar_select %p276, %s22, 1
          %s278 = scalar_lea.vmem %s2, %s277
        $region36: #{tpu_custom_call.1} parent=23 // pred_fallthru
          _
        // Predicated region
        $region37: #{tpu_custom_call.1} parent=23 // pred_check
          %p279 = pneg %p120
        $region38: #{tpu_custom_call.1} parent=23 // pred_check_branch
          %281 = sbr.rel (%p279) target = $region40
        $region39: #{tpu_custom_call.1} parent=23 // pred_region
          %p282 = scmp.lt.s32.totalorder %s22, 1
          %s283 = scalar_select %p282, %s22, 1
          %s284 = scalar_lea.vmem %s3, %s283
        $region40: #{tpu_custom_call.1} parent=23 // pred_fallthru
          _
      $region24: #{tpu_custom_call.1} parent=5 // pred_fallthru
        _
      %p285 = scmp.le.s32.totalorder 1, %s22
      %p286 = scmp.lt.s32.totalorder %s22, 3
      %p287 = pnand %p285, %p286
      %p288 = pneg %p287
      // Predicated region
      $region41: #{tpu_custom_call.1} parent=5 // pred_check
        _
      $region42: #{tpu_custom_call.1} parent=5 // pred_check_branch
        %290 = sbr.rel (%p287) target = $region44
      $region43: #{tpu_custom_call.1} parent=5 // pred_region
        %s291 = ssub.s32 %s22, 1
        %s292 = sand.u32 %s35, 1
        %s293 = scalar_lea.sflag [#allocation3], %s292
        %s294 = sand.u32 %s35, 1
        %s295 = scalar_lea.vmem [#allocation2], %s294
        // Predicated region
        $region45: #{tpu_custom_call.1} parent=43 // pred_check
          %p296 = pneg %p48
        $region46: #{tpu_custom_call.1} parent=43 // pred_check_branch
          %298 = sbr.rel (%p296) target = $region48
        $region47: #{tpu_custom_call.1} parent=43 // pred_region
          %299 = dma.done %s293, 16
        $region48: #{tpu_custom_call.1} parent=43 // pred_fallthru
          _
        %s300 = sand.u32 %s27, 1
        %s301 = scalar_lea.sflag [#allocation6], %s300
        %s302 = sand.u32 %s61, 1
        %s303 = scalar_lea.vmem [#allocation5], %s302
        // Predicated region
        $region49: #{tpu_custom_call.1} parent=43 // pred_check
          %p304 = pneg %p74
        $region50: #{tpu_custom_call.1} parent=43 // pred_check_branch
          %306 = sbr.rel (%p304) target = $region52
        $region51: #{tpu_custom_call.1} parent=43 // pred_region
          %307 = dma.done %s301, 16
        $region52: #{tpu_custom_call.1} parent=43 // pred_fallthru
          _
        // Predicated region
        $region53: #{tpu_custom_call.1} parent=43 // pred_check
          %p308 = pneg %p147
        $region54: #{tpu_custom_call.1} parent=43 // pred_check_branch
          %310 = sbr.rel (%p308) target = $region56
        $region55: #{tpu_custom_call.1} parent=43 // pred_region
          %311 = dma.done [#allocation6], 8192
        $region56: #{tpu_custom_call.1} parent=43 // pred_fallthru
          _
        // Predicated region
        $region57: #{tpu_custom_call.1} parent=43 // pred_check
          %p312 = pneg %p168
        $region58: #{tpu_custom_call.1} parent=43 // pred_check_branch
          %314 = sbr.rel (%p312) target = $region60
        $region59: #{tpu_custom_call.1} parent=43 // pred_region
          %315 = dma.done [#allocation9], 8192
        $region60: #{tpu_custom_call.1} parent=43 // pred_fallthru
          _
        %s316 = sand.u32 %s35, 1
        %s317 = scalar_lea.sflag [#allocation3], %s316
        %s318 = sand.u32 %s35, 1
        %s319 = scalar_lea.vmem [#allocation2], %s318
        %p320 = pneg %p48
        %p321 = pneg %p45
        %s322 = sand.u32 %s27, 1
        %s323 = scalar_lea.sflag [#allocation6], %s322
        %s324 = sand.u32 %s61, 1
        %s325 = scalar_lea.vmem [#allocation5], %s324
        %p326 = pneg %p74
        %p327 = pneg %p71
        %p328 = scmp.lt.s32.totalorder %s27, 1
        %s329 = scalar_select %p328, %s27, 1
        %s330 = scalar_lea.vmem %s2, %s329
        %p331 = pneg %p100
        %p332 = pneg %p97
        %p333 = scmp.lt.s32.totalorder %s27, 1
        %s334 = scalar_select %p333, %s27, 1
        %s335 = scalar_lea.vmem %s3, %s334
        %p336 = pneg %p126
        %p337 = pneg %p123
        %p338 = pneg %p147
        %p339 = pneg %p144
        %p340 = pneg %p168
        %p341 = pneg %p165
        %p342 = pneg %p194
        %p343 = pneg %p191
        %s344 = sand.u32 %s181, 1
        %s345 = scalar_lea.sflag [#allocation4], %s344
        %s346 = sand.u32 %s181, 1
        %s347 = scalar_lea.vmem [#allocation10], %s346
        %p348 = scmp.lt.s32.totalorder %s27, 1
        %s349 = scalar_select %p348, %s27, 1
        %s350 = scalar_lea.vmem %s2, %s349
        %p351 = scmp.lt.s32.totalorder %s27, 1
        %s352 = scalar_select %p351, %s27, 1
        %s353 = scalar_lea.vmem %s3, %s352
        %v354 = vlaneseq
        %v355 = vshrl.u32 %v354, 7
        %v356 = vadd.s32 %v355, 8
        %v357 = vadd.s32 %v355, 16
        %v358 = vadd.s32 %v355, 24
        %v359 = vadd.s32 %v355, 32
        %v360 = vadd.s32 %v355, 40
        %v361 = vadd.s32 %v355, 48
        %v362 = vadd.s32 %v355, 56
        %v363 = vadd.s32 %v355, 64
        %v364 = vadd.s32 %v355, 72
        %v365 = vadd.s32 %v355, 80
        %v366 = vadd.s32 %v355, 88
        %v367 = vadd.s32 %v355, 96
        %v368 = vadd.s32 %v355, 104
        %v369 = vadd.s32 %v355, 112
        %v370 = vadd.s32 %v355, 120
        %v371 = vadd.s32 %v355, 128
        %v372 = vadd.s32 %v355, 136
        %v373 = vadd.s32 %v355, 144
        %v374 = vadd.s32 %v355, 152
        %v375 = vadd.s32 %v355, 160
        %v376 = vadd.s32 %v355, 168
        %v377 = vadd.s32 %v355, 176
        %v378 = vadd.s32 %v355, 184
        %v379 = vadd.s32 %v355, 192
        %v380 = vadd.s32 %v355, 200
        %v381 = vadd.s32 %v355, 208
        %v382 = vadd.s32 %v355, 216
        %v383 = vadd.s32 %v355, 224
        %v384 = vadd.s32 %v355, 232
        %v385 = vadd.s32 %v355, 240
        %v386 = vadd.s32 %v355, 248
        %v387 = vadd.s32 %v355, 256
        %v388 = vadd.s32 %v355, 264
        %v389 = vadd.s32 %v355, 272
        %v390 = vadd.s32 %v355, 280
        %v391 = vadd.s32 %v355, 288
        %v392 = vadd.s32 %v355, 296
        %v393 = vadd.s32 %v355, 304
        %v394 = vadd.s32 %v355, 312
        %v395 = vadd.s32 %v355, 320
        %v396 = vadd.s32 %v355, 328
        %v397 = vadd.s32 %v355, 336
        %v398 = vadd.s32 %v355, 344
        %v399 = vadd.s32 %v355, 352
        %v400 = vadd.s32 %v355, 360
        %v401 = vadd.s32 %v355, 368
        %v402 = vadd.s32 %v355, 376
        %v403 = vadd.s32 %v355, 384
        %v404 = vadd.s32 %v355, 392
        %v405 = vadd.s32 %v355, 400
        %v406 = vadd.s32 %v355, 408
        %v407 = vadd.s32 %v355, 416
        %v408 = vadd.s32 %v355, 424
        %v409 = vadd.s32 %v355, 432
        %v410 = vadd.s32 %v355, 440
        %v411 = vadd.s32 %v355, 448
        %v412 = vadd.s32 %v355, 456
        %v413 = vadd.s32 %v355, 464
        %v414 = vadd.s32 %v355, 472
        %v415 = vadd.s32 %v355, 480
        %v416 = vadd.s32 %v355, 488
        %v417 = vadd.s32 %v355, 496
        %v418 = vadd.s32 %v355, 504
        %v419 = vld [vmem:[%s295] sm:$0x1]
        %v420 = vlaneseq
        %v421 = vshrl.u32 %v420, 7
        %v422 = vsub.s32 0, %v421
        %v423 = vrot.slane %v419, %v422
        %vm424 = vcmp.eq.s32.totalorder %v355, %v423
        %vm425 = vcmp.eq.s32.totalorder %v356, %v423
        %vm426 = vcmp.eq.s32.totalorder %v357, %v423
        %vm427 = vcmp.eq.s32.totalorder %v358, %v423
        %vm428 = vcmp.eq.s32.totalorder %v359, %v423
        %vm429 = vcmp.eq.s32.totalorder %v360, %v423
        %vm430 = vcmp.eq.s32.totalorder %v361, %v423
        %vm431 = vcmp.eq.s32.totalorder %v362, %v423
        %vm432 = vcmp.eq.s32.totalorder %v363, %v423
        %vm433 = vcmp.eq.s32.totalorder %v364, %v423
        %vm434 = vcmp.eq.s32.totalorder %v365, %v423
        %vm435 = vcmp.eq.s32.totalorder %v366, %v423
        %vm436 = vcmp.eq.s32.totalorder %v367, %v423
        %vm437 = vcmp.eq.s32.totalorder %v368, %v423
        %vm438 = vcmp.eq.s32.totalorder %v369, %v423
        %vm439 = vcmp.eq.s32.totalorder %v370, %v423
        %vm440 = vcmp.eq.s32.totalorder %v371, %v423
        %vm441 = vcmp.eq.s32.totalorder %v372, %v423
        %vm442 = vcmp.eq.s32.totalorder %v373, %v423
        %vm443 = vcmp.eq.s32.totalorder %v374, %v423
        %vm444 = vcmp.eq.s32.totalorder %v375, %v423
        %vm445 = vcmp.eq.s32.totalorder %v376, %v423
        %vm446 = vcmp.eq.s32.totalorder %v377, %v423
        %vm447 = vcmp.eq.s32.totalorder %v378, %v423
        %vm448 = vcmp.eq.s32.totalorder %v379, %v423
        %vm449 = vcmp.eq.s32.totalorder %v380, %v423
        %vm450 = vcmp.eq.s32.totalorder %v381, %v423
        %vm451 = vcmp.eq.s32.totalorder %v382, %v423
        %vm452 = vcmp.eq.s32.totalorder %v383, %v423
        %vm453 = vcmp.eq.s32.totalorder %v384, %v423
        %vm454 = vcmp.eq.s32.totalorder %v385, %v423
        %vm455 = vcmp.eq.s32.totalorder %v386, %v423
        %vm456 = vcmp.eq.s32.totalorder %v387, %v423
        %vm457 = vcmp.eq.s32.totalorder %v388, %v423
        %vm458 = vcmp.eq.s32.totalorder %v389, %v423
        %vm459 = vcmp.eq.s32.totalorder %v390, %v423
        %vm460 = vcmp.eq.s32.totalorder %v391, %v423
        %vm461 = vcmp.eq.s32.totalorder %v392, %v423
        %vm462 = vcmp.eq.s32.totalorder %v393, %v423
        %vm463 = vcmp.eq.s32.totalorder %v394, %v423
        %vm464 = vcmp.eq.s32.totalorder %v395, %v423
        %vm465 = vcmp.eq.s32.totalorder %v396, %v423
        %vm466 = vcmp.eq.s32.totalorder %v397, %v423
        %vm467 = vcmp.eq.s32.totalorder %v398, %v423
        %vm468 = vcmp.eq.s32.totalorder %v399, %v423
        %vm469 = vcmp.eq.s32.totalorder %v400, %v423
        %vm470 = vcmp.eq.s32.totalorder %v401, %v423
        %vm471 = vcmp.eq.s32.totalorder %v402, %v423
        %vm472 = vcmp.eq.s32.totalorder %v403, %v423
        %vm473 = vcmp.eq.s32.totalorder %v404, %v423
        %vm474 = vcmp.eq.s32.totalorder %v405, %v423
        %vm475 = vcmp.eq.s32.totalorder %v406, %v423
        %vm476 = vcmp.eq.s32.totalorder %v407, %v423
        %vm477 = vcmp.eq.s32.totalorder %v408, %v423
        %vm478 = vcmp.eq.s32.totalorder %v409, %v423
        %vm479 = vcmp.eq.s32.totalorder %v410, %v423
        %vm480 = vcmp.eq.s32.totalorder %v411, %v423
        %vm481 = vcmp.eq.s32.totalorder %v412, %v423
        %vm482 = vcmp.eq.s32.totalorder %v413, %v423
        %vm483 = vcmp.eq.s32.totalorder %v414, %v423
        %vm484 = vcmp.eq.s32.totalorder %v415, %v423
        %vm485 = vcmp.eq.s32.totalorder %v416, %v423
        %vm486 = vcmp.eq.s32.totalorder %v417, %v423
        %vm487 = vcmp.eq.s32.totalorder %v418, %v423
        %v488 = vsel %vm424, 1, 0
        %v489 = vsel %vm425, 1, 0
        %v490 = vsel %vm426, 1, 0
        %v491 = vsel %vm427, 1, 0
        %v492 = vsel %vm428, 1, 0
        %v493 = vsel %vm429, 1, 0
        %v494 = vsel %vm430, 1, 0
        %v495 = vsel %vm431, 1, 0
        %v496 = vsel %vm432, 1, 0
        %v497 = vsel %vm433, 1, 0
        %v498 = vsel %vm434, 1, 0
        %v499 = vsel %vm435, 1, 0
        %v500 = vsel %vm436, 1, 0
        %v501 = vsel %vm437, 1, 0
        %v502 = vsel %vm438, 1, 0
        %v503 = vsel %vm439, 1, 0
        %v504 = vsel %vm440, 1, 0
        %v505 = vsel %vm441, 1, 0
        %v506 = vsel %vm442, 1, 0
        %v507 = vsel %vm443, 1, 0
        %v508 = vsel %vm444, 1, 0
        %v509 = vsel %vm445, 1, 0
        %v510 = vsel %vm446, 1, 0
        %v511 = vsel %vm447, 1, 0
        %v512 = vsel %vm448, 1, 0
        %v513 = vsel %vm449, 1, 0
        %v514 = vsel %vm450, 1, 0
        %v515 = vsel %vm451, 1, 0
        %v516 = vsel %vm452, 1, 0
        %v517 = vsel %vm453, 1, 0
        %v518 = vsel %vm454, 1, 0
        %v519 = vsel %vm455, 1, 0
        %v520 = vsel %vm456, 1, 0
        %v521 = vsel %vm457, 1, 0
        %v522 = vsel %vm458, 1, 0
        %v523 = vsel %vm459, 1, 0
        %v524 = vsel %vm460, 1, 0
        %v525 = vsel %vm461, 1, 0
        %v526 = vsel %vm462, 1, 0
        %v527 = vsel %vm463, 1, 0
        %v528 = vsel %vm464, 1, 0
        %v529 = vsel %vm465, 1, 0
        %v530 = vsel %vm466, 1, 0
        %v531 = vsel %vm467, 1, 0
        %v532 = vsel %vm468, 1, 0
        %v533 = vsel %vm469, 1, 0
        %v534 = vsel %vm470, 1, 0
        %v535 = vsel %vm471, 1, 0
        %v536 = vsel %vm472, 1, 0
        %v537 = vsel %vm473, 1, 0
        %v538 = vsel %vm474, 1, 0
        %v539 = vsel %vm475, 1, 0
        %v540 = vsel %vm476, 1, 0
        %v541 = vsel %vm477, 1, 0
        %v542 = vsel %vm478, 1, 0
        %v543 = vsel %vm479, 1, 0
        %v544 = vsel %vm480, 1, 0
        %v545 = vsel %vm481, 1, 0
        %v546 = vsel %vm482, 1, 0
        %v547 = vsel %vm483, 1, 0
        %v548 = vsel %vm484, 1, 0
        %v549 = vsel %vm485, 1, 0
        %v550 = vsel %vm486, 1, 0
        %v551 = vsel %vm487, 1, 0
        %v552 = vcvt.s32.f32 %v488
        %v553 = vcvt.s32.f32 %v489
        %v554 = vcvt.s32.f32 %v490
        %v555 = vcvt.s32.f32 %v491
        %v556 = vcvt.s32.f32 %v492
        %v557 = vcvt.s32.f32 %v493
        %v558 = vcvt.s32.f32 %v494
        %v559 = vcvt.s32.f32 %v495
        %v560 = vcvt.s32.f32 %v496
        %v561 = vcvt.s32.f32 %v497
        %v562 = vcvt.s32.f32 %v498
        %v563 = vcvt.s32.f32 %v499
        %v564 = vcvt.s32.f32 %v500
        %v565 = vcvt.s32.f32 %v501
        %v566 = vcvt.s32.f32 %v502
        %v567 = vcvt.s32.f32 %v503
        %v568 = vcvt.s32.f32 %v504
        %v569 = vcvt.s32.f32 %v505
        %v570 = vcvt.s32.f32 %v506
        %v571 = vcvt.s32.f32 %v507
        %v572 = vcvt.s32.f32 %v508
        %v573 = vcvt.s32.f32 %v509
        %v574 = vcvt.s32.f32 %v510
        %v575 = vcvt.s32.f32 %v511
        %v576 = vcvt.s32.f32 %v512
        %v577 = vcvt.s32.f32 %v513
        %v578 = vcvt.s32.f32 %v514
        %v579 = vcvt.s32.f32 %v515
        %v580 = vcvt.s32.f32 %v516
        %v581 = vcvt.s32.f32 %v517
        %v582 = vcvt.s32.f32 %v518
        %v583 = vcvt.s32.f32 %v519
        %v584 = vcvt.s32.f32 %v520
        %v585 = vcvt.s32.f32 %v521
        %v586 = vcvt.s32.f32 %v522
        %v587 = vcvt.s32.f32 %v523
        %v588 = vcvt.s32.f32 %v524
        %v589 = vcvt.s32.f32 %v525
        %v590 = vcvt.s32.f32 %v526
        %v591 = vcvt.s32.f32 %v527
        %v592 = vcvt.s32.f32 %v528
        %v593 = vcvt.s32.f32 %v529
        %v594 = vcvt.s32.f32 %v530
        %v595 = vcvt.s32.f32 %v531
        %v596 = vcvt.s32.f32 %v532
        %v597 = vcvt.s32.f32 %v533
        %v598 = vcvt.s32.f32 %v534
        %v599 = vcvt.s32.f32 %v535
        %v600 = vcvt.s32.f32 %v536
        %v601 = vcvt.s32.f32 %v537
        %v602 = vcvt.s32.f32 %v538
        %v603 = vcvt.s32.f32 %v539
        %v604 = vcvt.s32.f32 %v540
        %v605 = vcvt.s32.f32 %v541
        %v606 = vcvt.s32.f32 %v542
        %v607 = vcvt.s32.f32 %v543
        %v608 = vcvt.s32.f32 %v544
        %v609 = vcvt.s32.f32 %v545
        %v610 = vcvt.s32.f32 %v546
        %v611 = vcvt.s32.f32 %v547
        %v612 = vcvt.s32.f32 %v548
        %v613 = vcvt.s32.f32 %v549
        %v614 = vcvt.s32.f32 %v550
        %v615 = vcvt.s32.f32 %v551
        %v616 = vld [vmem:[%s350] sm:$0x1]
        %v617 = vlaneseq
        %v618 = vshrl.u32 %v617, 7
        %v619 = vsub.s32 0, %v618
        %v620 = vrot.slane %v616, %v619
        %vm621 = vcmp.eq.s32.totalorder %v355, %v620
        %vm622 = vcmp.eq.s32.totalorder %v356, %v620
        %vm623 = vcmp.eq.s32.totalorder %v357, %v620
        %vm624 = vcmp.eq.s32.totalorder %v358, %v620
        %vm625 = vcmp.eq.s32.totalorder %v359, %v620
        %vm626 = vcmp.eq.s32.totalorder %v360, %v620
        %vm627 = vcmp.eq.s32.totalorder %v361, %v620
        %vm628 = vcmp.eq.s32.totalorder %v362, %v620
        %vm629 = vcmp.eq.s32.totalorder %v363, %v620
        %vm630 = vcmp.eq.s32.totalorder %v364, %v620
        %vm631 = vcmp.eq.s32.totalorder %v365, %v620
        %vm632 = vcmp.eq.s32.totalorder %v366, %v620
        %vm633 = vcmp.eq.s32.totalorder %v367, %v620
        %vm634 = vcmp.eq.s32.totalorder %v368, %v620
        %vm635 = vcmp.eq.s32.totalorder %v369, %v620
        %vm636 = vcmp.eq.s32.totalorder %v370, %v620
        %vm637 = vcmp.eq.s32.totalorder %v371, %v620
        %vm638 = vcmp.eq.s32.totalorder %v372, %v620
        %vm639 = vcmp.eq.s32.totalorder %v373, %v620
        %vm640 = vcmp.eq.s32.totalorder %v374, %v620
        %vm641 = vcmp.eq.s32.totalorder %v375, %v620
        %vm642 = vcmp.eq.s32.totalorder %v376, %v620
        %vm643 = vcmp.eq.s32.totalorder %v377, %v620
        %vm644 = vcmp.eq.s32.totalorder %v378, %v620
        %vm645 = vcmp.eq.s32.totalorder %v379, %v620
        %vm646 = vcmp.eq.s32.totalorder %v380, %v620
        %vm647 = vcmp.eq.s32.totalorder %v381, %v620
        %vm648 = vcmp.eq.s32.totalorder %v382, %v620
        %vm649 = vcmp.eq.s32.totalorder %v383, %v620
        %vm650 = vcmp.eq.s32.totalorder %v384, %v620
        %vm651 = vcmp.eq.s32.totalorder %v385, %v620
        %vm652 = vcmp.eq.s32.totalorder %v386, %v620
        %vm653 = vcmp.eq.s32.totalorder %v387, %v620
        %vm654 = vcmp.eq.s32.totalorder %v388, %v620
        %vm655 = vcmp.eq.s32.totalorder %v389, %v620
        %vm656 = vcmp.eq.s32.totalorder %v390, %v620
        %vm657 = vcmp.eq.s32.totalorder %v391, %v620
        %vm658 = vcmp.eq.s32.totalorder %v392, %v620
        %vm659 = vcmp.eq.s32.totalorder %v393, %v620
        %vm660 = vcmp.eq.s32.totalorder %v394, %v620
        %vm661 = vcmp.eq.s32.totalorder %v395, %v620
        %vm662 = vcmp.eq.s32.totalorder %v396, %v620
        %vm663 = vcmp.eq.s32.totalorder %v397, %v620
        %vm664 = vcmp.eq.s32.totalorder %v398, %v620
        %vm665 = vcmp.eq.s32.totalorder %v399, %v620
        %vm666 = vcmp.eq.s32.totalorder %v400, %v620
        %vm667 = vcmp.eq.s32.totalorder %v401, %v620
        %vm668 = vcmp.eq.s32.totalorder %v402, %v620
        %vm669 = vcmp.eq.s32.totalorder %v403, %v620
        %vm670 = vcmp.eq.s32.totalorder %v404, %v620
        %vm671 = vcmp.eq.s32.totalorder %v405, %v620
        %vm672 = vcmp.eq.s32.totalorder %v406, %v620
        %vm673 = vcmp.eq.s32.totalorder %v407, %v620
        %vm674 = vcmp.eq.s32.totalorder %v408, %v620
        %vm675 = vcmp.eq.s32.totalorder %v409, %v620
        %vm676 = vcmp.eq.s32.totalorder %v410, %v620
        %vm677 = vcmp.eq.s32.totalorder %v411, %v620
        %vm678 = vcmp.eq.s32.totalorder %v412, %v620
        %vm679 = vcmp.eq.s32.totalorder %v413, %v620
        %vm680 = vcmp.eq.s32.totalorder %v414, %v620
        %vm681 = vcmp.eq.s32.totalorder %v415, %v620
        %vm682 = vcmp.eq.s32.totalorder %v416, %v620
        %vm683 = vcmp.eq.s32.totalorder %v417, %v620
        %vm684 = vcmp.eq.s32.totalorder %v418, %v620
        %v685 = vsel %vm621, 1, 0
        %v686 = vsel %vm622, 1, 0
        %v687 = vsel %vm623, 1, 0
        %v688 = vsel %vm624, 1, 0
        %v689 = vsel %vm625, 1, 0
        %v690 = vsel %vm626, 1, 0
        %v691 = vsel %vm627, 1, 0
        %v692 = vsel %vm628, 1, 0
        %v693 = vsel %vm629, 1, 0
        %v694 = vsel %vm630, 1, 0
        %v695 = vsel %vm631, 1, 0
        %v696 = vsel %vm632, 1, 0
        %v697 = vsel %vm633, 1, 0
        %v698 = vsel %vm634, 1, 0
        %v699 = vsel %vm635, 1, 0
        %v700 = vsel %vm636, 1, 0
        %v701 = vsel %vm637, 1, 0
        %v702 = vsel %vm638, 1, 0
        %v703 = vsel %vm639, 1, 0
        %v704 = vsel %vm640, 1, 0
        %v705 = vsel %vm641, 1, 0
        %v706 = vsel %vm642, 1, 0
        %v707 = vsel %vm643, 1, 0
        %v708 = vsel %vm644, 1, 0
        %v709 = vsel %vm645, 1, 0
        %v710 = vsel %vm646, 1, 0
        %v711 = vsel %vm647, 1, 0
        %v712 = vsel %vm648, 1, 0
        %v713 = vsel %vm649, 1, 0
        %v714 = vsel %vm650, 1, 0
        %v715 = vsel %vm651, 1, 0
        %v716 = vsel %vm652, 1, 0
        %v717 = vsel %vm653, 1, 0
        %v718 = vsel %vm654, 1, 0
        %v719 = vsel %vm655, 1, 0
        %v720 = vsel %vm656, 1, 0
        %v721 = vsel %vm657, 1, 0
        %v722 = vsel %vm658, 1, 0
        %v723 = vsel %vm659, 1, 0
        %v724 = vsel %vm660, 1, 0
        %v725 = vsel %vm661, 1, 0
        %v726 = vsel %vm662, 1, 0
        %v727 = vsel %vm663, 1, 0
        %v728 = vsel %vm664, 1, 0
        %v729 = vsel %vm665, 1, 0
        %v730 = vsel %vm666, 1, 0
        %v731 = vsel %vm667, 1, 0
        %v732 = vsel %vm668, 1, 0
        %v733 = vsel %vm669, 1, 0
        %v734 = vsel %vm670, 1, 0
        %v735 = vsel %vm671, 1, 0
        %v736 = vsel %vm672, 1, 0
        %v737 = vsel %vm673, 1, 0
        %v738 = vsel %vm674, 1, 0
        %v739 = vsel %vm675, 1, 0
        %v740 = vsel %vm676, 1, 0
        %v741 = vsel %vm677, 1, 0
        %v742 = vsel %vm678, 1, 0
        %v743 = vsel %vm679, 1, 0
        %v744 = vsel %vm680, 1, 0
        %v745 = vsel %vm681, 1, 0
        %v746 = vsel %vm682, 1, 0
        %v747 = vsel %vm683, 1, 0
        %v748 = vsel %vm684, 1, 0
        %v749 = vcvt.s32.f32 %v685
        %v750 = vcvt.s32.f32 %v686
        %v751 = vcvt.s32.f32 %v687
        %v752 = vcvt.s32.f32 %v688
        %v753 = vcvt.s32.f32 %v689
        %v754 = vcvt.s32.f32 %v690
        %v755 = vcvt.s32.f32 %v691
        %v756 = vcvt.s32.f32 %v692
        %v757 = vcvt.s32.f32 %v693
        %v758 = vcvt.s32.f32 %v694
        %v759 = vcvt.s32.f32 %v695
        %v760 = vcvt.s32.f32 %v696
        %v761 = vcvt.s32.f32 %v697
        %v762 = vcvt.s32.f32 %v698
        %v763 = vcvt.s32.f32 %v699
        %v764 = vcvt.s32.f32 %v700
        %v765 = vcvt.s32.f32 %v701
        %v766 = vcvt.s32.f32 %v702
        %v767 = vcvt.s32.f32 %v703
        %v768 = vcvt.s32.f32 %v704
        %v769 = vcvt.s32.f32 %v705
        %v770 = vcvt.s32.f32 %v706
        %v771 = vcvt.s32.f32 %v707
        %v772 = vcvt.s32.f32 %v708
        %v773 = vcvt.s32.f32 %v709
        %v774 = vcvt.s32.f32 %v710
        %v775 = vcvt.s32.f32 %v711
        %v776 = vcvt.s32.f32 %v712
        %v777 = vcvt.s32.f32 %v713
        %v778 = vcvt.s32.f32 %v714
        %v779 = vcvt.s32.f32 %v715
        %v780 = vcvt.s32.f32 %v716
        %v781 = vcvt.s32.f32 %v717
        %v782 = vcvt.s32.f32 %v718
        %v783 = vcvt.s32.f32 %v719
        %v784 = vcvt.s32.f32 %v720
        %v785 = vcvt.s32.f32 %v721
        %v786 = vcvt.s32.f32 %v722
        %v787 = vcvt.s32.f32 %v723
        %v788 = vcvt.s32.f32 %v724
        %v789 = vcvt.s32.f32 %v725
        %v790 = vcvt.s32.f32 %v726
        %v791 = vcvt.s32.f32 %v727
        %v792 = vcvt.s32.f32 %v728
        %v793 = vcvt.s32.f32 %v729
        %v794 = vcvt.s32.f32 %v730
        %v795 = vcvt.s32.f32 %v731
        %v796 = vcvt.s32.f32 %v732
        %v797 = vcvt.s32.f32 %v733
        %v798 = vcvt.s32.f32 %v734
        %v799 = vcvt.s32.f32 %v735
        %v800 = vcvt.s32.f32 %v736
        %v801 = vcvt.s32.f32 %v737
        %v802 = vcvt.s32.f32 %v738
        %v803 = vcvt.s32.f32 %v739
        %v804 = vcvt.s32.f32 %v740
        %v805 = vcvt.s32.f32 %v741
        %v806 = vcvt.s32.f32 %v742
        %v807 = vcvt.s32.f32 %v743
        %v808 = vcvt.s32.f32 %v744
        %v809 = vcvt.s32.f32 %v745
        %v810 = vcvt.s32.f32 %v746
        %v811 = vcvt.s32.f32 %v747
        %v812 = vcvt.s32.f32 %v748
        %v813 = vld [vmem:[%s303] sm:$0x1]
        %v814 = vlaneseq
        %v815 = vshrl.u32 %v814, 7
        %v816 = vsub.s32 0, %v815
        %v817 = vrot.slane %v813, %v816
        %vm818 = vcmp.eq.s32.totalorder %v355, %v817
        %vm819 = vcmp.eq.s32.totalorder %v356, %v817
        %vm820 = vcmp.eq.s32.totalorder %v357, %v817
        %vm821 = vcmp.eq.s32.totalorder %v358, %v817
        %vm822 = vcmp.eq.s32.totalorder %v359, %v817
        %vm823 = vcmp.eq.s32.totalorder %v360, %v817
        %vm824 = vcmp.eq.s32.totalorder %v361, %v817
        %vm825 = vcmp.eq.s32.totalorder %v362, %v817
        %vm826 = vcmp.eq.s32.totalorder %v363, %v817
        %vm827 = vcmp.eq.s32.totalorder %v364, %v817
        %vm828 = vcmp.eq.s32.totalorder %v365, %v817
        %vm829 = vcmp.eq.s32.totalorder %v366, %v817
        %vm830 = vcmp.eq.s32.totalorder %v367, %v817
        %vm831 = vcmp.eq.s32.totalorder %v368, %v817
        %vm832 = vcmp.eq.s32.totalorder %v369, %v817
        %vm833 = vcmp.eq.s32.totalorder %v370, %v817
        %vm834 = vcmp.eq.s32.totalorder %v371, %v817
        %vm835 = vcmp.eq.s32.totalorder %v372, %v817
        %vm836 = vcmp.eq.s32.totalorder %v373, %v817
        %vm837 = vcmp.eq.s32.totalorder %v374, %v817
        %vm838 = vcmp.eq.s32.totalorder %v375, %v817
        %vm839 = vcmp.eq.s32.totalorder %v376, %v817
        %vm840 = vcmp.eq.s32.totalorder %v377, %v817
        %vm841 = vcmp.eq.s32.totalorder %v378, %v817
        %vm842 = vcmp.eq.s32.totalorder %v379, %v817
        %vm843 = vcmp.eq.s32.totalorder %v380, %v817
        %vm844 = vcmp.eq.s32.totalorder %v381, %v817
        %vm845 = vcmp.eq.s32.totalorder %v382, %v817
        %vm846 = vcmp.eq.s32.totalorder %v383, %v817
        %vm847 = vcmp.eq.s32.totalorder %v384, %v817
        %vm848 = vcmp.eq.s32.totalorder %v385, %v817
        %vm849 = vcmp.eq.s32.totalorder %v386, %v817
        %vm850 = vcmp.eq.s32.totalorder %v387, %v817
        %vm851 = vcmp.eq.s32.totalorder %v388, %v817
        %vm852 = vcmp.eq.s32.totalorder %v389, %v817
        %vm853 = vcmp.eq.s32.totalorder %v390, %v817
        %vm854 = vcmp.eq.s32.totalorder %v391, %v817
        %vm855 = vcmp.eq.s32.totalorder %v392, %v817
        %vm856 = vcmp.eq.s32.totalorder %v393, %v817
        %vm857 = vcmp.eq.s32.totalorder %v394, %v817
        %vm858 = vcmp.eq.s32.totalorder %v395, %v817
        %vm859 = vcmp.eq.s32.totalorder %v396, %v817
        %vm860 = vcmp.eq.s32.totalorder %v397, %v817
        %vm861 = vcmp.eq.s32.totalorder %v398, %v817
        %vm862 = vcmp.eq.s32.totalorder %v399, %v817
        %vm863 = vcmp.eq.s32.totalorder %v400, %v817
        %vm864 = vcmp.eq.s32.totalorder %v401, %v817
        %vm865 = vcmp.eq.s32.totalorder %v402, %v817
        %vm866 = vcmp.eq.s32.totalorder %v403, %v817
        %vm867 = vcmp.eq.s32.totalorder %v404, %v817
        %vm868 = vcmp.eq.s32.totalorder %v405, %v817
        %vm869 = vcmp.eq.s32.totalorder %v406, %v817
        %vm870 = vcmp.eq.s32.totalorder %v407, %v817
        %vm871 = vcmp.eq.s32.totalorder %v408, %v817
        %vm872 = vcmp.eq.s32.totalorder %v409, %v817
        %vm873 = vcmp.eq.s32.totalorder %v410, %v817
        %vm874 = vcmp.eq.s32.totalorder %v411, %v817
        %vm875 = vcmp.eq.s32.totalorder %v412, %v817
        %vm876 = vcmp.eq.s32.totalorder %v413, %v817
        %vm877 = vcmp.eq.s32.totalorder %v414, %v817
        %vm878 = vcmp.eq.s32.totalorder %v415, %v817
        %vm879 = vcmp.eq.s32.totalorder %v416, %v817
        %vm880 = vcmp.eq.s32.totalorder %v417, %v817
        %vm881 = vcmp.eq.s32.totalorder %v418, %v817
        %v882 = vsel %vm818, 1, 0
        %v883 = vsel %vm819, 1, 0
        %v884 = vsel %vm820, 1, 0
        %v885 = vsel %vm821, 1, 0
        %v886 = vsel %vm822, 1, 0
        %v887 = vsel %vm823, 1, 0
        %v888 = vsel %vm824, 1, 0
        %v889 = vsel %vm825, 1, 0
        %v890 = vsel %vm826, 1, 0
        %v891 = vsel %vm827, 1, 0
        %v892 = vsel %vm828, 1, 0
        %v893 = vsel %vm829, 1, 0
        %v894 = vsel %vm830, 1, 0
        %v895 = vsel %vm831, 1, 0
        %v896 = vsel %vm832, 1, 0
        %v897 = vsel %vm833, 1, 0
        %v898 = vsel %vm834, 1, 0
        %v899 = vsel %vm835, 1, 0
        %v900 = vsel %vm836, 1, 0
        %v901 = vsel %vm837, 1, 0
        %v902 = vsel %vm838, 1, 0
        %v903 = vsel %vm839, 1, 0
        %v904 = vsel %vm840, 1, 0
        %v905 = vsel %vm841, 1, 0
        %v906 = vsel %vm842, 1, 0
        %v907 = vsel %vm843, 1, 0
        %v908 = vsel %vm844, 1, 0
        %v909 = vsel %vm845, 1, 0
        %v910 = vsel %vm846, 1, 0
        %v911 = vsel %vm847, 1, 0
        %v912 = vsel %vm848, 1, 0
        %v913 = vsel %vm849, 1, 0
        %v914 = vsel %vm850, 1, 0
        %v915 = vsel %vm851, 1, 0
        %v916 = vsel %vm852, 1, 0
        %v917 = vsel %vm853, 1, 0
        %v918 = vsel %vm854, 1, 0
        %v919 = vsel %vm855, 1, 0
        %v920 = vsel %vm856, 1, 0
        %v921 = vsel %vm857, 1, 0
        %v922 = vsel %vm858, 1, 0
        %v923 = vsel %vm859, 1, 0
        %v924 = vsel %vm860, 1, 0
        %v925 = vsel %vm861, 1, 0
        %v926 = vsel %vm862, 1, 0
        %v927 = vsel %vm863, 1, 0
        %v928 = vsel %vm864, 1, 0
        %v929 = vsel %vm865, 1, 0
        %v930 = vsel %vm866, 1, 0
        %v931 = vsel %vm867, 1, 0
        %v932 = vsel %vm868, 1, 0
        %v933 = vsel %vm869, 1, 0
        %v934 = vsel %vm870, 1, 0
        %v935 = vsel %vm871, 1, 0
        %v936 = vsel %vm872, 1, 0
        %v937 = vsel %vm873, 1, 0
        %v938 = vsel %vm874, 1, 0
        %v939 = vsel %vm875, 1, 0
        %v940 = vsel %vm876, 1, 0
        %v941 = vsel %vm877, 1, 0
        %v942 = vsel %vm878, 1, 0
        %v943 = vsel %vm879, 1, 0
        %v944 = vsel %vm880, 1, 0
        %v945 = vsel %vm881, 1, 0
        %v946 = vcvt.s32.f32 %v882
        %v947 = vcvt.s32.f32 %v883
        %v948 = vcvt.s32.f32 %v884
        %v949 = vcvt.s32.f32 %v885
        %v950 = vcvt.s32.f32 %v886
        %v951 = vcvt.s32.f32 %v887
        %v952 = vcvt.s32.f32 %v888
        %v953 = vcvt.s32.f32 %v889
        %v954 = vcvt.s32.f32 %v890
        %v955 = vcvt.s32.f32 %v891
        %v956 = vcvt.s32.f32 %v892
        %v957 = vcvt.s32.f32 %v893
        %v958 = vcvt.s32.f32 %v894
        %v959 = vcvt.s32.f32 %v895
        %v960 = vcvt.s32.f32 %v896
        %v961 = vcvt.s32.f32 %v897
        %v962 = vcvt.s32.f32 %v898
        %v963 = vcvt.s32.f32 %v899
        %v964 = vcvt.s32.f32 %v900
        %v965 = vcvt.s32.f32 %v901
        %v966 = vcvt.s32.f32 %v902
        %v967 = vcvt.s32.f32 %v903
        %v968 = vcvt.s32.f32 %v904
        %v969 = vcvt.s32.f32 %v905
        %v970 = vcvt.s32.f32 %v906
        %v971 = vcvt.s32.f32 %v907
        %v972 = vcvt.s32.f32 %v908
        %v973 = vcvt.s32.f32 %v909
        %v974 = vcvt.s32.f32 %v910
        %v975 = vcvt.s32.f32 %v911
        %v976 = vcvt.s32.f32 %v912
        %v977 = vcvt.s32.f32 %v913
        %v978 = vcvt.s32.f32 %v914
        %v979 = vcvt.s32.f32 %v915
        %v980 = vcvt.s32.f32 %v916
        %v981 = vcvt.s32.f32 %v917
        %v982 = vcvt.s32.f32 %v918
        %v983 = vcvt.s32.f32 %v919
        %v984 = vcvt.s32.f32 %v920
        %v985 = vcvt.s32.f32 %v921
        %v986 = vcvt.s32.f32 %v922
        %v987 = vcvt.s32.f32 %v923
        %v988 = vcvt.s32.f32 %v924
        %v989 = vcvt.s32.f32 %v925
        %v990 = vcvt.s32.f32 %v926
        %v991 = vcvt.s32.f32 %v927
        %v992 = vcvt.s32.f32 %v928
        %v993 = vcvt.s32.f32 %v929
        %v994 = vcvt.s32.f32 %v930
        %v995 = vcvt.s32.f32 %v931
        %v996 = vcvt.s32.f32 %v932
        %v997 = vcvt.s32.f32 %v933
        %v998 = vcvt.s32.f32 %v934
        %v999 = vcvt.s32.f32 %v935
        %v1000 = vcvt.s32.f32 %v936
        %v1001 = vcvt.s32.f32 %v937
        %v1002 = vcvt.s32.f32 %v938
        %v1003 = vcvt.s32.f32 %v939
        %v1004 = vcvt.s32.f32 %v940
        %v1005 = vcvt.s32.f32 %v941
        %v1006 = vcvt.s32.f32 %v942
        %v1007 = vcvt.s32.f32 %v943
        %v1008 = vcvt.s32.f32 %v944
        %v1009 = vcvt.s32.f32 %v945
        %v1010 = vld [vmem:[%s353] sm:$0x1]
        %v1011 = vlaneseq
        %v1012 = vshrl.u32 %v1011, 7
        %v1013 = vsub.s32 0, %v1012
        %v1014 = vrot.slane %v1010, %v1013
        %vm1015 = vcmp.eq.s32.totalorder %v355, %v1014
        %vm1016 = vcmp.eq.s32.totalorder %v356, %v1014
        %vm1017 = vcmp.eq.s32.totalorder %v357, %v1014
        %vm1018 = vcmp.eq.s32.totalorder %v358, %v1014
        %vm1019 = vcmp.eq.s32.totalorder %v359, %v1014
        %vm1020 = vcmp.eq.s32.totalorder %v360, %v1014
        %vm1021 = vcmp.eq.s32.totalorder %v361, %v1014
        %vm1022 = vcmp.eq.s32.totalorder %v362, %v1014
        %vm1023 = vcmp.eq.s32.totalorder %v363, %v1014
        %vm1024 = vcmp.eq.s32.totalorder %v364, %v1014
        %vm1025 = vcmp.eq.s32.totalorder %v365, %v1014
        %vm1026 = vcmp.eq.s32.totalorder %v366, %v1014
        %vm1027 = vcmp.eq.s32.totalorder %v367, %v1014
        %vm1028 = vcmp.eq.s32.totalorder %v368, %v1014
        %vm1029 = vcmp.eq.s32.totalorder %v369, %v1014
        %vm1030 = vcmp.eq.s32.totalorder %v370, %v1014
        %vm1031 = vcmp.eq.s32.totalorder %v371, %v1014
        %vm1032 = vcmp.eq.s32.totalorder %v372, %v1014
        %vm1033 = vcmp.eq.s32.totalorder %v373, %v1014
        %vm1034 = vcmp.eq.s32.totalorder %v374, %v1014
        %vm1035 = vcmp.eq.s32.totalorder %v375, %v1014
        %vm1036 = vcmp.eq.s32.totalorder %v376, %v1014
        %vm1037 = vcmp.eq.s32.totalorder %v377, %v1014
        %vm1038 = vcmp.eq.s32.totalorder %v378, %v1014
        %vm1039 = vcmp.eq.s32.totalorder %v379, %v1014
        %vm1040 = vcmp.eq.s32.totalorder %v380, %v1014
        %vm1041 = vcmp.eq.s32.totalorder %v381, %v1014
        %vm1042 = vcmp.eq.s32.totalorder %v382, %v1014
        %vm1043 = vcmp.eq.s32.totalorder %v383, %v1014
        %vm1044 = vcmp.eq.s32.totalorder %v384, %v1014
        %vm1045 = vcmp.eq.s32.totalorder %v385, %v1014
        %vm1046 = vcmp.eq.s32.totalorder %v386, %v1014
        %vm1047 = vcmp.eq.s32.totalorder %v387, %v1014
        %vm1048 = vcmp.eq.s32.totalorder %v388, %v1014
        %vm1049 = vcmp.eq.s32.totalorder %v389, %v1014
        %vm1050 = vcmp.eq.s32.totalorder %v390, %v1014
        %vm1051 = vcmp.eq.s32.totalorder %v391, %v1014
        %vm1052 = vcmp.eq.s32.totalorder %v392, %v1014
        %vm1053 = vcmp.eq.s32.totalorder %v393, %v1014
        %vm1054 = vcmp.eq.s32.totalorder %v394, %v1014
        %vm1055 = vcmp.eq.s32.totalorder %v395, %v1014
        %vm1056 = vcmp.eq.s32.totalorder %v396, %v1014
        %vm1057 = vcmp.eq.s32.totalorder %v397, %v1014
        %vm1058 = vcmp.eq.s32.totalorder %v398, %v1014
        %vm1059 = vcmp.eq.s32.totalorder %v399, %v1014
        %vm1060 = vcmp.eq.s32.totalorder %v400, %v1014
        %vm1061 = vcmp.eq.s32.totalorder %v401, %v1014
        %vm1062 = vcmp.eq.s32.totalorder %v402, %v1014
        %vm1063 = vcmp.eq.s32.totalorder %v403, %v1014
        %vm1064 = vcmp.eq.s32.totalorder %v404, %v1014
        %vm1065 = vcmp.eq.s32.totalorder %v405, %v1014
        %vm1066 = vcmp.eq.s32.totalorder %v406, %v1014
        %vm1067 = vcmp.eq.s32.totalorder %v407, %v1014
        %vm1068 = vcmp.eq.s32.totalorder %v408, %v1014
        %vm1069 = vcmp.eq.s32.totalorder %v409, %v1014
        %vm1070 = vcmp.eq.s32.totalorder %v410, %v1014
        %vm1071 = vcmp.eq.s32.totalorder %v411, %v1014
        %vm1072 = vcmp.eq.s32.totalorder %v412, %v1014
        %vm1073 = vcmp.eq.s32.totalorder %v413, %v1014
        %vm1074 = vcmp.eq.s32.totalorder %v414, %v1014
        %vm1075 = vcmp.eq.s32.totalorder %v415, %v1014
        %vm1076 = vcmp.eq.s32.totalorder %v416, %v1014
        %vm1077 = vcmp.eq.s32.totalorder %v417, %v1014
        %vm1078 = vcmp.eq.s32.totalorder %v418, %v1014
        %v1079 = vsel %vm1015, 1, 0
        %v1080 = vsel %vm1016, 1, 0
        %v1081 = vsel %vm1017, 1, 0
        %v1082 = vsel %vm1018, 1, 0
        %v1083 = vsel %vm1019, 1, 0
        %v1084 = vsel %vm1020, 1, 0
        %v1085 = vsel %vm1021, 1, 0
        %v1086 = vsel %vm1022, 1, 0
        %v1087 = vsel %vm1023, 1, 0
        %v1088 = vsel %vm1024, 1, 0
        %v1089 = vsel %vm1025, 1, 0
        %v1090 = vsel %vm1026, 1, 0
        %v1091 = vsel %vm1027, 1, 0
        %v1092 = vsel %vm1028, 1, 0
        %v1093 = vsel %vm1029, 1, 0
        %v1094 = vsel %vm1030, 1, 0
        %v1095 = vsel %vm1031, 1, 0
        %v1096 = vsel %vm1032, 1, 0
        %v1097 = vsel %vm1033, 1, 0
        %v1098 = vsel %vm1034, 1, 0
        %v1099 = vsel %vm1035, 1, 0
        %v1100 = vsel %vm1036, 1, 0
        %v1101 = vsel %vm1037, 1, 0
        %v1102 = vsel %vm1038, 1, 0
        %v1103 = vsel %vm1039, 1, 0
        %v1104 = vsel %vm1040, 1, 0
        %v1105 = vsel %vm1041, 1, 0
        %v1106 = vsel %vm1042, 1, 0
        %v1107 = vsel %vm1043, 1, 0
        %v1108 = vsel %vm1044, 1, 0
        %v1109 = vsel %vm1045, 1, 0
        %v1110 = vsel %vm1046, 1, 0
        %v1111 = vsel %vm1047, 1, 0
        %v1112 = vsel %vm1048, 1, 0
        %v1113 = vsel %vm1049, 1, 0
        %v1114 = vsel %vm1050, 1, 0
        %v1115 = vsel %vm1051, 1, 0
        %v1116 = vsel %vm1052, 1, 0
        %v1117 = vsel %vm1053, 1, 0
        %v1118 = vsel %vm1054, 1, 0
        %v1119 = vsel %vm1055, 1, 0
        %v1120 = vsel %vm1056, 1, 0
        %v1121 = vsel %vm1057, 1, 0
        %v1122 = vsel %vm1058, 1, 0
        %v1123 = vsel %vm1059, 1, 0
        %v1124 = vsel %vm1060, 1, 0
        %v1125 = vsel %vm1061, 1, 0
        %v1126 = vsel %vm1062, 1, 0
        %v1127 = vsel %vm1063, 1, 0
        %v1128 = vsel %vm1064, 1, 0
        %v1129 = vsel %vm1065, 1, 0
        %v1130 = vsel %vm1066, 1, 0
        %v1131 = vsel %vm1067, 1, 0
        %v1132 = vsel %vm1068, 1, 0
        %v1133 = vsel %vm1069, 1, 0
        %v1134 = vsel %vm1070, 1, 0
        %v1135 = vsel %vm1071, 1, 0
        %v1136 = vsel %vm1072, 1, 0
        %v1137 = vsel %vm1073, 1, 0
        %v1138 = vsel %vm1074, 1, 0
        %v1139 = vsel %vm1075, 1, 0
        %v1140 = vsel %vm1076, 1, 0
        %v1141 = vsel %vm1077, 1, 0
        %v1142 = vsel %vm1078, 1, 0
        %v1143 = vcvt.s32.f32 %v1079
        %v1144 = vcvt.s32.f32 %v1080
        %v1145 = vcvt.s32.f32 %v1081
        %v1146 = vcvt.s32.f32 %v1082
        %v1147 = vcvt.s32.f32 %v1083
        %v1148 = vcvt.s32.f32 %v1084
        %v1149 = vcvt.s32.f32 %v1085
        %v1150 = vcvt.s32.f32 %v1086
        %v1151 = vcvt.s32.f32 %v1087
        %v1152 = vcvt.s32.f32 %v1088
        %v1153 = vcvt.s32.f32 %v1089
        %v1154 = vcvt.s32.f32 %v1090
        %v1155 = vcvt.s32.f32 %v1091
        %v1156 = vcvt.s32.f32 %v1092
        %v1157 = vcvt.s32.f32 %v1093
        %v1158 = vcvt.s32.f32 %v1094
        %v1159 = vcvt.s32.f32 %v1095
        %v1160 = vcvt.s32.f32 %v1096
        %v1161 = vcvt.s32.f32 %v1097
        %v1162 = vcvt.s32.f32 %v1098
        %v1163 = vcvt.s32.f32 %v1099
        %v1164 = vcvt.s32.f32 %v1100
        %v1165 = vcvt.s32.f32 %v1101
        %v1166 = vcvt.s32.f32 %v1102
        %v1167 = vcvt.s32.f32 %v1103
        %v1168 = vcvt.s32.f32 %v1104
        %v1169 = vcvt.s32.f32 %v1105
        %v1170 = vcvt.s32.f32 %v1106
        %v1171 = vcvt.s32.f32 %v1107
        %v1172 = vcvt.s32.f32 %v1108
        %v1173 = vcvt.s32.f32 %v1109
        %v1174 = vcvt.s32.f32 %v1110
        %v1175 = vcvt.s32.f32 %v1111
        %v1176 = vcvt.s32.f32 %v1112
        %v1177 = vcvt.s32.f32 %v1113
        %v1178 = vcvt.s32.f32 %v1114
        %v1179 = vcvt.s32.f32 %v1115
        %v1180 = vcvt.s32.f32 %v1116
        %v1181 = vcvt.s32.f32 %v1117
        %v1182 = vcvt.s32.f32 %v1118
        %v1183 = vcvt.s32.f32 %v1119
        %v1184 = vcvt.s32.f32 %v1120
        %v1185 = vcvt.s32.f32 %v1121
        %v1186 = vcvt.s32.f32 %v1122
        %v1187 = vcvt.s32.f32 %v1123
        %v1188 = vcvt.s32.f32 %v1124
        %v1189 = vcvt.s32.f32 %v1125
        %v1190 = vcvt.s32.f32 %v1126
        %v1191 = vcvt.s32.f32 %v1127
        %v1192 = vcvt.s32.f32 %v1128
        %v1193 = vcvt.s32.f32 %v1129
        %v1194 = vcvt.s32.f32 %v1130
        %v1195 = vcvt.s32.f32 %v1131
        %v1196 = vcvt.s32.f32 %v1132
        %v1197 = vcvt.s32.f32 %v1133
        %v1198 = vcvt.s32.f32 %v1134
        %v1199 = vcvt.s32.f32 %v1135
        %v1200 = vcvt.s32.f32 %v1136
        %v1201 = vcvt.s32.f32 %v1137
        %v1202 = vcvt.s32.f32 %v1138
        %v1203 = vcvt.s32.f32 %v1139
        %v1204 = vcvt.s32.f32 %v1140
        %v1205 = vcvt.s32.f32 %v1141
        %v1206 = vcvt.s32.f32 %v1142
        %v1207 = vld [vmem:[#allocation7] sm:$0xff]
        %v1208 = vld [vmem:[#allocation7 + $0x8] sm:$0xff]
        %v1209 = vld [vmem:[#allocation7 + $0x10] sm:$0xff]
        %v1210 = vld [vmem:[#allocation7 + $0x18] sm:$0xff]
        %v1211 = vld [vmem:[#allocation7 + $0x20] sm:$0xff]
        %v1212 = vld [vmem:[#allocation7 + $0x28] sm:$0xff]
        %v1213 = vld [vmem:[#allocation7 + $0x30] sm:$0xff]
        %v1214 = vld [vmem:[#allocation7 + $0x38] sm:$0xff]
        %v1215 = vld [vmem:[#allocation7 + $0x40] sm:$0xff]
        %v1216 = vld [vmem:[#allocation7 + $0x48] sm:$0xff]
        %v1217 = vld [vmem:[#allocation7 + $0x50] sm:$0xff]
        %v1218 = vld [vmem:[#allocation7 + $0x58] sm:$0xff]
        %v1219 = vld [vmem:[#allocation7 + $0x60] sm:$0xff]
        %v1220 = vld [vmem:[#allocation7 + $0x68] sm:$0xff]
        %v1221 = vld [vmem:[#allocation7 + $0x70] sm:$0xff]
        %v1222 = vld [vmem:[#allocation7 + $0x78] sm:$0xff]
        %v1223 = vld [vmem:[#allocation7 + $0x80] sm:$0xff]
        %v1224 = vld [vmem:[#allocation7 + $0x88] sm:$0xff]
        %v1225 = vld [vmem:[#allocation7 + $0x90] sm:$0xff]
        %v1226 = vld [vmem:[#allocation7 + $0x98] sm:$0xff]
        %v1227 = vld [vmem:[#allocation7 + $0xa0] sm:$0xff]
        %v1228 = vld [vmem:[#allocation7 + $0xa8] sm:$0xff]
        %v1229 = vld [vmem:[#allocation7 + $0xb0] sm:$0xff]
        %v1230 = vld [vmem:[#allocation7 + $0xb8] sm:$0xff]
        %v1231 = vld [vmem:[#allocation7 + $0xc0] sm:$0xff]
        %v1232 = vld [vmem:[#allocation7 + $0xc8] sm:$0xff]
        %v1233 = vld [vmem:[#allocation7 + $0xd0] sm:$0xff]
        %v1234 = vld [vmem:[#allocation7 + $0xd8] sm:$0xff]
        %v1235 = vld [vmem:[#allocation7 + $0xe0] sm:$0xff]
        %v1236 = vld [vmem:[#allocation7 + $0xe8] sm:$0xff]
        %v1237 = vld [vmem:[#allocation7 + $0xf0] sm:$0xff]
        %v1238 = vld [vmem:[#allocation7 + $0xf8] sm:$0xff]
        %v1239 = vld [vmem:[#allocation7 + $0x100] sm:$0xff]
        %v1240 = vld [vmem:[#allocation7 + $0x108] sm:$0xff]
        %v1241 = vld [vmem:[#allocation7 + $0x110] sm:$0xff]
        %v1242 = vld [vmem:[#allocation7 + $0x118] sm:$0xff]
        %v1243 = vld [vmem:[#allocation7 + $0x120] sm:$0xff]
        %v1244 = vld [vmem:[#allocation7 + $0x128] sm:$0xff]
        %v1245 = vld [vmem:[#allocation7 + $0x130] sm:$0xff]
        %v1246 = vld [vmem:[#allocation7 + $0x138] sm:$0xff]
        %v1247 = vld [vmem:[#allocation7 + $0x140] sm:$0xff]
        %v1248 = vld [vmem:[#allocation7 + $0x148] sm:$0xff]
        %v1249 = vld [vmem:[#allocation7 + $0x150] sm:$0xff]
        %v1250 = vld [vmem:[#allocation7 + $0x158] sm:$0xff]
        %v1251 = vld [vmem:[#allocation7 + $0x160] sm:$0xff]
        %v1252 = vld [vmem:[#allocation7 + $0x168] sm:$0xff]
        %v1253 = vld [vmem:[#allocation7 + $0x170] sm:$0xff]
        %v1254 = vld [vmem:[#allocation7 + $0x178] sm:$0xff]
        %v1255 = vld [vmem:[#allocation7 + $0x180] sm:$0xff]
        %v1256 = vld [vmem:[#allocation7 + $0x188] sm:$0xff]
        %v1257 = vld [vmem:[#allocation7 + $0x190] sm:$0xff]
        %v1258 = vld [vmem:[#allocation7 + $0x198] sm:$0xff]
        %v1259 = vld [vmem:[#allocation7 + $0x1a0] sm:$0xff]
        %v1260 = vld [vmem:[#allocation7 + $0x1a8] sm:$0xff]
        %v1261 = vld [vmem:[#allocation7 + $0x1b0] sm:$0xff]
        %v1262 = vld [vmem:[#allocation7 + $0x1b8] sm:$0xff]
        %v1263 = vld [vmem:[#allocation7 + $0x1c0] sm:$0xff]
        %v1264 = vld [vmem:[#allocation7 + $0x1c8] sm:$0xff]
        %v1265 = vld [vmem:[#allocation7 + $0x1d0] sm:$0xff]
        %v1266 = vld [vmem:[#allocation7 + $0x1d8] sm:$0xff]
        %v1267 = vld [vmem:[#allocation7 + $0x1e0] sm:$0xff]
        %v1268 = vld [vmem:[#allocation7 + $0x1e8] sm:$0xff]
        %v1269 = vld [vmem:[#allocation7 + $0x1f0] sm:$0xff]
        %v1270 = vld [vmem:[#allocation7 + $0x1f8] sm:$0xff]
        %v1271 = vand.u32 %v764, 4294901760
        %1272 = vmatprep.subr.mxu0 %v1271
        %v1273 = vand.u32 %v567, 4294901760
        %1274 = vmatpush1.msra.mxu0 %v1273
        %v1275 = vand.u32 %v763, 4294901760
        %1276 = vmatprep.subr.mxu0 %v1275
        %v1277 = vand.u32 %v566, 4294901760
        %1278 = vmatpush1.msra.mxu0 %v1277
        %v1279 = vand.u32 %v762, 4294901760
        %1280 = vmatprep.subr.mxu0 %v1279
        %v1281 = vand.u32 %v565, 4294901760
        %1282 = vmatpush1.msra.mxu0 %v1281
        %v1283 = vand.u32 %v761, 4294901760
        %1284 = vmatprep.subr.mxu0 %v1283
        %v1285 = vand.u32 %v564, 4294901760
        %1286 = vmatpush1.msra.mxu0 %v1285
        %v1287 = vand.u32 %v760, 4294901760
        %1288 = vmatprep.subr.mxu0 %v1287
        %v1289 = vand.u32 %v563, 4294901760
        %1290 = vmatpush1.msra.mxu0 %v1289
        %v1291 = vand.u32 %v759, 4294901760
        %1292 = vmatprep.subr.mxu0 %v1291
        %v1293 = vand.u32 %v562, 4294901760
        %1294 = vmatpush1.msra.mxu0 %v1293
        %v1295 = vand.u32 %v758, 4294901760
        %1296 = vmatprep.subr.mxu0 %v1295
        %v1297 = vand.u32 %v561, 4294901760
        %1298 = vmatpush1.msra.mxu0 %v1297
        %v1299 = vand.u32 %v757, 4294901760
        %1300 = vmatprep.subr.mxu0 %v1299
        %v1301 = vand.u32 %v560, 4294901760
        %1302 = vmatpush1.msra.mxu0 %v1301
        %v1303 = vand.u32 %v756, 4294901760
        %1304 = vmatprep.subr.mxu0 %v1303
        %v1305 = vand.u32 %v559, 4294901760
        %1306 = vmatpush1.msra.mxu0 %v1305
        %v1307 = vand.u32 %v755, 4294901760
        %1308 = vmatprep.subr.mxu0 %v1307
        %v1309 = vand.u32 %v558, 4294901760
        %1310 = vmatpush1.msra.mxu0 %v1309
        %v1311 = vand.u32 %v754, 4294901760
        %1312 = vmatprep.subr.mxu0 %v1311
        %v1313 = vand.u32 %v557, 4294901760
        %1314 = vmatpush1.msra.mxu0 %v1313
        %v1315 = vand.u32 %v753, 4294901760
        %1316 = vmatprep.subr.mxu0 %v1315
        %v1317 = vand.u32 %v556, 4294901760
        %1318 = vmatpush1.msra.mxu0 %v1317
        %v1319 = vand.u32 %v752, 4294901760
        %1320 = vmatprep.subr.mxu0 %v1319
        %v1321 = vand.u32 %v555, 4294901760
        %1322 = vmatpush1.msra.mxu0 %v1321
        %v1323 = vand.u32 %v751, 4294901760
        %1324 = vmatprep.subr.mxu0 %v1323
        %v1325 = vand.u32 %v554, 4294901760
        %1326 = vmatpush1.msra.mxu0 %v1325
        %v1327 = vand.u32 %v750, 4294901760
        %1328 = vmatprep.subr.mxu0 %v1327
        %v1329 = vand.u32 %v553, 4294901760
        %1330 = vmatpush1.msra.mxu0 %v1329
        %v1331 = vand.u32 %v749, 4294901760
        %1332 = vmatprep.subr.mxu0 %v1331
        %v1333 = vand.u32 %v552, 4294901760
        %1334 = vmatpush1.msra.mxu0 %v1333
        %v1335 = vand.u32 %v780, 4294901760
        %1336 = vmatprep.subr.mxu0 %v1335
        %v1337 = vand.u32 %v583, 4294901760
        %1338 = vmatpush2.msra.mxu0 %v1337
        %v1339 = vand.u32 %v779, 4294901760
        %1340 = vmatprep.subr.mxu0 %v1339
        %v1341 = vand.u32 %v582, 4294901760
        %1342 = vmatpush2.msra.mxu0 %v1341
        %v1343 = vand.u32 %v778, 4294901760
        %1344 = vmatprep.subr.mxu0 %v1343
        %v1345 = vand.u32 %v581, 4294901760
        %1346 = vmatpush2.msra.mxu0 %v1345
        %v1347 = vand.u32 %v777, 4294901760
        %1348 = vmatprep.subr.mxu0 %v1347
        %v1349 = vand.u32 %v580, 4294901760
        %1350 = vmatpush2.msra.mxu0 %v1349
        %v1351 = vand.u32 %v776, 4294901760
        %1352 = vmatprep.subr.mxu0 %v1351
        %v1353 = vand.u32 %v579, 4294901760
        %1354 = vmatpush2.msra.mxu0 %v1353
        %v1355 = vand.u32 %v775, 4294901760
        %1356 = vmatprep.subr.mxu0 %v1355
        %v1357 = vand.u32 %v578, 4294901760
        %1358 = vmatpush2.msra.mxu0 %v1357
        %v1359 = vand.u32 %v774, 4294901760
        %1360 = vmatprep.subr.mxu0 %v1359
        %v1361 = vand.u32 %v577, 4294901760
        %1362 = vmatpush2.msra.mxu0 %v1361
        %v1363 = vand.u32 %v773, 4294901760
        %1364 = vmatprep.subr.mxu0 %v1363
        %v1365 = vand.u32 %v576, 4294901760
        %1366 = vmatpush2.msra.mxu0 %v1365
        %v1367 = vand.u32 %v772, 4294901760
        %1368 = vmatprep.subr.mxu0 %v1367
        %v1369 = vand.u32 %v575, 4294901760
        %1370 = vmatpush2.msra.mxu0 %v1369
        %v1371 = vand.u32 %v771, 4294901760
        %1372 = vmatprep.subr.mxu0 %v1371
        %v1373 = vand.u32 %v574, 4294901760
        %1374 = vmatpush2.msra.mxu0 %v1373
        %v1375 = vand.u32 %v770, 4294901760
        %1376 = vmatprep.subr.mxu0 %v1375
        %v1377 = vand.u32 %v573, 4294901760
        %1378 = vmatpush2.msra.mxu0 %v1377
        %v1379 = vand.u32 %v769, 4294901760
        %1380 = vmatprep.subr.mxu0 %v1379
        %v1381 = vand.u32 %v572, 4294901760
        %1382 = vmatpush2.msra.mxu0 %v1381
        %v1383 = vand.u32 %v768, 4294901760
        %1384 = vmatprep.subr.mxu0 %v1383
        %v1385 = vand.u32 %v571, 4294901760
        %1386 = vmatpush2.msra.mxu0 %v1385
        %v1387 = vand.u32 %v767, 4294901760
        %1388 = vmatprep.subr.mxu0 %v1387
        %v1389 = vand.u32 %v570, 4294901760
        %1390 = vmatpush2.msra.mxu0 %v1389
        %v1391 = vand.u32 %v766, 4294901760
        %1392 = vmatprep.subr.mxu0 %v1391
        %v1393 = vand.u32 %v569, 4294901760
        %1394 = vmatpush2.msra.mxu0 %v1393
        %v1395 = vand.u32 %v765, 4294901760
        %1396 = vmatprep.subr.mxu0 %v1395
        %v1397 = vand.u32 %v568, 4294901760
        %1398 = vmatpush2.msra.mxu0 %v1397
        %v1399 = vand.u32 %v1208, 4294901760
        %v1400 = vsub.f32 %v1208, %v1399
        %v1401 = vand.u32 %v1400, 4294901760
        %v1402 = vsub.f32 %v1400, %v1401
        %v1403 = vand.u32 %v1402, 4294901760
        %1404 = vmatprep.mubr.f32.mxu0 %v1403
        %v1405 = vand.u32 %v1207, 4294901760
        %v1406 = vsub.f32 %v1207, %v1405
        %v1407 = vand.u32 %v1406, 4294901760
        %v1408 = vsub.f32 %v1406, %v1407
        %v1409 = vand.u32 %v1408, 4294901760
        %1410 = vmatmul.mubr.f32.gmra.mxu0 %v1409
        %v1411 = vpop.f32.mrf.mxu0
        %v1412 = vadd.f32 0.0, %v1411
        %v1413 = vpop.f32.mrf.mxu0
        %v1414 = vadd.f32 0.0, %v1413
        %v1415 = vand.u32 %v1212, 4294901760
        %v1416 = vsub.f32 %v1212, %v1415
        %v1417 = vand.u32 %v1416, 4294901760
        %v1418 = vsub.f32 %v1416, %v1417
        %v1419 = vand.u32 %v1418, 4294901760
        %1420 = vmatprep.mubr.f32.mxu0 %v1419
        %v1421 = vand.u32 %v1211, 4294901760
        %v1422 = vsub.f32 %v1211, %v1421
        %v1423 = vand.u32 %v1422, 4294901760
        %v1424 = vsub.f32 %v1422, %v1423
        %v1425 = vand.u32 %v1424, 4294901760
        %1426 = vmatmul.mubr.f32.gmra.mxu0 %v1425
        %v1427 = vpop.f32.mrf.mxu0
        %v1428 = vadd.f32 0.0, %v1427
        %v1429 = vpop.f32.mrf.mxu0
        %v1430 = vadd.f32 0.0, %v1429
        %v1431 = vand.u32 %v1216, 4294901760
        %v1432 = vsub.f32 %v1216, %v1431
        %v1433 = vand.u32 %v1432, 4294901760
        %v1434 = vsub.f32 %v1432, %v1433
        %v1435 = vand.u32 %v1434, 4294901760
        %1436 = vmatprep.mubr.f32.mxu0 %v1435
        %v1437 = vand.u32 %v1215, 4294901760
        %v1438 = vsub.f32 %v1215, %v1437
        %v1439 = vand.u32 %v1438, 4294901760
        %v1440 = vsub.f32 %v1438, %v1439
        %v1441 = vand.u32 %v1440, 4294901760
        %1442 = vmatmul.mubr.f32.gmra.mxu0 %v1441
        %v1443 = vpop.f32.mrf.mxu0
        %v1444 = vadd.f32 0.0, %v1443
        %v1445 = vpop.f32.mrf.mxu0
        %v1446 = vadd.f32 0.0, %v1445
        %v1447 = vand.u32 %v1220, 4294901760
        %v1448 = vsub.f32 %v1220, %v1447
        %v1449 = vand.u32 %v1448, 4294901760
        %v1450 = vsub.f32 %v1448, %v1449
        %v1451 = vand.u32 %v1450, 4294901760
        %1452 = vmatprep.mubr.f32.mxu0 %v1451
        %v1453 = vand.u32 %v1219, 4294901760
        %v1454 = vsub.f32 %v1219, %v1453
        %v1455 = vand.u32 %v1454, 4294901760
        %v1456 = vsub.f32 %v1454, %v1455
        %v1457 = vand.u32 %v1456, 4294901760
        %1458 = vmatmul.mubr.f32.gmra.mxu0 %v1457
        %v1459 = vpop.f32.mrf.mxu0
        %v1460 = vadd.f32 0.0, %v1459
        %v1461 = vpop.f32.mrf.mxu0
        %v1462 = vadd.f32 0.0, %v1461
        %v1463 = vand.u32 %v1224, 4294901760
        %v1464 = vsub.f32 %v1224, %v1463
        %v1465 = vand.u32 %v1464, 4294901760
        %v1466 = vsub.f32 %v1464, %v1465
        %v1467 = vand.u32 %v1466, 4294901760
        %1468 = vmatprep.mubr.f32.mxu0 %v1467
        %v1469 = vand.u32 %v1223, 4294901760
        %v1470 = vsub.f32 %v1223, %v1469
        %v1471 = vand.u32 %v1470, 4294901760
        %v1472 = vsub.f32 %v1470, %v1471
        %v1473 = vand.u32 %v1472, 4294901760
        %1474 = vmatmul.mubr.f32.gmra.mxu0 %v1473
        %v1475 = vpop.f32.mrf.mxu0
        %v1476 = vadd.f32 0.0, %v1475
        %v1477 = vpop.f32.mrf.mxu0
        %v1478 = vadd.f32 0.0, %v1477
        %v1479 = vand.u32 %v1228, 4294901760
        %v1480 = vsub.f32 %v1228, %v1479
        %v1481 = vand.u32 %v1480, 4294901760
        %v1482 = vsub.f32 %v1480, %v1481
        %v1483 = vand.u32 %v1482, 4294901760
        %1484 = vmatprep.mubr.f32.mxu0 %v1483
        %v1485 = vand.u32 %v1227, 4294901760
        %v1486 = vsub.f32 %v1227, %v1485
        %v1487 = vand.u32 %v1486, 4294901760
        %v1488 = vsub.f32 %v1486, %v1487
        %v1489 = vand.u32 %v1488, 4294901760
        %1490 = vmatmul.mubr.f32.gmra.mxu0 %v1489
        %v1491 = vpop.f32.mrf.mxu0
        %v1492 = vadd.f32 0.0, %v1491
        %v1493 = vpop.f32.mrf.mxu0
        %v1494 = vadd.f32 0.0, %v1493
        %v1495 = vand.u32 %v1232, 4294901760
        %v1496 = vsub.f32 %v1232, %v1495
        %v1497 = vand.u32 %v1496, 4294901760
        %v1498 = vsub.f32 %v1496, %v1497
        %v1499 = vand.u32 %v1498, 4294901760
        %1500 = vmatprep.mubr.f32.mxu0 %v1499
        %v1501 = vand.u32 %v1231, 4294901760
        %v1502 = vsub.f32 %v1231, %v1501
        %v1503 = vand.u32 %v1502, 4294901760
        %v1504 = vsub.f32 %v1502, %v1503
        %v1505 = vand.u32 %v1504, 4294901760
        %1506 = vmatmul.mubr.f32.gmra.mxu0 %v1505
        %v1507 = vpop.f32.mrf.mxu0
        %v1508 = vadd.f32 0.0, %v1507
        %v1509 = vpop.f32.mrf.mxu0
        %v1510 = vadd.f32 0.0, %v1509
        %v1511 = vand.u32 %v1236, 4294901760
        %v1512 = vsub.f32 %v1236, %v1511
        %v1513 = vand.u32 %v1512, 4294901760
        %v1514 = vsub.f32 %v1512, %v1513
        %v1515 = vand.u32 %v1514, 4294901760
        %1516 = vmatprep.mubr.f32.mxu0 %v1515
        %v1517 = vand.u32 %v1235, 4294901760
        %v1518 = vsub.f32 %v1235, %v1517
        %v1519 = vand.u32 %v1518, 4294901760
        %v1520 = vsub.f32 %v1518, %v1519
        %v1521 = vand.u32 %v1520, 4294901760
        %1522 = vmatmul.mubr.f32.gmra.mxu0 %v1521
        %v1523 = vpop.f32.mrf.mxu0
        %v1524 = vadd.f32 0.0, %v1523
        %v1525 = vpop.f32.mrf.mxu0
        %v1526 = vadd.f32 0.0, %v1525
        %v1527 = vand.u32 %v1240, 4294901760
        %v1528 = vsub.f32 %v1240, %v1527
        %v1529 = vand.u32 %v1528, 4294901760
        %v1530 = vsub.f32 %v1528, %v1529
        %v1531 = vand.u32 %v1530, 4294901760
        %1532 = vmatprep.mubr.f32.mxu0 %v1531
        %v1533 = vand.u32 %v1239, 4294901760
        %v1534 = vsub.f32 %v1239, %v1533
        %v1535 = vand.u32 %v1534, 4294901760
        %v1536 = vsub.f32 %v1534, %v1535
        %v1537 = vand.u32 %v1536, 4294901760
        %1538 = vmatmul.mubr.f32.gmra.mxu0 %v1537
        %v1539 = vpop.f32.mrf.mxu0
        %v1540 = vadd.f32 0.0, %v1539
        %v1541 = vpop.f32.mrf.mxu0
        %v1542 = vadd.f32 0.0, %v1541
        %v1543 = vand.u32 %v1244, 4294901760
        %v1544 = vsub.f32 %v1244, %v1543
        %v1545 = vand.u32 %v1544, 4294901760
        %v1546 = vsub.f32 %v1544, %v1545
        %v1547 = vand.u32 %v1546, 4294901760
        %1548 = vmatprep.mubr.f32.mxu0 %v1547
        %v1549 = vand.u32 %v1243, 4294901760
        %v1550 = vsub.f32 %v1243, %v1549
        %v1551 = vand.u32 %v1550, 4294901760
        %v1552 = vsub.f32 %v1550, %v1551
        %v1553 = vand.u32 %v1552, 4294901760
        %1554 = vmatmul.mubr.f32.gmra.mxu0 %v1553
        %v1555 = vpop.f32.mrf.mxu0
        %v1556 = vadd.f32 0.0, %v1555
        %v1557 = vpop.f32.mrf.mxu0
        %v1558 = vadd.f32 0.0, %v1557
        %v1559 = vand.u32 %v1248, 4294901760
        %v1560 = vsub.f32 %v1248, %v1559
        %v1561 = vand.u32 %v1560, 4294901760
        %v1562 = vsub.f32 %v1560, %v1561
        %v1563 = vand.u32 %v1562, 4294901760
        %1564 = vmatprep.mubr.f32.mxu0 %v1563
        %v1565 = vand.u32 %v1247, 4294901760
        %v1566 = vsub.f32 %v1247, %v1565
        %v1567 = vand.u32 %v1566, 4294901760
        %v1568 = vsub.f32 %v1566, %v1567
        %v1569 = vand.u32 %v1568, 4294901760
        %1570 = vmatmul.mubr.f32.gmra.mxu0 %v1569
        %v1571 = vpop.f32.mrf.mxu0
        %v1572 = vadd.f32 0.0, %v1571
        %v1573 = vpop.f32.mrf.mxu0
        %v1574 = vadd.f32 0.0, %v1573
        %v1575 = vand.u32 %v1252, 4294901760
        %v1576 = vsub.f32 %v1252, %v1575
        %v1577 = vand.u32 %v1576, 4294901760
        %v1578 = vsub.f32 %v1576, %v1577
        %v1579 = vand.u32 %v1578, 4294901760
        %1580 = vmatprep.mubr.f32.mxu0 %v1579
        %v1581 = vand.u32 %v1251, 4294901760
        %v1582 = vsub.f32 %v1251, %v1581
        %v1583 = vand.u32 %v1582, 4294901760
        %v1584 = vsub.f32 %v1582, %v1583
        %v1585 = vand.u32 %v1584, 4294901760
        %1586 = vmatmul.mubr.f32.gmra.mxu0 %v1585
        %v1587 = vpop.f32.mrf.mxu0
        %v1588 = vadd.f32 0.0, %v1587
        %v1589 = vpop.f32.mrf.mxu0
        %v1590 = vadd.f32 0.0, %v1589
        %v1591 = vand.u32 %v1256, 4294901760
        %v1592 = vsub.f32 %v1256, %v1591
        %v1593 = vand.u32 %v1592, 4294901760
        %v1594 = vsub.f32 %v1592, %v1593
        %v1595 = vand.u32 %v1594, 4294901760
        %1596 = vmatprep.mubr.f32.mxu0 %v1595
        %v1597 = vand.u32 %v1255, 4294901760
        %v1598 = vsub.f32 %v1255, %v1597
        %v1599 = vand.u32 %v1598, 4294901760
        %v1600 = vsub.f32 %v1598, %v1599
        %v1601 = vand.u32 %v1600, 4294901760
        %1602 = vmatmul.mubr.f32.gmra.mxu0 %v1601
        %v1603 = vpop.f32.mrf.mxu0
        %v1604 = vadd.f32 0.0, %v1603
        %v1605 = vpop.f32.mrf.mxu0
        %v1606 = vadd.f32 0.0, %v1605
        %v1607 = vand.u32 %v1260, 4294901760
        %v1608 = vsub.f32 %v1260, %v1607
        %v1609 = vand.u32 %v1608, 4294901760
        %v1610 = vsub.f32 %v1608, %v1609
        %v1611 = vand.u32 %v1610, 4294901760
        %1612 = vmatprep.mubr.f32.mxu0 %v1611
        %v1613 = vand.u32 %v1259, 4294901760
        %v1614 = vsub.f32 %v1259, %v1613
        %v1615 = vand.u32 %v1614, 4294901760
        %v1616 = vsub.f32 %v1614, %v1615
        %v1617 = vand.u32 %v1616, 4294901760
        %1618 = vmatmul.mubr.f32.gmra.mxu0 %v1617
        %v1619 = vpop.f32.mrf.mxu0
        %v1620 = vadd.f32 0.0, %v1619
        %v1621 = vpop.f32.mrf.mxu0
        %v1622 = vadd.f32 0.0, %v1621
        %v1623 = vand.u32 %v1264, 4294901760
        %v1624 = vsub.f32 %v1264, %v1623
        %v1625 = vand.u32 %v1624, 4294901760
        %v1626 = vsub.f32 %v1624, %v1625
        %v1627 = vand.u32 %v1626, 4294901760
        %1628 = vmatprep.mubr.f32.mxu0 %v1627
        %v1629 = vand.u32 %v1263, 4294901760
        %v1630 = vsub.f32 %v1263, %v1629
        %v1631 = vand.u32 %v1630, 4294901760
        %v1632 = vsub.f32 %v1630, %v1631
        %v1633 = vand.u32 %v1632, 4294901760
        %1634 = vmatmul.mubr.f32.gmra.mxu0 %v1633
        %v1635 = vpop.f32.mrf.mxu0
        %v1636 = vadd.f32 0.0, %v1635
        %v1637 = vpop.f32.mrf.mxu0
        %v1638 = vadd.f32 0.0, %v1637
        %v1639 = vand.u32 %v1268, 4294901760
        %v1640 = vsub.f32 %v1268, %v1639
        %v1641 = vand.u32 %v1640, 4294901760
        %v1642 = vsub.f32 %v1640, %v1641
        %v1643 = vand.u32 %v1642, 4294901760
        %1644 = vmatprep.mubr.f32.mxu0 %v1643
        %v1645 = vand.u32 %v1267, 4294901760
        %v1646 = vsub.f32 %v1267, %v1645
        %v1647 = vand.u32 %v1646, 4294901760
        %v1648 = vsub.f32 %v1646, %v1647
        %v1649 = vand.u32 %v1648, 4294901760
        %1650 = vmatmul.mubr.f32.gmra.mxu0 %v1649
        %v1651 = vpop.f32.mrf.mxu0
        %v1652 = vadd.f32 0.0, %v1651
        %v1653 = vpop.f32.mrf.mxu0
        %v1654 = vadd.f32 0.0, %v1653
        %1655 = vdwg.mxu0
        %v1656 = vand.u32 %v764, 4294901760
        %v1657 = vsub.f32 %v764, %v1656
        %v1658 = vand.u32 %v1657, 4294901760
        %v1659 = vsub.f32 %v1657, %v1658
        %v1660 = vand.u32 %v1659, 4294901760
        %1661 = vmatprep.subr.mxu0 %v1660
        %v1662 = vand.u32 %v567, 4294901760
        %v1663 = vsub.f32 %v567, %v1662
        %v1664 = vand.u32 %v1663, 4294901760
        %v1665 = vsub.f32 %v1663, %v1664
        %v1666 = vand.u32 %v1665, 4294901760
        %1667 = vmatpush1.msra.mxu0 %v1666
        %v1668 = vand.u32 %v763, 4294901760
        %v1669 = vsub.f32 %v763, %v1668
        %v1670 = vand.u32 %v1669, 4294901760
        %v1671 = vsub.f32 %v1669, %v1670
        %v1672 = vand.u32 %v1671, 4294901760
        %1673 = vmatprep.subr.mxu0 %v1672
        %v1674 = vand.u32 %v566, 4294901760
        %v1675 = vsub.f32 %v566, %v1674
        %v1676 = vand.u32 %v1675, 4294901760
        %v1677 = vsub.f32 %v1675, %v1676
        %v1678 = vand.u32 %v1677, 4294901760
        %1679 = vmatpush1.msra.mxu0 %v1678
        %v1680 = vand.u32 %v762, 4294901760
        %v1681 = vsub.f32 %v762, %v1680
        %v1682 = vand.u32 %v1681, 4294901760
        %v1683 = vsub.f32 %v1681, %v1682
        %v1684 = vand.u32 %v1683, 4294901760
        %1685 = vmatprep.subr.mxu0 %v1684
        %v1686 = vand.u32 %v565, 4294901760
        %v1687 = vsub.f32 %v565, %v1686
        %v1688 = vand.u32 %v1687, 4294901760
        %v1689 = vsub.f32 %v1687, %v1688
        %v1690 = vand.u32 %v1689, 4294901760
        %1691 = vmatpush1.msra.mxu0 %v1690
        %v1692 = vand.u32 %v761, 4294901760
        %v1693 = vsub.f32 %v761, %v1692
        %v1694 = vand.u32 %v1693, 4294901760
        %v1695 = vsub.f32 %v1693, %v1694
        %v1696 = vand.u32 %v1695, 4294901760
        %1697 = vmatprep.subr.mxu0 %v1696
        %v1698 = vand.u32 %v564, 4294901760
        %v1699 = vsub.f32 %v564, %v1698
        %v1700 = vand.u32 %v1699, 4294901760
        %v1701 = vsub.f32 %v1699, %v1700
        %v1702 = vand.u32 %v1701, 4294901760
        %1703 = vmatpush1.msra.mxu0 %v1702
        %v1704 = vand.u32 %v760, 4294901760
        %v1705 = vsub.f32 %v760, %v1704
        %v1706 = vand.u32 %v1705, 4294901760
        %v1707 = vsub.f32 %v1705, %v1706
        %v1708 = vand.u32 %v1707, 4294901760
        %1709 = vmatprep.subr.mxu0 %v1708
        %v1710 = vand.u32 %v563, 4294901760
        %v1711 = vsub.f32 %v563, %v1710
        %v1712 = vand.u32 %v1711, 4294901760
        %v1713 = vsub.f32 %v1711, %v1712
        %v1714 = vand.u32 %v1713, 4294901760
        %1715 = vmatpush1.msra.mxu0 %v1714
        %v1716 = vand.u32 %v759, 4294901760
        %v1717 = vsub.f32 %v759, %v1716
        %v1718 = vand.u32 %v1717, 4294901760
        %v1719 = vsub.f32 %v1717, %v1718
        %v1720 = vand.u32 %v1719, 4294901760
        %1721 = vmatprep.subr.mxu0 %v1720
        %v1722 = vand.u32 %v562, 4294901760
        %v1723 = vsub.f32 %v562, %v1722
        %v1724 = vand.u32 %v1723, 4294901760
        %v1725 = vsub.f32 %v1723, %v1724
        %v1726 = vand.u32 %v1725, 4294901760
        %1727 = vmatpush1.msra.mxu0 %v1726
        %v1728 = vand.u32 %v758, 4294901760
        %v1729 = vsub.f32 %v758, %v1728
        %v1730 = vand.u32 %v1729, 4294901760
        %v1731 = vsub.f32 %v1729, %v1730
        %v1732 = vand.u32 %v1731, 4294901760
        %1733 = vmatprep.subr.mxu0 %v1732
        %v1734 = vand.u32 %v561, 4294901760
        %v1735 = vsub.f32 %v561, %v1734
        %v1736 = vand.u32 %v1735, 4294901760
        %v1737 = vsub.f32 %v1735, %v1736
        %v1738 = vand.u32 %v1737, 4294901760
        %1739 = vmatpush1.msra.mxu0 %v1738
        %v1740 = vand.u32 %v757, 4294901760
        %v1741 = vsub.f32 %v757, %v1740
        %v1742 = vand.u32 %v1741, 4294901760
        %v1743 = vsub.f32 %v1741, %v1742
        %v1744 = vand.u32 %v1743, 4294901760
        %1745 = vmatprep.subr.mxu0 %v1744
        %v1746 = vand.u32 %v560, 4294901760
        %v1747 = vsub.f32 %v560, %v1746
        %v1748 = vand.u32 %v1747, 4294901760
        %v1749 = vsub.f32 %v1747, %v1748
        %v1750 = vand.u32 %v1749, 4294901760
        %1751 = vmatpush1.msra.mxu0 %v1750
        %v1752 = vand.u32 %v756, 4294901760
        %v1753 = vsub.f32 %v756, %v1752
        %v1754 = vand.u32 %v1753, 4294901760
        %v1755 = vsub.f32 %v1753, %v1754
        %v1756 = vand.u32 %v1755, 4294901760
        %1757 = vmatprep.subr.mxu0 %v1756
        %v1758 = vand.u32 %v559, 4294901760
        %v1759 = vsub.f32 %v559, %v1758
        %v1760 = vand.u32 %v1759, 4294901760
        %v1761 = vsub.f32 %v1759, %v1760
        %v1762 = vand.u32 %v1761, 4294901760
        %1763 = vmatpush1.msra.mxu0 %v1762
        %v1764 = vand.u32 %v755, 4294901760
        %v1765 = vsub.f32 %v755, %v1764
        %v1766 = vand.u32 %v1765, 4294901760
        %v1767 = vsub.f32 %v1765, %v1766
        %v1768 = vand.u32 %v1767, 4294901760
        %1769 = vmatprep.subr.mxu0 %v1768
        %v1770 = vand.u32 %v558, 4294901760
        %v1771 = vsub.f32 %v558, %v1770
        %v1772 = vand.u32 %v1771, 4294901760
        %v1773 = vsub.f32 %v1771, %v1772
        %v1774 = vand.u32 %v1773, 4294901760
        %1775 = vmatpush1.msra.mxu0 %v1774
        %v1776 = vand.u32 %v754, 4294901760
        %v1777 = vsub.f32 %v754, %v1776
        %v1778 = vand.u32 %v1777, 4294901760
        %v1779 = vsub.f32 %v1777, %v1778
        %v1780 = vand.u32 %v1779, 4294901760
        %1781 = vmatprep.subr.mxu0 %v1780
        %v1782 = vand.u32 %v557, 4294901760
        %v1783 = vsub.f32 %v557, %v1782
        %v1784 = vand.u32 %v1783, 4294901760
        %v1785 = vsub.f32 %v1783, %v1784
        %v1786 = vand.u32 %v1785, 4294901760
        %1787 = vmatpush1.msra.mxu0 %v1786
        %v1788 = vand.u32 %v753, 4294901760
        %v1789 = vsub.f32 %v753, %v1788
        %v1790 = vand.u32 %v1789, 4294901760
        %v1791 = vsub.f32 %v1789, %v1790
        %v1792 = vand.u32 %v1791, 4294901760
        %1793 = vmatprep.subr.mxu0 %v1792
        %v1794 = vand.u32 %v556, 4294901760
        %v1795 = vsub.f32 %v556, %v1794
        %v1796 = vand.u32 %v1795, 4294901760
        %v1797 = vsub.f32 %v1795, %v1796
        %v1798 = vand.u32 %v1797, 4294901760
        %1799 = vmatpush1.msra.mxu0 %v1798
        %v1800 = vand.u32 %v752, 4294901760
        %v1801 = vsub.f32 %v752, %v1800
        %v1802 = vand.u32 %v1801, 4294901760
        %v1803 = vsub.f32 %v1801, %v1802
        %v1804 = vand.u32 %v1803, 4294901760
        %1805 = vmatprep.subr.mxu0 %v1804
        %v1806 = vand.u32 %v555, 4294901760
        %v1807 = vsub.f32 %v555, %v1806
        %v1808 = vand.u32 %v1807, 4294901760
        %v1809 = vsub.f32 %v1807, %v1808
        %v1810 = vand.u32 %v1809, 4294901760
        %1811 = vmatpush1.msra.mxu0 %v1810
        %v1812 = vand.u32 %v751, 4294901760
        %v1813 = vsub.f32 %v751, %v1812
        %v1814 = vand.u32 %v1813, 4294901760
        %v1815 = vsub.f32 %v1813, %v1814
        %v1816 = vand.u32 %v1815, 4294901760
        %1817 = vmatprep.subr.mxu0 %v1816
        %v1818 = vand.u32 %v554, 4294901760
        %v1819 = vsub.f32 %v554, %v1818
        %v1820 = vand.u32 %v1819, 4294901760
        %v1821 = vsub.f32 %v1819, %v1820
        %v1822 = vand.u32 %v1821, 4294901760
        %1823 = vmatpush1.msra.mxu0 %v1822
        %v1824 = vand.u32 %v750, 4294901760
        %v1825 = vsub.f32 %v750, %v1824
        %v1826 = vand.u32 %v1825, 4294901760
        %v1827 = vsub.f32 %v1825, %v1826
        %v1828 = vand.u32 %v1827, 4294901760
        %1829 = vmatprep.subr.mxu0 %v1828
        %v1830 = vand.u32 %v553, 4294901760
        %v1831 = vsub.f32 %v553, %v1830
        %v1832 = vand.u32 %v1831, 4294901760
        %v1833 = vsub.f32 %v1831, %v1832
        %v1834 = vand.u32 %v1833, 4294901760
        %1835 = vmatpush1.msra.mxu0 %v1834
        %v1836 = vand.u32 %v749, 4294901760
        %v1837 = vsub.f32 %v749, %v1836
        %v1838 = vand.u32 %v1837, 4294901760
        %v1839 = vsub.f32 %v1837, %v1838
        %v1840 = vand.u32 %v1839, 4294901760
        %1841 = vmatprep.subr.mxu0 %v1840
        %v1842 = vand.u32 %v552, 4294901760
        %v1843 = vsub.f32 %v552, %v1842
        %v1844 = vand.u32 %v1843, 4294901760
        %v1845 = vsub.f32 %v1843, %v1844
        %v1846 = vand.u32 %v1845, 4294901760
        %1847 = vmatpush1.msra.mxu0 %v1846
        %v1848 = vand.u32 %v780, 4294901760
        %v1849 = vsub.f32 %v780, %v1848
        %v1850 = vand.u32 %v1849, 4294901760
        %v1851 = vsub.f32 %v1849, %v1850
        %v1852 = vand.u32 %v1851, 4294901760
        %1853 = vmatprep.subr.mxu0 %v1852
        %v1854 = vand.u32 %v583, 4294901760
        %v1855 = vsub.f32 %v583, %v1854
        %v1856 = vand.u32 %v1855, 4294901760
        %v1857 = vsub.f32 %v1855, %v1856
        %v1858 = vand.u32 %v1857, 4294901760
        %1859 = vmatpush2.msra.mxu0 %v1858
        %v1860 = vand.u32 %v779, 4294901760
        %v1861 = vsub.f32 %v779, %v1860
        %v1862 = vand.u32 %v1861, 4294901760
        %v1863 = vsub.f32 %v1861, %v1862
        %v1864 = vand.u32 %v1863, 4294901760
        %1865 = vmatprep.subr.mxu0 %v1864
        %v1866 = vand.u32 %v582, 4294901760
        %v1867 = vsub.f32 %v582, %v1866
        %v1868 = vand.u32 %v1867, 4294901760
        %v1869 = vsub.f32 %v1867, %v1868
        %v1870 = vand.u32 %v1869, 4294901760
        %1871 = vmatpush2.msra.mxu0 %v1870
        %v1872 = vand.u32 %v778, 4294901760
        %v1873 = vsub.f32 %v778, %v1872
        %v1874 = vand.u32 %v1873, 4294901760
        %v1875 = vsub.f32 %v1873, %v1874
        %v1876 = vand.u32 %v1875, 4294901760
        %1877 = vmatprep.subr.mxu0 %v1876
        %v1878 = vand.u32 %v581, 4294901760
        %v1879 = vsub.f32 %v581, %v1878
        %v1880 = vand.u32 %v1879, 4294901760
        %v1881 = vsub.f32 %v1879, %v1880
        %v1882 = vand.u32 %v1881, 4294901760
        %1883 = vmatpush2.msra.mxu0 %v1882
        %v1884 = vand.u32 %v777, 4294901760
        %v1885 = vsub.f32 %v777, %v1884
        %v1886 = vand.u32 %v1885, 4294901760
        %v1887 = vsub.f32 %v1885, %v1886
        %v1888 = vand.u32 %v1887, 4294901760
        %1889 = vmatprep.subr.mxu0 %v1888
        %v1890 = vand.u32 %v580, 4294901760
        %v1891 = vsub.f32 %v580, %v1890
        %v1892 = vand.u32 %v1891, 4294901760
        %v1893 = vsub.f32 %v1891, %v1892
        %v1894 = vand.u32 %v1893, 4294901760
        %1895 = vmatpush2.msra.mxu0 %v1894
        %v1896 = vand.u32 %v776, 4294901760
        %v1897 = vsub.f32 %v776, %v1896
        %v1898 = vand.u32 %v1897, 4294901760
        %v1899 = vsub.f32 %v1897, %v1898
        %v1900 = vand.u32 %v1899, 4294901760
        %1901 = vmatprep.subr.mxu0 %v1900
        %v1902 = vand.u32 %v579, 4294901760
        %v1903 = vsub.f32 %v579, %v1902
        %v1904 = vand.u32 %v1903, 4294901760
        %v1905 = vsub.f32 %v1903, %v1904
        %v1906 = vand.u32 %v1905, 4294901760
        %1907 = vmatpush2.msra.mxu0 %v1906
        %v1908 = vand.u32 %v775, 4294901760
        %v1909 = vsub.f32 %v775, %v1908
        %v1910 = vand.u32 %v1909, 4294901760
        %v1911 = vsub.f32 %v1909, %v1910
        %v1912 = vand.u32 %v1911, 4294901760
        %1913 = vmatprep.subr.mxu0 %v1912
        %v1914 = vand.u32 %v578, 4294901760
        %v1915 = vsub.f32 %v578, %v1914
        %v1916 = vand.u32 %v1915, 4294901760
        %v1917 = vsub.f32 %v1915, %v1916
        %v1918 = vand.u32 %v1917, 4294901760
        %1919 = vmatpush2.msra.mxu0 %v1918
        %v1920 = vand.u32 %v774, 4294901760
        %v1921 = vsub.f32 %v774, %v1920
        %v1922 = vand.u32 %v1921, 4294901760
        %v1923 = vsub.f32 %v1921, %v1922
        %v1924 = vand.u32 %v1923, 4294901760
        %1925 = vmatprep.subr.mxu0 %v1924
        %v1926 = vand.u32 %v577, 4294901760
        %v1927 = vsub.f32 %v577, %v1926
        %v1928 = vand.u32 %v1927, 4294901760
        %v1929 = vsub.f32 %v1927, %v1928
        %v1930 = vand.u32 %v1929, 4294901760
        %1931 = vmatpush2.msra.mxu0 %v1930
        %v1932 = vand.u32 %v773, 4294901760
        %v1933 = vsub.f32 %v773, %v1932
        %v1934 = vand.u32 %v1933, 4294901760
        %v1935 = vsub.f32 %v1933, %v1934
        %v1936 = vand.u32 %v1935, 4294901760
        %1937 = vmatprep.subr.mxu0 %v1936
        %v1938 = vand.u32 %v576, 4294901760
        %v1939 = vsub.f32 %v576, %v1938
        %v1940 = vand.u32 %v1939, 4294901760
        %v1941 = vsub.f32 %v1939, %v1940
        %v1942 = vand.u32 %v1941, 4294901760
        %1943 = vmatpush2.msra.mxu0 %v1942
        %v1944 = vand.u32 %v772, 4294901760
        %v1945 = vsub.f32 %v772, %v1944
        %v1946 = vand.u32 %v1945, 4294901760
        %v1947 = vsub.f32 %v1945, %v1946
        %v1948 = vand.u32 %v1947, 4294901760
        %1949 = vmatprep.subr.mxu0 %v1948
        %v1950 = vand.u32 %v575, 4294901760
        %v1951 = vsub.f32 %v575, %v1950
        %v1952 = vand.u32 %v1951, 4294901760
        %v1953 = vsub.f32 %v1951, %v1952
        %v1954 = vand.u32 %v1953, 4294901760
        %1955 = vmatpush2.msra.mxu0 %v1954
        %v1956 = vand.u32 %v771, 4294901760
        %v1957 = vsub.f32 %v771, %v1956
        %v1958 = vand.u32 %v1957, 4294901760
        %v1959 = vsub.f32 %v1957, %v1958
        %v1960 = vand.u32 %v1959, 4294901760
        %1961 = vmatprep.subr.mxu0 %v1960
        %v1962 = vand.u32 %v574, 4294901760
        %v1963 = vsub.f32 %v574, %v1962
        %v1964 = vand.u32 %v1963, 4294901760
        %v1965 = vsub.f32 %v1963, %v1964
        %v1966 = vand.u32 %v1965, 4294901760
        %1967 = vmatpush2.msra.mxu0 %v1966
        %v1968 = vand.u32 %v770, 4294901760
        %v1969 = vsub.f32 %v770, %v1968
        %v1970 = vand.u32 %v1969, 4294901760
        %v1971 = vsub.f32 %v1969, %v1970
        %v1972 = vand.u32 %v1971, 4294901760
        %1973 = vmatprep.subr.mxu0 %v1972
        %v1974 = vand.u32 %v573, 4294901760
        %v1975 = vsub.f32 %v573, %v1974
        %v1976 = vand.u32 %v1975, 4294901760
        %v1977 = vsub.f32 %v1975, %v1976
        %v1978 = vand.u32 %v1977, 4294901760
        %1979 = vmatpush2.msra.mxu0 %v1978
        %v1980 = vand.u32 %v769, 4294901760
        %v1981 = vsub.f32 %v769, %v1980
        %v1982 = vand.u32 %v1981, 4294901760
        %v1983 = vsub.f32 %v1981, %v1982
        %v1984 = vand.u32 %v1983, 4294901760
        %1985 = vmatprep.subr.mxu0 %v1984
        %v1986 = vand.u32 %v572, 4294901760
        %v1987 = vsub.f32 %v572, %v1986
        %v1988 = vand.u32 %v1987, 4294901760
        %v1989 = vsub.f32 %v1987, %v1988
        %v1990 = vand.u32 %v1989, 4294901760
        %1991 = vmatpush2.msra.mxu0 %v1990
        %v1992 = vand.u32 %v768, 4294901760
        %v1993 = vsub.f32 %v768, %v1992
        %v1994 = vand.u32 %v1993, 4294901760
        %v1995 = vsub.f32 %v1993, %v1994
        %v1996 = vand.u32 %v1995, 4294901760
        %1997 = vmatprep.subr.mxu0 %v1996
        %v1998 = vand.u32 %v571, 4294901760
        %v1999 = vsub.f32 %v571, %v1998
        %v2000 = vand.u32 %v1999, 4294901760
        %v2001 = vsub.f32 %v1999, %v2000
        %v2002 = vand.u32 %v2001, 4294901760
        %2003 = vmatpush2.msra.mxu0 %v2002
        %v2004 = vand.u32 %v767, 4294901760
        %v2005 = vsub.f32 %v767, %v2004
        %v2006 = vand.u32 %v2005, 4294901760
        %v2007 = vsub.f32 %v2005, %v2006
        %v2008 = vand.u32 %v2007, 4294901760
        %2009 = vmatprep.subr.mxu0 %v2008
        %v2010 = vand.u32 %v570, 4294901760
        %v2011 = vsub.f32 %v570, %v2010
        %v2012 = vand.u32 %v2011, 4294901760
        %v2013 = vsub.f32 %v2011, %v2012
        %v2014 = vand.u32 %v2013, 4294901760
        %2015 = vmatpush2.msra.mxu0 %v2014
        %v2016 = vand.u32 %v766, 4294901760
        %v2017 = vsub.f32 %v766, %v2016
        %v2018 = vand.u32 %v2017, 4294901760
        %v2019 = vsub.f32 %v2017, %v2018
        %v2020 = vand.u32 %v2019, 4294901760
        %2021 = vmatprep.subr.mxu0 %v2020
        %v2022 = vand.u32 %v569, 4294901760
        %v2023 = vsub.f32 %v569, %v2022
        %v2024 = vand.u32 %v2023, 4294901760
        %v2025 = vsub.f32 %v2023, %v2024
        %v2026 = vand.u32 %v2025, 4294901760
        %2027 = vmatpush2.msra.mxu0 %v2026
        %v2028 = vand.u32 %v765, 4294901760
        %v2029 = vsub.f32 %v765, %v2028
        %v2030 = vand.u32 %v2029, 4294901760
        %v2031 = vsub.f32 %v2029, %v2030
        %v2032 = vand.u32 %v2031, 4294901760
        %2033 = vmatprep.subr.mxu0 %v2032
        %v2034 = vand.u32 %v568, 4294901760
        %v2035 = vsub.f32 %v568, %v2034
        %v2036 = vand.u32 %v2035, 4294901760
        %v2037 = vsub.f32 %v2035, %v2036
        %v2038 = vand.u32 %v2037, 4294901760
        %2039 = vmatpush2.msra.mxu0 %v2038
        %v2040 = vand.u32 %v1208, 4294901760
        %2041 = vmatprep.mubr.f32.mxu0 %v2040
        %v2042 = vand.u32 %v1207, 4294901760
        %2043 = vmatmul.mubr.f32.gmra.mxu0 %v2042
        %v2044 = vpop.f32.mrf.mxu0
        %v2045 = vadd.f32 %v1412, %v2044
        %v2046 = vpop.f32.mrf.mxu0
        %v2047 = vadd.f32 %v1414, %v2046
        %v2048 = vand.u32 %v1212, 4294901760
        %2049 = vmatprep.mubr.f32.mxu0 %v2048
        %v2050 = vand.u32 %v1211, 4294901760
        %2051 = vmatmul.mubr.f32.gmra.mxu0 %v2050
        %v2052 = vpop.f32.mrf.mxu0
        %v2053 = vadd.f32 %v1428, %v2052
        %v2054 = vpop.f32.mrf.mxu0
        %v2055 = vadd.f32 %v1430, %v2054
        %v2056 = vand.u32 %v1216, 4294901760
        %2057 = vmatprep.mubr.f32.mxu0 %v2056
        %v2058 = vand.u32 %v1215, 4294901760
        %2059 = vmatmul.mubr.f32.gmra.mxu0 %v2058
        %v2060 = vpop.f32.mrf.mxu0
        %v2061 = vadd.f32 %v1444, %v2060
        %v2062 = vpop.f32.mrf.mxu0
        %v2063 = vadd.f32 %v1446, %v2062
        %v2064 = vand.u32 %v1220, 4294901760
        %2065 = vmatprep.mubr.f32.mxu0 %v2064
        %v2066 = vand.u32 %v1219, 4294901760
        %2067 = vmatmul.mubr.f32.gmra.mxu0 %v2066
        %v2068 = vpop.f32.mrf.mxu0
        %v2069 = vadd.f32 %v1460, %v2068
        %v2070 = vpop.f32.mrf.mxu0
        %v2071 = vadd.f32 %v1462, %v2070
        %v2072 = vand.u32 %v1224, 4294901760
        %2073 = vmatprep.mubr.f32.mxu0 %v2072
        %v2074 = vand.u32 %v1223, 4294901760
        %2075 = vmatmul.mubr.f32.gmra.mxu0 %v2074
        %v2076 = vpop.f32.mrf.mxu0
        %v2077 = vadd.f32 %v1476, %v2076
        %v2078 = vpop.f32.mrf.mxu0
        %v2079 = vadd.f32 %v1478, %v2078
        %v2080 = vand.u32 %v1228, 4294901760
        %2081 = vmatprep.mubr.f32.mxu0 %v2080
        %v2082 = vand.u32 %v1227, 4294901760
        %2083 = vmatmul.mubr.f32.gmra.mxu0 %v2082
        %v2084 = vpop.f32.mrf.mxu0
        %v2085 = vadd.f32 %v1492, %v2084
        %v2086 = vpop.f32.mrf.mxu0
        %v2087 = vadd.f32 %v1494, %v2086
        %v2088 = vand.u32 %v1232, 4294901760
        %2089 = vmatprep.mubr.f32.mxu0 %v2088
        %v2090 = vand.u32 %v1231, 4294901760
        %2091 = vmatmul.mubr.f32.gmra.mxu0 %v2090
        %v2092 = vpop.f32.mrf.mxu0
        %v2093 = vadd.f32 %v1508, %v2092
        %v2094 = vpop.f32.mrf.mxu0
        %v2095 = vadd.f32 %v1510, %v2094
        %v2096 = vand.u32 %v1236, 4294901760
        %2097 = vmatprep.mubr.f32.mxu0 %v2096
        %v2098 = vand.u32 %v1235, 4294901760
        %2099 = vmatmul.mubr.f32.gmra.mxu0 %v2098
        %v2100 = vpop.f32.mrf.mxu0
        %v2101 = vadd.f32 %v1524, %v2100
        %v2102 = vpop.f32.mrf.mxu0
        %v2103 = vadd.f32 %v1526, %v2102
        %v2104 = vand.u32 %v1240, 4294901760
        %2105 = vmatprep.mubr.f32.mxu0 %v2104
        %v2106 = vand.u32 %v1239, 4294901760
        %2107 = vmatmul.mubr.f32.gmra.mxu0 %v2106
        %v2108 = vpop.f32.mrf.mxu0
        %v2109 = vadd.f32 %v1540, %v2108
        %v2110 = vpop.f32.mrf.mxu0
        %v2111 = vadd.f32 %v1542, %v2110
        %v2112 = vand.u32 %v1244, 4294901760
        %2113 = vmatprep.mubr.f32.mxu0 %v2112
        %v2114 = vand.u32 %v1243, 4294901760
        %2115 = vmatmul.mubr.f32.gmra.mxu0 %v2114
        %v2116 = vpop.f32.mrf.mxu0
        %v2117 = vadd.f32 %v1556, %v2116
        %v2118 = vpop.f32.mrf.mxu0
        %v2119 = vadd.f32 %v1558, %v2118
        %v2120 = vand.u32 %v1248, 4294901760
        %2121 = vmatprep.mubr.f32.mxu0 %v2120
        %v2122 = vand.u32 %v1247, 4294901760
        %2123 = vmatmul.mubr.f32.gmra.mxu0 %v2122
        %v2124 = vpop.f32.mrf.mxu0
        %v2125 = vadd.f32 %v1572, %v2124
        %v2126 = vpop.f32.mrf.mxu0
        %v2127 = vadd.f32 %v1574, %v2126
        %v2128 = vand.u32 %v1252, 4294901760
        %2129 = vmatprep.mubr.f32.mxu0 %v2128
        %v2130 = vand.u32 %v1251, 4294901760
        %2131 = vmatmul.mubr.f32.gmra.mxu0 %v2130
        %v2132 = vpop.f32.mrf.mxu0
        %v2133 = vadd.f32 %v1588, %v2132
        %v2134 = vpop.f32.mrf.mxu0
        %v2135 = vadd.f32 %v1590, %v2134
        %v2136 = vand.u32 %v1256, 4294901760
        %2137 = vmatprep.mubr.f32.mxu0 %v2136
        %v2138 = vand.u32 %v1255, 4294901760
        %2139 = vmatmul.mubr.f32.gmra.mxu0 %v2138
        %v2140 = vpop.f32.mrf.mxu0
        %v2141 = vadd.f32 %v1604, %v2140
        %v2142 = vpop.f32.mrf.mxu0
        %v2143 = vadd.f32 %v1606, %v2142
        %v2144 = vand.u32 %v1260, 4294901760
        %2145 = vmatprep.mubr.f32.mxu0 %v2144
        %v2146 = vand.u32 %v1259, 4294901760
        %2147 = vmatmul.mubr.f32.gmra.mxu0 %v2146
        %v2148 = vpop.f32.mrf.mxu0
        %v2149 = vadd.f32 %v1620, %v2148
        %v2150 = vpop.f32.mrf.mxu0
        %v2151 = vadd.f32 %v1622, %v2150
        %v2152 = vand.u32 %v1264, 4294901760
        %2153 = vmatprep.mubr.f32.mxu0 %v2152
        %v2154 = vand.u32 %v1263, 4294901760
        %2155 = vmatmul.mubr.f32.gmra.mxu0 %v2154
        %v2156 = vpop.f32.mrf.mxu0
        %v2157 = vadd.f32 %v1636, %v2156
        %v2158 = vpop.f32.mrf.mxu0
        %v2159 = vadd.f32 %v1638, %v2158
        %v2160 = vand.u32 %v1268, 4294901760
        %2161 = vmatprep.mubr.f32.mxu0 %v2160
        %v2162 = vand.u32 %v1267, 4294901760
        %2163 = vmatmul.mubr.f32.gmra.mxu0 %v2162
        %v2164 = vpop.f32.mrf.mxu0
        %v2165 = vadd.f32 %v1652, %v2164
        %v2166 = vpop.f32.mrf.mxu0
        %v2167 = vadd.f32 %v1654, %v2166
        %2168 = vdwg.mxu0
        %v2169 = vand.u32 %v764, 4294901760
        %v2170 = vsub.f32 %v764, %v2169
        %2171 = vmatprep.subr.mxu0 %v2170
        %v2172 = vand.u32 %v567, 4294901760
        %v2173 = vsub.f32 %v567, %v2172
        %2174 = vmatpush1.msra.mxu0 %v2173
        %v2175 = vand.u32 %v763, 4294901760
        %v2176 = vsub.f32 %v763, %v2175
        %2177 = vmatprep.subr.mxu0 %v2176
        %v2178 = vand.u32 %v566, 4294901760
        %v2179 = vsub.f32 %v566, %v2178
        %2180 = vmatpush1.msra.mxu0 %v2179
        %v2181 = vand.u32 %v762, 4294901760
        %v2182 = vsub.f32 %v762, %v2181
        %2183 = vmatprep.subr.mxu0 %v2182
        %v2184 = vand.u32 %v565, 4294901760
        %v2185 = vsub.f32 %v565, %v2184
        %2186 = vmatpush1.msra.mxu0 %v2185
        %v2187 = vand.u32 %v761, 4294901760
        %v2188 = vsub.f32 %v761, %v2187
        %2189 = vmatprep.subr.mxu0 %v2188
        %v2190 = vand.u32 %v564, 4294901760
        %v2191 = vsub.f32 %v564, %v2190
        %2192 = vmatpush1.msra.mxu0 %v2191
        %v2193 = vand.u32 %v760, 4294901760
        %v2194 = vsub.f32 %v760, %v2193
        %2195 = vmatprep.subr.mxu0 %v2194
        %v2196 = vand.u32 %v563, 4294901760
        %v2197 = vsub.f32 %v563, %v2196
        %2198 = vmatpush1.msra.mxu0 %v2197
        %v2199 = vand.u32 %v759, 4294901760
        %v2200 = vsub.f32 %v759, %v2199
        %2201 = vmatprep.subr.mxu0 %v2200
        %v2202 = vand.u32 %v562, 4294901760
        %v2203 = vsub.f32 %v562, %v2202
        %2204 = vmatpush1.msra.mxu0 %v2203
        %v2205 = vand.u32 %v758, 4294901760
        %v2206 = vsub.f32 %v758, %v2205
        %2207 = vmatprep.subr.mxu0 %v2206
        %v2208 = vand.u32 %v561, 4294901760
        %v2209 = vsub.f32 %v561, %v2208
        %2210 = vmatpush1.msra.mxu0 %v2209
        %v2211 = vand.u32 %v757, 4294901760
        %v2212 = vsub.f32 %v757, %v2211
        %2213 = vmatprep.subr.mxu0 %v2212
        %v2214 = vand.u32 %v560, 4294901760
        %v2215 = vsub.f32 %v560, %v2214
        %2216 = vmatpush1.msra.mxu0 %v2215
        %v2217 = vand.u32 %v756, 4294901760
        %v2218 = vsub.f32 %v756, %v2217
        %2219 = vmatprep.subr.mxu0 %v2218
        %v2220 = vand.u32 %v559, 4294901760
        %v2221 = vsub.f32 %v559, %v2220
        %2222 = vmatpush1.msra.mxu0 %v2221
        %v2223 = vand.u32 %v755, 4294901760
        %v2224 = vsub.f32 %v755, %v2223
        %2225 = vmatprep.subr.mxu0 %v2224
        %v2226 = vand.u32 %v558, 4294901760
        %v2227 = vsub.f32 %v558, %v2226
        %2228 = vmatpush1.msra.mxu0 %v2227
        %v2229 = vand.u32 %v754, 4294901760
        %v2230 = vsub.f32 %v754, %v2229
        %2231 = vmatprep.subr.mxu0 %v2230
        %v2232 = vand.u32 %v557, 4294901760
        %v2233 = vsub.f32 %v557, %v2232
        %2234 = vmatpush1.msra.mxu0 %v2233
        %v2235 = vand.u32 %v753, 4294901760
        %v2236 = vsub.f32 %v753, %v2235
        %2237 = vmatprep.subr.mxu0 %v2236
        %v2238 = vand.u32 %v556, 4294901760
        %v2239 = vsub.f32 %v556, %v2238
        %2240 = vmatpush1.msra.mxu0 %v2239
        %v2241 = vand.u32 %v752, 4294901760
        %v2242 = vsub.f32 %v752, %v2241
        %2243 = vmatprep.subr.mxu0 %v2242
        %v2244 = vand.u32 %v555, 4294901760
        %v2245 = vsub.f32 %v555, %v2244
        %2246 = vmatpush1.msra.mxu0 %v2245
        %v2247 = vand.u32 %v751, 4294901760
        %v2248 = vsub.f32 %v751, %v2247
        %2249 = vmatprep.subr.mxu0 %v2248
        %v2250 = vand.u32 %v554, 4294901760
        %v2251 = vsub.f32 %v554, %v2250
        %2252 = vmatpush1.msra.mxu0 %v2251
        %v2253 = vand.u32 %v750, 4294901760
        %v2254 = vsub.f32 %v750, %v2253
        %2255 = vmatprep.subr.mxu0 %v2254
        %v2256 = vand.u32 %v553, 4294901760
        %v2257 = vsub.f32 %v553, %v2256
        %2258 = vmatpush1.msra.mxu0 %v2257
        %v2259 = vand.u32 %v749, 4294901760
        %v2260 = vsub.f32 %v749, %v2259
        %2261 = vmatprep.subr.mxu0 %v2260
        %v2262 = vand.u32 %v552, 4294901760
        %v2263 = vsub.f32 %v552, %v2262
        %2264 = vmatpush1.msra.mxu0 %v2263
        %v2265 = vand.u32 %v780, 4294901760
        %v2266 = vsub.f32 %v780, %v2265
        %2267 = vmatprep.subr.mxu0 %v2266
        %v2268 = vand.u32 %v583, 4294901760
        %v2269 = vsub.f32 %v583, %v2268
        %2270 = vmatpush2.msra.mxu0 %v2269
        %v2271 = vand.u32 %v779, 4294901760
        %v2272 = vsub.f32 %v779, %v2271
        %2273 = vmatprep.subr.mxu0 %v2272
        %v2274 = vand.u32 %v582, 4294901760
        %v2275 = vsub.f32 %v582, %v2274
        %2276 = vmatpush2.msra.mxu0 %v2275
        %v2277 = vand.u32 %v778, 4294901760
        %v2278 = vsub.f32 %v778, %v2277
        %2279 = vmatprep.subr.mxu0 %v2278
        %v2280 = vand.u32 %v581, 4294901760
        %v2281 = vsub.f32 %v581, %v2280
        %2282 = vmatpush2.msra.mxu0 %v2281
        %v2283 = vand.u32 %v777, 4294901760
        %v2284 = vsub.f32 %v777, %v2283
        %2285 = vmatprep.subr.mxu0 %v2284
        %v2286 = vand.u32 %v580, 4294901760
        %v2287 = vsub.f32 %v580, %v2286
        %2288 = vmatpush2.msra.mxu0 %v2287
        %v2289 = vand.u32 %v776, 4294901760
        %v2290 = vsub.f32 %v776, %v2289
        %2291 = vmatprep.subr.mxu0 %v2290
        %v2292 = vand.u32 %v579, 4294901760
        %v2293 = vsub.f32 %v579, %v2292
        %2294 = vmatpush2.msra.mxu0 %v2293
        %v2295 = vand.u32 %v775, 4294901760
        %v2296 = vsub.f32 %v775, %v2295
        %2297 = vmatprep.subr.mxu0 %v2296
        %v2298 = vand.u32 %v578, 4294901760
        %v2299 = vsub.f32 %v578, %v2298
        %2300 = vmatpush2.msra.mxu0 %v2299
        %v2301 = vand.u32 %v774, 4294901760
        %v2302 = vsub.f32 %v774, %v2301
        %2303 = vmatprep.subr.mxu0 %v2302
        %v2304 = vand.u32 %v577, 4294901760
        %v2305 = vsub.f32 %v577, %v2304
        %2306 = vmatpush2.msra.mxu0 %v2305
        %v2307 = vand.u32 %v773, 4294901760
        %v2308 = vsub.f32 %v773, %v2307
        %2309 = vmatprep.subr.mxu0 %v2308
        %v2310 = vand.u32 %v576, 4294901760
        %v2311 = vsub.f32 %v576, %v2310
        %2312 = vmatpush2.msra.mxu0 %v2311
        %v2313 = vand.u32 %v772, 4294901760
        %v2314 = vsub.f32 %v772, %v2313
        %2315 = vmatprep.subr.mxu0 %v2314
        %v2316 = vand.u32 %v575, 4294901760
        %v2317 = vsub.f32 %v575, %v2316
        %2318 = vmatpush2.msra.mxu0 %v2317
        %v2319 = vand.u32 %v771, 4294901760
        %v2320 = vsub.f32 %v771, %v2319
        %2321 = vmatprep.subr.mxu0 %v2320
        %v2322 = vand.u32 %v574, 4294901760
        %v2323 = vsub.f32 %v574, %v2322
        %2324 = vmatpush2.msra.mxu0 %v2323
        %v2325 = vand.u32 %v770, 4294901760
        %v2326 = vsub.f32 %v770, %v2325
        %2327 = vmatprep.subr.mxu0 %v2326
        %v2328 = vand.u32 %v573, 4294901760
        %v2329 = vsub.f32 %v573, %v2328
        %2330 = vmatpush2.msra.mxu0 %v2329
        %v2331 = vand.u32 %v769, 4294901760
        %v2332 = vsub.f32 %v769, %v2331
        %2333 = vmatprep.subr.mxu0 %v2332
        %v2334 = vand.u32 %v572, 4294901760
        %v2335 = vsub.f32 %v572, %v2334
        %2336 = vmatpush2.msra.mxu0 %v2335
        %v2337 = vand.u32 %v768, 4294901760
        %v2338 = vsub.f32 %v768, %v2337
        %2339 = vmatprep.subr.mxu0 %v2338
        %v2340 = vand.u32 %v571, 4294901760
        %v2341 = vsub.f32 %v571, %v2340
        %2342 = vmatpush2.msra.mxu0 %v2341
        %v2343 = vand.u32 %v767, 4294901760
        %v2344 = vsub.f32 %v767, %v2343
        %2345 = vmatprep.subr.mxu0 %v2344
        %v2346 = vand.u32 %v570, 4294901760
        %v2347 = vsub.f32 %v570, %v2346
        %2348 = vmatpush2.msra.mxu0 %v2347
        %v2349 = vand.u32 %v766, 4294901760
        %v2350 = vsub.f32 %v766, %v2349
        %2351 = vmatprep.subr.mxu0 %v2350
        %v2352 = vand.u32 %v569, 4294901760
        %v2353 = vsub.f32 %v569, %v2352
        %2354 = vmatpush2.msra.mxu0 %v2353
        %v2355 = vand.u32 %v765, 4294901760
        %v2356 = vsub.f32 %v765, %v2355
        %2357 = vmatprep.subr.mxu0 %v2356
        %v2358 = vand.u32 %v568, 4294901760
        %v2359 = vsub.f32 %v568, %v2358
        %2360 = vmatpush2.msra.mxu0 %v2359
        %v2361 = vand.u32 %v1208, 4294901760
        %v2362 = vsub.f32 %v1208, %v2361
        %2363 = vmatprep.mubr.f32.mxu0 %v2362
        %v2364 = vand.u32 %v1207, 4294901760
        %v2365 = vsub.f32 %v1207, %v2364
        %2366 = vmatmul.mubr.f32.gmra.mxu0 %v2365
        %v2367 = vpop.f32.mrf.mxu0
        %v2368 = vadd.f32 %v2045, %v2367
        %v2369 = vpop.f32.mrf.mxu0
        %v2370 = vadd.f32 %v2047, %v2369
        %v2371 = vand.u32 %v1212, 4294901760
        %v2372 = vsub.f32 %v1212, %v2371
        %2373 = vmatprep.mubr.f32.mxu0 %v2372
        %v2374 = vand.u32 %v1211, 4294901760
        %v2375 = vsub.f32 %v1211, %v2374
        %2376 = vmatmul.mubr.f32.gmra.mxu0 %v2375
        %v2377 = vpop.f32.mrf.mxu0
        %v2378 = vadd.f32 %v2053, %v2377
        %v2379 = vpop.f32.mrf.mxu0
        %v2380 = vadd.f32 %v2055, %v2379
        %v2381 = vand.u32 %v1216, 4294901760
        %v2382 = vsub.f32 %v1216, %v2381
        %2383 = vmatprep.mubr.f32.mxu0 %v2382
        %v2384 = vand.u32 %v1215, 4294901760
        %v2385 = vsub.f32 %v1215, %v2384
        %2386 = vmatmul.mubr.f32.gmra.mxu0 %v2385
        %v2387 = vpop.f32.mrf.mxu0
        %v2388 = vadd.f32 %v2061, %v2387
        %v2389 = vpop.f32.mrf.mxu0
        %v2390 = vadd.f32 %v2063, %v2389
        %v2391 = vand.u32 %v1220, 4294901760
        %v2392 = vsub.f32 %v1220, %v2391
        %2393 = vmatprep.mubr.f32.mxu0 %v2392
        %v2394 = vand.u32 %v1219, 4294901760
        %v2395 = vsub.f32 %v1219, %v2394
        %2396 = vmatmul.mubr.f32.gmra.mxu0 %v2395
        %v2397 = vpop.f32.mrf.mxu0
        %v2398 = vadd.f32 %v2069, %v2397
        %v2399 = vpop.f32.mrf.mxu0
        %v2400 = vadd.f32 %v2071, %v2399
        %v2401 = vand.u32 %v1224, 4294901760
        %v2402 = vsub.f32 %v1224, %v2401
        %2403 = vmatprep.mubr.f32.mxu0 %v2402
        %v2404 = vand.u32 %v1223, 4294901760
        %v2405 = vsub.f32 %v1223, %v2404
        %2406 = vmatmul.mubr.f32.gmra.mxu0 %v2405
        %v2407 = vpop.f32.mrf.mxu0
        %v2408 = vadd.f32 %v2077, %v2407
        %v2409 = vpop.f32.mrf.mxu0
        %v2410 = vadd.f32 %v2079, %v2409
        %v2411 = vand.u32 %v1228, 4294901760
        %v2412 = vsub.f32 %v1228, %v2411
        %2413 = vmatprep.mubr.f32.mxu0 %v2412
        %v2414 = vand.u32 %v1227, 4294901760
        %v2415 = vsub.f32 %v1227, %v2414
        %2416 = vmatmul.mubr.f32.gmra.mxu0 %v2415
        %v2417 = vpop.f32.mrf.mxu0
        %v2418 = vadd.f32 %v2085, %v2417
        %v2419 = vpop.f32.mrf.mxu0
        %v2420 = vadd.f32 %v2087, %v2419
        %v2421 = vand.u32 %v1232, 4294901760
        %v2422 = vsub.f32 %v1232, %v2421
        %2423 = vmatprep.mubr.f32.mxu0 %v2422
        %v2424 = vand.u32 %v1231, 4294901760
        %v2425 = vsub.f32 %v1231, %v2424
        %2426 = vmatmul.mubr.f32.gmra.mxu0 %v2425
        %v2427 = vpop.f32.mrf.mxu0
        %v2428 = vadd.f32 %v2093, %v2427
        %v2429 = vpop.f32.mrf.mxu0
        %v2430 = vadd.f32 %v2095, %v2429
        %v2431 = vand.u32 %v1236, 4294901760
        %v2432 = vsub.f32 %v1236, %v2431
        %2433 = vmatprep.mubr.f32.mxu0 %v2432
        %v2434 = vand.u32 %v1235, 4294901760
        %v2435 = vsub.f32 %v1235, %v2434
        %2436 = vmatmul.mubr.f32.gmra.mxu0 %v2435
        %v2437 = vpop.f32.mrf.mxu0
        %v2438 = vadd.f32 %v2101, %v2437
        %v2439 = vpop.f32.mrf.mxu0
        %v2440 = vadd.f32 %v2103, %v2439
        %v2441 = vand.u32 %v1240, 4294901760
        %v2442 = vsub.f32 %v1240, %v2441
        %2443 = vmatprep.mubr.f32.mxu0 %v2442
        %v2444 = vand.u32 %v1239, 4294901760
        %v2445 = vsub.f32 %v1239, %v2444
        %2446 = vmatmul.mubr.f32.gmra.mxu0 %v2445
        %v2447 = vpop.f32.mrf.mxu0
        %v2448 = vadd.f32 %v2109, %v2447
        %v2449 = vpop.f32.mrf.mxu0
        %v2450 = vadd.f32 %v2111, %v2449
        %v2451 = vand.u32 %v1244, 4294901760
        %v2452 = vsub.f32 %v1244, %v2451
        %2453 = vmatprep.mubr.f32.mxu0 %v2452
        %v2454 = vand.u32 %v1243, 4294901760
        %v2455 = vsub.f32 %v1243, %v2454
        %2456 = vmatmul.mubr.f32.gmra.mxu0 %v2455
        %v2457 = vpop.f32.mrf.mxu0
        %v2458 = vadd.f32 %v2117, %v2457
        %v2459 = vpop.f32.mrf.mxu0
        %v2460 = vadd.f32 %v2119, %v2459
        %v2461 = vand.u32 %v1248, 4294901760
        %v2462 = vsub.f32 %v1248, %v2461
        %2463 = vmatprep.mubr.f32.mxu0 %v2462
        %v2464 = vand.u32 %v1247, 4294901760
        %v2465 = vsub.f32 %v1247, %v2464
        %2466 = vmatmul.mubr.f32.gmra.mxu0 %v2465
        %v2467 = vpop.f32.mrf.mxu0
        %v2468 = vadd.f32 %v2125, %v2467
        %v2469 = vpop.f32.mrf.mxu0
        %v2470 = vadd.f32 %v2127, %v2469
        %v2471 = vand.u32 %v1252, 4294901760
        %v2472 = vsub.f32 %v1252, %v2471
        %2473 = vmatprep.mubr.f32.mxu0 %v2472
        %v2474 = vand.u32 %v1251, 4294901760
        %v2475 = vsub.f32 %v1251, %v2474
        %2476 = vmatmul.mubr.f32.gmra.mxu0 %v2475
        %v2477 = vpop.f32.mrf.mxu0
        %v2478 = vadd.f32 %v2133, %v2477
        %v2479 = vpop.f32.mrf.mxu0
        %v2480 = vadd.f32 %v2135, %v2479
        %v2481 = vand.u32 %v1256, 4294901760
        %v2482 = vsub.f32 %v1256, %v2481
        %2483 = vmatprep.mubr.f32.mxu0 %v2482
        %v2484 = vand.u32 %v1255, 4294901760
        %v2485 = vsub.f32 %v1255, %v2484
        %2486 = vmatmul.mubr.f32.gmra.mxu0 %v2485
        %v2487 = vpop.f32.mrf.mxu0
        %v2488 = vadd.f32 %v2141, %v2487
        %v2489 = vpop.f32.mrf.mxu0
        %v2490 = vadd.f32 %v2143, %v2489
        %v2491 = vand.u32 %v1260, 4294901760
        %v2492 = vsub.f32 %v1260, %v2491
        %2493 = vmatprep.mubr.f32.mxu0 %v2492
        %v2494 = vand.u32 %v1259, 4294901760
        %v2495 = vsub.f32 %v1259, %v2494
        %2496 = vmatmul.mubr.f32.gmra.mxu0 %v2495
        %v2497 = vpop.f32.mrf.mxu0
        %v2498 = vadd.f32 %v2149, %v2497
        %v2499 = vpop.f32.mrf.mxu0
        %v2500 = vadd.f32 %v2151, %v2499
        %v2501 = vand.u32 %v1264, 4294901760
        %v2502 = vsub.f32 %v1264, %v2501
        %2503 = vmatprep.mubr.f32.mxu0 %v2502
        %v2504 = vand.u32 %v1263, 4294901760
        %v2505 = vsub.f32 %v1263, %v2504
        %2506 = vmatmul.mubr.f32.gmra.mxu0 %v2505
        %v2507 = vpop.f32.mrf.mxu0
        %v2508 = vadd.f32 %v2157, %v2507
        %v2509 = vpop.f32.mrf.mxu0
        %v2510 = vadd.f32 %v2159, %v2509
        %v2511 = vand.u32 %v1268, 4294901760
        %v2512 = vsub.f32 %v1268, %v2511
        %2513 = vmatprep.mubr.f32.mxu0 %v2512
        %v2514 = vand.u32 %v1267, 4294901760
        %v2515 = vsub.f32 %v1267, %v2514
        %2516 = vmatmul.mubr.f32.gmra.mxu0 %v2515
        %v2517 = vpop.f32.mrf.mxu0
        %v2518 = vadd.f32 %v2165, %v2517
        %v2519 = vpop.f32.mrf.mxu0
        %v2520 = vadd.f32 %v2167, %v2519
        %2521 = vdwg.mxu0
        %v2522 = vand.u32 %v764, 4294901760
        %2523 = vmatprep.subr.mxu0 %v2522
        %v2524 = vand.u32 %v567, 4294901760
        %2525 = vmatpush1.msra.mxu0 %v2524
        %v2526 = vand.u32 %v763, 4294901760
        %2527 = vmatprep.subr.mxu0 %v2526
        %v2528 = vand.u32 %v566, 4294901760
        %2529 = vmatpush1.msra.mxu0 %v2528
        %v2530 = vand.u32 %v762, 4294901760
        %2531 = vmatprep.subr.mxu0 %v2530
        %v2532 = vand.u32 %v565, 4294901760
        %2533 = vmatpush1.msra.mxu0 %v2532
        %v2534 = vand.u32 %v761, 4294901760
        %2535 = vmatprep.subr.mxu0 %v2534
        %v2536 = vand.u32 %v564, 4294901760
        %2537 = vmatpush1.msra.mxu0 %v2536
        %v2538 = vand.u32 %v760, 4294901760
        %2539 = vmatprep.subr.mxu0 %v2538
        %v2540 = vand.u32 %v563, 4294901760
        %2541 = vmatpush1.msra.mxu0 %v2540
        %v2542 = vand.u32 %v759, 4294901760
        %2543 = vmatprep.subr.mxu0 %v2542
        %v2544 = vand.u32 %v562, 4294901760
        %2545 = vmatpush1.msra.mxu0 %v2544
        %v2546 = vand.u32 %v758, 4294901760
        %2547 = vmatprep.subr.mxu0 %v2546
        %v2548 = vand.u32 %v561, 4294901760
        %2549 = vmatpush1.msra.mxu0 %v2548
        %v2550 = vand.u32 %v757, 4294901760
        %2551 = vmatprep.subr.mxu0 %v2550
        %v2552 = vand.u32 %v560, 4294901760
        %2553 = vmatpush1.msra.mxu0 %v2552
        %v2554 = vand.u32 %v756, 4294901760
        %2555 = vmatprep.subr.mxu0 %v2554
        %v2556 = vand.u32 %v559, 4294901760
        %2557 = vmatpush1.msra.mxu0 %v2556
        %v2558 = vand.u32 %v755, 4294901760
        %2559 = vmatprep.subr.mxu0 %v2558
        %v2560 = vand.u32 %v558, 4294901760
        %2561 = vmatpush1.msra.mxu0 %v2560
        %v2562 = vand.u32 %v754, 4294901760
        %2563 = vmatprep.subr.mxu0 %v2562
        %v2564 = vand.u32 %v557, 4294901760
        %2565 = vmatpush1.msra.mxu0 %v2564
        %v2566 = vand.u32 %v753, 4294901760
        %2567 = vmatprep.subr.mxu0 %v2566
        %v2568 = vand.u32 %v556, 4294901760
        %2569 = vmatpush1.msra.mxu0 %v2568
        %v2570 = vand.u32 %v752, 4294901760
        %2571 = vmatprep.subr.mxu0 %v2570
        %v2572 = vand.u32 %v555, 4294901760
        %2573 = vmatpush1.msra.mxu0 %v2572
        %v2574 = vand.u32 %v751, 4294901760
        %2575 = vmatprep.subr.mxu0 %v2574
        %v2576 = vand.u32 %v554, 4294901760
        %2577 = vmatpush1.msra.mxu0 %v2576
        %v2578 = vand.u32 %v750, 4294901760
        %2579 = vmatprep.subr.mxu0 %v2578
        %v2580 = vand.u32 %v553, 4294901760
        %2581 = vmatpush1.msra.mxu0 %v2580
        %v2582 = vand.u32 %v749, 4294901760
        %2583 = vmatprep.subr.mxu0 %v2582
        %v2584 = vand.u32 %v552, 4294901760
        %2585 = vmatpush1.msra.mxu0 %v2584
        %v2586 = vand.u32 %v780, 4294901760
        %2587 = vmatprep.subr.mxu0 %v2586
        %v2588 = vand.u32 %v583, 4294901760
        %2589 = vmatpush2.msra.mxu0 %v2588
        %v2590 = vand.u32 %v779, 4294901760
        %2591 = vmatprep.subr.mxu0 %v2590
        %v2592 = vand.u32 %v582, 4294901760
        %2593 = vmatpush2.msra.mxu0 %v2592
        %v2594 = vand.u32 %v778, 4294901760
        %2595 = vmatprep.subr.mxu0 %v2594
        %v2596 = vand.u32 %v581, 4294901760
        %2597 = vmatpush2.msra.mxu0 %v2596
        %v2598 = vand.u32 %v777, 4294901760
        %2599 = vmatprep.subr.mxu0 %v2598
        %v2600 = vand.u32 %v580, 4294901760
        %2601 = vmatpush2.msra.mxu0 %v2600
        %v2602 = vand.u32 %v776, 4294901760
        %2603 = vmatprep.subr.mxu0 %v2602
        %v2604 = vand.u32 %v579, 4294901760
        %2605 = vmatpush2.msra.mxu0 %v2604
        %v2606 = vand.u32 %v775, 4294901760
        %2607 = vmatprep.subr.mxu0 %v2606
        %v2608 = vand.u32 %v578, 4294901760
        %2609 = vmatpush2.msra.mxu0 %v2608
        %v2610 = vand.u32 %v774, 4294901760
        %2611 = vmatprep.subr.mxu0 %v2610
        %v2612 = vand.u32 %v577, 4294901760
        %2613 = vmatpush2.msra.mxu0 %v2612
        %v2614 = vand.u32 %v773, 4294901760
        %2615 = vmatprep.subr.mxu0 %v2614
        %v2616 = vand.u32 %v576, 4294901760
        %2617 = vmatpush2.msra.mxu0 %v2616
        %v2618 = vand.u32 %v772, 4294901760
        %2619 = vmatprep.subr.mxu0 %v2618
        %v2620 = vand.u32 %v575, 4294901760
        %2621 = vmatpush2.msra.mxu0 %v2620
        %v2622 = vand.u32 %v771, 4294901760
        %2623 = vmatprep.subr.mxu0 %v2622
        %v2624 = vand.u32 %v574, 4294901760
        %2625 = vmatpush2.msra.mxu0 %v2624
        %v2626 = vand.u32 %v770, 4294901760
        %2627 = vmatprep.subr.mxu0 %v2626
        %v2628 = vand.u32 %v573, 4294901760
        %2629 = vmatpush2.msra.mxu0 %v2628
        %v2630 = vand.u32 %v769, 4294901760
        %2631 = vmatprep.subr.mxu0 %v2630
        %v2632 = vand.u32 %v572, 4294901760
        %2633 = vmatpush2.msra.mxu0 %v2632
        %v2634 = vand.u32 %v768, 4294901760
        %2635 = vmatprep.subr.mxu0 %v2634
        %v2636 = vand.u32 %v571, 4294901760
        %2637 = vmatpush2.msra.mxu0 %v2636
        %v2638 = vand.u32 %v767, 4294901760
        %2639 = vmatprep.subr.mxu0 %v2638
        %v2640 = vand.u32 %v570, 4294901760
        %2641 = vmatpush2.msra.mxu0 %v2640
        %v2642 = vand.u32 %v766, 4294901760
        %2643 = vmatprep.subr.mxu0 %v2642
        %v2644 = vand.u32 %v569, 4294901760
        %2645 = vmatpush2.msra.mxu0 %v2644
        %v2646 = vand.u32 %v765, 4294901760
        %2647 = vmatprep.subr.mxu0 %v2646
        %v2648 = vand.u32 %v568, 4294901760
        %2649 = vmatpush2.msra.mxu0 %v2648
        %v2650 = vand.u32 %v1208, 4294901760
        %v2651 = vsub.f32 %v1208, %v2650
        %v2652 = vand.u32 %v2651, 4294901760
        %2653 = vmatprep.mubr.f32.mxu0 %v2652
        %v2654 = vand.u32 %v1207, 4294901760
        %v2655 = vsub.f32 %v1207, %v2654
        %v2656 = vand.u32 %v2655, 4294901760
        %2657 = vmatmul.mubr.f32.gmra.mxu0 %v2656
        %v2658 = vpop.f32.mrf.mxu0
        %v2659 = vadd.f32 %v2368, %v2658
        %v2660 = vpop.f32.mrf.mxu0
        %v2661 = vadd.f32 %v2370, %v2660
        %v2662 = vand.u32 %v1212, 4294901760
        %v2663 = vsub.f32 %v1212, %v2662
        %v2664 = vand.u32 %v2663, 4294901760
        %2665 = vmatprep.mubr.f32.mxu0 %v2664
        %v2666 = vand.u32 %v1211, 4294901760
        %v2667 = vsub.f32 %v1211, %v2666
        %v2668 = vand.u32 %v2667, 4294901760
        %2669 = vmatmul.mubr.f32.gmra.mxu0 %v2668
        %v2670 = vpop.f32.mrf.mxu0
        %v2671 = vadd.f32 %v2378, %v2670
        %v2672 = vpop.f32.mrf.mxu0
        %v2673 = vadd.f32 %v2380, %v2672
        %v2674 = vand.u32 %v1216, 4294901760
        %v2675 = vsub.f32 %v1216, %v2674
        %v2676 = vand.u32 %v2675, 4294901760
        %2677 = vmatprep.mubr.f32.mxu0 %v2676
        %v2678 = vand.u32 %v1215, 4294901760
        %v2679 = vsub.f32 %v1215, %v2678
        %v2680 = vand.u32 %v2679, 4294901760
        %2681 = vmatmul.mubr.f32.gmra.mxu0 %v2680
        %v2682 = vpop.f32.mrf.mxu0
        %v2683 = vadd.f32 %v2388, %v2682
        %v2684 = vpop.f32.mrf.mxu0
        %v2685 = vadd.f32 %v2390, %v2684
        %v2686 = vand.u32 %v1220, 4294901760
        %v2687 = vsub.f32 %v1220, %v2686
        %v2688 = vand.u32 %v2687, 4294901760
        %2689 = vmatprep.mubr.f32.mxu0 %v2688
        %v2690 = vand.u32 %v1219, 4294901760
        %v2691 = vsub.f32 %v1219, %v2690
        %v2692 = vand.u32 %v2691, 4294901760
        %2693 = vmatmul.mubr.f32.gmra.mxu0 %v2692
        %v2694 = vpop.f32.mrf.mxu0
        %v2695 = vadd.f32 %v2398, %v2694
        %v2696 = vpop.f32.mrf.mxu0
        %v2697 = vadd.f32 %v2400, %v2696
        %v2698 = vand.u32 %v1224, 4294901760
        %v2699 = vsub.f32 %v1224, %v2698
        %v2700 = vand.u32 %v2699, 4294901760
        %2701 = vmatprep.mubr.f32.mxu0 %v2700
        %v2702 = vand.u32 %v1223, 4294901760
        %v2703 = vsub.f32 %v1223, %v2702
        %v2704 = vand.u32 %v2703, 4294901760
        %2705 = vmatmul.mubr.f32.gmra.mxu0 %v2704
        %v2706 = vpop.f32.mrf.mxu0
        %v2707 = vadd.f32 %v2408, %v2706
        %v2708 = vpop.f32.mrf.mxu0
        %v2709 = vadd.f32 %v2410, %v2708
        %v2710 = vand.u32 %v1228, 4294901760
        %v2711 = vsub.f32 %v1228, %v2710
        %v2712 = vand.u32 %v2711, 4294901760
        %2713 = vmatprep.mubr.f32.mxu0 %v2712
        %v2714 = vand.u32 %v1227, 4294901760
        %v2715 = vsub.f32 %v1227, %v2714
        %v2716 = vand.u32 %v2715, 4294901760
        %2717 = vmatmul.mubr.f32.gmra.mxu0 %v2716
        %v2718 = vpop.f32.mrf.mxu0
        %v2719 = vadd.f32 %v2418, %v2718
        %v2720 = vpop.f32.mrf.mxu0
        %v2721 = vadd.f32 %v2420, %v2720
        %v2722 = vand.u32 %v1232, 4294901760
        %v2723 = vsub.f32 %v1232, %v2722
        %v2724 = vand.u32 %v2723, 4294901760
        %2725 = vmatprep.mubr.f32.mxu0 %v2724
        %v2726 = vand.u32 %v1231, 4294901760
        %v2727 = vsub.f32 %v1231, %v2726
        %v2728 = vand.u32 %v2727, 4294901760
        %2729 = vmatmul.mubr.f32.gmra.mxu0 %v2728
        %v2730 = vpop.f32.mrf.mxu0
        %v2731 = vadd.f32 %v2428, %v2730
        %v2732 = vpop.f32.mrf.mxu0
        %v2733 = vadd.f32 %v2430, %v2732
        %v2734 = vand.u32 %v1236, 4294901760
        %v2735 = vsub.f32 %v1236, %v2734
        %v2736 = vand.u32 %v2735, 4294901760
        %2737 = vmatprep.mubr.f32.mxu0 %v2736
        %v2738 = vand.u32 %v1235, 4294901760
        %v2739 = vsub.f32 %v1235, %v2738
        %v2740 = vand.u32 %v2739, 4294901760
        %2741 = vmatmul.mubr.f32.gmra.mxu0 %v2740
        %v2742 = vpop.f32.mrf.mxu0
        %v2743 = vadd.f32 %v2438, %v2742
        %v2744 = vpop.f32.mrf.mxu0
        %v2745 = vadd.f32 %v2440, %v2744
        %v2746 = vand.u32 %v1240, 4294901760
        %v2747 = vsub.f32 %v1240, %v2746
        %v2748 = vand.u32 %v2747, 4294901760
        %2749 = vmatprep.mubr.f32.mxu0 %v2748
        %v2750 = vand.u32 %v1239, 4294901760
        %v2751 = vsub.f32 %v1239, %v2750
        %v2752 = vand.u32 %v2751, 4294901760
        %2753 = vmatmul.mubr.f32.gmra.mxu0 %v2752
        %v2754 = vpop.f32.mrf.mxu0
        %v2755 = vadd.f32 %v2448, %v2754
        %v2756 = vpop.f32.mrf.mxu0
        %v2757 = vadd.f32 %v2450, %v2756
        %v2758 = vand.u32 %v1244, 4294901760
        %v2759 = vsub.f32 %v1244, %v2758
        %v2760 = vand.u32 %v2759, 4294901760
        %2761 = vmatprep.mubr.f32.mxu0 %v2760
        %v2762 = vand.u32 %v1243, 4294901760
        %v2763 = vsub.f32 %v1243, %v2762
        %v2764 = vand.u32 %v2763, 4294901760
        %2765 = vmatmul.mubr.f32.gmra.mxu0 %v2764
        %v2766 = vpop.f32.mrf.mxu0
        %v2767 = vadd.f32 %v2458, %v2766
        %v2768 = vpop.f32.mrf.mxu0
        %v2769 = vadd.f32 %v2460, %v2768
        %v2770 = vand.u32 %v1248, 4294901760
        %v2771 = vsub.f32 %v1248, %v2770
        %v2772 = vand.u32 %v2771, 4294901760
        %2773 = vmatprep.mubr.f32.mxu0 %v2772
        %v2774 = vand.u32 %v1247, 4294901760
        %v2775 = vsub.f32 %v1247, %v2774
        %v2776 = vand.u32 %v2775, 4294901760
        %2777 = vmatmul.mubr.f32.gmra.mxu0 %v2776
        %v2778 = vpop.f32.mrf.mxu0
        %v2779 = vadd.f32 %v2468, %v2778
        %v2780 = vpop.f32.mrf.mxu0
        %v2781 = vadd.f32 %v2470, %v2780
        %v2782 = vand.u32 %v1252, 4294901760
        %v2783 = vsub.f32 %v1252, %v2782
        %v2784 = vand.u32 %v2783, 4294901760
        %2785 = vmatprep.mubr.f32.mxu0 %v2784
        %v2786 = vand.u32 %v1251, 4294901760
        %v2787 = vsub.f32 %v1251, %v2786
        %v2788 = vand.u32 %v2787, 4294901760
        %2789 = vmatmul.mubr.f32.gmra.mxu0 %v2788
        %v2790 = vpop.f32.mrf.mxu0
        %v2791 = vadd.f32 %v2478, %v2790
        %v2792 = vpop.f32.mrf.mxu0
        %v2793 = vadd.f32 %v2480, %v2792
        %v2794 = vand.u32 %v1256, 4294901760
        %v2795 = vsub.f32 %v1256, %v2794
        %v2796 = vand.u32 %v2795, 4294901760
        %2797 = vmatprep.mubr.f32.mxu0 %v2796
        %v2798 = vand.u32 %v1255, 4294901760
        %v2799 = vsub.f32 %v1255, %v2798
        %v2800 = vand.u32 %v2799, 4294901760
        %2801 = vmatmul.mubr.f32.gmra.mxu0 %v2800
        %v2802 = vpop.f32.mrf.mxu0
        %v2803 = vadd.f32 %v2488, %v2802
        %v2804 = vpop.f32.mrf.mxu0
        %v2805 = vadd.f32 %v2490, %v2804
        %v2806 = vand.u32 %v1260, 4294901760
        %v2807 = vsub.f32 %v1260, %v2806
        %v2808 = vand.u32 %v2807, 4294901760
        %2809 = vmatprep.mubr.f32.mxu0 %v2808
        %v2810 = vand.u32 %v1259, 4294901760
        %v2811 = vsub.f32 %v1259, %v2810
        %v2812 = vand.u32 %v2811, 4294901760
        %2813 = vmatmul.mubr.f32.gmra.mxu0 %v2812
        %v2814 = vpop.f32.mrf.mxu0
        %v2815 = vadd.f32 %v2498, %v2814
        %v2816 = vpop.f32.mrf.mxu0
        %v2817 = vadd.f32 %v2500, %v2816
        %v2818 = vand.u32 %v1264, 4294901760
        %v2819 = vsub.f32 %v1264, %v2818
        %v2820 = vand.u32 %v2819, 4294901760
        %2821 = vmatprep.mubr.f32.mxu0 %v2820
        %v2822 = vand.u32 %v1263, 4294901760
        %v2823 = vsub.f32 %v1263, %v2822
        %v2824 = vand.u32 %v2823, 4294901760
        %2825 = vmatmul.mubr.f32.gmra.mxu0 %v2824
        %v2826 = vpop.f32.mrf.mxu0
        %v2827 = vadd.f32 %v2508, %v2826
        %v2828 = vpop.f32.mrf.mxu0
        %v2829 = vadd.f32 %v2510, %v2828
        %v2830 = vand.u32 %v1268, 4294901760
        %v2831 = vsub.f32 %v1268, %v2830
        %v2832 = vand.u32 %v2831, 4294901760
        %2833 = vmatprep.mubr.f32.mxu0 %v2832
        %v2834 = vand.u32 %v1267, 4294901760
        %v2835 = vsub.f32 %v1267, %v2834
        %v2836 = vand.u32 %v2835, 4294901760
        %2837 = vmatmul.mubr.f32.gmra.mxu0 %v2836
        %v2838 = vpop.f32.mrf.mxu0
        %v2839 = vadd.f32 %v2518, %v2838
        %v2840 = vpop.f32.mrf.mxu0
        %v2841 = vadd.f32 %v2520, %v2840
        %2842 = vdwg.mxu0
        %v2843 = vand.u32 %v764, 4294901760
        %v2844 = vsub.f32 %v764, %v2843
        %v2845 = vand.u32 %v2844, 4294901760
        %2846 = vmatprep.subr.mxu0 %v2845
        %v2847 = vand.u32 %v567, 4294901760
        %v2848 = vsub.f32 %v567, %v2847
        %v2849 = vand.u32 %v2848, 4294901760
        %2850 = vmatpush1.msra.mxu0 %v2849
        %v2851 = vand.u32 %v763, 4294901760
        %v2852 = vsub.f32 %v763, %v2851
        %v2853 = vand.u32 %v2852, 4294901760
        %2854 = vmatprep.subr.mxu0 %v2853
        %v2855 = vand.u32 %v566, 4294901760
        %v2856 = vsub.f32 %v566, %v2855
        %v2857 = vand.u32 %v2856, 4294901760
        %2858 = vmatpush1.msra.mxu0 %v2857
        %v2859 = vand.u32 %v762, 4294901760
        %v2860 = vsub.f32 %v762, %v2859
        %v2861 = vand.u32 %v2860, 4294901760
        %2862 = vmatprep.subr.mxu0 %v2861
        %v2863 = vand.u32 %v565, 4294901760
        %v2864 = vsub.f32 %v565, %v2863
        %v2865 = vand.u32 %v2864, 4294901760
        %2866 = vmatpush1.msra.mxu0 %v2865
        %v2867 = vand.u32 %v761, 4294901760
        %v2868 = vsub.f32 %v761, %v2867
        %v2869 = vand.u32 %v2868, 4294901760
        %2870 = vmatprep.subr.mxu0 %v2869
        %v2871 = vand.u32 %v564, 4294901760
        %v2872 = vsub.f32 %v564, %v2871
        %v2873 = vand.u32 %v2872, 4294901760
        %2874 = vmatpush1.msra.mxu0 %v2873
        %v2875 = vand.u32 %v760, 4294901760
        %v2876 = vsub.f32 %v760, %v2875
        %v2877 = vand.u32 %v2876, 4294901760
        %2878 = vmatprep.subr.mxu0 %v2877
        %v2879 = vand.u32 %v563, 4294901760
        %v2880 = vsub.f32 %v563, %v2879
        %v2881 = vand.u32 %v2880, 4294901760
        %2882 = vmatpush1.msra.mxu0 %v2881
        %v2883 = vand.u32 %v759, 4294901760
        %v2884 = vsub.f32 %v759, %v2883
        %v2885 = vand.u32 %v2884, 4294901760
        %2886 = vmatprep.subr.mxu0 %v2885
        %v2887 = vand.u32 %v562, 4294901760
        %v2888 = vsub.f32 %v562, %v2887
        %v2889 = vand.u32 %v2888, 4294901760
        %2890 = vmatpush1.msra.mxu0 %v2889
        %v2891 = vand.u32 %v758, 4294901760
        %v2892 = vsub.f32 %v758, %v2891
        %v2893 = vand.u32 %v2892, 4294901760
        %2894 = vmatprep.subr.mxu0 %v2893
        %v2895 = vand.u32 %v561, 4294901760
        %v2896 = vsub.f32 %v561, %v2895
        %v2897 = vand.u32 %v2896, 4294901760
        %2898 = vmatpush1.msra.mxu0 %v2897
        %v2899 = vand.u32 %v757, 4294901760
        %v2900 = vsub.f32 %v757, %v2899
        %v2901 = vand.u32 %v2900, 4294901760
        %2902 = vmatprep.subr.mxu0 %v2901
        %v2903 = vand.u32 %v560, 4294901760
        %v2904 = vsub.f32 %v560, %v2903
        %v2905 = vand.u32 %v2904, 4294901760
        %2906 = vmatpush1.msra.mxu0 %v2905
        %v2907 = vand.u32 %v756, 4294901760
        %v2908 = vsub.f32 %v756, %v2907
        %v2909 = vand.u32 %v2908, 4294901760
        %2910 = vmatprep.subr.mxu0 %v2909
        %v2911 = vand.u32 %v559, 4294901760
        %v2912 = vsub.f32 %v559, %v2911
        %v2913 = vand.u32 %v2912, 4294901760
        %2914 = vmatpush1.msra.mxu0 %v2913
        %v2915 = vand.u32 %v755, 4294901760
        %v2916 = vsub.f32 %v755, %v2915
        %v2917 = vand.u32 %v2916, 4294901760
        %2918 = vmatprep.subr.mxu0 %v2917
        %v2919 = vand.u32 %v558, 4294901760
        %v2920 = vsub.f32 %v558, %v2919
        %v2921 = vand.u32 %v2920, 4294901760
        %2922 = vmatpush1.msra.mxu0 %v2921
        %v2923 = vand.u32 %v754, 4294901760
        %v2924 = vsub.f32 %v754, %v2923
        %v2925 = vand.u32 %v2924, 4294901760
        %2926 = vmatprep.subr.mxu0 %v2925
        %v2927 = vand.u32 %v557, 4294901760
        %v2928 = vsub.f32 %v557, %v2927
        %v2929 = vand.u32 %v2928, 4294901760
        %2930 = vmatpush1.msra.mxu0 %v2929
        %v2931 = vand.u32 %v753, 4294901760
        %v2932 = vsub.f32 %v753, %v2931
        %v2933 = vand.u32 %v2932, 4294901760
        %2934 = vmatprep.subr.mxu0 %v2933
        %v2935 = vand.u32 %v556, 4294901760
        %v2936 = vsub.f32 %v556, %v2935
        %v2937 = vand.u32 %v2936, 4294901760
        %2938 = vmatpush1.msra.mxu0 %v2937
        %v2939 = vand.u32 %v752, 4294901760
        %v2940 = vsub.f32 %v752, %v2939
        %v2941 = vand.u32 %v2940, 4294901760
        %2942 = vmatprep.subr.mxu0 %v2941
        %v2943 = vand.u32 %v555, 4294901760
        %v2944 = vsub.f32 %v555, %v2943
        %v2945 = vand.u32 %v2944, 4294901760
        %2946 = vmatpush1.msra.mxu0 %v2945
        %v2947 = vand.u32 %v751, 4294901760
        %v2948 = vsub.f32 %v751, %v2947
        %v2949 = vand.u32 %v2948, 4294901760
        %2950 = vmatprep.subr.mxu0 %v2949
        %v2951 = vand.u32 %v554, 4294901760
        %v2952 = vsub.f32 %v554, %v2951
        %v2953 = vand.u32 %v2952, 4294901760
        %2954 = vmatpush1.msra.mxu0 %v2953
        %v2955 = vand.u32 %v750, 4294901760
        %v2956 = vsub.f32 %v750, %v2955
        %v2957 = vand.u32 %v2956, 4294901760
        %2958 = vmatprep.subr.mxu0 %v2957
        %v2959 = vand.u32 %v553, 4294901760
        %v2960 = vsub.f32 %v553, %v2959
        %v2961 = vand.u32 %v2960, 4294901760
        %2962 = vmatpush1.msra.mxu0 %v2961
        %v2963 = vand.u32 %v749, 4294901760
        %v2964 = vsub.f32 %v749, %v2963
        %v2965 = vand.u32 %v2964, 4294901760
        %2966 = vmatprep.subr.mxu0 %v2965
        %v2967 = vand.u32 %v552, 4294901760
        %v2968 = vsub.f32 %v552, %v2967
        %v2969 = vand.u32 %v2968, 4294901760
        %2970 = vmatpush1.msra.mxu0 %v2969
        %v2971 = vand.u32 %v780, 4294901760
        %v2972 = vsub.f32 %v780, %v2971
        %v2973 = vand.u32 %v2972, 4294901760
        %2974 = vmatprep.subr.mxu0 %v2973
        %v2975 = vand.u32 %v583, 4294901760
        %v2976 = vsub.f32 %v583, %v2975
        %v2977 = vand.u32 %v2976, 4294901760
        %2978 = vmatpush2.msra.mxu0 %v2977
        %v2979 = vand.u32 %v779, 4294901760
        %v2980 = vsub.f32 %v779, %v2979
        %v2981 = vand.u32 %v2980, 4294901760
        %2982 = vmatprep.subr.mxu0 %v2981
        %v2983 = vand.u32 %v582, 4294901760
        %v2984 = vsub.f32 %v582, %v2983
        %v2985 = vand.u32 %v2984, 4294901760
        %2986 = vmatpush2.msra.mxu0 %v2985
        %v2987 = vand.u32 %v778, 4294901760
        %v2988 = vsub.f32 %v778, %v2987
        %v2989 = vand.u32 %v2988, 4294901760
        %2990 = vmatprep.subr.mxu0 %v2989
        %v2991 = vand.u32 %v581, 4294901760
        %v2992 = vsub.f32 %v581, %v2991
        %v2993 = vand.u32 %v2992, 4294901760
        %2994 = vmatpush2.msra.mxu0 %v2993
        %v2995 = vand.u32 %v777, 4294901760
        %v2996 = vsub.f32 %v777, %v2995
        %v2997 = vand.u32 %v2996, 4294901760
        %2998 = vmatprep.subr.mxu0 %v2997
        %v2999 = vand.u32 %v580, 4294901760
        %v3000 = vsub.f32 %v580, %v2999
        %v3001 = vand.u32 %v3000, 4294901760
        %3002 = vmatpush2.msra.mxu0 %v3001
        %v3003 = vand.u32 %v776, 4294901760
        %v3004 = vsub.f32 %v776, %v3003
        %v3005 = vand.u32 %v3004, 4294901760
        %3006 = vmatprep.subr.mxu0 %v3005
        %v3007 = vand.u32 %v579, 4294901760
        %v3008 = vsub.f32 %v579, %v3007
        %v3009 = vand.u32 %v3008, 4294901760
        %3010 = vmatpush2.msra.mxu0 %v3009
        %v3011 = vand.u32 %v775, 4294901760
        %v3012 = vsub.f32 %v775, %v3011
        %v3013 = vand.u32 %v3012, 4294901760
        %3014 = vmatprep.subr.mxu0 %v3013
        %v3015 = vand.u32 %v578, 4294901760
        %v3016 = vsub.f32 %v578, %v3015
        %v3017 = vand.u32 %v3016, 4294901760
        %3018 = vmatpush2.msra.mxu0 %v3017
        %v3019 = vand.u32 %v774, 4294901760
        %v3020 = vsub.f32 %v774, %v3019
        %v3021 = vand.u32 %v3020, 4294901760
        %3022 = vmatprep.subr.mxu0 %v3021
        %v3023 = vand.u32 %v577, 4294901760
        %v3024 = vsub.f32 %v577, %v3023
        %v3025 = vand.u32 %v3024, 4294901760
        %3026 = vmatpush2.msra.mxu0 %v3025
        %v3027 = vand.u32 %v773, 4294901760
        %v3028 = vsub.f32 %v773, %v3027
        %v3029 = vand.u32 %v3028, 4294901760
        %3030 = vmatprep.subr.mxu0 %v3029
        %v3031 = vand.u32 %v576, 4294901760
        %v3032 = vsub.f32 %v576, %v3031
        %v3033 = vand.u32 %v3032, 4294901760
        %3034 = vmatpush2.msra.mxu0 %v3033
        %v3035 = vand.u32 %v772, 4294901760
        %v3036 = vsub.f32 %v772, %v3035
        %v3037 = vand.u32 %v3036, 4294901760
        %3038 = vmatprep.subr.mxu0 %v3037
        %v3039 = vand.u32 %v575, 4294901760
        %v3040 = vsub.f32 %v575, %v3039
        %v3041 = vand.u32 %v3040, 4294901760
        %3042 = vmatpush2.msra.mxu0 %v3041
        %v3043 = vand.u32 %v771, 4294901760
        %v3044 = vsub.f32 %v771, %v3043
        %v3045 = vand.u32 %v3044, 4294901760
        %3046 = vmatprep.subr.mxu0 %v3045
        %v3047 = vand.u32 %v574, 4294901760
        %v3048 = vsub.f32 %v574, %v3047
        %v3049 = vand.u32 %v3048, 4294901760
        %3050 = vmatpush2.msra.mxu0 %v3049
        %v3051 = vand.u32 %v770, 4294901760
        %v3052 = vsub.f32 %v770, %v3051
        %v3053 = vand.u32 %v3052, 4294901760
        %3054 = vmatprep.subr.mxu0 %v3053
        %v3055 = vand.u32 %v573, 4294901760
        %v3056 = vsub.f32 %v573, %v3055
        %v3057 = vand.u32 %v3056, 4294901760
        %3058 = vmatpush2.msra.mxu0 %v3057
        %v3059 = vand.u32 %v769, 4294901760
        %v3060 = vsub.f32 %v769, %v3059
        %v3061 = vand.u32 %v3060, 4294901760
        %3062 = vmatprep.subr.mxu0 %v3061
        %v3063 = vand.u32 %v572, 4294901760
        %v3064 = vsub.f32 %v572, %v3063
        %v3065 = vand.u32 %v3064, 4294901760
        %3066 = vmatpush2.msra.mxu0 %v3065
        %v3067 = vand.u32 %v768, 4294901760
        %v3068 = vsub.f32 %v768, %v3067
        %v3069 = vand.u32 %v3068, 4294901760
        %3070 = vmatprep.subr.mxu0 %v3069
        %v3071 = vand.u32 %v571, 4294901760
        %v3072 = vsub.f32 %v571, %v3071
        %v3073 = vand.u32 %v3072, 4294901760
        %3074 = vmatpush2.msra.mxu0 %v3073
        %v3075 = vand.u32 %v767, 4294901760
        %v3076 = vsub.f32 %v767, %v3075
        %v3077 = vand.u32 %v3076, 4294901760
        %3078 = vmatprep.subr.mxu0 %v3077
        %v3079 = vand.u32 %v570, 4294901760
        %v3080 = vsub.f32 %v570, %v3079
        %v3081 = vand.u32 %v3080, 4294901760
        %3082 = vmatpush2.msra.mxu0 %v3081
        %v3083 = vand.u32 %v766, 4294901760
        %v3084 = vsub.f32 %v766, %v3083
        %v3085 = vand.u32 %v3084, 4294901760
        %3086 = vmatprep.subr.mxu0 %v3085
        %v3087 = vand.u32 %v569, 4294901760
        %v3088 = vsub.f32 %v569, %v3087
        %v3089 = vand.u32 %v3088, 4294901760
        %3090 = vmatpush2.msra.mxu0 %v3089
        %v3091 = vand.u32 %v765, 4294901760
        %v3092 = vsub.f32 %v765, %v3091
        %v3093 = vand.u32 %v3092, 4294901760
        %3094 = vmatprep.subr.mxu0 %v3093
        %v3095 = vand.u32 %v568, 4294901760
        %v3096 = vsub.f32 %v568, %v3095
        %v3097 = vand.u32 %v3096, 4294901760
        %3098 = vmatpush2.msra.mxu0 %v3097
        %v3099 = vand.u32 %v1208, 4294901760
        %3100 = vmatprep.mubr.f32.mxu0 %v3099
        %v3101 = vand.u32 %v1207, 4294901760
        %3102 = vmatmul.mubr.f32.gmra.mxu0 %v3101
        %v3103 = vpop.f32.mrf.mxu0
        %v3104 = vadd.f32 %v2659, %v3103
        %v3105 = vpop.f32.mrf.mxu0
        %v3106 = vadd.f32 %v2661, %v3105
        %v3107 = vand.u32 %v1212, 4294901760
        %3108 = vmatprep.mubr.f32.mxu0 %v3107
        %v3109 = vand.u32 %v1211, 4294901760
        %3110 = vmatmul.mubr.f32.gmra.mxu0 %v3109
        %v3111 = vpop.f32.mrf.mxu0
        %v3112 = vadd.f32 %v2671, %v3111
        %v3113 = vpop.f32.mrf.mxu0
        %v3114 = vadd.f32 %v2673, %v3113
        %v3115 = vand.u32 %v1216, 4294901760
        %3116 = vmatprep.mubr.f32.mxu0 %v3115
        %v3117 = vand.u32 %v1215, 4294901760
        %3118 = vmatmul.mubr.f32.gmra.mxu0 %v3117
        %v3119 = vpop.f32.mrf.mxu0
        %v3120 = vadd.f32 %v2683, %v3119
        %v3121 = vpop.f32.mrf.mxu0
        %v3122 = vadd.f32 %v2685, %v3121
        %v3123 = vand.u32 %v1220, 4294901760
        %3124 = vmatprep.mubr.f32.mxu0 %v3123
        %v3125 = vand.u32 %v1219, 4294901760
        %3126 = vmatmul.mubr.f32.gmra.mxu0 %v3125
        %v3127 = vpop.f32.mrf.mxu0
        %v3128 = vadd.f32 %v2695, %v3127
        %v3129 = vpop.f32.mrf.mxu0
        %v3130 = vadd.f32 %v2697, %v3129
        %v3131 = vand.u32 %v1224, 4294901760
        %3132 = vmatprep.mubr.f32.mxu0 %v3131
        %v3133 = vand.u32 %v1223, 4294901760
        %3134 = vmatmul.mubr.f32.gmra.mxu0 %v3133
        %v3135 = vpop.f32.mrf.mxu0
        %v3136 = vadd.f32 %v2707, %v3135
        %v3137 = vpop.f32.mrf.mxu0
        %v3138 = vadd.f32 %v2709, %v3137
        %v3139 = vand.u32 %v1228, 4294901760
        %3140 = vmatprep.mubr.f32.mxu0 %v3139
        %v3141 = vand.u32 %v1227, 4294901760
        %3142 = vmatmul.mubr.f32.gmra.mxu0 %v3141
        %v3143 = vpop.f32.mrf.mxu0
        %v3144 = vadd.f32 %v2719, %v3143
        %v3145 = vpop.f32.mrf.mxu0
        %v3146 = vadd.f32 %v2721, %v3145
        %v3147 = vand.u32 %v1232, 4294901760
        %3148 = vmatprep.mubr.f32.mxu0 %v3147
        %v3149 = vand.u32 %v1231, 4294901760
        %3150 = vmatmul.mubr.f32.gmra.mxu0 %v3149
        %v3151 = vpop.f32.mrf.mxu0
        %v3152 = vadd.f32 %v2731, %v3151
        %v3153 = vpop.f32.mrf.mxu0
        %v3154 = vadd.f32 %v2733, %v3153
        %v3155 = vand.u32 %v1236, 4294901760
        %3156 = vmatprep.mubr.f32.mxu0 %v3155
        %v3157 = vand.u32 %v1235, 4294901760
        %3158 = vmatmul.mubr.f32.gmra.mxu0 %v3157
        %v3159 = vpop.f32.mrf.mxu0
        %v3160 = vadd.f32 %v2743, %v3159
        %v3161 = vpop.f32.mrf.mxu0
        %v3162 = vadd.f32 %v2745, %v3161
        %v3163 = vand.u32 %v1240, 4294901760
        %3164 = vmatprep.mubr.f32.mxu0 %v3163
        %v3165 = vand.u32 %v1239, 4294901760
        %3166 = vmatmul.mubr.f32.gmra.mxu0 %v3165
        %v3167 = vpop.f32.mrf.mxu0
        %v3168 = vadd.f32 %v2755, %v3167
        %v3169 = vpop.f32.mrf.mxu0
        %v3170 = vadd.f32 %v2757, %v3169
        %v3171 = vand.u32 %v1244, 4294901760
        %3172 = vmatprep.mubr.f32.mxu0 %v3171
        %v3173 = vand.u32 %v1243, 4294901760
        %3174 = vmatmul.mubr.f32.gmra.mxu0 %v3173
        %v3175 = vpop.f32.mrf.mxu0
        %v3176 = vadd.f32 %v2767, %v3175
        %v3177 = vpop.f32.mrf.mxu0
        %v3178 = vadd.f32 %v2769, %v3177
        %v3179 = vand.u32 %v1248, 4294901760
        %3180 = vmatprep.mubr.f32.mxu0 %v3179
        %v3181 = vand.u32 %v1247, 4294901760
        %3182 = vmatmul.mubr.f32.gmra.mxu0 %v3181
        %v3183 = vpop.f32.mrf.mxu0
        %v3184 = vadd.f32 %v2779, %v3183
        %v3185 = vpop.f32.mrf.mxu0
        %v3186 = vadd.f32 %v2781, %v3185
        %v3187 = vand.u32 %v1252, 4294901760
        %3188 = vmatprep.mubr.f32.mxu0 %v3187
        %v3189 = vand.u32 %v1251, 4294901760
        %3190 = vmatmul.mubr.f32.gmra.mxu0 %v3189
        %v3191 = vpop.f32.mrf.mxu0
        %v3192 = vadd.f32 %v2791, %v3191
        %v3193 = vpop.f32.mrf.mxu0
        %v3194 = vadd.f32 %v2793, %v3193
        %v3195 = vand.u32 %v1256, 4294901760
        %3196 = vmatprep.mubr.f32.mxu0 %v3195
        %v3197 = vand.u32 %v1255, 4294901760
        %3198 = vmatmul.mubr.f32.gmra.mxu0 %v3197
        %v3199 = vpop.f32.mrf.mxu0
        %v3200 = vadd.f32 %v2803, %v3199
        %v3201 = vpop.f32.mrf.mxu0
        %v3202 = vadd.f32 %v2805, %v3201
        %v3203 = vand.u32 %v1260, 4294901760
        %3204 = vmatprep.mubr.f32.mxu0 %v3203
        %v3205 = vand.u32 %v1259, 4294901760
        %3206 = vmatmul.mubr.f32.gmra.mxu0 %v3205
        %v3207 = vpop.f32.mrf.mxu0
        %v3208 = vadd.f32 %v2815, %v3207
        %v3209 = vpop.f32.mrf.mxu0
        %v3210 = vadd.f32 %v2817, %v3209
        %v3211 = vand.u32 %v1264, 4294901760
        %3212 = vmatprep.mubr.f32.mxu0 %v3211
        %v3213 = vand.u32 %v1263, 4294901760
        %3214 = vmatmul.mubr.f32.gmra.mxu0 %v3213
        %v3215 = vpop.f32.mrf.mxu0
        %v3216 = vadd.f32 %v2827, %v3215
        %v3217 = vpop.f32.mrf.mxu0
        %v3218 = vadd.f32 %v2829, %v3217
        %v3219 = vand.u32 %v1268, 4294901760
        %3220 = vmatprep.mubr.f32.mxu0 %v3219
        %v3221 = vand.u32 %v1267, 4294901760
        %3222 = vmatmul.mubr.f32.gmra.mxu0 %v3221
        %v3223 = vpop.f32.mrf.mxu0
        %v3224 = vadd.f32 %v2839, %v3223
        %v3225 = vpop.f32.mrf.mxu0
        %v3226 = vadd.f32 %v2841, %v3225
        %3227 = vdwg.mxu0
        %v3228 = vand.u32 %v764, 4294901760
        %3229 = vmatprep.subr.mxu0 %v3228
        %v3230 = vand.u32 %v567, 4294901760
        %3231 = vmatpush1.msra.mxu0 %v3230
        %v3232 = vand.u32 %v763, 4294901760
        %3233 = vmatprep.subr.mxu0 %v3232
        %v3234 = vand.u32 %v566, 4294901760
        %3235 = vmatpush1.msra.mxu0 %v3234
        %v3236 = vand.u32 %v762, 4294901760
        %3237 = vmatprep.subr.mxu0 %v3236
        %v3238 = vand.u32 %v565, 4294901760
        %3239 = vmatpush1.msra.mxu0 %v3238
        %v3240 = vand.u32 %v761, 4294901760
        %3241 = vmatprep.subr.mxu0 %v3240
        %v3242 = vand.u32 %v564, 4294901760
        %3243 = vmatpush1.msra.mxu0 %v3242
        %v3244 = vand.u32 %v760, 4294901760
        %3245 = vmatprep.subr.mxu0 %v3244
        %v3246 = vand.u32 %v563, 4294901760
        %3247 = vmatpush1.msra.mxu0 %v3246
        %v3248 = vand.u32 %v759, 4294901760
        %3249 = vmatprep.subr.mxu0 %v3248
        %v3250 = vand.u32 %v562, 4294901760
        %3251 = vmatpush1.msra.mxu0 %v3250
        %v3252 = vand.u32 %v758, 4294901760
        %3253 = vmatprep.subr.mxu0 %v3252
        %v3254 = vand.u32 %v561, 4294901760
        %3255 = vmatpush1.msra.mxu0 %v3254
        %v3256 = vand.u32 %v757, 4294901760
        %3257 = vmatprep.subr.mxu0 %v3256
        %v3258 = vand.u32 %v560, 4294901760
        %3259 = vmatpush1.msra.mxu0 %v3258
        %v3260 = vand.u32 %v756, 4294901760
        %3261 = vmatprep.subr.mxu0 %v3260
        %v3262 = vand.u32 %v559, 4294901760
        %3263 = vmatpush1.msra.mxu0 %v3262
        %v3264 = vand.u32 %v755, 4294901760
        %3265 = vmatprep.subr.mxu0 %v3264
        %v3266 = vand.u32 %v558, 4294901760
        %3267 = vmatpush1.msra.mxu0 %v3266
        %v3268 = vand.u32 %v754, 4294901760
        %3269 = vmatprep.subr.mxu0 %v3268
        %v3270 = vand.u32 %v557, 4294901760
        %3271 = vmatpush1.msra.mxu0 %v3270
        %v3272 = vand.u32 %v753, 4294901760
        %3273 = vmatprep.subr.mxu0 %v3272
        %v3274 = vand.u32 %v556, 4294901760
        %3275 = vmatpush1.msra.mxu0 %v3274
        %v3276 = vand.u32 %v752, 4294901760
        %3277 = vmatprep.subr.mxu0 %v3276
        %v3278 = vand.u32 %v555, 4294901760
        %3279 = vmatpush1.msra.mxu0 %v3278
        %v3280 = vand.u32 %v751, 4294901760
        %3281 = vmatprep.subr.mxu0 %v3280
        %v3282 = vand.u32 %v554, 4294901760
        %3283 = vmatpush1.msra.mxu0 %v3282
        %v3284 = vand.u32 %v750, 4294901760
        %3285 = vmatprep.subr.mxu0 %v3284
        %v3286 = vand.u32 %v553, 4294901760
        %3287 = vmatpush1.msra.mxu0 %v3286
        %v3288 = vand.u32 %v749, 4294901760
        %3289 = vmatprep.subr.mxu0 %v3288
        %v3290 = vand.u32 %v552, 4294901760
        %3291 = vmatpush1.msra.mxu0 %v3290
        %v3292 = vand.u32 %v780, 4294901760
        %3293 = vmatprep.subr.mxu0 %v3292
        %v3294 = vand.u32 %v583, 4294901760
        %3295 = vmatpush2.msra.mxu0 %v3294
        %v3296 = vand.u32 %v779, 4294901760
        %3297 = vmatprep.subr.mxu0 %v3296
        %v3298 = vand.u32 %v582, 4294901760
        %3299 = vmatpush2.msra.mxu0 %v3298
        %v3300 = vand.u32 %v778, 4294901760
        %3301 = vmatprep.subr.mxu0 %v3300
        %v3302 = vand.u32 %v581, 4294901760
        %3303 = vmatpush2.msra.mxu0 %v3302
        %v3304 = vand.u32 %v777, 4294901760
        %3305 = vmatprep.subr.mxu0 %v3304
        %v3306 = vand.u32 %v580, 4294901760
        %3307 = vmatpush2.msra.mxu0 %v3306
        %v3308 = vand.u32 %v776, 4294901760
        %3309 = vmatprep.subr.mxu0 %v3308
        %v3310 = vand.u32 %v579, 4294901760
        %3311 = vmatpush2.msra.mxu0 %v3310
        %v3312 = vand.u32 %v775, 4294901760
        %3313 = vmatprep.subr.mxu0 %v3312
        %v3314 = vand.u32 %v578, 4294901760
        %3315 = vmatpush2.msra.mxu0 %v3314
        %v3316 = vand.u32 %v774, 4294901760
        %3317 = vmatprep.subr.mxu0 %v3316
        %v3318 = vand.u32 %v577, 4294901760
        %3319 = vmatpush2.msra.mxu0 %v3318
        %v3320 = vand.u32 %v773, 4294901760
        %3321 = vmatprep.subr.mxu0 %v3320
        %v3322 = vand.u32 %v576, 4294901760
        %3323 = vmatpush2.msra.mxu0 %v3322
        %v3324 = vand.u32 %v772, 4294901760
        %3325 = vmatprep.subr.mxu0 %v3324
        %v3326 = vand.u32 %v575, 4294901760
        %3327 = vmatpush2.msra.mxu0 %v3326
        %v3328 = vand.u32 %v771, 4294901760
        %3329 = vmatprep.subr.mxu0 %v3328
        %v3330 = vand.u32 %v574, 4294901760
        %3331 = vmatpush2.msra.mxu0 %v3330
        %v3332 = vand.u32 %v770, 4294901760
        %3333 = vmatprep.subr.mxu0 %v3332
        %v3334 = vand.u32 %v573, 4294901760
        %3335 = vmatpush2.msra.mxu0 %v3334
        %v3336 = vand.u32 %v769, 4294901760
        %3337 = vmatprep.subr.mxu0 %v3336
        %v3338 = vand.u32 %v572, 4294901760
        %3339 = vmatpush2.msra.mxu0 %v3338
        %v3340 = vand.u32 %v768, 4294901760
        %3341 = vmatprep.subr.mxu0 %v3340
        %v3342 = vand.u32 %v571, 4294901760
        %3343 = vmatpush2.msra.mxu0 %v3342
        %v3344 = vand.u32 %v767, 4294901760
        %3345 = vmatprep.subr.mxu0 %v3344
        %v3346 = vand.u32 %v570, 4294901760
        %3347 = vmatpush2.msra.mxu0 %v3346
        %v3348 = vand.u32 %v766, 4294901760
        %3349 = vmatprep.subr.mxu0 %v3348
        %v3350 = vand.u32 %v569, 4294901760
        %3351 = vmatpush2.msra.mxu0 %v3350
        %v3352 = vand.u32 %v765, 4294901760
        %3353 = vmatprep.subr.mxu0 %v3352
        %v3354 = vand.u32 %v568, 4294901760
        %3355 = vmatpush2.msra.mxu0 %v3354
        %v3356 = vand.u32 %v1208, 4294901760
        %3357 = vmatprep.mubr.f32.mxu0 %v3356
        %v3358 = vand.u32 %v1207, 4294901760
        %3359 = vmatmul.mubr.f32.gmra.mxu0 %v3358
        %v3360 = vpop.f32.mrf.mxu0
        %v3361 = vadd.f32 %v3104, %v3360
        %v3362 = vpop.f32.mrf.mxu0
        %v3363 = vadd.f32 %v3106, %v3362
        %v3364 = vand.u32 %v1212, 4294901760
        %3365 = vmatprep.mubr.f32.mxu0 %v3364
        %v3366 = vand.u32 %v1211, 4294901760
        %3367 = vmatmul.mubr.f32.gmra.mxu0 %v3366
        %v3368 = vpop.f32.mrf.mxu0
        %v3369 = vadd.f32 %v3112, %v3368
        %v3370 = vpop.f32.mrf.mxu0
        %v3371 = vadd.f32 %v3114, %v3370
        %v3372 = vand.u32 %v1216, 4294901760
        %3373 = vmatprep.mubr.f32.mxu0 %v3372
        %v3374 = vand.u32 %v1215, 4294901760
        %3375 = vmatmul.mubr.f32.gmra.mxu0 %v3374
        %v3376 = vpop.f32.mrf.mxu0
        %v3377 = vadd.f32 %v3120, %v3376
        %v3378 = vpop.f32.mrf.mxu0
        %v3379 = vadd.f32 %v3122, %v3378
        %v3380 = vand.u32 %v1220, 4294901760
        %3381 = vmatprep.mubr.f32.mxu0 %v3380
        %v3382 = vand.u32 %v1219, 4294901760
        %3383 = vmatmul.mubr.f32.gmra.mxu0 %v3382
        %v3384 = vpop.f32.mrf.mxu0
        %v3385 = vadd.f32 %v3128, %v3384
        %v3386 = vpop.f32.mrf.mxu0
        %v3387 = vadd.f32 %v3130, %v3386
        %v3388 = vand.u32 %v1224, 4294901760
        %3389 = vmatprep.mubr.f32.mxu0 %v3388
        %v3390 = vand.u32 %v1223, 4294901760
        %3391 = vmatmul.mubr.f32.gmra.mxu0 %v3390
        %v3392 = vpop.f32.mrf.mxu0
        %v3393 = vadd.f32 %v3136, %v3392
        %v3394 = vpop.f32.mrf.mxu0
        %v3395 = vadd.f32 %v3138, %v3394
        %v3396 = vand.u32 %v1228, 4294901760
        %3397 = vmatprep.mubr.f32.mxu0 %v3396
        %v3398 = vand.u32 %v1227, 4294901760
        %3399 = vmatmul.mubr.f32.gmra.mxu0 %v3398
        %v3400 = vpop.f32.mrf.mxu0
        %v3401 = vadd.f32 %v3144, %v3400
        %v3402 = vpop.f32.mrf.mxu0
        %v3403 = vadd.f32 %v3146, %v3402
        %v3404 = vand.u32 %v1232, 4294901760
        %3405 = vmatprep.mubr.f32.mxu0 %v3404
        %v3406 = vand.u32 %v1231, 4294901760
        %3407 = vmatmul.mubr.f32.gmra.mxu0 %v3406
        %v3408 = vpop.f32.mrf.mxu0
        %v3409 = vadd.f32 %v3152, %v3408
        %v3410 = vpop.f32.mrf.mxu0
        %v3411 = vadd.f32 %v3154, %v3410
        %v3412 = vand.u32 %v1236, 4294901760
        %3413 = vmatprep.mubr.f32.mxu0 %v3412
        %v3414 = vand.u32 %v1235, 4294901760
        %3415 = vmatmul.mubr.f32.gmra.mxu0 %v3414
        %v3416 = vpop.f32.mrf.mxu0
        %v3417 = vadd.f32 %v3160, %v3416
        %v3418 = vpop.f32.mrf.mxu0
        %v3419 = vadd.f32 %v3162, %v3418
        %v3420 = vand.u32 %v1240, 4294901760
        %3421 = vmatprep.mubr.f32.mxu0 %v3420
        %v3422 = vand.u32 %v1239, 4294901760
        %3423 = vmatmul.mubr.f32.gmra.mxu0 %v3422
        %v3424 = vpop.f32.mrf.mxu0
        %v3425 = vadd.f32 %v3168, %v3424
        %v3426 = vpop.f32.mrf.mxu0
        %v3427 = vadd.f32 %v3170, %v3426
        %v3428 = vand.u32 %v1244, 4294901760
        %3429 = vmatprep.mubr.f32.mxu0 %v3428
        %v3430 = vand.u32 %v1243, 4294901760
        %3431 = vmatmul.mubr.f32.gmra.mxu0 %v3430
        %v3432 = vpop.f32.mrf.mxu0
        %v3433 = vadd.f32 %v3176, %v3432
        %v3434 = vpop.f32.mrf.mxu0
        %v3435 = vadd.f32 %v3178, %v3434
        %v3436 = vand.u32 %v1248, 4294901760
        %3437 = vmatprep.mubr.f32.mxu0 %v3436
        %v3438 = vand.u32 %v1247, 4294901760
        %3439 = vmatmul.mubr.f32.gmra.mxu0 %v3438
        %v3440 = vpop.f32.mrf.mxu0
        %v3441 = vadd.f32 %v3184, %v3440
        %v3442 = vpop.f32.mrf.mxu0
        %v3443 = vadd.f32 %v3186, %v3442
        %v3444 = vand.u32 %v1252, 4294901760
        %3445 = vmatprep.mubr.f32.mxu0 %v3444
        %v3446 = vand.u32 %v1251, 4294901760
        %3447 = vmatmul.mubr.f32.gmra.mxu0 %v3446
        %v3448 = vpop.f32.mrf.mxu0
        %v3449 = vadd.f32 %v3192, %v3448
        %v3450 = vpop.f32.mrf.mxu0
        %v3451 = vadd.f32 %v3194, %v3450
        %v3452 = vand.u32 %v1256, 4294901760
        %3453 = vmatprep.mubr.f32.mxu0 %v3452
        %v3454 = vand.u32 %v1255, 4294901760
        %3455 = vmatmul.mubr.f32.gmra.mxu0 %v3454
        %v3456 = vpop.f32.mrf.mxu0
        %v3457 = vadd.f32 %v3200, %v3456
        %v3458 = vpop.f32.mrf.mxu0
        %v3459 = vadd.f32 %v3202, %v3458
        %v3460 = vand.u32 %v1260, 4294901760
        %3461 = vmatprep.mubr.f32.mxu0 %v3460
        %v3462 = vand.u32 %v1259, 4294901760
        %3463 = vmatmul.mubr.f32.gmra.mxu0 %v3462
        %v3464 = vpop.f32.mrf.mxu0
        %v3465 = vadd.f32 %v3208, %v3464
        %v3466 = vpop.f32.mrf.mxu0
        %v3467 = vadd.f32 %v3210, %v3466
        %v3468 = vand.u32 %v1264, 4294901760
        %3469 = vmatprep.mubr.f32.mxu0 %v3468
        %v3470 = vand.u32 %v1263, 4294901760
        %3471 = vmatmul.mubr.f32.gmra.mxu0 %v3470
        %v3472 = vpop.f32.mrf.mxu0
        %v3473 = vadd.f32 %v3216, %v3472
        %v3474 = vpop.f32.mrf.mxu0
        %v3475 = vadd.f32 %v3218, %v3474
        %v3476 = vand.u32 %v1268, 4294901760
        %3477 = vmatprep.mubr.f32.mxu0 %v3476
        %v3478 = vand.u32 %v1267, 4294901760
        %3479 = vmatmul.mubr.f32.gmra.mxu0 %v3478
        %v3480 = vpop.f32.mrf.mxu0
        %v3481 = vadd.f32 %v3224, %v3480
        %v3482 = vpop.f32.mrf.mxu0
        %v3483 = vadd.f32 %v3226, %v3482
        %3484 = vdwg.mxu0
        %v3485 = vand.u32 %v796, 4294901760
        %3486 = vmatprep.subr.mxu0 %v3485
        %v3487 = vand.u32 %v599, 4294901760
        %3488 = vmatpush1.msra.mxu0 %v3487
        %v3489 = vand.u32 %v795, 4294901760
        %3490 = vmatprep.subr.mxu0 %v3489
        %v3491 = vand.u32 %v598, 4294901760
        %3492 = vmatpush1.msra.mxu0 %v3491
        %v3493 = vand.u32 %v794, 4294901760
        %3494 = vmatprep.subr.mxu0 %v3493
        %v3495 = vand.u32 %v597, 4294901760
        %3496 = vmatpush1.msra.mxu0 %v3495
        %v3497 = vand.u32 %v793, 4294901760
        %3498 = vmatprep.subr.mxu0 %v3497
        %v3499 = vand.u32 %v596, 4294901760
        %3500 = vmatpush1.msra.mxu0 %v3499
        %v3501 = vand.u32 %v792, 4294901760
        %3502 = vmatprep.subr.mxu0 %v3501
        %v3503 = vand.u32 %v595, 4294901760
        %3504 = vmatpush1.msra.mxu0 %v3503
        %v3505 = vand.u32 %v791, 4294901760
        %3506 = vmatprep.subr.mxu0 %v3505
        %v3507 = vand.u32 %v594, 4294901760
        %3508 = vmatpush1.msra.mxu0 %v3507
        %v3509 = vand.u32 %v790, 4294901760
        %3510 = vmatprep.subr.mxu0 %v3509
        %v3511 = vand.u32 %v593, 4294901760
        %3512 = vmatpush1.msra.mxu0 %v3511
        %v3513 = vand.u32 %v789, 4294901760
        %3514 = vmatprep.subr.mxu0 %v3513
        %v3515 = vand.u32 %v592, 4294901760
        %3516 = vmatpush1.msra.mxu0 %v3515
        %v3517 = vand.u32 %v788, 4294901760
        %3518 = vmatprep.subr.mxu0 %v3517
        %v3519 = vand.u32 %v591, 4294901760
        %3520 = vmatpush1.msra.mxu0 %v3519
        %v3521 = vand.u32 %v787, 4294901760
        %3522 = vmatprep.subr.mxu0 %v3521
        %v3523 = vand.u32 %v590, 4294901760
        %3524 = vmatpush1.msra.mxu0 %v3523
        %v3525 = vand.u32 %v786, 4294901760
        %3526 = vmatprep.subr.mxu0 %v3525
        %v3527 = vand.u32 %v589, 4294901760
        %3528 = vmatpush1.msra.mxu0 %v3527
        %v3529 = vand.u32 %v785, 4294901760
        %3530 = vmatprep.subr.mxu0 %v3529
        %v3531 = vand.u32 %v588, 4294901760
        %3532 = vmatpush1.msra.mxu0 %v3531
        %v3533 = vand.u32 %v784, 4294901760
        %3534 = vmatprep.subr.mxu0 %v3533
        %v3535 = vand.u32 %v587, 4294901760
        %3536 = vmatpush1.msra.mxu0 %v3535
        %v3537 = vand.u32 %v783, 4294901760
        %3538 = vmatprep.subr.mxu0 %v3537
        %v3539 = vand.u32 %v586, 4294901760
        %3540 = vmatpush1.msra.mxu0 %v3539
        %v3541 = vand.u32 %v782, 4294901760
        %3542 = vmatprep.subr.mxu0 %v3541
        %v3543 = vand.u32 %v585, 4294901760
        %3544 = vmatpush1.msra.mxu0 %v3543
        %v3545 = vand.u32 %v781, 4294901760
        %3546 = vmatprep.subr.mxu0 %v3545
        %v3547 = vand.u32 %v584, 4294901760
        %3548 = vmatpush1.msra.mxu0 %v3547
        %v3549 = vand.u32 %v812, 4294901760
        %3550 = vmatprep.subr.mxu0 %v3549
        %v3551 = vand.u32 %v615, 4294901760
        %3552 = vmatpush2.msra.mxu0 %v3551
        %v3553 = vand.u32 %v811, 4294901760
        %3554 = vmatprep.subr.mxu0 %v3553
        %v3555 = vand.u32 %v614, 4294901760
        %3556 = vmatpush2.msra.mxu0 %v3555
        %v3557 = vand.u32 %v810, 4294901760
        %3558 = vmatprep.subr.mxu0 %v3557
        %v3559 = vand.u32 %v613, 4294901760
        %3560 = vmatpush2.msra.mxu0 %v3559
        %v3561 = vand.u32 %v809, 4294901760
        %3562 = vmatprep.subr.mxu0 %v3561
        %v3563 = vand.u32 %v612, 4294901760
        %3564 = vmatpush2.msra.mxu0 %v3563
        %v3565 = vand.u32 %v808, 4294901760
        %3566 = vmatprep.subr.mxu0 %v3565
        %v3567 = vand.u32 %v611, 4294901760
        %3568 = vmatpush2.msra.mxu0 %v3567
        %v3569 = vand.u32 %v807, 4294901760
        %3570 = vmatprep.subr.mxu0 %v3569
        %v3571 = vand.u32 %v610, 4294901760
        %3572 = vmatpush2.msra.mxu0 %v3571
        %v3573 = vand.u32 %v806, 4294901760
        %3574 = vmatprep.subr.mxu0 %v3573
        %v3575 = vand.u32 %v609, 4294901760
        %3576 = vmatpush2.msra.mxu0 %v3575
        %v3577 = vand.u32 %v805, 4294901760
        %3578 = vmatprep.subr.mxu0 %v3577
        %v3579 = vand.u32 %v608, 4294901760
        %3580 = vmatpush2.msra.mxu0 %v3579
        %v3581 = vand.u32 %v804, 4294901760
        %3582 = vmatprep.subr.mxu0 %v3581
        %v3583 = vand.u32 %v607, 4294901760
        %3584 = vmatpush2.msra.mxu0 %v3583
        %v3585 = vand.u32 %v803, 4294901760
        %3586 = vmatprep.subr.mxu0 %v3585
        %v3587 = vand.u32 %v606, 4294901760
        %3588 = vmatpush2.msra.mxu0 %v3587
        %v3589 = vand.u32 %v802, 4294901760
        %3590 = vmatprep.subr.mxu0 %v3589
        %v3591 = vand.u32 %v605, 4294901760
        %3592 = vmatpush2.msra.mxu0 %v3591
        %v3593 = vand.u32 %v801, 4294901760
        %3594 = vmatprep.subr.mxu0 %v3593
        %v3595 = vand.u32 %v604, 4294901760
        %3596 = vmatpush2.msra.mxu0 %v3595
        %v3597 = vand.u32 %v800, 4294901760
        %3598 = vmatprep.subr.mxu0 %v3597
        %v3599 = vand.u32 %v603, 4294901760
        %3600 = vmatpush2.msra.mxu0 %v3599
        %v3601 = vand.u32 %v799, 4294901760
        %3602 = vmatprep.subr.mxu0 %v3601
        %v3603 = vand.u32 %v602, 4294901760
        %3604 = vmatpush2.msra.mxu0 %v3603
        %v3605 = vand.u32 %v798, 4294901760
        %3606 = vmatprep.subr.mxu0 %v3605
        %v3607 = vand.u32 %v601, 4294901760
        %3608 = vmatpush2.msra.mxu0 %v3607
        %v3609 = vand.u32 %v797, 4294901760
        %3610 = vmatprep.subr.mxu0 %v3609
        %v3611 = vand.u32 %v600, 4294901760
        %3612 = vmatpush2.msra.mxu0 %v3611
        %v3613 = vand.u32 %v1210, 4294901760
        %v3614 = vsub.f32 %v1210, %v3613
        %v3615 = vand.u32 %v3614, 4294901760
        %v3616 = vsub.f32 %v3614, %v3615
        %v3617 = vand.u32 %v3616, 4294901760
        %3618 = vmatprep.mubr.f32.mxu0 %v3617
        %v3619 = vand.u32 %v1209, 4294901760
        %v3620 = vsub.f32 %v1209, %v3619
        %v3621 = vand.u32 %v3620, 4294901760
        %v3622 = vsub.f32 %v3620, %v3621
        %v3623 = vand.u32 %v3622, 4294901760
        %3624 = vmatmul.mubr.f32.gmra.mxu0 %v3623
        %v3625 = vpop.f32.mrf.mxu0
        %v3626 = vadd.f32 %v3361, %v3625
        %v3627 = vpop.f32.mrf.mxu0
        %v3628 = vadd.f32 %v3363, %v3627
        %v3629 = vand.u32 %v1214, 4294901760
        %v3630 = vsub.f32 %v1214, %v3629
        %v3631 = vand.u32 %v3630, 4294901760
        %v3632 = vsub.f32 %v3630, %v3631
        %v3633 = vand.u32 %v3632, 4294901760
        %3634 = vmatprep.mubr.f32.mxu0 %v3633
        %v3635 = vand.u32 %v1213, 4294901760
        %v3636 = vsub.f32 %v1213, %v3635
        %v3637 = vand.u32 %v3636, 4294901760
        %v3638 = vsub.f32 %v3636, %v3637
        %v3639 = vand.u32 %v3638, 4294901760
        %3640 = vmatmul.mubr.f32.gmra.mxu0 %v3639
        %v3641 = vpop.f32.mrf.mxu0
        %v3642 = vadd.f32 %v3369, %v3641
        %v3643 = vpop.f32.mrf.mxu0
        %v3644 = vadd.f32 %v3371, %v3643
        %v3645 = vand.u32 %v1218, 4294901760
        %v3646 = vsub.f32 %v1218, %v3645
        %v3647 = vand.u32 %v3646, 4294901760
        %v3648 = vsub.f32 %v3646, %v3647
        %v3649 = vand.u32 %v3648, 4294901760
        %3650 = vmatprep.mubr.f32.mxu0 %v3649
        %v3651 = vand.u32 %v1217, 4294901760
        %v3652 = vsub.f32 %v1217, %v3651
        %v3653 = vand.u32 %v3652, 4294901760
        %v3654 = vsub.f32 %v3652, %v3653
        %v3655 = vand.u32 %v3654, 4294901760
        %3656 = vmatmul.mubr.f32.gmra.mxu0 %v3655
        %v3657 = vpop.f32.mrf.mxu0
        %v3658 = vadd.f32 %v3377, %v3657
        %v3659 = vpop.f32.mrf.mxu0
        %v3660 = vadd.f32 %v3379, %v3659
        %v3661 = vand.u32 %v1222, 4294901760
        %v3662 = vsub.f32 %v1222, %v3661
        %v3663 = vand.u32 %v3662, 4294901760
        %v3664 = vsub.f32 %v3662, %v3663
        %v3665 = vand.u32 %v3664, 4294901760
        %3666 = vmatprep.mubr.f32.mxu0 %v3665
        %v3667 = vand.u32 %v1221, 4294901760
        %v3668 = vsub.f32 %v1221, %v3667
        %v3669 = vand.u32 %v3668, 4294901760
        %v3670 = vsub.f32 %v3668, %v3669
        %v3671 = vand.u32 %v3670, 4294901760
        %3672 = vmatmul.mubr.f32.gmra.mxu0 %v3671
        %v3673 = vpop.f32.mrf.mxu0
        %v3674 = vadd.f32 %v3385, %v3673
        %v3675 = vpop.f32.mrf.mxu0
        %v3676 = vadd.f32 %v3387, %v3675
        %v3677 = vand.u32 %v1226, 4294901760
        %v3678 = vsub.f32 %v1226, %v3677
        %v3679 = vand.u32 %v3678, 4294901760
        %v3680 = vsub.f32 %v3678, %v3679
        %v3681 = vand.u32 %v3680, 4294901760
        %3682 = vmatprep.mubr.f32.mxu0 %v3681
        %v3683 = vand.u32 %v1225, 4294901760
        %v3684 = vsub.f32 %v1225, %v3683
        %v3685 = vand.u32 %v3684, 4294901760
        %v3686 = vsub.f32 %v3684, %v3685
        %v3687 = vand.u32 %v3686, 4294901760
        %3688 = vmatmul.mubr.f32.gmra.mxu0 %v3687
        %v3689 = vpop.f32.mrf.mxu0
        %v3690 = vadd.f32 %v3393, %v3689
        %v3691 = vpop.f32.mrf.mxu0
        %v3692 = vadd.f32 %v3395, %v3691
        %v3693 = vand.u32 %v1230, 4294901760
        %v3694 = vsub.f32 %v1230, %v3693
        %v3695 = vand.u32 %v3694, 4294901760
        %v3696 = vsub.f32 %v3694, %v3695
        %v3697 = vand.u32 %v3696, 4294901760
        %3698 = vmatprep.mubr.f32.mxu0 %v3697
        %v3699 = vand.u32 %v1229, 4294901760
        %v3700 = vsub.f32 %v1229, %v3699
        %v3701 = vand.u32 %v3700, 4294901760
        %v3702 = vsub.f32 %v3700, %v3701
        %v3703 = vand.u32 %v3702, 4294901760
        %3704 = vmatmul.mubr.f32.gmra.mxu0 %v3703
        %v3705 = vpop.f32.mrf.mxu0
        %v3706 = vadd.f32 %v3401, %v3705
        %v3707 = vpop.f32.mrf.mxu0
        %v3708 = vadd.f32 %v3403, %v3707
        %v3709 = vand.u32 %v1234, 4294901760
        %v3710 = vsub.f32 %v1234, %v3709
        %v3711 = vand.u32 %v3710, 4294901760
        %v3712 = vsub.f32 %v3710, %v3711
        %v3713 = vand.u32 %v3712, 4294901760
        %3714 = vmatprep.mubr.f32.mxu0 %v3713
        %v3715 = vand.u32 %v1233, 4294901760
        %v3716 = vsub.f32 %v1233, %v3715
        %v3717 = vand.u32 %v3716, 4294901760
        %v3718 = vsub.f32 %v3716, %v3717
        %v3719 = vand.u32 %v3718, 4294901760
        %3720 = vmatmul.mubr.f32.gmra.mxu0 %v3719
        %v3721 = vpop.f32.mrf.mxu0
        %v3722 = vadd.f32 %v3409, %v3721
        %v3723 = vpop.f32.mrf.mxu0
        %v3724 = vadd.f32 %v3411, %v3723
        %v3725 = vand.u32 %v1238, 4294901760
        %v3726 = vsub.f32 %v1238, %v3725
        %v3727 = vand.u32 %v3726, 4294901760
        %v3728 = vsub.f32 %v3726, %v3727
        %v3729 = vand.u32 %v3728, 4294901760
        %3730 = vmatprep.mubr.f32.mxu0 %v3729
        %v3731 = vand.u32 %v1237, 4294901760
        %v3732 = vsub.f32 %v1237, %v3731
        %v3733 = vand.u32 %v3732, 4294901760
        %v3734 = vsub.f32 %v3732, %v3733
        %v3735 = vand.u32 %v3734, 4294901760
        %3736 = vmatmul.mubr.f32.gmra.mxu0 %v3735
        %v3737 = vpop.f32.mrf.mxu0
        %v3738 = vadd.f32 %v3417, %v3737
        %v3739 = vpop.f32.mrf.mxu0
        %v3740 = vadd.f32 %v3419, %v3739
        %v3741 = vand.u32 %v1242, 4294901760
        %v3742 = vsub.f32 %v1242, %v3741
        %v3743 = vand.u32 %v3742, 4294901760
        %v3744 = vsub.f32 %v3742, %v3743
        %v3745 = vand.u32 %v3744, 4294901760
        %3746 = vmatprep.mubr.f32.mxu0 %v3745
        %v3747 = vand.u32 %v1241, 4294901760
        %v3748 = vsub.f32 %v1241, %v3747
        %v3749 = vand.u32 %v3748, 4294901760
        %v3750 = vsub.f32 %v3748, %v3749
        %v3751 = vand.u32 %v3750, 4294901760
        %3752 = vmatmul.mubr.f32.gmra.mxu0 %v3751
        %v3753 = vpop.f32.mrf.mxu0
        %v3754 = vadd.f32 %v3425, %v3753
        %v3755 = vpop.f32.mrf.mxu0
        %v3756 = vadd.f32 %v3427, %v3755
        %v3757 = vand.u32 %v1246, 4294901760
        %v3758 = vsub.f32 %v1246, %v3757
        %v3759 = vand.u32 %v3758, 4294901760
        %v3760 = vsub.f32 %v3758, %v3759
        %v3761 = vand.u32 %v3760, 4294901760
        %3762 = vmatprep.mubr.f32.mxu0 %v3761
        %v3763 = vand.u32 %v1245, 4294901760
        %v3764 = vsub.f32 %v1245, %v3763
        %v3765 = vand.u32 %v3764, 4294901760
        %v3766 = vsub.f32 %v3764, %v3765
        %v3767 = vand.u32 %v3766, 4294901760
        %3768 = vmatmul.mubr.f32.gmra.mxu0 %v3767
        %v3769 = vpop.f32.mrf.mxu0
        %v3770 = vadd.f32 %v3433, %v3769
        %v3771 = vpop.f32.mrf.mxu0
        %v3772 = vadd.f32 %v3435, %v3771
        %v3773 = vand.u32 %v1250, 4294901760
        %v3774 = vsub.f32 %v1250, %v3773
        %v3775 = vand.u32 %v3774, 4294901760
        %v3776 = vsub.f32 %v3774, %v3775
        %v3777 = vand.u32 %v3776, 4294901760
        %3778 = vmatprep.mubr.f32.mxu0 %v3777
        %v3779 = vand.u32 %v1249, 4294901760
        %v3780 = vsub.f32 %v1249, %v3779
        %v3781 = vand.u32 %v3780, 4294901760
        %v3782 = vsub.f32 %v3780, %v3781
        %v3783 = vand.u32 %v3782, 4294901760
        %3784 = vmatmul.mubr.f32.gmra.mxu0 %v3783
        %v3785 = vpop.f32.mrf.mxu0
        %v3786 = vadd.f32 %v3441, %v3785
        %v3787 = vpop.f32.mrf.mxu0
        %v3788 = vadd.f32 %v3443, %v3787
        %v3789 = vand.u32 %v1254, 4294901760
        %v3790 = vsub.f32 %v1254, %v3789
        %v3791 = vand.u32 %v3790, 4294901760
        %v3792 = vsub.f32 %v3790, %v3791
        %v3793 = vand.u32 %v3792, 4294901760
        %3794 = vmatprep.mubr.f32.mxu0 %v3793
        %v3795 = vand.u32 %v1253, 4294901760
        %v3796 = vsub.f32 %v1253, %v3795
        %v3797 = vand.u32 %v3796, 4294901760
        %v3798 = vsub.f32 %v3796, %v3797
        %v3799 = vand.u32 %v3798, 4294901760
        %3800 = vmatmul.mubr.f32.gmra.mxu0 %v3799
        %v3801 = vpop.f32.mrf.mxu0
        %v3802 = vadd.f32 %v3449, %v3801
        %v3803 = vpop.f32.mrf.mxu0
        %v3804 = vadd.f32 %v3451, %v3803
        %v3805 = vand.u32 %v1258, 4294901760
        %v3806 = vsub.f32 %v1258, %v3805
        %v3807 = vand.u32 %v3806, 4294901760
        %v3808 = vsub.f32 %v3806, %v3807
        %v3809 = vand.u32 %v3808, 4294901760
        %3810 = vmatprep.mubr.f32.mxu0 %v3809
        %v3811 = vand.u32 %v1257, 4294901760
        %v3812 = vsub.f32 %v1257, %v3811
        %v3813 = vand.u32 %v3812, 4294901760
        %v3814 = vsub.f32 %v3812, %v3813
        %v3815 = vand.u32 %v3814, 4294901760
        %3816 = vmatmul.mubr.f32.gmra.mxu0 %v3815
        %v3817 = vpop.f32.mrf.mxu0
        %v3818 = vadd.f32 %v3457, %v3817
        %v3819 = vpop.f32.mrf.mxu0
        %v3820 = vadd.f32 %v3459, %v3819
        %v3821 = vand.u32 %v1262, 4294901760
        %v3822 = vsub.f32 %v1262, %v3821
        %v3823 = vand.u32 %v3822, 4294901760
        %v3824 = vsub.f32 %v3822, %v3823
        %v3825 = vand.u32 %v3824, 4294901760
        %3826 = vmatprep.mubr.f32.mxu0 %v3825
        %v3827 = vand.u32 %v1261, 4294901760
        %v3828 = vsub.f32 %v1261, %v3827
        %v3829 = vand.u32 %v3828, 4294901760
        %v3830 = vsub.f32 %v3828, %v3829
        %v3831 = vand.u32 %v3830, 4294901760
        %3832 = vmatmul.mubr.f32.gmra.mxu0 %v3831
        %v3833 = vpop.f32.mrf.mxu0
        %v3834 = vadd.f32 %v3465, %v3833
        %v3835 = vpop.f32.mrf.mxu0
        %v3836 = vadd.f32 %v3467, %v3835
        %v3837 = vand.u32 %v1266, 4294901760
        %v3838 = vsub.f32 %v1266, %v3837
        %v3839 = vand.u32 %v3838, 4294901760
        %v3840 = vsub.f32 %v3838, %v3839
        %v3841 = vand.u32 %v3840, 4294901760
        %3842 = vmatprep.mubr.f32.mxu0 %v3841
        %v3843 = vand.u32 %v1265, 4294901760
        %v3844 = vsub.f32 %v1265, %v3843
        %v3845 = vand.u32 %v3844, 4294901760
        %v3846 = vsub.f32 %v3844, %v3845
        %v3847 = vand.u32 %v3846, 4294901760
        %3848 = vmatmul.mubr.f32.gmra.mxu0 %v3847
        %v3849 = vpop.f32.mrf.mxu0
        %v3850 = vadd.f32 %v3473, %v3849
        %v3851 = vpop.f32.mrf.mxu0
        %v3852 = vadd.f32 %v3475, %v3851
        %v3853 = vand.u32 %v1270, 4294901760
        %v3854 = vsub.f32 %v1270, %v3853
        %v3855 = vand.u32 %v3854, 4294901760
        %v3856 = vsub.f32 %v3854, %v3855
        %v3857 = vand.u32 %v3856, 4294901760
        %3858 = vmatprep.mubr.f32.mxu0 %v3857
        %v3859 = vand.u32 %v1269, 4294901760
        %v3860 = vsub.f32 %v1269, %v3859
        %v3861 = vand.u32 %v3860, 4294901760
        %v3862 = vsub.f32 %v3860, %v3861
        %v3863 = vand.u32 %v3862, 4294901760
        %3864 = vmatmul.mubr.f32.gmra.mxu0 %v3863
        %v3865 = vpop.f32.mrf.mxu0
        %v3866 = vadd.f32 %v3481, %v3865
        %v3867 = vpop.f32.mrf.mxu0
        %v3868 = vadd.f32 %v3483, %v3867
        %3869 = vdwg.mxu0
        %v3870 = vand.u32 %v796, 4294901760
        %v3871 = vsub.f32 %v796, %v3870
        %v3872 = vand.u32 %v3871, 4294901760
        %v3873 = vsub.f32 %v3871, %v3872
        %v3874 = vand.u32 %v3873, 4294901760
        %3875 = vmatprep.subr.mxu0 %v3874
        %v3876 = vand.u32 %v599, 4294901760
        %v3877 = vsub.f32 %v599, %v3876
        %v3878 = vand.u32 %v3877, 4294901760
        %v3879 = vsub.f32 %v3877, %v3878
        %v3880 = vand.u32 %v3879, 4294901760
        %3881 = vmatpush1.msra.mxu0 %v3880
        %v3882 = vand.u32 %v795, 4294901760
        %v3883 = vsub.f32 %v795, %v3882
        %v3884 = vand.u32 %v3883, 4294901760
        %v3885 = vsub.f32 %v3883, %v3884
        %v3886 = vand.u32 %v3885, 4294901760
        %3887 = vmatprep.subr.mxu0 %v3886
        %v3888 = vand.u32 %v598, 4294901760
        %v3889 = vsub.f32 %v598, %v3888
        %v3890 = vand.u32 %v3889, 4294901760
        %v3891 = vsub.f32 %v3889, %v3890
        %v3892 = vand.u32 %v3891, 4294901760
        %3893 = vmatpush1.msra.mxu0 %v3892
        %v3894 = vand.u32 %v794, 4294901760
        %v3895 = vsub.f32 %v794, %v3894
        %v3896 = vand.u32 %v3895, 4294901760
        %v3897 = vsub.f32 %v3895, %v3896
        %v3898 = vand.u32 %v3897, 4294901760
        %3899 = vmatprep.subr.mxu0 %v3898
        %v3900 = vand.u32 %v597, 4294901760
        %v3901 = vsub.f32 %v597, %v3900
        %v3902 = vand.u32 %v3901, 4294901760
        %v3903 = vsub.f32 %v3901, %v3902
        %v3904 = vand.u32 %v3903, 4294901760
        %3905 = vmatpush1.msra.mxu0 %v3904
        %v3906 = vand.u32 %v793, 4294901760
        %v3907 = vsub.f32 %v793, %v3906
        %v3908 = vand.u32 %v3907, 4294901760
        %v3909 = vsub.f32 %v3907, %v3908
        %v3910 = vand.u32 %v3909, 4294901760
        %3911 = vmatprep.subr.mxu0 %v3910
        %v3912 = vand.u32 %v596, 4294901760
        %v3913 = vsub.f32 %v596, %v3912
        %v3914 = vand.u32 %v3913, 4294901760
        %v3915 = vsub.f32 %v3913, %v3914
        %v3916 = vand.u32 %v3915, 4294901760
        %3917 = vmatpush1.msra.mxu0 %v3916
        %v3918 = vand.u32 %v792, 4294901760
        %v3919 = vsub.f32 %v792, %v3918
        %v3920 = vand.u32 %v3919, 4294901760
        %v3921 = vsub.f32 %v3919, %v3920
        %v3922 = vand.u32 %v3921, 4294901760
        %3923 = vmatprep.subr.mxu0 %v3922
        %v3924 = vand.u32 %v595, 4294901760
        %v3925 = vsub.f32 %v595, %v3924
        %v3926 = vand.u32 %v3925, 4294901760
        %v3927 = vsub.f32 %v3925, %v3926
        %v3928 = vand.u32 %v3927, 4294901760
        %3929 = vmatpush1.msra.mxu0 %v3928
        %v3930 = vand.u32 %v791, 4294901760
        %v3931 = vsub.f32 %v791, %v3930
        %v3932 = vand.u32 %v3931, 4294901760
        %v3933 = vsub.f32 %v3931, %v3932
        %v3934 = vand.u32 %v3933, 4294901760
        %3935 = vmatprep.subr.mxu0 %v3934
        %v3936 = vand.u32 %v594, 4294901760
        %v3937 = vsub.f32 %v594, %v3936
        %v3938 = vand.u32 %v3937, 4294901760
        %v3939 = vsub.f32 %v3937, %v3938
        %v3940 = vand.u32 %v3939, 4294901760
        %3941 = vmatpush1.msra.mxu0 %v3940
        %v3942 = vand.u32 %v790, 4294901760
        %v3943 = vsub.f32 %v790, %v3942
        %v3944 = vand.u32 %v3943, 4294901760
        %v3945 = vsub.f32 %v3943, %v3944
        %v3946 = vand.u32 %v3945, 4294901760
        %3947 = vmatprep.subr.mxu0 %v3946
        %v3948 = vand.u32 %v593, 4294901760
        %v3949 = vsub.f32 %v593, %v3948
        %v3950 = vand.u32 %v3949, 4294901760
        %v3951 = vsub.f32 %v3949, %v3950
        %v3952 = vand.u32 %v3951, 4294901760
        %3953 = vmatpush1.msra.mxu0 %v3952
        %v3954 = vand.u32 %v789, 4294901760
        %v3955 = vsub.f32 %v789, %v3954
        %v3956 = vand.u32 %v3955, 4294901760
        %v3957 = vsub.f32 %v3955, %v3956
        %v3958 = vand.u32 %v3957, 4294901760
        %3959 = vmatprep.subr.mxu0 %v3958
        %v3960 = vand.u32 %v592, 4294901760
        %v3961 = vsub.f32 %v592, %v3960
        %v3962 = vand.u32 %v3961, 4294901760
        %v3963 = vsub.f32 %v3961, %v3962
        %v3964 = vand.u32 %v3963, 4294901760
        %3965 = vmatpush1.msra.mxu0 %v3964
        %v3966 = vand.u32 %v788, 4294901760
        %v3967 = vsub.f32 %v788, %v3966
        %v3968 = vand.u32 %v3967, 4294901760
        %v3969 = vsub.f32 %v3967, %v3968
        %v3970 = vand.u32 %v3969, 4294901760
        %3971 = vmatprep.subr.mxu0 %v3970
        %v3972 = vand.u32 %v591, 4294901760
        %v3973 = vsub.f32 %v591, %v3972
        %v3974 = vand.u32 %v3973, 4294901760
        %v3975 = vsub.f32 %v3973, %v3974
        %v3976 = vand.u32 %v3975, 4294901760
        %3977 = vmatpush1.msra.mxu0 %v3976
        %v3978 = vand.u32 %v787, 4294901760
        %v3979 = vsub.f32 %v787, %v3978
        %v3980 = vand.u32 %v3979, 4294901760
        %v3981 = vsub.f32 %v3979, %v3980
        %v3982 = vand.u32 %v3981, 4294901760
        %3983 = vmatprep.subr.mxu0 %v3982
        %v3984 = vand.u32 %v590, 4294901760
        %v3985 = vsub.f32 %v590, %v3984
        %v3986 = vand.u32 %v3985, 4294901760
        %v3987 = vsub.f32 %v3985, %v3986
        %v3988 = vand.u32 %v3987, 4294901760
        %3989 = vmatpush1.msra.mxu0 %v3988
        %v3990 = vand.u32 %v786, 4294901760
        %v3991 = vsub.f32 %v786, %v3990
        %v3992 = vand.u32 %v3991, 4294901760
        %v3993 = vsub.f32 %v3991, %v3992
        %v3994 = vand.u32 %v3993, 4294901760
        %3995 = vmatprep.subr.mxu0 %v3994
        %v3996 = vand.u32 %v589, 4294901760
        %v3997 = vsub.f32 %v589, %v3996
        %v3998 = vand.u32 %v3997, 4294901760
        %v3999 = vsub.f32 %v3997, %v3998
        %v4000 = vand.u32 %v3999, 4294901760
        %4001 = vmatpush1.msra.mxu0 %v4000
        %v4002 = vand.u32 %v785, 4294901760
        %v4003 = vsub.f32 %v785, %v4002
        %v4004 = vand.u32 %v4003, 4294901760
        %v4005 = vsub.f32 %v4003, %v4004
        %v4006 = vand.u32 %v4005, 4294901760
        %4007 = vmatprep.subr.mxu0 %v4006
        %v4008 = vand.u32 %v588, 4294901760
        %v4009 = vsub.f32 %v588, %v4008
        %v4010 = vand.u32 %v4009, 4294901760
        %v4011 = vsub.f32 %v4009, %v4010
        %v4012 = vand.u32 %v4011, 4294901760
        %4013 = vmatpush1.msra.mxu0 %v4012
        %v4014 = vand.u32 %v784, 4294901760
        %v4015 = vsub.f32 %v784, %v4014
        %v4016 = vand.u32 %v4015, 4294901760
        %v4017 = vsub.f32 %v4015, %v4016
        %v4018 = vand.u32 %v4017, 4294901760
        %4019 = vmatprep.subr.mxu0 %v4018
        %v4020 = vand.u32 %v587, 4294901760
        %v4021 = vsub.f32 %v587, %v4020
        %v4022 = vand.u32 %v4021, 4294901760
        %v4023 = vsub.f32 %v4021, %v4022
        %v4024 = vand.u32 %v4023, 4294901760
        %4025 = vmatpush1.msra.mxu0 %v4024
        %v4026 = vand.u32 %v783, 4294901760
        %v4027 = vsub.f32 %v783, %v4026
        %v4028 = vand.u32 %v4027, 4294901760
        %v4029 = vsub.f32 %v4027, %v4028
        %v4030 = vand.u32 %v4029, 4294901760
        %4031 = vmatprep.subr.mxu0 %v4030
        %v4032 = vand.u32 %v586, 4294901760
        %v4033 = vsub.f32 %v586, %v4032
        %v4034 = vand.u32 %v4033, 4294901760
        %v4035 = vsub.f32 %v4033, %v4034
        %v4036 = vand.u32 %v4035, 4294901760
        %4037 = vmatpush1.msra.mxu0 %v4036
        %v4038 = vand.u32 %v782, 4294901760
        %v4039 = vsub.f32 %v782, %v4038
        %v4040 = vand.u32 %v4039, 4294901760
        %v4041 = vsub.f32 %v4039, %v4040
        %v4042 = vand.u32 %v4041, 4294901760
        %4043 = vmatprep.subr.mxu0 %v4042
        %v4044 = vand.u32 %v585, 4294901760
        %v4045 = vsub.f32 %v585, %v4044
        %v4046 = vand.u32 %v4045, 4294901760
        %v4047 = vsub.f32 %v4045, %v4046
        %v4048 = vand.u32 %v4047, 4294901760
        %4049 = vmatpush1.msra.mxu0 %v4048
        %v4050 = vand.u32 %v781, 4294901760
        %v4051 = vsub.f32 %v781, %v4050
        %v4052 = vand.u32 %v4051, 4294901760
        %v4053 = vsub.f32 %v4051, %v4052
        %v4054 = vand.u32 %v4053, 4294901760
        %4055 = vmatprep.subr.mxu0 %v4054
        %v4056 = vand.u32 %v584, 4294901760
        %v4057 = vsub.f32 %v584, %v4056
        %v4058 = vand.u32 %v4057, 4294901760
        %v4059 = vsub.f32 %v4057, %v4058
        %v4060 = vand.u32 %v4059, 4294901760
        %4061 = vmatpush1.msra.mxu0 %v4060
        %v4062 = vand.u32 %v812, 4294901760
        %v4063 = vsub.f32 %v812, %v4062
        %v4064 = vand.u32 %v4063, 4294901760
        %v4065 = vsub.f32 %v4063, %v4064
        %v4066 = vand.u32 %v4065, 4294901760
        %4067 = vmatprep.subr.mxu0 %v4066
        %v4068 = vand.u32 %v615, 4294901760
        %v4069 = vsub.f32 %v615, %v4068
        %v4070 = vand.u32 %v4069, 4294901760
        %v4071 = vsub.f32 %v4069, %v4070
        %v4072 = vand.u32 %v4071, 4294901760
        %4073 = vmatpush2.msra.mxu0 %v4072
        %v4074 = vand.u32 %v811, 4294901760
        %v4075 = vsub.f32 %v811, %v4074
        %v4076 = vand.u32 %v4075, 4294901760
        %v4077 = vsub.f32 %v4075, %v4076
        %v4078 = vand.u32 %v4077, 4294901760
        %4079 = vmatprep.subr.mxu0 %v4078
        %v4080 = vand.u32 %v614, 4294901760
        %v4081 = vsub.f32 %v614, %v4080
        %v4082 = vand.u32 %v4081, 4294901760
        %v4083 = vsub.f32 %v4081, %v4082
        %v4084 = vand.u32 %v4083, 4294901760
        %4085 = vmatpush2.msra.mxu0 %v4084
        %v4086 = vand.u32 %v810, 4294901760
        %v4087 = vsub.f32 %v810, %v4086
        %v4088 = vand.u32 %v4087, 4294901760
        %v4089 = vsub.f32 %v4087, %v4088
        %v4090 = vand.u32 %v4089, 4294901760
        %4091 = vmatprep.subr.mxu0 %v4090
        %v4092 = vand.u32 %v613, 4294901760
        %v4093 = vsub.f32 %v613, %v4092
        %v4094 = vand.u32 %v4093, 4294901760
        %v4095 = vsub.f32 %v4093, %v4094
        %v4096 = vand.u32 %v4095, 4294901760
        %4097 = vmatpush2.msra.mxu0 %v4096
        %v4098 = vand.u32 %v809, 4294901760
        %v4099 = vsub.f32 %v809, %v4098
        %v4100 = vand.u32 %v4099, 4294901760
        %v4101 = vsub.f32 %v4099, %v4100
        %v4102 = vand.u32 %v4101, 4294901760
        %4103 = vmatprep.subr.mxu0 %v4102
        %v4104 = vand.u32 %v612, 4294901760
        %v4105 = vsub.f32 %v612, %v4104
        %v4106 = vand.u32 %v4105, 4294901760
        %v4107 = vsub.f32 %v4105, %v4106
        %v4108 = vand.u32 %v4107, 4294901760
        %4109 = vmatpush2.msra.mxu0 %v4108
        %v4110 = vand.u32 %v808, 4294901760
        %v4111 = vsub.f32 %v808, %v4110
        %v4112 = vand.u32 %v4111, 4294901760
        %v4113 = vsub.f32 %v4111, %v4112
        %v4114 = vand.u32 %v4113, 4294901760
        %4115 = vmatprep.subr.mxu0 %v4114
        %v4116 = vand.u32 %v611, 4294901760
        %v4117 = vsub.f32 %v611, %v4116
        %v4118 = vand.u32 %v4117, 4294901760
        %v4119 = vsub.f32 %v4117, %v4118
        %v4120 = vand.u32 %v4119, 4294901760
        %4121 = vmatpush2.msra.mxu0 %v4120
        %v4122 = vand.u32 %v807, 4294901760
        %v4123 = vsub.f32 %v807, %v4122
        %v4124 = vand.u32 %v4123, 4294901760
        %v4125 = vsub.f32 %v4123, %v4124
        %v4126 = vand.u32 %v4125, 4294901760
        %4127 = vmatprep.subr.mxu0 %v4126
        %v4128 = vand.u32 %v610, 4294901760
        %v4129 = vsub.f32 %v610, %v4128
        %v4130 = vand.u32 %v4129, 4294901760
        %v4131 = vsub.f32 %v4129, %v4130
        %v4132 = vand.u32 %v4131, 4294901760
        %4133 = vmatpush2.msra.mxu0 %v4132
        %v4134 = vand.u32 %v806, 4294901760
        %v4135 = vsub.f32 %v806, %v4134
        %v4136 = vand.u32 %v4135, 4294901760
        %v4137 = vsub.f32 %v4135, %v4136
        %v4138 = vand.u32 %v4137, 4294901760
        %4139 = vmatprep.subr.mxu0 %v4138
        %v4140 = vand.u32 %v609, 4294901760
        %v4141 = vsub.f32 %v609, %v4140
        %v4142 = vand.u32 %v4141, 4294901760
        %v4143 = vsub.f32 %v4141, %v4142
        %v4144 = vand.u32 %v4143, 4294901760
        %4145 = vmatpush2.msra.mxu0 %v4144
        %v4146 = vand.u32 %v805, 4294901760
        %v4147 = vsub.f32 %v805, %v4146
        %v4148 = vand.u32 %v4147, 4294901760
        %v4149 = vsub.f32 %v4147, %v4148
        %v4150 = vand.u32 %v4149, 4294901760
        %4151 = vmatprep.subr.mxu0 %v4150
        %v4152 = vand.u32 %v608, 4294901760
        %v4153 = vsub.f32 %v608, %v4152
        %v4154 = vand.u32 %v4153, 4294901760
        %v4155 = vsub.f32 %v4153, %v4154
        %v4156 = vand.u32 %v4155, 4294901760
        %4157 = vmatpush2.msra.mxu0 %v4156
        %v4158 = vand.u32 %v804, 4294901760
        %v4159 = vsub.f32 %v804, %v4158
        %v4160 = vand.u32 %v4159, 4294901760
        %v4161 = vsub.f32 %v4159, %v4160
        %v4162 = vand.u32 %v4161, 4294901760
        %4163 = vmatprep.subr.mxu0 %v4162
        %v4164 = vand.u32 %v607, 4294901760
        %v4165 = vsub.f32 %v607, %v4164
        %v4166 = vand.u32 %v4165, 4294901760
        %v4167 = vsub.f32 %v4165, %v4166
        %v4168 = vand.u32 %v4167, 4294901760
        %4169 = vmatpush2.msra.mxu0 %v4168
        %v4170 = vand.u32 %v803, 4294901760
        %v4171 = vsub.f32 %v803, %v4170
        %v4172 = vand.u32 %v4171, 4294901760
        %v4173 = vsub.f32 %v4171, %v4172
        %v4174 = vand.u32 %v4173, 4294901760
        %4175 = vmatprep.subr.mxu0 %v4174
        %v4176 = vand.u32 %v606, 4294901760
        %v4177 = vsub.f32 %v606, %v4176
        %v4178 = vand.u32 %v4177, 4294901760
        %v4179 = vsub.f32 %v4177, %v4178
        %v4180 = vand.u32 %v4179, 4294901760
        %4181 = vmatpush2.msra.mxu0 %v4180
        %v4182 = vand.u32 %v802, 4294901760
        %v4183 = vsub.f32 %v802, %v4182
        %v4184 = vand.u32 %v4183, 4294901760
        %v4185 = vsub.f32 %v4183, %v4184
        %v4186 = vand.u32 %v4185, 4294901760
        %4187 = vmatprep.subr.mxu0 %v4186
        %v4188 = vand.u32 %v605, 4294901760
        %v4189 = vsub.f32 %v605, %v4188
        %v4190 = vand.u32 %v4189, 4294901760
        %v4191 = vsub.f32 %v4189, %v4190
        %v4192 = vand.u32 %v4191, 4294901760
        %4193 = vmatpush2.msra.mxu0 %v4192
        %v4194 = vand.u32 %v801, 4294901760
        %v4195 = vsub.f32 %v801, %v4194
        %v4196 = vand.u32 %v4195, 4294901760
        %v4197 = vsub.f32 %v4195, %v4196
        %v4198 = vand.u32 %v4197, 4294901760
        %4199 = vmatprep.subr.mxu0 %v4198
        %v4200 = vand.u32 %v604, 4294901760
        %v4201 = vsub.f32 %v604, %v4200
        %v4202 = vand.u32 %v4201, 4294901760
        %v4203 = vsub.f32 %v4201, %v4202
        %v4204 = vand.u32 %v4203, 4294901760
        %4205 = vmatpush2.msra.mxu0 %v4204
        %v4206 = vand.u32 %v800, 4294901760
        %v4207 = vsub.f32 %v800, %v4206
        %v4208 = vand.u32 %v4207, 4294901760
        %v4209 = vsub.f32 %v4207, %v4208
        %v4210 = vand.u32 %v4209, 4294901760
        %4211 = vmatprep.subr.mxu0 %v4210
        %v4212 = vand.u32 %v603, 4294901760
        %v4213 = vsub.f32 %v603, %v4212
        %v4214 = vand.u32 %v4213, 4294901760
        %v4215 = vsub.f32 %v4213, %v4214
        %v4216 = vand.u32 %v4215, 4294901760
        %4217 = vmatpush2.msra.mxu0 %v4216
        %v4218 = vand.u32 %v799, 4294901760
        %v4219 = vsub.f32 %v799, %v4218
        %v4220 = vand.u32 %v4219, 4294901760
        %v4221 = vsub.f32 %v4219, %v4220
        %v4222 = vand.u32 %v4221, 4294901760
        %4223 = vmatprep.subr.mxu0 %v4222
        %v4224 = vand.u32 %v602, 4294901760
        %v4225 = vsub.f32 %v602, %v4224
        %v4226 = vand.u32 %v4225, 4294901760
        %v4227 = vsub.f32 %v4225, %v4226
        %v4228 = vand.u32 %v4227, 4294901760
        %4229 = vmatpush2.msra.mxu0 %v4228
        %v4230 = vand.u32 %v798, 4294901760
        %v4231 = vsub.f32 %v798, %v4230
        %v4232 = vand.u32 %v4231, 4294901760
        %v4233 = vsub.f32 %v4231, %v4232
        %v4234 = vand.u32 %v4233, 4294901760
        %4235 = vmatprep.subr.mxu0 %v4234
        %v4236 = vand.u32 %v601, 4294901760
        %v4237 = vsub.f32 %v601, %v4236
        %v4238 = vand.u32 %v4237, 4294901760
        %v4239 = vsub.f32 %v4237, %v4238
        %v4240 = vand.u32 %v4239, 4294901760
        %4241 = vmatpush2.msra.mxu0 %v4240
        %v4242 = vand.u32 %v797, 4294901760
        %v4243 = vsub.f32 %v797, %v4242
        %v4244 = vand.u32 %v4243, 4294901760
        %v4245 = vsub.f32 %v4243, %v4244
        %v4246 = vand.u32 %v4245, 4294901760
        %4247 = vmatprep.subr.mxu0 %v4246
        %v4248 = vand.u32 %v600, 4294901760
        %v4249 = vsub.f32 %v600, %v4248
        %v4250 = vand.u32 %v4249, 4294901760
        %v4251 = vsub.f32 %v4249, %v4250
        %v4252 = vand.u32 %v4251, 4294901760
        %4253 = vmatpush2.msra.mxu0 %v4252
        %v4254 = vand.u32 %v1210, 4294901760
        %4255 = vmatprep.mubr.f32.mxu0 %v4254
        %v4256 = vand.u32 %v1209, 4294901760
        %4257 = vmatmul.mubr.f32.gmra.mxu0 %v4256
        %v4258 = vpop.f32.mrf.mxu0
        %v4259 = vadd.f32 %v3626, %v4258
        %v4260 = vpop.f32.mrf.mxu0
        %v4261 = vadd.f32 %v3628, %v4260
        %v4262 = vand.u32 %v1214, 4294901760
        %4263 = vmatprep.mubr.f32.mxu0 %v4262
        %v4264 = vand.u32 %v1213, 4294901760
        %4265 = vmatmul.mubr.f32.gmra.mxu0 %v4264
        %v4266 = vpop.f32.mrf.mxu0
        %v4267 = vadd.f32 %v3642, %v4266
        %v4268 = vpop.f32.mrf.mxu0
        %v4269 = vadd.f32 %v3644, %v4268
        %v4270 = vand.u32 %v1218, 4294901760
        %4271 = vmatprep.mubr.f32.mxu0 %v4270
        %v4272 = vand.u32 %v1217, 4294901760
        %4273 = vmatmul.mubr.f32.gmra.mxu0 %v4272
        %v4274 = vpop.f32.mrf.mxu0
        %v4275 = vadd.f32 %v3658, %v4274
        %v4276 = vpop.f32.mrf.mxu0
        %v4277 = vadd.f32 %v3660, %v4276
        %v4278 = vand.u32 %v1222, 4294901760
        %4279 = vmatprep.mubr.f32.mxu0 %v4278
        %v4280 = vand.u32 %v1221, 4294901760
        %4281 = vmatmul.mubr.f32.gmra.mxu0 %v4280
        %v4282 = vpop.f32.mrf.mxu0
        %v4283 = vadd.f32 %v3674, %v4282
        %v4284 = vpop.f32.mrf.mxu0
        %v4285 = vadd.f32 %v3676, %v4284
        %v4286 = vand.u32 %v1226, 4294901760
        %4287 = vmatprep.mubr.f32.mxu0 %v4286
        %v4288 = vand.u32 %v1225, 4294901760
        %4289 = vmatmul.mubr.f32.gmra.mxu0 %v4288
        %v4290 = vpop.f32.mrf.mxu0
        %v4291 = vadd.f32 %v3690, %v4290
        %v4292 = vpop.f32.mrf.mxu0
        %v4293 = vadd.f32 %v3692, %v4292
        %v4294 = vand.u32 %v1230, 4294901760
        %4295 = vmatprep.mubr.f32.mxu0 %v4294
        %v4296 = vand.u32 %v1229, 4294901760
        %4297 = vmatmul.mubr.f32.gmra.mxu0 %v4296
        %v4298 = vpop.f32.mrf.mxu0
        %v4299 = vadd.f32 %v3706, %v4298
        %v4300 = vpop.f32.mrf.mxu0
        %v4301 = vadd.f32 %v3708, %v4300
        %v4302 = vand.u32 %v1234, 4294901760
        %4303 = vmatprep.mubr.f32.mxu0 %v4302
        %v4304 = vand.u32 %v1233, 4294901760
        %4305 = vmatmul.mubr.f32.gmra.mxu0 %v4304
        %v4306 = vpop.f32.mrf.mxu0
        %v4307 = vadd.f32 %v3722, %v4306
        %v4308 = vpop.f32.mrf.mxu0
        %v4309 = vadd.f32 %v3724, %v4308
        %v4310 = vand.u32 %v1238, 4294901760
        %4311 = vmatprep.mubr.f32.mxu0 %v4310
        %v4312 = vand.u32 %v1237, 4294901760
        %4313 = vmatmul.mubr.f32.gmra.mxu0 %v4312
        %v4314 = vpop.f32.mrf.mxu0
        %v4315 = vadd.f32 %v3738, %v4314
        %v4316 = vpop.f32.mrf.mxu0
        %v4317 = vadd.f32 %v3740, %v4316
        %v4318 = vand.u32 %v1242, 4294901760
        %4319 = vmatprep.mubr.f32.mxu0 %v4318
        %v4320 = vand.u32 %v1241, 4294901760
        %4321 = vmatmul.mubr.f32.gmra.mxu0 %v4320
        %v4322 = vpop.f32.mrf.mxu0
        %v4323 = vadd.f32 %v3754, %v4322
        %v4324 = vpop.f32.mrf.mxu0
        %v4325 = vadd.f32 %v3756, %v4324
        %v4326 = vand.u32 %v1246, 4294901760
        %4327 = vmatprep.mubr.f32.mxu0 %v4326
        %v4328 = vand.u32 %v1245, 4294901760
        %4329 = vmatmul.mubr.f32.gmra.mxu0 %v4328
        %v4330 = vpop.f32.mrf.mxu0
        %v4331 = vadd.f32 %v3770, %v4330
        %v4332 = vpop.f32.mrf.mxu0
        %v4333 = vadd.f32 %v3772, %v4332
        %v4334 = vand.u32 %v1250, 4294901760
        %4335 = vmatprep.mubr.f32.mxu0 %v4334
        %v4336 = vand.u32 %v1249, 4294901760
        %4337 = vmatmul.mubr.f32.gmra.mxu0 %v4336
        %v4338 = vpop.f32.mrf.mxu0
        %v4339 = vadd.f32 %v3786, %v4338
        %v4340 = vpop.f32.mrf.mxu0
        %v4341 = vadd.f32 %v3788, %v4340
        %v4342 = vand.u32 %v1254, 4294901760
        %4343 = vmatprep.mubr.f32.mxu0 %v4342
        %v4344 = vand.u32 %v1253, 4294901760
        %4345 = vmatmul.mubr.f32.gmra.mxu0 %v4344
        %v4346 = vpop.f32.mrf.mxu0
        %v4347 = vadd.f32 %v3802, %v4346
        %v4348 = vpop.f32.mrf.mxu0
        %v4349 = vadd.f32 %v3804, %v4348
        %v4350 = vand.u32 %v1258, 4294901760
        %4351 = vmatprep.mubr.f32.mxu0 %v4350
        %v4352 = vand.u32 %v1257, 4294901760
        %4353 = vmatmul.mubr.f32.gmra.mxu0 %v4352
        %v4354 = vpop.f32.mrf.mxu0
        %v4355 = vadd.f32 %v3818, %v4354
        %v4356 = vpop.f32.mrf.mxu0
        %v4357 = vadd.f32 %v3820, %v4356
        %v4358 = vand.u32 %v1262, 4294901760
        %4359 = vmatprep.mubr.f32.mxu0 %v4358
        %v4360 = vand.u32 %v1261, 4294901760
        %4361 = vmatmul.mubr.f32.gmra.mxu0 %v4360
        %v4362 = vpop.f32.mrf.mxu0
        %v4363 = vadd.f32 %v3834, %v4362
        %v4364 = vpop.f32.mrf.mxu0
        %v4365 = vadd.f32 %v3836, %v4364
        %v4366 = vand.u32 %v1266, 4294901760
        %4367 = vmatprep.mubr.f32.mxu0 %v4366
        %v4368 = vand.u32 %v1265, 4294901760
        %4369 = vmatmul.mubr.f32.gmra.mxu0 %v4368
        %v4370 = vpop.f32.mrf.mxu0
        %v4371 = vadd.f32 %v3850, %v4370
        %v4372 = vpop.f32.mrf.mxu0
        %v4373 = vadd.f32 %v3852, %v4372
        %v4374 = vand.u32 %v1270, 4294901760
        %4375 = vmatprep.mubr.f32.mxu0 %v4374
        %v4376 = vand.u32 %v1269, 4294901760
        %4377 = vmatmul.mubr.f32.gmra.mxu0 %v4376
        %v4378 = vpop.f32.mrf.mxu0
        %v4379 = vadd.f32 %v3866, %v4378
        %v4380 = vpop.f32.mrf.mxu0
        %v4381 = vadd.f32 %v3868, %v4380
        %4382 = vdwg.mxu0
        %v4383 = vand.u32 %v796, 4294901760
        %v4384 = vsub.f32 %v796, %v4383
        %4385 = vmatprep.subr.mxu0 %v4384
        %v4386 = vand.u32 %v599, 4294901760
        %v4387 = vsub.f32 %v599, %v4386
        %4388 = vmatpush1.msra.mxu0 %v4387
        %v4389 = vand.u32 %v795, 4294901760
        %v4390 = vsub.f32 %v795, %v4389
        %4391 = vmatprep.subr.mxu0 %v4390
        %v4392 = vand.u32 %v598, 4294901760
        %v4393 = vsub.f32 %v598, %v4392
        %4394 = vmatpush1.msra.mxu0 %v4393
        %v4395 = vand.u32 %v794, 4294901760
        %v4396 = vsub.f32 %v794, %v4395
        %4397 = vmatprep.subr.mxu0 %v4396
        %v4398 = vand.u32 %v597, 4294901760
        %v4399 = vsub.f32 %v597, %v4398
        %4400 = vmatpush1.msra.mxu0 %v4399
        %v4401 = vand.u32 %v793, 4294901760
        %v4402 = vsub.f32 %v793, %v4401
        %4403 = vmatprep.subr.mxu0 %v4402
        %v4404 = vand.u32 %v596, 4294901760
        %v4405 = vsub.f32 %v596, %v4404
        %4406 = vmatpush1.msra.mxu0 %v4405
        %v4407 = vand.u32 %v792, 4294901760
        %v4408 = vsub.f32 %v792, %v4407
        %4409 = vmatprep.subr.mxu0 %v4408
        %v4410 = vand.u32 %v595, 4294901760
        %v4411 = vsub.f32 %v595, %v4410
        %4412 = vmatpush1.msra.mxu0 %v4411
        %v4413 = vand.u32 %v791, 4294901760
        %v4414 = vsub.f32 %v791, %v4413
        %4415 = vmatprep.subr.mxu0 %v4414
        %v4416 = vand.u32 %v594, 4294901760
        %v4417 = vsub.f32 %v594, %v4416
        %4418 = vmatpush1.msra.mxu0 %v4417
        %v4419 = vand.u32 %v790, 4294901760
        %v4420 = vsub.f32 %v790, %v4419
        %4421 = vmatprep.subr.mxu0 %v4420
        %v4422 = vand.u32 %v593, 4294901760
        %v4423 = vsub.f32 %v593, %v4422
        %4424 = vmatpush1.msra.mxu0 %v4423
        %v4425 = vand.u32 %v789, 4294901760
        %v4426 = vsub.f32 %v789, %v4425
        %4427 = vmatprep.subr.mxu0 %v4426
        %v4428 = vand.u32 %v592, 4294901760
        %v4429 = vsub.f32 %v592, %v4428
        %4430 = vmatpush1.msra.mxu0 %v4429
        %v4431 = vand.u32 %v788, 4294901760
        %v4432 = vsub.f32 %v788, %v4431
        %4433 = vmatprep.subr.mxu0 %v4432
        %v4434 = vand.u32 %v591, 4294901760
        %v4435 = vsub.f32 %v591, %v4434
        %4436 = vmatpush1.msra.mxu0 %v4435
        %v4437 = vand.u32 %v787, 4294901760
        %v4438 = vsub.f32 %v787, %v4437
        %4439 = vmatprep.subr.mxu0 %v4438
        %v4440 = vand.u32 %v590, 4294901760
        %v4441 = vsub.f32 %v590, %v4440
        %4442 = vmatpush1.msra.mxu0 %v4441
        %v4443 = vand.u32 %v786, 4294901760
        %v4444 = vsub.f32 %v786, %v4443
        %4445 = vmatprep.subr.mxu0 %v4444
        %v4446 = vand.u32 %v589, 4294901760
        %v4447 = vsub.f32 %v589, %v4446
        %4448 = vmatpush1.msra.mxu0 %v4447
        %v4449 = vand.u32 %v785, 4294901760
        %v4450 = vsub.f32 %v785, %v4449
        %4451 = vmatprep.subr.mxu0 %v4450
        %v4452 = vand.u32 %v588, 4294901760
        %v4453 = vsub.f32 %v588, %v4452
        %4454 = vmatpush1.msra.mxu0 %v4453
        %v4455 = vand.u32 %v784, 4294901760
        %v4456 = vsub.f32 %v784, %v4455
        %4457 = vmatprep.subr.mxu0 %v4456
        %v4458 = vand.u32 %v587, 4294901760
        %v4459 = vsub.f32 %v587, %v4458
        %4460 = vmatpush1.msra.mxu0 %v4459
        %v4461 = vand.u32 %v783, 4294901760
        %v4462 = vsub.f32 %v783, %v4461
        %4463 = vmatprep.subr.mxu0 %v4462
        %v4464 = vand.u32 %v586, 4294901760
        %v4465 = vsub.f32 %v586, %v4464
        %4466 = vmatpush1.msra.mxu0 %v4465
        %v4467 = vand.u32 %v782, 4294901760
        %v4468 = vsub.f32 %v782, %v4467
        %4469 = vmatprep.subr.mxu0 %v4468
        %v4470 = vand.u32 %v585, 4294901760
        %v4471 = vsub.f32 %v585, %v4470
        %4472 = vmatpush1.msra.mxu0 %v4471
        %v4473 = vand.u32 %v781, 4294901760
        %v4474 = vsub.f32 %v781, %v4473
        %4475 = vmatprep.subr.mxu0 %v4474
        %v4476 = vand.u32 %v584, 4294901760
        %v4477 = vsub.f32 %v584, %v4476
        %4478 = vmatpush1.msra.mxu0 %v4477
        %v4479 = vand.u32 %v812, 4294901760
        %v4480 = vsub.f32 %v812, %v4479
        %4481 = vmatprep.subr.mxu0 %v4480
        %v4482 = vand.u32 %v615, 4294901760
        %v4483 = vsub.f32 %v615, %v4482
        %4484 = vmatpush2.msra.mxu0 %v4483
        %v4485 = vand.u32 %v811, 4294901760
        %v4486 = vsub.f32 %v811, %v4485
        %4487 = vmatprep.subr.mxu0 %v4486
        %v4488 = vand.u32 %v614, 4294901760
        %v4489 = vsub.f32 %v614, %v4488
        %4490 = vmatpush2.msra.mxu0 %v4489
        %v4491 = vand.u32 %v810, 4294901760
        %v4492 = vsub.f32 %v810, %v4491
        %4493 = vmatprep.subr.mxu0 %v4492
        %v4494 = vand.u32 %v613, 4294901760
        %v4495 = vsub.f32 %v613, %v4494
        %4496 = vmatpush2.msra.mxu0 %v4495
        %v4497 = vand.u32 %v809, 4294901760
        %v4498 = vsub.f32 %v809, %v4497
        %4499 = vmatprep.subr.mxu0 %v4498
        %v4500 = vand.u32 %v612, 4294901760
        %v4501 = vsub.f32 %v612, %v4500
        %4502 = vmatpush2.msra.mxu0 %v4501
        %v4503 = vand.u32 %v808, 4294901760
        %v4504 = vsub.f32 %v808, %v4503
        %4505 = vmatprep.subr.mxu0 %v4504
        %v4506 = vand.u32 %v611, 4294901760
        %v4507 = vsub.f32 %v611, %v4506
        %4508 = vmatpush2.msra.mxu0 %v4507
        %v4509 = vand.u32 %v807, 4294901760
        %v4510 = vsub.f32 %v807, %v4509
        %4511 = vmatprep.subr.mxu0 %v4510
        %v4512 = vand.u32 %v610, 4294901760
        %v4513 = vsub.f32 %v610, %v4512
        %4514 = vmatpush2.msra.mxu0 %v4513
        %v4515 = vand.u32 %v806, 4294901760
        %v4516 = vsub.f32 %v806, %v4515
        %4517 = vmatprep.subr.mxu0 %v4516
        %v4518 = vand.u32 %v609, 4294901760
        %v4519 = vsub.f32 %v609, %v4518
        %4520 = vmatpush2.msra.mxu0 %v4519
        %v4521 = vand.u32 %v805, 4294901760
        %v4522 = vsub.f32 %v805, %v4521
        %4523 = vmatprep.subr.mxu0 %v4522
        %v4524 = vand.u32 %v608, 4294901760
        %v4525 = vsub.f32 %v608, %v4524
        %4526 = vmatpush2.msra.mxu0 %v4525
        %v4527 = vand.u32 %v804, 4294901760
        %v4528 = vsub.f32 %v804, %v4527
        %4529 = vmatprep.subr.mxu0 %v4528
        %v4530 = vand.u32 %v607, 4294901760
        %v4531 = vsub.f32 %v607, %v4530
        %4532 = vmatpush2.msra.mxu0 %v4531
        %v4533 = vand.u32 %v803, 4294901760
        %v4534 = vsub.f32 %v803, %v4533
        %4535 = vmatprep.subr.mxu0 %v4534
        %v4536 = vand.u32 %v606, 4294901760
        %v4537 = vsub.f32 %v606, %v4536
        %4538 = vmatpush2.msra.mxu0 %v4537
        %v4539 = vand.u32 %v802, 4294901760
        %v4540 = vsub.f32 %v802, %v4539
        %4541 = vmatprep.subr.mxu0 %v4540
        %v4542 = vand.u32 %v605, 4294901760
        %v4543 = vsub.f32 %v605, %v4542
        %4544 = vmatpush2.msra.mxu0 %v4543
        %v4545 = vand.u32 %v801, 4294901760
        %v4546 = vsub.f32 %v801, %v4545
        %4547 = vmatprep.subr.mxu0 %v4546
        %v4548 = vand.u32 %v604, 4294901760
        %v4549 = vsub.f32 %v604, %v4548
        %4550 = vmatpush2.msra.mxu0 %v4549
        %v4551 = vand.u32 %v800, 4294901760
        %v4552 = vsub.f32 %v800, %v4551
        %4553 = vmatprep.subr.mxu0 %v4552
        %v4554 = vand.u32 %v603, 4294901760
        %v4555 = vsub.f32 %v603, %v4554
        %4556 = vmatpush2.msra.mxu0 %v4555
        %v4557 = vand.u32 %v799, 4294901760
        %v4558 = vsub.f32 %v799, %v4557
        %4559 = vmatprep.subr.mxu0 %v4558
        %v4560 = vand.u32 %v602, 4294901760
        %v4561 = vsub.f32 %v602, %v4560
        %4562 = vmatpush2.msra.mxu0 %v4561
        %v4563 = vand.u32 %v798, 4294901760
        %v4564 = vsub.f32 %v798, %v4563
        %4565 = vmatprep.subr.mxu0 %v4564
        %v4566 = vand.u32 %v601, 4294901760
        %v4567 = vsub.f32 %v601, %v4566
        %4568 = vmatpush2.msra.mxu0 %v4567
        %v4569 = vand.u32 %v797, 4294901760
        %v4570 = vsub.f32 %v797, %v4569
        %4571 = vmatprep.subr.mxu0 %v4570
        %v4572 = vand.u32 %v600, 4294901760
        %v4573 = vsub.f32 %v600, %v4572
        %4574 = vmatpush2.msra.mxu0 %v4573
        %v4575 = vand.u32 %v1210, 4294901760
        %v4576 = vsub.f32 %v1210, %v4575
        %4577 = vmatprep.mubr.f32.mxu0 %v4576
        %v4578 = vand.u32 %v1209, 4294901760
        %v4579 = vsub.f32 %v1209, %v4578
        %4580 = vmatmul.mubr.f32.gmra.mxu0 %v4579
        %v4581 = vpop.f32.mrf.mxu0
        %v4582 = vadd.f32 %v4259, %v4581
        %v4583 = vpop.f32.mrf.mxu0
        %v4584 = vadd.f32 %v4261, %v4583
        %v4585 = vand.u32 %v1214, 4294901760
        %v4586 = vsub.f32 %v1214, %v4585
        %4587 = vmatprep.mubr.f32.mxu0 %v4586
        %v4588 = vand.u32 %v1213, 4294901760
        %v4589 = vsub.f32 %v1213, %v4588
        %4590 = vmatmul.mubr.f32.gmra.mxu0 %v4589
        %v4591 = vpop.f32.mrf.mxu0
        %v4592 = vadd.f32 %v4267, %v4591
        %v4593 = vpop.f32.mrf.mxu0
        %v4594 = vadd.f32 %v4269, %v4593
        %v4595 = vand.u32 %v1218, 4294901760
        %v4596 = vsub.f32 %v1218, %v4595
        %4597 = vmatprep.mubr.f32.mxu0 %v4596
        %v4598 = vand.u32 %v1217, 4294901760
        %v4599 = vsub.f32 %v1217, %v4598
        %4600 = vmatmul.mubr.f32.gmra.mxu0 %v4599
        %v4601 = vpop.f32.mrf.mxu0
        %v4602 = vadd.f32 %v4275, %v4601
        %v4603 = vpop.f32.mrf.mxu0
        %v4604 = vadd.f32 %v4277, %v4603
        %v4605 = vand.u32 %v1222, 4294901760
        %v4606 = vsub.f32 %v1222, %v4605
        %4607 = vmatprep.mubr.f32.mxu0 %v4606
        %v4608 = vand.u32 %v1221, 4294901760
        %v4609 = vsub.f32 %v1221, %v4608
        %4610 = vmatmul.mubr.f32.gmra.mxu0 %v4609
        %v4611 = vpop.f32.mrf.mxu0
        %v4612 = vadd.f32 %v4283, %v4611
        %v4613 = vpop.f32.mrf.mxu0
        %v4614 = vadd.f32 %v4285, %v4613
        %v4615 = vand.u32 %v1226, 4294901760
        %v4616 = vsub.f32 %v1226, %v4615
        %4617 = vmatprep.mubr.f32.mxu0 %v4616
        %v4618 = vand.u32 %v1225, 4294901760
        %v4619 = vsub.f32 %v1225, %v4618
        %4620 = vmatmul.mubr.f32.gmra.mxu0 %v4619
        %v4621 = vpop.f32.mrf.mxu0
        %v4622 = vadd.f32 %v4291, %v4621
        %v4623 = vpop.f32.mrf.mxu0
        %v4624 = vadd.f32 %v4293, %v4623
        %v4625 = vand.u32 %v1230, 4294901760
        %v4626 = vsub.f32 %v1230, %v4625
        %4627 = vmatprep.mubr.f32.mxu0 %v4626
        %v4628 = vand.u32 %v1229, 4294901760
        %v4629 = vsub.f32 %v1229, %v4628
        %4630 = vmatmul.mubr.f32.gmra.mxu0 %v4629
        %v4631 = vpop.f32.mrf.mxu0
        %v4632 = vadd.f32 %v4299, %v4631
        %v4633 = vpop.f32.mrf.mxu0
        %v4634 = vadd.f32 %v4301, %v4633
        %v4635 = vand.u32 %v1234, 4294901760
        %v4636 = vsub.f32 %v1234, %v4635
        %4637 = vmatprep.mubr.f32.mxu0 %v4636
        %v4638 = vand.u32 %v1233, 4294901760
        %v4639 = vsub.f32 %v1233, %v4638
        %4640 = vmatmul.mubr.f32.gmra.mxu0 %v4639
        %v4641 = vpop.f32.mrf.mxu0
        %v4642 = vadd.f32 %v4307, %v4641
        %v4643 = vpop.f32.mrf.mxu0
        %v4644 = vadd.f32 %v4309, %v4643
        %v4645 = vand.u32 %v1238, 4294901760
        %v4646 = vsub.f32 %v1238, %v4645
        %4647 = vmatprep.mubr.f32.mxu0 %v4646
        %v4648 = vand.u32 %v1237, 4294901760
        %v4649 = vsub.f32 %v1237, %v4648
        %4650 = vmatmul.mubr.f32.gmra.mxu0 %v4649
        %v4651 = vpop.f32.mrf.mxu0
        %v4652 = vadd.f32 %v4315, %v4651
        %v4653 = vpop.f32.mrf.mxu0
        %v4654 = vadd.f32 %v4317, %v4653
        %v4655 = vand.u32 %v1242, 4294901760
        %v4656 = vsub.f32 %v1242, %v4655
        %4657 = vmatprep.mubr.f32.mxu0 %v4656
        %v4658 = vand.u32 %v1241, 4294901760
        %v4659 = vsub.f32 %v1241, %v4658
        %4660 = vmatmul.mubr.f32.gmra.mxu0 %v4659
        %v4661 = vpop.f32.mrf.mxu0
        %v4662 = vadd.f32 %v4323, %v4661
        %v4663 = vpop.f32.mrf.mxu0
        %v4664 = vadd.f32 %v4325, %v4663
        %v4665 = vand.u32 %v1246, 4294901760
        %v4666 = vsub.f32 %v1246, %v4665
        %4667 = vmatprep.mubr.f32.mxu0 %v4666
        %v4668 = vand.u32 %v1245, 4294901760
        %v4669 = vsub.f32 %v1245, %v4668
        %4670 = vmatmul.mubr.f32.gmra.mxu0 %v4669
        %v4671 = vpop.f32.mrf.mxu0
        %v4672 = vadd.f32 %v4331, %v4671
        %v4673 = vpop.f32.mrf.mxu0
        %v4674 = vadd.f32 %v4333, %v4673
        %v4675 = vand.u32 %v1250, 4294901760
        %v4676 = vsub.f32 %v1250, %v4675
        %4677 = vmatprep.mubr.f32.mxu0 %v4676
        %v4678 = vand.u32 %v1249, 4294901760
        %v4679 = vsub.f32 %v1249, %v4678
        %4680 = vmatmul.mubr.f32.gmra.mxu0 %v4679
        %v4681 = vpop.f32.mrf.mxu0
        %v4682 = vadd.f32 %v4339, %v4681
        %v4683 = vpop.f32.mrf.mxu0
        %v4684 = vadd.f32 %v4341, %v4683
        %v4685 = vand.u32 %v1254, 4294901760
        %v4686 = vsub.f32 %v1254, %v4685
        %4687 = vmatprep.mubr.f32.mxu0 %v4686
        %v4688 = vand.u32 %v1253, 4294901760
        %v4689 = vsub.f32 %v1253, %v4688
        %4690 = vmatmul.mubr.f32.gmra.mxu0 %v4689
        %v4691 = vpop.f32.mrf.mxu0
        %v4692 = vadd.f32 %v4347, %v4691
        %v4693 = vpop.f32.mrf.mxu0
        %v4694 = vadd.f32 %v4349, %v4693
        %v4695 = vand.u32 %v1258, 4294901760
        %v4696 = vsub.f32 %v1258, %v4695
        %4697 = vmatprep.mubr.f32.mxu0 %v4696
        %v4698 = vand.u32 %v1257, 4294901760
        %v4699 = vsub.f32 %v1257, %v4698
        %4700 = vmatmul.mubr.f32.gmra.mxu0 %v4699
        %v4701 = vpop.f32.mrf.mxu0
        %v4702 = vadd.f32 %v4355, %v4701
        %v4703 = vpop.f32.mrf.mxu0
        %v4704 = vadd.f32 %v4357, %v4703
        %v4705 = vand.u32 %v1262, 4294901760
        %v4706 = vsub.f32 %v1262, %v4705
        %4707 = vmatprep.mubr.f32.mxu0 %v4706
        %v4708 = vand.u32 %v1261, 4294901760
        %v4709 = vsub.f32 %v1261, %v4708
        %4710 = vmatmul.mubr.f32.gmra.mxu0 %v4709
        %v4711 = vpop.f32.mrf.mxu0
        %v4712 = vadd.f32 %v4363, %v4711
        %v4713 = vpop.f32.mrf.mxu0
        %v4714 = vadd.f32 %v4365, %v4713
        %v4715 = vand.u32 %v1266, 4294901760
        %v4716 = vsub.f32 %v1266, %v4715
        %4717 = vmatprep.mubr.f32.mxu0 %v4716
        %v4718 = vand.u32 %v1265, 4294901760
        %v4719 = vsub.f32 %v1265, %v4718
        %4720 = vmatmul.mubr.f32.gmra.mxu0 %v4719
        %v4721 = vpop.f32.mrf.mxu0
        %v4722 = vadd.f32 %v4371, %v4721
        %v4723 = vpop.f32.mrf.mxu0
        %v4724 = vadd.f32 %v4373, %v4723
        %v4725 = vand.u32 %v1270, 4294901760
        %v4726 = vsub.f32 %v1270, %v4725
        %4727 = vmatprep.mubr.f32.mxu0 %v4726
        %v4728 = vand.u32 %v1269, 4294901760
        %v4729 = vsub.f32 %v1269, %v4728
        %4730 = vmatmul.mubr.f32.gmra.mxu0 %v4729
        %v4731 = vpop.f32.mrf.mxu0
        %v4732 = vadd.f32 %v4379, %v4731
        %v4733 = vpop.f32.mrf.mxu0
        %v4734 = vadd.f32 %v4381, %v4733
        %4735 = vdwg.mxu0
        %v4736 = vand.u32 %v796, 4294901760
        %4737 = vmatprep.subr.mxu0 %v4736
        %v4738 = vand.u32 %v599, 4294901760
        %4739 = vmatpush1.msra.mxu0 %v4738
        %v4740 = vand.u32 %v795, 4294901760
        %4741 = vmatprep.subr.mxu0 %v4740
        %v4742 = vand.u32 %v598, 4294901760
        %4743 = vmatpush1.msra.mxu0 %v4742
        %v4744 = vand.u32 %v794, 4294901760
        %4745 = vmatprep.subr.mxu0 %v4744
        %v4746 = vand.u32 %v597, 4294901760
        %4747 = vmatpush1.msra.mxu0 %v4746
        %v4748 = vand.u32 %v793, 4294901760
        %4749 = vmatprep.subr.mxu0 %v4748
        %v4750 = vand.u32 %v596, 4294901760
        %4751 = vmatpush1.msra.mxu0 %v4750
        %v4752 = vand.u32 %v792, 4294901760
        %4753 = vmatprep.subr.mxu0 %v4752
        %v4754 = vand.u32 %v595, 4294901760
        %4755 = vmatpush1.msra.mxu0 %v4754
        %v4756 = vand.u32 %v791, 4294901760
        %4757 = vmatprep.subr.mxu0 %v4756
        %v4758 = vand.u32 %v594, 4294901760
        %4759 = vmatpush1.msra.mxu0 %v4758
        %v4760 = vand.u32 %v790, 4294901760
        %4761 = vmatprep.subr.mxu0 %v4760
        %v4762 = vand.u32 %v593, 4294901760
        %4763 = vmatpush1.msra.mxu0 %v4762
        %v4764 = vand.u32 %v789, 4294901760
        %4765 = vmatprep.subr.mxu0 %v4764
        %v4766 = vand.u32 %v592, 4294901760
        %4767 = vmatpush1.msra.mxu0 %v4766
        %v4768 = vand.u32 %v788, 4294901760
        %4769 = vmatprep.subr.mxu0 %v4768
        %v4770 = vand.u32 %v591, 4294901760
        %4771 = vmatpush1.msra.mxu0 %v4770
        %v4772 = vand.u32 %v787, 4294901760
        %4773 = vmatprep.subr.mxu0 %v4772
        %v4774 = vand.u32 %v590, 4294901760
        %4775 = vmatpush1.msra.mxu0 %v4774
        %v4776 = vand.u32 %v786, 4294901760
        %4777 = vmatprep.subr.mxu0 %v4776
        %v4778 = vand.u32 %v589, 4294901760
        %4779 = vmatpush1.msra.mxu0 %v4778
        %v4780 = vand.u32 %v785, 4294901760
        %4781 = vmatprep.subr.mxu0 %v4780
        %v4782 = vand.u32 %v588, 4294901760
        %4783 = vmatpush1.msra.mxu0 %v4782
        %v4784 = vand.u32 %v784, 4294901760
        %4785 = vmatprep.subr.mxu0 %v4784
        %v4786 = vand.u32 %v587, 4294901760
        %4787 = vmatpush1.msra.mxu0 %v4786
        %v4788 = vand.u32 %v783, 4294901760
        %4789 = vmatprep.subr.mxu0 %v4788
        %v4790 = vand.u32 %v586, 4294901760
        %4791 = vmatpush1.msra.mxu0 %v4790
        %v4792 = vand.u32 %v782, 4294901760
        %4793 = vmatprep.subr.mxu0 %v4792
        %v4794 = vand.u32 %v585, 4294901760
        %4795 = vmatpush1.msra.mxu0 %v4794
        %v4796 = vand.u32 %v781, 4294901760
        %4797 = vmatprep.subr.mxu0 %v4796
        %v4798 = vand.u32 %v584, 4294901760
        %4799 = vmatpush1.msra.mxu0 %v4798
        %v4800 = vand.u32 %v812, 4294901760
        %4801 = vmatprep.subr.mxu0 %v4800
        %v4802 = vand.u32 %v615, 4294901760
        %4803 = vmatpush2.msra.mxu0 %v4802
        %v4804 = vand.u32 %v811, 4294901760
        %4805 = vmatprep.subr.mxu0 %v4804
        %v4806 = vand.u32 %v614, 4294901760
        %4807 = vmatpush2.msra.mxu0 %v4806
        %v4808 = vand.u32 %v810, 4294901760
        %4809 = vmatprep.subr.mxu0 %v4808
        %v4810 = vand.u32 %v613, 4294901760
        %4811 = vmatpush2.msra.mxu0 %v4810
        %v4812 = vand.u32 %v809, 4294901760
        %4813 = vmatprep.subr.mxu0 %v4812
        %v4814 = vand.u32 %v612, 4294901760
        %4815 = vmatpush2.msra.mxu0 %v4814
        %v4816 = vand.u32 %v808, 4294901760
        %4817 = vmatprep.subr.mxu0 %v4816
        %v4818 = vand.u32 %v611, 4294901760
        %4819 = vmatpush2.msra.mxu0 %v4818
        %v4820 = vand.u32 %v807, 4294901760
        %4821 = vmatprep.subr.mxu0 %v4820
        %v4822 = vand.u32 %v610, 4294901760
        %4823 = vmatpush2.msra.mxu0 %v4822
        %v4824 = vand.u32 %v806, 4294901760
        %4825 = vmatprep.subr.mxu0 %v4824
        %v4826 = vand.u32 %v609, 4294901760
        %4827 = vmatpush2.msra.mxu0 %v4826
        %v4828 = vand.u32 %v805, 4294901760
        %4829 = vmatprep.subr.mxu0 %v4828
        %v4830 = vand.u32 %v608, 4294901760
        %4831 = vmatpush2.msra.mxu0 %v4830
        %v4832 = vand.u32 %v804, 4294901760
        %4833 = vmatprep.subr.mxu0 %v4832
        %v4834 = vand.u32 %v607, 4294901760
        %4835 = vmatpush2.msra.mxu0 %v4834
        %v4836 = vand.u32 %v803, 4294901760
        %4837 = vmatprep.subr.mxu0 %v4836
        %v4838 = vand.u32 %v606, 4294901760
        %4839 = vmatpush2.msra.mxu0 %v4838
        %v4840 = vand.u32 %v802, 4294901760
        %4841 = vmatprep.subr.mxu0 %v4840
        %v4842 = vand.u32 %v605, 4294901760
        %4843 = vmatpush2.msra.mxu0 %v4842
        %v4844 = vand.u32 %v801, 4294901760
        %4845 = vmatprep.subr.mxu0 %v4844
        %v4846 = vand.u32 %v604, 4294901760
        %4847 = vmatpush2.msra.mxu0 %v4846
        %v4848 = vand.u32 %v800, 4294901760
        %4849 = vmatprep.subr.mxu0 %v4848
        %v4850 = vand.u32 %v603, 4294901760
        %4851 = vmatpush2.msra.mxu0 %v4850
        %v4852 = vand.u32 %v799, 4294901760
        %4853 = vmatprep.subr.mxu0 %v4852
        %v4854 = vand.u32 %v602, 4294901760
        %4855 = vmatpush2.msra.mxu0 %v4854
        %v4856 = vand.u32 %v798, 4294901760
        %4857 = vmatprep.subr.mxu0 %v4856
        %v4858 = vand.u32 %v601, 4294901760
        %4859 = vmatpush2.msra.mxu0 %v4858
        %v4860 = vand.u32 %v797, 4294901760
        %4861 = vmatprep.subr.mxu0 %v4860
        %v4862 = vand.u32 %v600, 4294901760
        %4863 = vmatpush2.msra.mxu0 %v4862
        %v4864 = vand.u32 %v1210, 4294901760
        %v4865 = vsub.f32 %v1210, %v4864
        %v4866 = vand.u32 %v4865, 4294901760
        %4867 = vmatprep.mubr.f32.mxu0 %v4866
        %v4868 = vand.u32 %v1209, 4294901760
        %v4869 = vsub.f32 %v1209, %v4868
        %v4870 = vand.u32 %v4869, 4294901760
        %4871 = vmatmul.mubr.f32.gmra.mxu0 %v4870
        %v4872 = vpop.f32.mrf.mxu0
        %v4873 = vadd.f32 %v4582, %v4872
        %v4874 = vpop.f32.mrf.mxu0
        %v4875 = vadd.f32 %v4584, %v4874
        %v4876 = vand.u32 %v1214, 4294901760
        %v4877 = vsub.f32 %v1214, %v4876
        %v4878 = vand.u32 %v4877, 4294901760
        %4879 = vmatprep.mubr.f32.mxu0 %v4878
        %v4880 = vand.u32 %v1213, 4294901760
        %v4881 = vsub.f32 %v1213, %v4880
        %v4882 = vand.u32 %v4881, 4294901760
        %4883 = vmatmul.mubr.f32.gmra.mxu0 %v4882
        %v4884 = vpop.f32.mrf.mxu0
        %v4885 = vadd.f32 %v4592, %v4884
        %v4886 = vpop.f32.mrf.mxu0
        %v4887 = vadd.f32 %v4594, %v4886
        %v4888 = vand.u32 %v1218, 4294901760
        %v4889 = vsub.f32 %v1218, %v4888
        %v4890 = vand.u32 %v4889, 4294901760
        %4891 = vmatprep.mubr.f32.mxu0 %v4890
        %v4892 = vand.u32 %v1217, 4294901760
        %v4893 = vsub.f32 %v1217, %v4892
        %v4894 = vand.u32 %v4893, 4294901760
        %4895 = vmatmul.mubr.f32.gmra.mxu0 %v4894
        %v4896 = vpop.f32.mrf.mxu0
        %v4897 = vadd.f32 %v4602, %v4896
        %v4898 = vpop.f32.mrf.mxu0
        %v4899 = vadd.f32 %v4604, %v4898
        %v4900 = vand.u32 %v1222, 4294901760
        %v4901 = vsub.f32 %v1222, %v4900
        %v4902 = vand.u32 %v4901, 4294901760
        %4903 = vmatprep.mubr.f32.mxu0 %v4902
        %v4904 = vand.u32 %v1221, 4294901760
        %v4905 = vsub.f32 %v1221, %v4904
        %v4906 = vand.u32 %v4905, 4294901760
        %4907 = vmatmul.mubr.f32.gmra.mxu0 %v4906
        %v4908 = vpop.f32.mrf.mxu0
        %v4909 = vadd.f32 %v4612, %v4908
        %v4910 = vpop.f32.mrf.mxu0
        %v4911 = vadd.f32 %v4614, %v4910
        %v4912 = vand.u32 %v1226, 4294901760
        %v4913 = vsub.f32 %v1226, %v4912
        %v4914 = vand.u32 %v4913, 4294901760
        %4915 = vmatprep.mubr.f32.mxu0 %v4914
        %v4916 = vand.u32 %v1225, 4294901760
        %v4917 = vsub.f32 %v1225, %v4916
        %v4918 = vand.u32 %v4917, 4294901760
        %4919 = vmatmul.mubr.f32.gmra.mxu0 %v4918
        %v4920 = vpop.f32.mrf.mxu0
        %v4921 = vadd.f32 %v4622, %v4920
        %v4922 = vpop.f32.mrf.mxu0
        %v4923 = vadd.f32 %v4624, %v4922
        %v4924 = vand.u32 %v1230, 4294901760
        %v4925 = vsub.f32 %v1230, %v4924
        %v4926 = vand.u32 %v4925, 4294901760
        %4927 = vmatprep.mubr.f32.mxu0 %v4926
        %v4928 = vand.u32 %v1229, 4294901760
        %v4929 = vsub.f32 %v1229, %v4928
        %v4930 = vand.u32 %v4929, 4294901760
        %4931 = vmatmul.mubr.f32.gmra.mxu0 %v4930
        %v4932 = vpop.f32.mrf.mxu0
        %v4933 = vadd.f32 %v4632, %v4932
        %v4934 = vpop.f32.mrf.mxu0
        %v4935 = vadd.f32 %v4634, %v4934
        %v4936 = vand.u32 %v1234, 4294901760
        %v4937 = vsub.f32 %v1234, %v4936
        %v4938 = vand.u32 %v4937, 4294901760
        %4939 = vmatprep.mubr.f32.mxu0 %v4938
        %v4940 = vand.u32 %v1233, 4294901760
        %v4941 = vsub.f32 %v1233, %v4940
        %v4942 = vand.u32 %v4941, 4294901760
        %4943 = vmatmul.mubr.f32.gmra.mxu0 %v4942
        %v4944 = vpop.f32.mrf.mxu0
        %v4945 = vadd.f32 %v4642, %v4944
        %v4946 = vpop.f32.mrf.mxu0
        %v4947 = vadd.f32 %v4644, %v4946
        %v4948 = vand.u32 %v1238, 4294901760
        %v4949 = vsub.f32 %v1238, %v4948
        %v4950 = vand.u32 %v4949, 4294901760
        %4951 = vmatprep.mubr.f32.mxu0 %v4950
        %v4952 = vand.u32 %v1237, 4294901760
        %v4953 = vsub.f32 %v1237, %v4952
        %v4954 = vand.u32 %v4953, 4294901760
        %4955 = vmatmul.mubr.f32.gmra.mxu0 %v4954
        %v4956 = vpop.f32.mrf.mxu0
        %v4957 = vadd.f32 %v4652, %v4956
        %v4958 = vpop.f32.mrf.mxu0
        %v4959 = vadd.f32 %v4654, %v4958
        %v4960 = vand.u32 %v1242, 4294901760
        %v4961 = vsub.f32 %v1242, %v4960
        %v4962 = vand.u32 %v4961, 4294901760
        %4963 = vmatprep.mubr.f32.mxu0 %v4962
        %v4964 = vand.u32 %v1241, 4294901760
        %v4965 = vsub.f32 %v1241, %v4964
        %v4966 = vand.u32 %v4965, 4294901760
        %4967 = vmatmul.mubr.f32.gmra.mxu0 %v4966
        %v4968 = vpop.f32.mrf.mxu0
        %v4969 = vadd.f32 %v4662, %v4968
        %v4970 = vpop.f32.mrf.mxu0
        %v4971 = vadd.f32 %v4664, %v4970
        %v4972 = vand.u32 %v1246, 4294901760
        %v4973 = vsub.f32 %v1246, %v4972
        %v4974 = vand.u32 %v4973, 4294901760
        %4975 = vmatprep.mubr.f32.mxu0 %v4974
        %v4976 = vand.u32 %v1245, 4294901760
        %v4977 = vsub.f32 %v1245, %v4976
        %v4978 = vand.u32 %v4977, 4294901760
        %4979 = vmatmul.mubr.f32.gmra.mxu0 %v4978
        %v4980 = vpop.f32.mrf.mxu0
        %v4981 = vadd.f32 %v4672, %v4980
        %v4982 = vpop.f32.mrf.mxu0
        %v4983 = vadd.f32 %v4674, %v4982
        %v4984 = vand.u32 %v1250, 4294901760
        %v4985 = vsub.f32 %v1250, %v4984
        %v4986 = vand.u32 %v4985, 4294901760
        %4987 = vmatprep.mubr.f32.mxu0 %v4986
        %v4988 = vand.u32 %v1249, 4294901760
        %v4989 = vsub.f32 %v1249, %v4988
        %v4990 = vand.u32 %v4989, 4294901760
        %4991 = vmatmul.mubr.f32.gmra.mxu0 %v4990
        %v4992 = vpop.f32.mrf.mxu0
        %v4993 = vadd.f32 %v4682, %v4992
        %v4994 = vpop.f32.mrf.mxu0
        %v4995 = vadd.f32 %v4684, %v4994
        %v4996 = vand.u32 %v1254, 4294901760
        %v4997 = vsub.f32 %v1254, %v4996
        %v4998 = vand.u32 %v4997, 4294901760
        %4999 = vmatprep.mubr.f32.mxu0 %v4998
        %v5000 = vand.u32 %v1253, 4294901760
        %v5001 = vsub.f32 %v1253, %v5000
        %v5002 = vand.u32 %v5001, 4294901760
        %5003 = vmatmul.mubr.f32.gmra.mxu0 %v5002
        %v5004 = vpop.f32.mrf.mxu0
        %v5005 = vadd.f32 %v4692, %v5004
        %v5006 = vpop.f32.mrf.mxu0
        %v5007 = vadd.f32 %v4694, %v5006
        %v5008 = vand.u32 %v1258, 4294901760
        %v5009 = vsub.f32 %v1258, %v5008
        %v5010 = vand.u32 %v5009, 4294901760
        %5011 = vmatprep.mubr.f32.mxu0 %v5010
        %v5012 = vand.u32 %v1257, 4294901760
        %v5013 = vsub.f32 %v1257, %v5012
        %v5014 = vand.u32 %v5013, 4294901760
        %5015 = vmatmul.mubr.f32.gmra.mxu0 %v5014
        %v5016 = vpop.f32.mrf.mxu0
        %v5017 = vadd.f32 %v4702, %v5016
        %v5018 = vpop.f32.mrf.mxu0
        %v5019 = vadd.f32 %v4704, %v5018
        %v5020 = vand.u32 %v1262, 4294901760
        %v5021 = vsub.f32 %v1262, %v5020
        %v5022 = vand.u32 %v5021, 4294901760
        %5023 = vmatprep.mubr.f32.mxu0 %v5022
        %v5024 = vand.u32 %v1261, 4294901760
        %v5025 = vsub.f32 %v1261, %v5024
        %v5026 = vand.u32 %v5025, 4294901760
        %5027 = vmatmul.mubr.f32.gmra.mxu0 %v5026
        %v5028 = vpop.f32.mrf.mxu0
        %v5029 = vadd.f32 %v4712, %v5028
        %v5030 = vpop.f32.mrf.mxu0
        %v5031 = vadd.f32 %v4714, %v5030
        %v5032 = vand.u32 %v1266, 4294901760
        %v5033 = vsub.f32 %v1266, %v5032
        %v5034 = vand.u32 %v5033, 4294901760
        %5035 = vmatprep.mubr.f32.mxu0 %v5034
        %v5036 = vand.u32 %v1265, 4294901760
        %v5037 = vsub.f32 %v1265, %v5036
        %v5038 = vand.u32 %v5037, 4294901760
        %5039 = vmatmul.mubr.f32.gmra.mxu0 %v5038
        %v5040 = vpop.f32.mrf.mxu0
        %v5041 = vadd.f32 %v4722, %v5040
        %v5042 = vpop.f32.mrf.mxu0
        %v5043 = vadd.f32 %v4724, %v5042
        %v5044 = vand.u32 %v1270, 4294901760
        %v5045 = vsub.f32 %v1270, %v5044
        %v5046 = vand.u32 %v5045, 4294901760
        %5047 = vmatprep.mubr.f32.mxu0 %v5046
        %v5048 = vand.u32 %v1269, 4294901760
        %v5049 = vsub.f32 %v1269, %v5048
        %v5050 = vand.u32 %v5049, 4294901760
        %5051 = vmatmul.mubr.f32.gmra.mxu0 %v5050
        %v5052 = vpop.f32.mrf.mxu0
        %v5053 = vadd.f32 %v4732, %v5052
        %v5054 = vpop.f32.mrf.mxu0
        %v5055 = vadd.f32 %v4734, %v5054
        %5056 = vdwg.mxu0
        %v5057 = vand.u32 %v796, 4294901760
        %v5058 = vsub.f32 %v796, %v5057
        %v5059 = vand.u32 %v5058, 4294901760
        %5060 = vmatprep.subr.mxu0 %v5059
        %v5061 = vand.u32 %v599, 4294901760
        %v5062 = vsub.f32 %v599, %v5061
        %v5063 = vand.u32 %v5062, 4294901760
        %5064 = vmatpush1.msra.mxu0 %v5063
        %v5065 = vand.u32 %v795, 4294901760
        %v5066 = vsub.f32 %v795, %v5065
        %v5067 = vand.u32 %v5066, 4294901760
        %5068 = vmatprep.subr.mxu0 %v5067
        %v5069 = vand.u32 %v598, 4294901760
        %v5070 = vsub.f32 %v598, %v5069
        %v5071 = vand.u32 %v5070, 4294901760
        %5072 = vmatpush1.msra.mxu0 %v5071
        %v5073 = vand.u32 %v794, 4294901760
        %v5074 = vsub.f32 %v794, %v5073
        %v5075 = vand.u32 %v5074, 4294901760
        %5076 = vmatprep.subr.mxu0 %v5075
        %v5077 = vand.u32 %v597, 4294901760
        %v5078 = vsub.f32 %v597, %v5077
        %v5079 = vand.u32 %v5078, 4294901760
        %5080 = vmatpush1.msra.mxu0 %v5079
        %v5081 = vand.u32 %v793, 4294901760
        %v5082 = vsub.f32 %v793, %v5081
        %v5083 = vand.u32 %v5082, 4294901760
        %5084 = vmatprep.subr.mxu0 %v5083
        %v5085 = vand.u32 %v596, 4294901760
        %v5086 = vsub.f32 %v596, %v5085
        %v5087 = vand.u32 %v5086, 4294901760
        %5088 = vmatpush1.msra.mxu0 %v5087
        %v5089 = vand.u32 %v792, 4294901760
        %v5090 = vsub.f32 %v792, %v5089
        %v5091 = vand.u32 %v5090, 4294901760
        %5092 = vmatprep.subr.mxu0 %v5091
        %v5093 = vand.u32 %v595, 4294901760
        %v5094 = vsub.f32 %v595, %v5093
        %v5095 = vand.u32 %v5094, 4294901760
        %5096 = vmatpush1.msra.mxu0 %v5095
        %v5097 = vand.u32 %v791, 4294901760
        %v5098 = vsub.f32 %v791, %v5097
        %v5099 = vand.u32 %v5098, 4294901760
        %5100 = vmatprep.subr.mxu0 %v5099
        %v5101 = vand.u32 %v594, 4294901760
        %v5102 = vsub.f32 %v594, %v5101
        %v5103 = vand.u32 %v5102, 4294901760
        %5104 = vmatpush1.msra.mxu0 %v5103
        %v5105 = vand.u32 %v790, 4294901760
        %v5106 = vsub.f32 %v790, %v5105
        %v5107 = vand.u32 %v5106, 4294901760
        %5108 = vmatprep.subr.mxu0 %v5107
        %v5109 = vand.u32 %v593, 4294901760
        %v5110 = vsub.f32 %v593, %v5109
        %v5111 = vand.u32 %v5110, 4294901760
        %5112 = vmatpush1.msra.mxu0 %v5111
        %v5113 = vand.u32 %v789, 4294901760
        %v5114 = vsub.f32 %v789, %v5113
        %v5115 = vand.u32 %v5114, 4294901760
        %5116 = vmatprep.subr.mxu0 %v5115
        %v5117 = vand.u32 %v592, 4294901760
        %v5118 = vsub.f32 %v592, %v5117
        %v5119 = vand.u32 %v5118, 4294901760
        %5120 = vmatpush1.msra.mxu0 %v5119
        %v5121 = vand.u32 %v788, 4294901760
        %v5122 = vsub.f32 %v788, %v5121
        %v5123 = vand.u32 %v5122, 4294901760
        %5124 = vmatprep.subr.mxu0 %v5123
        %v5125 = vand.u32 %v591, 4294901760
        %v5126 = vsub.f32 %v591, %v5125
        %v5127 = vand.u32 %v5126, 4294901760
        %5128 = vmatpush1.msra.mxu0 %v5127
        %v5129 = vand.u32 %v787, 4294901760
        %v5130 = vsub.f32 %v787, %v5129
        %v5131 = vand.u32 %v5130, 4294901760
        %5132 = vmatprep.subr.mxu0 %v5131
        %v5133 = vand.u32 %v590, 4294901760
        %v5134 = vsub.f32 %v590, %v5133
        %v5135 = vand.u32 %v5134, 4294901760
        %5136 = vmatpush1.msra.mxu0 %v5135
        %v5137 = vand.u32 %v786, 4294901760
        %v5138 = vsub.f32 %v786, %v5137
        %v5139 = vand.u32 %v5138, 4294901760
        %5140 = vmatprep.subr.mxu0 %v5139
        %v5141 = vand.u32 %v589, 4294901760
        %v5142 = vsub.f32 %v589, %v5141
        %v5143 = vand.u32 %v5142, 4294901760
        %5144 = vmatpush1.msra.mxu0 %v5143
        %v5145 = vand.u32 %v785, 4294901760
        %v5146 = vsub.f32 %v785, %v5145
        %v5147 = vand.u32 %v5146, 4294901760
        %5148 = vmatprep.subr.mxu0 %v5147
        %v5149 = vand.u32 %v588, 4294901760
        %v5150 = vsub.f32 %v588, %v5149
        %v5151 = vand.u32 %v5150, 4294901760
        %5152 = vmatpush1.msra.mxu0 %v5151
        %v5153 = vand.u32 %v784, 4294901760
        %v5154 = vsub.f32 %v784, %v5153
        %v5155 = vand.u32 %v5154, 4294901760
        %5156 = vmatprep.subr.mxu0 %v5155
        %v5157 = vand.u32 %v587, 4294901760
        %v5158 = vsub.f32 %v587, %v5157
        %v5159 = vand.u32 %v5158, 4294901760
        %5160 = vmatpush1.msra.mxu0 %v5159
        %v5161 = vand.u32 %v783, 4294901760
        %v5162 = vsub.f32 %v783, %v5161
        %v5163 = vand.u32 %v5162, 4294901760
        %5164 = vmatprep.subr.mxu0 %v5163
        %v5165 = vand.u32 %v586, 4294901760
        %v5166 = vsub.f32 %v586, %v5165
        %v5167 = vand.u32 %v5166, 4294901760
        %5168 = vmatpush1.msra.mxu0 %v5167
        %v5169 = vand.u32 %v782, 4294901760
        %v5170 = vsub.f32 %v782, %v5169
        %v5171 = vand.u32 %v5170, 4294901760
        %5172 = vmatprep.subr.mxu0 %v5171
        %v5173 = vand.u32 %v585, 4294901760
        %v5174 = vsub.f32 %v585, %v5173
        %v5175 = vand.u32 %v5174, 4294901760
        %5176 = vmatpush1.msra.mxu0 %v5175
        %v5177 = vand.u32 %v781, 4294901760
        %v5178 = vsub.f32 %v781, %v5177
        %v5179 = vand.u32 %v5178, 4294901760
        %5180 = vmatprep.subr.mxu0 %v5179
        %v5181 = vand.u32 %v584, 4294901760
        %v5182 = vsub.f32 %v584, %v5181
        %v5183 = vand.u32 %v5182, 4294901760
        %5184 = vmatpush1.msra.mxu0 %v5183
        %v5185 = vand.u32 %v812, 4294901760
        %v5186 = vsub.f32 %v812, %v5185
        %v5187 = vand.u32 %v5186, 4294901760
        %5188 = vmatprep.subr.mxu0 %v5187
        %v5189 = vand.u32 %v615, 4294901760
        %v5190 = vsub.f32 %v615, %v5189
        %v5191 = vand.u32 %v5190, 4294901760
        %5192 = vmatpush2.msra.mxu0 %v5191
        %v5193 = vand.u32 %v811, 4294901760
        %v5194 = vsub.f32 %v811, %v5193
        %v5195 = vand.u32 %v5194, 4294901760
        %5196 = vmatprep.subr.mxu0 %v5195
        %v5197 = vand.u32 %v614, 4294901760
        %v5198 = vsub.f32 %v614, %v5197
        %v5199 = vand.u32 %v5198, 4294901760
        %5200 = vmatpush2.msra.mxu0 %v5199
        %v5201 = vand.u32 %v810, 4294901760
        %v5202 = vsub.f32 %v810, %v5201
        %v5203 = vand.u32 %v5202, 4294901760
        %5204 = vmatprep.subr.mxu0 %v5203
        %v5205 = vand.u32 %v613, 4294901760
        %v5206 = vsub.f32 %v613, %v5205
        %v5207 = vand.u32 %v5206, 4294901760
        %5208 = vmatpush2.msra.mxu0 %v5207
        %v5209 = vand.u32 %v809, 4294901760
        %v5210 = vsub.f32 %v809, %v5209
        %v5211 = vand.u32 %v5210, 4294901760
        %5212 = vmatprep.subr.mxu0 %v5211
        %v5213 = vand.u32 %v612, 4294901760
        %v5214 = vsub.f32 %v612, %v5213
        %v5215 = vand.u32 %v5214, 4294901760
        %5216 = vmatpush2.msra.mxu0 %v5215
        %v5217 = vand.u32 %v808, 4294901760
        %v5218 = vsub.f32 %v808, %v5217
        %v5219 = vand.u32 %v5218, 4294901760
        %5220 = vmatprep.subr.mxu0 %v5219
        %v5221 = vand.u32 %v611, 4294901760
        %v5222 = vsub.f32 %v611, %v5221
        %v5223 = vand.u32 %v5222, 4294901760
        %5224 = vmatpush2.msra.mxu0 %v5223
        %v5225 = vand.u32 %v807, 4294901760
        %v5226 = vsub.f32 %v807, %v5225
        %v5227 = vand.u32 %v5226, 4294901760
        %5228 = vmatprep.subr.mxu0 %v5227
        %v5229 = vand.u32 %v610, 4294901760
        %v5230 = vsub.f32 %v610, %v5229
        %v5231 = vand.u32 %v5230, 4294901760
        %5232 = vmatpush2.msra.mxu0 %v5231
        %v5233 = vand.u32 %v806, 4294901760
        %v5234 = vsub.f32 %v806, %v5233
        %v5235 = vand.u32 %v5234, 4294901760
        %5236 = vmatprep.subr.mxu0 %v5235
        %v5237 = vand.u32 %v609, 4294901760
        %v5238 = vsub.f32 %v609, %v5237
        %v5239 = vand.u32 %v5238, 4294901760
        %5240 = vmatpush2.msra.mxu0 %v5239
        %v5241 = vand.u32 %v805, 4294901760
        %v5242 = vsub.f32 %v805, %v5241
        %v5243 = vand.u32 %v5242, 4294901760
        %5244 = vmatprep.subr.mxu0 %v5243
        %v5245 = vand.u32 %v608, 4294901760
        %v5246 = vsub.f32 %v608, %v5245
        %v5247 = vand.u32 %v5246, 4294901760
        %5248 = vmatpush2.msra.mxu0 %v5247
        %v5249 = vand.u32 %v804, 4294901760
        %v5250 = vsub.f32 %v804, %v5249
        %v5251 = vand.u32 %v5250, 4294901760
        %5252 = vmatprep.subr.mxu0 %v5251
        %v5253 = vand.u32 %v607, 4294901760
        %v5254 = vsub.f32 %v607, %v5253
        %v5255 = vand.u32 %v5254, 4294901760
        %5256 = vmatpush2.msra.mxu0 %v5255
        %v5257 = vand.u32 %v803, 4294901760
        %v5258 = vsub.f32 %v803, %v5257
        %v5259 = vand.u32 %v5258, 4294901760
        %5260 = vmatprep.subr.mxu0 %v5259
        %v5261 = vand.u32 %v606, 4294901760
        %v5262 = vsub.f32 %v606, %v5261
        %v5263 = vand.u32 %v5262, 4294901760
        %5264 = vmatpush2.msra.mxu0 %v5263
        %v5265 = vand.u32 %v802, 4294901760
        %v5266 = vsub.f32 %v802, %v5265
        %v5267 = vand.u32 %v5266, 4294901760
        %5268 = vmatprep.subr.mxu0 %v5267
        %v5269 = vand.u32 %v605, 4294901760
        %v5270 = vsub.f32 %v605, %v5269
        %v5271 = vand.u32 %v5270, 4294901760
        %5272 = vmatpush2.msra.mxu0 %v5271
        %v5273 = vand.u32 %v801, 4294901760
        %v5274 = vsub.f32 %v801, %v5273
        %v5275 = vand.u32 %v5274, 4294901760
        %5276 = vmatprep.subr.mxu0 %v5275
        %v5277 = vand.u32 %v604, 4294901760
        %v5278 = vsub.f32 %v604, %v5277
        %v5279 = vand.u32 %v5278, 4294901760
        %5280 = vmatpush2.msra.mxu0 %v5279
        %v5281 = vand.u32 %v800, 4294901760
        %v5282 = vsub.f32 %v800, %v5281
        %v5283 = vand.u32 %v5282, 4294901760
        %5284 = vmatprep.subr.mxu0 %v5283
        %v5285 = vand.u32 %v603, 4294901760
        %v5286 = vsub.f32 %v603, %v5285
        %v5287 = vand.u32 %v5286, 4294901760
        %5288 = vmatpush2.msra.mxu0 %v5287
        %v5289 = vand.u32 %v799, 4294901760
        %v5290 = vsub.f32 %v799, %v5289
        %v5291 = vand.u32 %v5290, 4294901760
        %5292 = vmatprep.subr.mxu0 %v5291
        %v5293 = vand.u32 %v602, 4294901760
        %v5294 = vsub.f32 %v602, %v5293
        %v5295 = vand.u32 %v5294, 4294901760
        %5296 = vmatpush2.msra.mxu0 %v5295
        %v5297 = vand.u32 %v798, 4294901760
        %v5298 = vsub.f32 %v798, %v5297
        %v5299 = vand.u32 %v5298, 4294901760
        %5300 = vmatprep.subr.mxu0 %v5299
        %v5301 = vand.u32 %v601, 4294901760
        %v5302 = vsub.f32 %v601, %v5301
        %v5303 = vand.u32 %v5302, 4294901760
        %5304 = vmatpush2.msra.mxu0 %v5303
        %v5305 = vand.u32 %v797, 4294901760
        %v5306 = vsub.f32 %v797, %v5305
        %v5307 = vand.u32 %v5306, 4294901760
        %5308 = vmatprep.subr.mxu0 %v5307
        %v5309 = vand.u32 %v600, 4294901760
        %v5310 = vsub.f32 %v600, %v5309
        %v5311 = vand.u32 %v5310, 4294901760
        %5312 = vmatpush2.msra.mxu0 %v5311
        %v5313 = vand.u32 %v1210, 4294901760
        %5314 = vmatprep.mubr.f32.mxu0 %v5313
        %v5315 = vand.u32 %v1209, 4294901760
        %5316 = vmatmul.mubr.f32.gmra.mxu0 %v5315
        %v5317 = vpop.f32.mrf.mxu0
        %v5318 = vadd.f32 %v4873, %v5317
        %v5319 = vpop.f32.mrf.mxu0
        %v5320 = vadd.f32 %v4875, %v5319
        %v5321 = vand.u32 %v1214, 4294901760
        %5322 = vmatprep.mubr.f32.mxu0 %v5321
        %v5323 = vand.u32 %v1213, 4294901760
        %5324 = vmatmul.mubr.f32.gmra.mxu0 %v5323
        %v5325 = vpop.f32.mrf.mxu0
        %v5326 = vadd.f32 %v4885, %v5325
        %v5327 = vpop.f32.mrf.mxu0
        %v5328 = vadd.f32 %v4887, %v5327
        %v5329 = vand.u32 %v1218, 4294901760
        %5330 = vmatprep.mubr.f32.mxu0 %v5329
        %v5331 = vand.u32 %v1217, 4294901760
        %5332 = vmatmul.mubr.f32.gmra.mxu0 %v5331
        %v5333 = vpop.f32.mrf.mxu0
        %v5334 = vadd.f32 %v4897, %v5333
        %v5335 = vpop.f32.mrf.mxu0
        %v5336 = vadd.f32 %v4899, %v5335
        %v5337 = vand.u32 %v1222, 4294901760
        %5338 = vmatprep.mubr.f32.mxu0 %v5337
        %v5339 = vand.u32 %v1221, 4294901760
        %5340 = vmatmul.mubr.f32.gmra.mxu0 %v5339
        %v5341 = vpop.f32.mrf.mxu0
        %v5342 = vadd.f32 %v4909, %v5341
        %v5343 = vpop.f32.mrf.mxu0
        %v5344 = vadd.f32 %v4911, %v5343
        %v5345 = vand.u32 %v1226, 4294901760
        %5346 = vmatprep.mubr.f32.mxu0 %v5345
        %v5347 = vand.u32 %v1225, 4294901760
        %5348 = vmatmul.mubr.f32.gmra.mxu0 %v5347
        %v5349 = vpop.f32.mrf.mxu0
        %v5350 = vadd.f32 %v4921, %v5349
        %v5351 = vpop.f32.mrf.mxu0
        %v5352 = vadd.f32 %v4923, %v5351
        %v5353 = vand.u32 %v1230, 4294901760
        %5354 = vmatprep.mubr.f32.mxu0 %v5353
        %v5355 = vand.u32 %v1229, 4294901760
        %5356 = vmatmul.mubr.f32.gmra.mxu0 %v5355
        %v5357 = vpop.f32.mrf.mxu0
        %v5358 = vadd.f32 %v4933, %v5357
        %v5359 = vpop.f32.mrf.mxu0
        %v5360 = vadd.f32 %v4935, %v5359
        %v5361 = vand.u32 %v1234, 4294901760
        %5362 = vmatprep.mubr.f32.mxu0 %v5361
        %v5363 = vand.u32 %v1233, 4294901760
        %5364 = vmatmul.mubr.f32.gmra.mxu0 %v5363
        %v5365 = vpop.f32.mrf.mxu0
        %v5366 = vadd.f32 %v4945, %v5365
        %v5367 = vpop.f32.mrf.mxu0
        %v5368 = vadd.f32 %v4947, %v5367
        %v5369 = vand.u32 %v1238, 4294901760
        %5370 = vmatprep.mubr.f32.mxu0 %v5369
        %v5371 = vand.u32 %v1237, 4294901760
        %5372 = vmatmul.mubr.f32.gmra.mxu0 %v5371
        %v5373 = vpop.f32.mrf.mxu0
        %v5374 = vadd.f32 %v4957, %v5373
        %v5375 = vpop.f32.mrf.mxu0
        %v5376 = vadd.f32 %v4959, %v5375
        %v5377 = vand.u32 %v1242, 4294901760
        %5378 = vmatprep.mubr.f32.mxu0 %v5377
        %v5379 = vand.u32 %v1241, 4294901760
        %5380 = vmatmul.mubr.f32.gmra.mxu0 %v5379
        %v5381 = vpop.f32.mrf.mxu0
        %v5382 = vadd.f32 %v4969, %v5381
        %v5383 = vpop.f32.mrf.mxu0
        %v5384 = vadd.f32 %v4971, %v5383
        %v5385 = vand.u32 %v1246, 4294901760
        %5386 = vmatprep.mubr.f32.mxu0 %v5385
        %v5387 = vand.u32 %v1245, 4294901760
        %5388 = vmatmul.mubr.f32.gmra.mxu0 %v5387
        %v5389 = vpop.f32.mrf.mxu0
        %v5390 = vadd.f32 %v4981, %v5389
        %v5391 = vpop.f32.mrf.mxu0
        %v5392 = vadd.f32 %v4983, %v5391
        %v5393 = vand.u32 %v1250, 4294901760
        %5394 = vmatprep.mubr.f32.mxu0 %v5393
        %v5395 = vand.u32 %v1249, 4294901760
        %5396 = vmatmul.mubr.f32.gmra.mxu0 %v5395
        %v5397 = vpop.f32.mrf.mxu0
        %v5398 = vadd.f32 %v4993, %v5397
        %v5399 = vpop.f32.mrf.mxu0
        %v5400 = vadd.f32 %v4995, %v5399
        %v5401 = vand.u32 %v1254, 4294901760
        %5402 = vmatprep.mubr.f32.mxu0 %v5401
        %v5403 = vand.u32 %v1253, 4294901760
        %5404 = vmatmul.mubr.f32.gmra.mxu0 %v5403
        %v5405 = vpop.f32.mrf.mxu0
        %v5406 = vadd.f32 %v5005, %v5405
        %v5407 = vpop.f32.mrf.mxu0
        %v5408 = vadd.f32 %v5007, %v5407
        %v5409 = vand.u32 %v1258, 4294901760
        %5410 = vmatprep.mubr.f32.mxu0 %v5409
        %v5411 = vand.u32 %v1257, 4294901760
        %5412 = vmatmul.mubr.f32.gmra.mxu0 %v5411
        %v5413 = vpop.f32.mrf.mxu0
        %v5414 = vadd.f32 %v5017, %v5413
        %v5415 = vpop.f32.mrf.mxu0
        %v5416 = vadd.f32 %v5019, %v5415
        %v5417 = vand.u32 %v1262, 4294901760
        %5418 = vmatprep.mubr.f32.mxu0 %v5417
        %v5419 = vand.u32 %v1261, 4294901760
        %5420 = vmatmul.mubr.f32.gmra.mxu0 %v5419
        %v5421 = vpop.f32.mrf.mxu0
        %v5422 = vadd.f32 %v5029, %v5421
        %v5423 = vpop.f32.mrf.mxu0
        %v5424 = vadd.f32 %v5031, %v5423
        %v5425 = vand.u32 %v1266, 4294901760
        %5426 = vmatprep.mubr.f32.mxu0 %v5425
        %v5427 = vand.u32 %v1265, 4294901760
        %5428 = vmatmul.mubr.f32.gmra.mxu0 %v5427
        %v5429 = vpop.f32.mrf.mxu0
        %v5430 = vadd.f32 %v5041, %v5429
        %v5431 = vpop.f32.mrf.mxu0
        %v5432 = vadd.f32 %v5043, %v5431
        %v5433 = vand.u32 %v1270, 4294901760
        %5434 = vmatprep.mubr.f32.mxu0 %v5433
        %v5435 = vand.u32 %v1269, 4294901760
        %5436 = vmatmul.mubr.f32.gmra.mxu0 %v5435
        %v5437 = vpop.f32.mrf.mxu0
        %v5438 = vadd.f32 %v5053, %v5437
        %v5439 = vpop.f32.mrf.mxu0
        %v5440 = vadd.f32 %v5055, %v5439
        %5441 = vdwg.mxu0
        %v5442 = vand.u32 %v796, 4294901760
        %5443 = vmatprep.subr.mxu0 %v5442
        %v5444 = vand.u32 %v599, 4294901760
        %5445 = vmatpush1.msra.mxu0 %v5444
        %v5446 = vand.u32 %v795, 4294901760
        %5447 = vmatprep.subr.mxu0 %v5446
        %v5448 = vand.u32 %v598, 4294901760
        %5449 = vmatpush1.msra.mxu0 %v5448
        %v5450 = vand.u32 %v794, 4294901760
        %5451 = vmatprep.subr.mxu0 %v5450
        %v5452 = vand.u32 %v597, 4294901760
        %5453 = vmatpush1.msra.mxu0 %v5452
        %v5454 = vand.u32 %v793, 4294901760
        %5455 = vmatprep.subr.mxu0 %v5454
        %v5456 = vand.u32 %v596, 4294901760
        %5457 = vmatpush1.msra.mxu0 %v5456
        %v5458 = vand.u32 %v792, 4294901760
        %5459 = vmatprep.subr.mxu0 %v5458
        %v5460 = vand.u32 %v595, 4294901760
        %5461 = vmatpush1.msra.mxu0 %v5460
        %v5462 = vand.u32 %v791, 4294901760
        %5463 = vmatprep.subr.mxu0 %v5462
        %v5464 = vand.u32 %v594, 4294901760
        %5465 = vmatpush1.msra.mxu0 %v5464
        %v5466 = vand.u32 %v790, 4294901760
        %5467 = vmatprep.subr.mxu0 %v5466
        %v5468 = vand.u32 %v593, 4294901760
        %5469 = vmatpush1.msra.mxu0 %v5468
        %v5470 = vand.u32 %v789, 4294901760
        %5471 = vmatprep.subr.mxu0 %v5470
        %v5472 = vand.u32 %v592, 4294901760
        %5473 = vmatpush1.msra.mxu0 %v5472
        %v5474 = vand.u32 %v788, 4294901760
        %5475 = vmatprep.subr.mxu0 %v5474
        %v5476 = vand.u32 %v591, 4294901760
        %5477 = vmatpush1.msra.mxu0 %v5476
        %v5478 = vand.u32 %v787, 4294901760
        %5479 = vmatprep.subr.mxu0 %v5478
        %v5480 = vand.u32 %v590, 4294901760
        %5481 = vmatpush1.msra.mxu0 %v5480
        %v5482 = vand.u32 %v786, 4294901760
        %5483 = vmatprep.subr.mxu0 %v5482
        %v5484 = vand.u32 %v589, 4294901760
        %5485 = vmatpush1.msra.mxu0 %v5484
        %v5486 = vand.u32 %v785, 4294901760
        %5487 = vmatprep.subr.mxu0 %v5486
        %v5488 = vand.u32 %v588, 4294901760
        %5489 = vmatpush1.msra.mxu0 %v5488
        %v5490 = vand.u32 %v784, 4294901760
        %5491 = vmatprep.subr.mxu0 %v5490
        %v5492 = vand.u32 %v587, 4294901760
        %5493 = vmatpush1.msra.mxu0 %v5492
        %v5494 = vand.u32 %v783, 4294901760
        %5495 = vmatprep.subr.mxu0 %v5494
        %v5496 = vand.u32 %v586, 4294901760
        %5497 = vmatpush1.msra.mxu0 %v5496
        %v5498 = vand.u32 %v782, 4294901760
        %5499 = vmatprep.subr.mxu0 %v5498
        %v5500 = vand.u32 %v585, 4294901760
        %5501 = vmatpush1.msra.mxu0 %v5500
        %v5502 = vand.u32 %v781, 4294901760
        %5503 = vmatprep.subr.mxu0 %v5502
        %v5504 = vand.u32 %v584, 4294901760
        %5505 = vmatpush1.msra.mxu0 %v5504
        %v5506 = vand.u32 %v812, 4294901760
        %5507 = vmatprep.subr.mxu0 %v5506
        %v5508 = vand.u32 %v615, 4294901760
        %5509 = vmatpush2.msra.mxu0 %v5508
        %v5510 = vand.u32 %v811, 4294901760
        %5511 = vmatprep.subr.mxu0 %v5510
        %v5512 = vand.u32 %v614, 4294901760
        %5513 = vmatpush2.msra.mxu0 %v5512
        %v5514 = vand.u32 %v810, 4294901760
        %5515 = vmatprep.subr.mxu0 %v5514
        %v5516 = vand.u32 %v613, 4294901760
        %5517 = vmatpush2.msra.mxu0 %v5516
        %v5518 = vand.u32 %v809, 4294901760
        %5519 = vmatprep.subr.mxu0 %v5518
        %v5520 = vand.u32 %v612, 4294901760
        %5521 = vmatpush2.msra.mxu0 %v5520
        %v5522 = vand.u32 %v808, 4294901760
        %5523 = vmatprep.subr.mxu0 %v5522
        %v5524 = vand.u32 %v611, 4294901760
        %5525 = vmatpush2.msra.mxu0 %v5524
        %v5526 = vand.u32 %v807, 4294901760
        %5527 = vmatprep.subr.mxu0 %v5526
        %v5528 = vand.u32 %v610, 4294901760
        %5529 = vmatpush2.msra.mxu0 %v5528
        %v5530 = vand.u32 %v806, 4294901760
        %5531 = vmatprep.subr.mxu0 %v5530
        %v5532 = vand.u32 %v609, 4294901760
        %5533 = vmatpush2.msra.mxu0 %v5532
        %v5534 = vand.u32 %v805, 4294901760
        %5535 = vmatprep.subr.mxu0 %v5534
        %v5536 = vand.u32 %v608, 4294901760
        %5537 = vmatpush2.msra.mxu0 %v5536
        %v5538 = vand.u32 %v804, 4294901760
        %5539 = vmatprep.subr.mxu0 %v5538
        %v5540 = vand.u32 %v607, 4294901760
        %5541 = vmatpush2.msra.mxu0 %v5540
        %v5542 = vand.u32 %v803, 4294901760
        %5543 = vmatprep.subr.mxu0 %v5542
        %v5544 = vand.u32 %v606, 4294901760
        %5545 = vmatpush2.msra.mxu0 %v5544
        %v5546 = vand.u32 %v802, 4294901760
        %5547 = vmatprep.subr.mxu0 %v5546
        %v5548 = vand.u32 %v605, 4294901760
        %5549 = vmatpush2.msra.mxu0 %v5548
        %v5550 = vand.u32 %v801, 4294901760
        %5551 = vmatprep.subr.mxu0 %v5550
        %v5552 = vand.u32 %v604, 4294901760
        %5553 = vmatpush2.msra.mxu0 %v5552
        %v5554 = vand.u32 %v800, 4294901760
        %5555 = vmatprep.subr.mxu0 %v5554
        %v5556 = vand.u32 %v603, 4294901760
        %5557 = vmatpush2.msra.mxu0 %v5556
        %v5558 = vand.u32 %v799, 4294901760
        %5559 = vmatprep.subr.mxu0 %v5558
        %v5560 = vand.u32 %v602, 4294901760
        %5561 = vmatpush2.msra.mxu0 %v5560
        %v5562 = vand.u32 %v798, 4294901760
        %5563 = vmatprep.subr.mxu0 %v5562
        %v5564 = vand.u32 %v601, 4294901760
        %5565 = vmatpush2.msra.mxu0 %v5564
        %v5566 = vand.u32 %v797, 4294901760
        %5567 = vmatprep.subr.mxu0 %v5566
        %v5568 = vand.u32 %v600, 4294901760
        %5569 = vmatpush2.msra.mxu0 %v5568
        %v5570 = vand.u32 %v1210, 4294901760
        %5571 = vmatprep.mubr.f32.mxu0 %v5570
        %v5572 = vand.u32 %v1209, 4294901760
        %5573 = vmatmul.mubr.f32.gmra.mxu0 %v5572
        %v5574 = vpop.f32.mrf.mxu0
        %v5575 = vadd.f32 %v5318, %v5574
        %v5576 = vpop.f32.mrf.mxu0
        %v5577 = vadd.f32 %v5320, %v5576
        %v5578 = vand.u32 %v1214, 4294901760
        %5579 = vmatprep.mubr.f32.mxu0 %v5578
        %v5580 = vand.u32 %v1213, 4294901760
        %5581 = vmatmul.mubr.f32.gmra.mxu0 %v5580
        %v5582 = vpop.f32.mrf.mxu0
        %v5583 = vadd.f32 %v5326, %v5582
        %v5584 = vpop.f32.mrf.mxu0
        %v5585 = vadd.f32 %v5328, %v5584
        %v5586 = vand.u32 %v1218, 4294901760
        %5587 = vmatprep.mubr.f32.mxu0 %v5586
        %v5588 = vand.u32 %v1217, 4294901760
        %5589 = vmatmul.mubr.f32.gmra.mxu0 %v5588
        %v5590 = vpop.f32.mrf.mxu0
        %v5591 = vadd.f32 %v5334, %v5590
        %v5592 = vpop.f32.mrf.mxu0
        %v5593 = vadd.f32 %v5336, %v5592
        %v5594 = vand.u32 %v1222, 4294901760
        %5595 = vmatprep.mubr.f32.mxu0 %v5594
        %v5596 = vand.u32 %v1221, 4294901760
        %5597 = vmatmul.mubr.f32.gmra.mxu0 %v5596
        %v5598 = vpop.f32.mrf.mxu0
        %v5599 = vadd.f32 %v5342, %v5598
        %v5600 = vpop.f32.mrf.mxu0
        %v5601 = vadd.f32 %v5344, %v5600
        %v5602 = vand.u32 %v1226, 4294901760
        %5603 = vmatprep.mubr.f32.mxu0 %v5602
        %v5604 = vand.u32 %v1225, 4294901760
        %5605 = vmatmul.mubr.f32.gmra.mxu0 %v5604
        %v5606 = vpop.f32.mrf.mxu0
        %v5607 = vadd.f32 %v5350, %v5606
        %v5608 = vpop.f32.mrf.mxu0
        %v5609 = vadd.f32 %v5352, %v5608
        %v5610 = vand.u32 %v1230, 4294901760
        %5611 = vmatprep.mubr.f32.mxu0 %v5610
        %v5612 = vand.u32 %v1229, 4294901760
        %5613 = vmatmul.mubr.f32.gmra.mxu0 %v5612
        %v5614 = vpop.f32.mrf.mxu0
        %v5615 = vadd.f32 %v5358, %v5614
        %v5616 = vpop.f32.mrf.mxu0
        %v5617 = vadd.f32 %v5360, %v5616
        %v5618 = vand.u32 %v1234, 4294901760
        %5619 = vmatprep.mubr.f32.mxu0 %v5618
        %v5620 = vand.u32 %v1233, 4294901760
        %5621 = vmatmul.mubr.f32.gmra.mxu0 %v5620
        %v5622 = vpop.f32.mrf.mxu0
        %v5623 = vadd.f32 %v5366, %v5622
        %v5624 = vpop.f32.mrf.mxu0
        %v5625 = vadd.f32 %v5368, %v5624
        %v5626 = vand.u32 %v1238, 4294901760
        %5627 = vmatprep.mubr.f32.mxu0 %v5626
        %v5628 = vand.u32 %v1237, 4294901760
        %5629 = vmatmul.mubr.f32.gmra.mxu0 %v5628
        %v5630 = vpop.f32.mrf.mxu0
        %v5631 = vadd.f32 %v5374, %v5630
        %v5632 = vpop.f32.mrf.mxu0
        %v5633 = vadd.f32 %v5376, %v5632
        %v5634 = vand.u32 %v1242, 4294901760
        %5635 = vmatprep.mubr.f32.mxu0 %v5634
        %v5636 = vand.u32 %v1241, 4294901760
        %5637 = vmatmul.mubr.f32.gmra.mxu0 %v5636
        %v5638 = vpop.f32.mrf.mxu0
        %v5639 = vadd.f32 %v5382, %v5638
        %v5640 = vpop.f32.mrf.mxu0
        %v5641 = vadd.f32 %v5384, %v5640
        %v5642 = vand.u32 %v1246, 4294901760
        %5643 = vmatprep.mubr.f32.mxu0 %v5642
        %v5644 = vand.u32 %v1245, 4294901760
        %5645 = vmatmul.mubr.f32.gmra.mxu0 %v5644
        %v5646 = vpop.f32.mrf.mxu0
        %v5647 = vadd.f32 %v5390, %v5646
        %v5648 = vpop.f32.mrf.mxu0
        %v5649 = vadd.f32 %v5392, %v5648
        %v5650 = vand.u32 %v1250, 4294901760
        %5651 = vmatprep.mubr.f32.mxu0 %v5650
        %v5652 = vand.u32 %v1249, 4294901760
        %5653 = vmatmul.mubr.f32.gmra.mxu0 %v5652
        %v5654 = vpop.f32.mrf.mxu0
        %v5655 = vadd.f32 %v5398, %v5654
        %v5656 = vpop.f32.mrf.mxu0
        %v5657 = vadd.f32 %v5400, %v5656
        %v5658 = vand.u32 %v1254, 4294901760
        %5659 = vmatprep.mubr.f32.mxu0 %v5658
        %v5660 = vand.u32 %v1253, 4294901760
        %5661 = vmatmul.mubr.f32.gmra.mxu0 %v5660
        %v5662 = vpop.f32.mrf.mxu0
        %v5663 = vadd.f32 %v5406, %v5662
        %v5664 = vpop.f32.mrf.mxu0
        %v5665 = vadd.f32 %v5408, %v5664
        %v5666 = vand.u32 %v1258, 4294901760
        %5667 = vmatprep.mubr.f32.mxu0 %v5666
        %v5668 = vand.u32 %v1257, 4294901760
        %5669 = vmatmul.mubr.f32.gmra.mxu0 %v5668
        %v5670 = vpop.f32.mrf.mxu0
        %v5671 = vadd.f32 %v5414, %v5670
        %v5672 = vpop.f32.mrf.mxu0
        %v5673 = vadd.f32 %v5416, %v5672
        %v5674 = vand.u32 %v1262, 4294901760
        %5675 = vmatprep.mubr.f32.mxu0 %v5674
        %v5676 = vand.u32 %v1261, 4294901760
        %5677 = vmatmul.mubr.f32.gmra.mxu0 %v5676
        %v5678 = vpop.f32.mrf.mxu0
        %v5679 = vadd.f32 %v5422, %v5678
        %v5680 = vpop.f32.mrf.mxu0
        %v5681 = vadd.f32 %v5424, %v5680
        %v5682 = vand.u32 %v1266, 4294901760
        %5683 = vmatprep.mubr.f32.mxu0 %v5682
        %v5684 = vand.u32 %v1265, 4294901760
        %5685 = vmatmul.mubr.f32.gmra.mxu0 %v5684
        %v5686 = vpop.f32.mrf.mxu0
        %v5687 = vadd.f32 %v5430, %v5686
        %v5688 = vpop.f32.mrf.mxu0
        %v5689 = vadd.f32 %v5432, %v5688
        %v5690 = vand.u32 %v1270, 4294901760
        %5691 = vmatprep.mubr.f32.mxu0 %v5690
        %v5692 = vand.u32 %v1269, 4294901760
        %5693 = vmatmul.mubr.f32.gmra.mxu0 %v5692
        %v5694 = vpop.f32.mrf.mxu0
        %v5695 = vadd.f32 %v5438, %v5694
        %v5696 = vpop.f32.mrf.mxu0
        %v5697 = vadd.f32 %v5440, %v5696
        %5698 = vdwg.mxu0
        %v5699 = vld [vmem:[#allocation8] sm:$0xff]
        %v5700 = vld [vmem:[#allocation8 + $0x8] sm:$0xff]
        %v5701 = vld [vmem:[#allocation8 + $0x10] sm:$0xff]
        %v5702 = vld [vmem:[#allocation8 + $0x18] sm:$0xff]
        %v5703 = vld [vmem:[#allocation8 + $0x20] sm:$0xff]
        %v5704 = vld [vmem:[#allocation8 + $0x28] sm:$0xff]
        %v5705 = vld [vmem:[#allocation8 + $0x30] sm:$0xff]
        %v5706 = vld [vmem:[#allocation8 + $0x38] sm:$0xff]
        %v5707 = vld [vmem:[#allocation8 + $0x40] sm:$0xff]
        %v5708 = vld [vmem:[#allocation8 + $0x48] sm:$0xff]
        %v5709 = vld [vmem:[#allocation8 + $0x50] sm:$0xff]
        %v5710 = vld [vmem:[#allocation8 + $0x58] sm:$0xff]
        %v5711 = vld [vmem:[#allocation8 + $0x60] sm:$0xff]
        %v5712 = vld [vmem:[#allocation8 + $0x68] sm:$0xff]
        %v5713 = vld [vmem:[#allocation8 + $0x70] sm:$0xff]
        %v5714 = vld [vmem:[#allocation8 + $0x78] sm:$0xff]
        %v5715 = vld [vmem:[#allocation8 + $0x80] sm:$0xff]
        %v5716 = vld [vmem:[#allocation8 + $0x88] sm:$0xff]
        %v5717 = vld [vmem:[#allocation8 + $0x90] sm:$0xff]
        %v5718 = vld [vmem:[#allocation8 + $0x98] sm:$0xff]
        %v5719 = vld [vmem:[#allocation8 + $0xa0] sm:$0xff]
        %v5720 = vld [vmem:[#allocation8 + $0xa8] sm:$0xff]
        %v5721 = vld [vmem:[#allocation8 + $0xb0] sm:$0xff]
        %v5722 = vld [vmem:[#allocation8 + $0xb8] sm:$0xff]
        %v5723 = vld [vmem:[#allocation8 + $0xc0] sm:$0xff]
        %v5724 = vld [vmem:[#allocation8 + $0xc8] sm:$0xff]
        %v5725 = vld [vmem:[#allocation8 + $0xd0] sm:$0xff]
        %v5726 = vld [vmem:[#allocation8 + $0xd8] sm:$0xff]
        %v5727 = vld [vmem:[#allocation8 + $0xe0] sm:$0xff]
        %v5728 = vld [vmem:[#allocation8 + $0xe8] sm:$0xff]
        %v5729 = vld [vmem:[#allocation8 + $0xf0] sm:$0xff]
        %v5730 = vld [vmem:[#allocation8 + $0xf8] sm:$0xff]
        %v5731 = vld [vmem:[#allocation8 + $0x100] sm:$0xff]
        %v5732 = vld [vmem:[#allocation8 + $0x108] sm:$0xff]
        %v5733 = vld [vmem:[#allocation8 + $0x110] sm:$0xff]
        %v5734 = vld [vmem:[#allocation8 + $0x118] sm:$0xff]
        %v5735 = vld [vmem:[#allocation8 + $0x120] sm:$0xff]
        %v5736 = vld [vmem:[#allocation8 + $0x128] sm:$0xff]
        %v5737 = vld [vmem:[#allocation8 + $0x130] sm:$0xff]
        %v5738 = vld [vmem:[#allocation8 + $0x138] sm:$0xff]
        %v5739 = vld [vmem:[#allocation8 + $0x140] sm:$0xff]
        %v5740 = vld [vmem:[#allocation8 + $0x148] sm:$0xff]
        %v5741 = vld [vmem:[#allocation8 + $0x150] sm:$0xff]
        %v5742 = vld [vmem:[#allocation8 + $0x158] sm:$0xff]
        %v5743 = vld [vmem:[#allocation8 + $0x160] sm:$0xff]
        %v5744 = vld [vmem:[#allocation8 + $0x168] sm:$0xff]
        %v5745 = vld [vmem:[#allocation8 + $0x170] sm:$0xff]
        %v5746 = vld [vmem:[#allocation8 + $0x178] sm:$0xff]
        %v5747 = vld [vmem:[#allocation8 + $0x180] sm:$0xff]
        %v5748 = vld [vmem:[#allocation8 + $0x188] sm:$0xff]
        %v5749 = vld [vmem:[#allocation8 + $0x190] sm:$0xff]
        %v5750 = vld [vmem:[#allocation8 + $0x198] sm:$0xff]
        %v5751 = vld [vmem:[#allocation8 + $0x1a0] sm:$0xff]
        %v5752 = vld [vmem:[#allocation8 + $0x1a8] sm:$0xff]
        %v5753 = vld [vmem:[#allocation8 + $0x1b0] sm:$0xff]
        %v5754 = vld [vmem:[#allocation8 + $0x1b8] sm:$0xff]
        %v5755 = vld [vmem:[#allocation8 + $0x1c0] sm:$0xff]
        %v5756 = vld [vmem:[#allocation8 + $0x1c8] sm:$0xff]
        %v5757 = vld [vmem:[#allocation8 + $0x1d0] sm:$0xff]
        %v5758 = vld [vmem:[#allocation8 + $0x1d8] sm:$0xff]
        %v5759 = vld [vmem:[#allocation8 + $0x1e0] sm:$0xff]
        %v5760 = vld [vmem:[#allocation8 + $0x1e8] sm:$0xff]
        %v5761 = vld [vmem:[#allocation8 + $0x1f0] sm:$0xff]
        %v5762 = vld [vmem:[#allocation8 + $0x1f8] sm:$0xff]
        %v5763 = vand.u32 %v1158, 4294901760
        %5764 = vmatprep.subr.mxu0 %v5763
        %v5765 = vand.u32 %v961, 4294901760
        %5766 = vmatpush1.msra.mxu0 %v5765
        %v5767 = vand.u32 %v1157, 4294901760
        %5768 = vmatprep.subr.mxu0 %v5767
        %v5769 = vand.u32 %v960, 4294901760
        %5770 = vmatpush1.msra.mxu0 %v5769
        %v5771 = vand.u32 %v1156, 4294901760
        %5772 = vmatprep.subr.mxu0 %v5771
        %v5773 = vand.u32 %v959, 4294901760
        %5774 = vmatpush1.msra.mxu0 %v5773
        %v5775 = vand.u32 %v1155, 4294901760
        %5776 = vmatprep.subr.mxu0 %v5775
        %v5777 = vand.u32 %v958, 4294901760
        %5778 = vmatpush1.msra.mxu0 %v5777
        %v5779 = vand.u32 %v1154, 4294901760
        %5780 = vmatprep.subr.mxu0 %v5779
        %v5781 = vand.u32 %v957, 4294901760
        %5782 = vmatpush1.msra.mxu0 %v5781
        %v5783 = vand.u32 %v1153, 4294901760
        %5784 = vmatprep.subr.mxu0 %v5783
        %v5785 = vand.u32 %v956, 4294901760
        %5786 = vmatpush1.msra.mxu0 %v5785
        %v5787 = vand.u32 %v1152, 4294901760
        %5788 = vmatprep.subr.mxu0 %v5787
        %v5789 = vand.u32 %v955, 4294901760
        %5790 = vmatpush1.msra.mxu0 %v5789
        %v5791 = vand.u32 %v1151, 4294901760
        %5792 = vmatprep.subr.mxu0 %v5791
        %v5793 = vand.u32 %v954, 4294901760
        %5794 = vmatpush1.msra.mxu0 %v5793
        %v5795 = vand.u32 %v1150, 4294901760
        %5796 = vmatprep.subr.mxu0 %v5795
        %v5797 = vand.u32 %v953, 4294901760
        %5798 = vmatpush1.msra.mxu0 %v5797
        %v5799 = vand.u32 %v1149, 4294901760
        %5800 = vmatprep.subr.mxu0 %v5799
        %v5801 = vand.u32 %v952, 4294901760
        %5802 = vmatpush1.msra.mxu0 %v5801
        %v5803 = vand.u32 %v1148, 4294901760
        %5804 = vmatprep.subr.mxu0 %v5803
        %v5805 = vand.u32 %v951, 4294901760
        %5806 = vmatpush1.msra.mxu0 %v5805
        %v5807 = vand.u32 %v1147, 4294901760
        %5808 = vmatprep.subr.mxu0 %v5807
        %v5809 = vand.u32 %v950, 4294901760
        %5810 = vmatpush1.msra.mxu0 %v5809
        %v5811 = vand.u32 %v1146, 4294901760
        %5812 = vmatprep.subr.mxu0 %v5811
        %v5813 = vand.u32 %v949, 4294901760
        %5814 = vmatpush1.msra.mxu0 %v5813
        %v5815 = vand.u32 %v1145, 4294901760
        %5816 = vmatprep.subr.mxu0 %v5815
        %v5817 = vand.u32 %v948, 4294901760
        %5818 = vmatpush1.msra.mxu0 %v5817
        %v5819 = vand.u32 %v1144, 4294901760
        %5820 = vmatprep.subr.mxu0 %v5819
        %v5821 = vand.u32 %v947, 4294901760
        %5822 = vmatpush1.msra.mxu0 %v5821
        %v5823 = vand.u32 %v1143, 4294901760
        %5824 = vmatprep.subr.mxu0 %v5823
        %v5825 = vand.u32 %v946, 4294901760
        %5826 = vmatpush1.msra.mxu0 %v5825
        %v5827 = vand.u32 %v1174, 4294901760
        %5828 = vmatprep.subr.mxu0 %v5827
        %v5829 = vand.u32 %v977, 4294901760
        %5830 = vmatpush2.msra.mxu0 %v5829
        %v5831 = vand.u32 %v1173, 4294901760
        %5832 = vmatprep.subr.mxu0 %v5831
        %v5833 = vand.u32 %v976, 4294901760
        %5834 = vmatpush2.msra.mxu0 %v5833
        %v5835 = vand.u32 %v1172, 4294901760
        %5836 = vmatprep.subr.mxu0 %v5835
        %v5837 = vand.u32 %v975, 4294901760
        %5838 = vmatpush2.msra.mxu0 %v5837
        %v5839 = vand.u32 %v1171, 4294901760
        %5840 = vmatprep.subr.mxu0 %v5839
        %v5841 = vand.u32 %v974, 4294901760
        %5842 = vmatpush2.msra.mxu0 %v5841
        %v5843 = vand.u32 %v1170, 4294901760
        %5844 = vmatprep.subr.mxu0 %v5843
        %v5845 = vand.u32 %v973, 4294901760
        %5846 = vmatpush2.msra.mxu0 %v5845
        %v5847 = vand.u32 %v1169, 4294901760
        %5848 = vmatprep.subr.mxu0 %v5847
        %v5849 = vand.u32 %v972, 4294901760
        %5850 = vmatpush2.msra.mxu0 %v5849
        %v5851 = vand.u32 %v1168, 4294901760
        %5852 = vmatprep.subr.mxu0 %v5851
        %v5853 = vand.u32 %v971, 4294901760
        %5854 = vmatpush2.msra.mxu0 %v5853
        %v5855 = vand.u32 %v1167, 4294901760
        %5856 = vmatprep.subr.mxu0 %v5855
        %v5857 = vand.u32 %v970, 4294901760
        %5858 = vmatpush2.msra.mxu0 %v5857
        %v5859 = vand.u32 %v1166, 4294901760
        %5860 = vmatprep.subr.mxu0 %v5859
        %v5861 = vand.u32 %v969, 4294901760
        %5862 = vmatpush2.msra.mxu0 %v5861
        %v5863 = vand.u32 %v1165, 4294901760
        %5864 = vmatprep.subr.mxu0 %v5863
        %v5865 = vand.u32 %v968, 4294901760
        %5866 = vmatpush2.msra.mxu0 %v5865
        %v5867 = vand.u32 %v1164, 4294901760
        %5868 = vmatprep.subr.mxu0 %v5867
        %v5869 = vand.u32 %v967, 4294901760
        %5870 = vmatpush2.msra.mxu0 %v5869
        %v5871 = vand.u32 %v1163, 4294901760
        %5872 = vmatprep.subr.mxu0 %v5871
        %v5873 = vand.u32 %v966, 4294901760
        %5874 = vmatpush2.msra.mxu0 %v5873
        %v5875 = vand.u32 %v1162, 4294901760
        %5876 = vmatprep.subr.mxu0 %v5875
        %v5877 = vand.u32 %v965, 4294901760
        %5878 = vmatpush2.msra.mxu0 %v5877
        %v5879 = vand.u32 %v1161, 4294901760
        %5880 = vmatprep.subr.mxu0 %v5879
        %v5881 = vand.u32 %v964, 4294901760
        %5882 = vmatpush2.msra.mxu0 %v5881
        %v5883 = vand.u32 %v1160, 4294901760
        %5884 = vmatprep.subr.mxu0 %v5883
        %v5885 = vand.u32 %v963, 4294901760
        %5886 = vmatpush2.msra.mxu0 %v5885
        %v5887 = vand.u32 %v1159, 4294901760
        %5888 = vmatprep.subr.mxu0 %v5887
        %v5889 = vand.u32 %v962, 4294901760
        %5890 = vmatpush2.msra.mxu0 %v5889
        %v5891 = vand.u32 %v5700, 4294901760
        %v5892 = vsub.f32 %v5700, %v5891
        %v5893 = vand.u32 %v5892, 4294901760
        %v5894 = vsub.f32 %v5892, %v5893
        %v5895 = vand.u32 %v5894, 4294901760
        %5896 = vmatprep.mubr.f32.mxu0 %v5895
        %v5897 = vand.u32 %v5699, 4294901760
        %v5898 = vsub.f32 %v5699, %v5897
        %v5899 = vand.u32 %v5898, 4294901760
        %v5900 = vsub.f32 %v5898, %v5899
        %v5901 = vand.u32 %v5900, 4294901760
        %5902 = vmatmul.mubr.f32.gmra.mxu0 %v5901
        %v5903 = vpop.f32.mrf.mxu0
        %v5904 = vadd.f32 0.0, %v5903
        %v5905 = vpop.f32.mrf.mxu0
        %v5906 = vadd.f32 0.0, %v5905
        %v5907 = vand.u32 %v5704, 4294901760
        %v5908 = vsub.f32 %v5704, %v5907
        %v5909 = vand.u32 %v5908, 4294901760
        %v5910 = vsub.f32 %v5908, %v5909
        %v5911 = vand.u32 %v5910, 4294901760
        %5912 = vmatprep.mubr.f32.mxu0 %v5911
        %v5913 = vand.u32 %v5703, 4294901760
        %v5914 = vsub.f32 %v5703, %v5913
        %v5915 = vand.u32 %v5914, 4294901760
        %v5916 = vsub.f32 %v5914, %v5915
        %v5917 = vand.u32 %v5916, 4294901760
        %5918 = vmatmul.mubr.f32.gmra.mxu0 %v5917
        %v5919 = vpop.f32.mrf.mxu0
        %v5920 = vadd.f32 0.0, %v5919
        %v5921 = vpop.f32.mrf.mxu0
        %v5922 = vadd.f32 0.0, %v5921
        %v5923 = vand.u32 %v5708, 4294901760
        %v5924 = vsub.f32 %v5708, %v5923
        %v5925 = vand.u32 %v5924, 4294901760
        %v5926 = vsub.f32 %v5924, %v5925
        %v5927 = vand.u32 %v5926, 4294901760
        %5928 = vmatprep.mubr.f32.mxu0 %v5927
        %v5929 = vand.u32 %v5707, 4294901760
        %v5930 = vsub.f32 %v5707, %v5929
        %v5931 = vand.u32 %v5930, 4294901760
        %v5932 = vsub.f32 %v5930, %v5931
        %v5933 = vand.u32 %v5932, 4294901760
        %5934 = vmatmul.mubr.f32.gmra.mxu0 %v5933
        %v5935 = vpop.f32.mrf.mxu0
        %v5936 = vadd.f32 0.0, %v5935
        %v5937 = vpop.f32.mrf.mxu0
        %v5938 = vadd.f32 0.0, %v5937
        %v5939 = vand.u32 %v5712, 4294901760
        %v5940 = vsub.f32 %v5712, %v5939
        %v5941 = vand.u32 %v5940, 4294901760
        %v5942 = vsub.f32 %v5940, %v5941
        %v5943 = vand.u32 %v5942, 4294901760
        %5944 = vmatprep.mubr.f32.mxu0 %v5943
        %v5945 = vand.u32 %v5711, 4294901760
        %v5946 = vsub.f32 %v5711, %v5945
        %v5947 = vand.u32 %v5946, 4294901760
        %v5948 = vsub.f32 %v5946, %v5947
        %v5949 = vand.u32 %v5948, 4294901760
        %5950 = vmatmul.mubr.f32.gmra.mxu0 %v5949
        %v5951 = vpop.f32.mrf.mxu0
        %v5952 = vadd.f32 0.0, %v5951
        %v5953 = vpop.f32.mrf.mxu0
        %v5954 = vadd.f32 0.0, %v5953
        %v5955 = vand.u32 %v5716, 4294901760
        %v5956 = vsub.f32 %v5716, %v5955
        %v5957 = vand.u32 %v5956, 4294901760
        %v5958 = vsub.f32 %v5956, %v5957
        %v5959 = vand.u32 %v5958, 4294901760
        %5960 = vmatprep.mubr.f32.mxu0 %v5959
        %v5961 = vand.u32 %v5715, 4294901760
        %v5962 = vsub.f32 %v5715, %v5961
        %v5963 = vand.u32 %v5962, 4294901760
        %v5964 = vsub.f32 %v5962, %v5963
        %v5965 = vand.u32 %v5964, 4294901760
        %5966 = vmatmul.mubr.f32.gmra.mxu0 %v5965
        %v5967 = vpop.f32.mrf.mxu0
        %v5968 = vadd.f32 0.0, %v5967
        %v5969 = vpop.f32.mrf.mxu0
        %v5970 = vadd.f32 0.0, %v5969
        %v5971 = vand.u32 %v5720, 4294901760
        %v5972 = vsub.f32 %v5720, %v5971
        %v5973 = vand.u32 %v5972, 4294901760
        %v5974 = vsub.f32 %v5972, %v5973
        %v5975 = vand.u32 %v5974, 4294901760
        %5976 = vmatprep.mubr.f32.mxu0 %v5975
        %v5977 = vand.u32 %v5719, 4294901760
        %v5978 = vsub.f32 %v5719, %v5977
        %v5979 = vand.u32 %v5978, 4294901760
        %v5980 = vsub.f32 %v5978, %v5979
        %v5981 = vand.u32 %v5980, 4294901760
        %5982 = vmatmul.mubr.f32.gmra.mxu0 %v5981
        %v5983 = vpop.f32.mrf.mxu0
        %v5984 = vadd.f32 0.0, %v5983
        %v5985 = vpop.f32.mrf.mxu0
        %v5986 = vadd.f32 0.0, %v5985
        %v5987 = vand.u32 %v5724, 4294901760
        %v5988 = vsub.f32 %v5724, %v5987
        %v5989 = vand.u32 %v5988, 4294901760
        %v5990 = vsub.f32 %v5988, %v5989
        %v5991 = vand.u32 %v5990, 4294901760
        %5992 = vmatprep.mubr.f32.mxu0 %v5991
        %v5993 = vand.u32 %v5723, 4294901760
        %v5994 = vsub.f32 %v5723, %v5993
        %v5995 = vand.u32 %v5994, 4294901760
        %v5996 = vsub.f32 %v5994, %v5995
        %v5997 = vand.u32 %v5996, 4294901760
        %5998 = vmatmul.mubr.f32.gmra.mxu0 %v5997
        %v5999 = vpop.f32.mrf.mxu0
        %v6000 = vadd.f32 0.0, %v5999
        %v6001 = vpop.f32.mrf.mxu0
        %v6002 = vadd.f32 0.0, %v6001
        %v6003 = vand.u32 %v5728, 4294901760
        %v6004 = vsub.f32 %v5728, %v6003
        %v6005 = vand.u32 %v6004, 4294901760
        %v6006 = vsub.f32 %v6004, %v6005
        %v6007 = vand.u32 %v6006, 4294901760
        %6008 = vmatprep.mubr.f32.mxu0 %v6007
        %v6009 = vand.u32 %v5727, 4294901760
        %v6010 = vsub.f32 %v5727, %v6009
        %v6011 = vand.u32 %v6010, 4294901760
        %v6012 = vsub.f32 %v6010, %v6011
        %v6013 = vand.u32 %v6012, 4294901760
        %6014 = vmatmul.mubr.f32.gmra.mxu0 %v6013
        %v6015 = vpop.f32.mrf.mxu0
        %v6016 = vadd.f32 0.0, %v6015
        %v6017 = vpop.f32.mrf.mxu0
        %v6018 = vadd.f32 0.0, %v6017
        %v6019 = vand.u32 %v5732, 4294901760
        %v6020 = vsub.f32 %v5732, %v6019
        %v6021 = vand.u32 %v6020, 4294901760
        %v6022 = vsub.f32 %v6020, %v6021
        %v6023 = vand.u32 %v6022, 4294901760
        %6024 = vmatprep.mubr.f32.mxu0 %v6023
        %v6025 = vand.u32 %v5731, 4294901760
        %v6026 = vsub.f32 %v5731, %v6025
        %v6027 = vand.u32 %v6026, 4294901760
        %v6028 = vsub.f32 %v6026, %v6027
        %v6029 = vand.u32 %v6028, 4294901760
        %6030 = vmatmul.mubr.f32.gmra.mxu0 %v6029
        %v6031 = vpop.f32.mrf.mxu0
        %v6032 = vadd.f32 0.0, %v6031
        %v6033 = vpop.f32.mrf.mxu0
        %v6034 = vadd.f32 0.0, %v6033
        %v6035 = vand.u32 %v5736, 4294901760
        %v6036 = vsub.f32 %v5736, %v6035
        %v6037 = vand.u32 %v6036, 4294901760
        %v6038 = vsub.f32 %v6036, %v6037
        %v6039 = vand.u32 %v6038, 4294901760
        %6040 = vmatprep.mubr.f32.mxu0 %v6039
        %v6041 = vand.u32 %v5735, 4294901760
        %v6042 = vsub.f32 %v5735, %v6041
        %v6043 = vand.u32 %v6042, 4294901760
        %v6044 = vsub.f32 %v6042, %v6043
        %v6045 = vand.u32 %v6044, 4294901760
        %6046 = vmatmul.mubr.f32.gmra.mxu0 %v6045
        %v6047 = vpop.f32.mrf.mxu0
        %v6048 = vadd.f32 0.0, %v6047
        %v6049 = vpop.f32.mrf.mxu0
        %v6050 = vadd.f32 0.0, %v6049
        %v6051 = vand.u32 %v5740, 4294901760
        %v6052 = vsub.f32 %v5740, %v6051
        %v6053 = vand.u32 %v6052, 4294901760
        %v6054 = vsub.f32 %v6052, %v6053
        %v6055 = vand.u32 %v6054, 4294901760
        %6056 = vmatprep.mubr.f32.mxu0 %v6055
        %v6057 = vand.u32 %v5739, 4294901760
        %v6058 = vsub.f32 %v5739, %v6057
        %v6059 = vand.u32 %v6058, 4294901760
        %v6060 = vsub.f32 %v6058, %v6059
        %v6061 = vand.u32 %v6060, 4294901760
        %6062 = vmatmul.mubr.f32.gmra.mxu0 %v6061
        %v6063 = vpop.f32.mrf.mxu0
        %v6064 = vadd.f32 0.0, %v6063
        %v6065 = vpop.f32.mrf.mxu0
        %v6066 = vadd.f32 0.0, %v6065
        %v6067 = vand.u32 %v5744, 4294901760
        %v6068 = vsub.f32 %v5744, %v6067
        %v6069 = vand.u32 %v6068, 4294901760
        %v6070 = vsub.f32 %v6068, %v6069
        %v6071 = vand.u32 %v6070, 4294901760
        %6072 = vmatprep.mubr.f32.mxu0 %v6071
        %v6073 = vand.u32 %v5743, 4294901760
        %v6074 = vsub.f32 %v5743, %v6073
        %v6075 = vand.u32 %v6074, 4294901760
        %v6076 = vsub.f32 %v6074, %v6075
        %v6077 = vand.u32 %v6076, 4294901760
        %6078 = vmatmul.mubr.f32.gmra.mxu0 %v6077
        %v6079 = vpop.f32.mrf.mxu0
        %v6080 = vadd.f32 0.0, %v6079
        %v6081 = vpop.f32.mrf.mxu0
        %v6082 = vadd.f32 0.0, %v6081
        %v6083 = vand.u32 %v5748, 4294901760
        %v6084 = vsub.f32 %v5748, %v6083
        %v6085 = vand.u32 %v6084, 4294901760
        %v6086 = vsub.f32 %v6084, %v6085
        %v6087 = vand.u32 %v6086, 4294901760
        %6088 = vmatprep.mubr.f32.mxu0 %v6087
        %v6089 = vand.u32 %v5747, 4294901760
        %v6090 = vsub.f32 %v5747, %v6089
        %v6091 = vand.u32 %v6090, 4294901760
        %v6092 = vsub.f32 %v6090, %v6091
        %v6093 = vand.u32 %v6092, 4294901760
        %6094 = vmatmul.mubr.f32.gmra.mxu0 %v6093
        %v6095 = vpop.f32.mrf.mxu0
        %v6096 = vadd.f32 0.0, %v6095
        %v6097 = vpop.f32.mrf.mxu0
        %v6098 = vadd.f32 0.0, %v6097
        %v6099 = vand.u32 %v5752, 4294901760
        %v6100 = vsub.f32 %v5752, %v6099
        %v6101 = vand.u32 %v6100, 4294901760
        %v6102 = vsub.f32 %v6100, %v6101
        %v6103 = vand.u32 %v6102, 4294901760
        %6104 = vmatprep.mubr.f32.mxu0 %v6103
        %v6105 = vand.u32 %v5751, 4294901760
        %v6106 = vsub.f32 %v5751, %v6105
        %v6107 = vand.u32 %v6106, 4294901760
        %v6108 = vsub.f32 %v6106, %v6107
        %v6109 = vand.u32 %v6108, 4294901760
        %6110 = vmatmul.mubr.f32.gmra.mxu0 %v6109
        %v6111 = vpop.f32.mrf.mxu0
        %v6112 = vadd.f32 0.0, %v6111
        %v6113 = vpop.f32.mrf.mxu0
        %v6114 = vadd.f32 0.0, %v6113
        %v6115 = vand.u32 %v5756, 4294901760
        %v6116 = vsub.f32 %v5756, %v6115
        %v6117 = vand.u32 %v6116, 4294901760
        %v6118 = vsub.f32 %v6116, %v6117
        %v6119 = vand.u32 %v6118, 4294901760
        %6120 = vmatprep.mubr.f32.mxu0 %v6119
        %v6121 = vand.u32 %v5755, 4294901760
        %v6122 = vsub.f32 %v5755, %v6121
        %v6123 = vand.u32 %v6122, 4294901760
        %v6124 = vsub.f32 %v6122, %v6123
        %v6125 = vand.u32 %v6124, 4294901760
        %6126 = vmatmul.mubr.f32.gmra.mxu0 %v6125
        %v6127 = vpop.f32.mrf.mxu0
        %v6128 = vadd.f32 0.0, %v6127
        %v6129 = vpop.f32.mrf.mxu0
        %v6130 = vadd.f32 0.0, %v6129
        %v6131 = vand.u32 %v5760, 4294901760
        %v6132 = vsub.f32 %v5760, %v6131
        %v6133 = vand.u32 %v6132, 4294901760
        %v6134 = vsub.f32 %v6132, %v6133
        %v6135 = vand.u32 %v6134, 4294901760
        %6136 = vmatprep.mubr.f32.mxu0 %v6135
        %v6137 = vand.u32 %v5759, 4294901760
        %v6138 = vsub.f32 %v5759, %v6137
        %v6139 = vand.u32 %v6138, 4294901760
        %v6140 = vsub.f32 %v6138, %v6139
        %v6141 = vand.u32 %v6140, 4294901760
        %6142 = vmatmul.mubr.f32.gmra.mxu0 %v6141
        %v6143 = vpop.f32.mrf.mxu0
        %v6144 = vadd.f32 0.0, %v6143
        %v6145 = vpop.f32.mrf.mxu0
        %v6146 = vadd.f32 0.0, %v6145
        %6147 = vdwg.mxu0
        %v6148 = vand.u32 %v1158, 4294901760
        %v6149 = vsub.f32 %v1158, %v6148
        %v6150 = vand.u32 %v6149, 4294901760
        %v6151 = vsub.f32 %v6149, %v6150
        %v6152 = vand.u32 %v6151, 4294901760
        %6153 = vmatprep.subr.mxu0 %v6152
        %v6154 = vand.u32 %v961, 4294901760
        %v6155 = vsub.f32 %v961, %v6154
        %v6156 = vand.u32 %v6155, 4294901760
        %v6157 = vsub.f32 %v6155, %v6156
        %v6158 = vand.u32 %v6157, 4294901760
        %6159 = vmatpush1.msra.mxu0 %v6158
        %v6160 = vand.u32 %v1157, 4294901760
        %v6161 = vsub.f32 %v1157, %v6160
        %v6162 = vand.u32 %v6161, 4294901760
        %v6163 = vsub.f32 %v6161, %v6162
        %v6164 = vand.u32 %v6163, 4294901760
        %6165 = vmatprep.subr.mxu0 %v6164
        %v6166 = vand.u32 %v960, 4294901760
        %v6167 = vsub.f32 %v960, %v6166
        %v6168 = vand.u32 %v6167, 4294901760
        %v6169 = vsub.f32 %v6167, %v6168
        %v6170 = vand.u32 %v6169, 4294901760
        %6171 = vmatpush1.msra.mxu0 %v6170
        %v6172 = vand.u32 %v1156, 4294901760
        %v6173 = vsub.f32 %v1156, %v6172
        %v6174 = vand.u32 %v6173, 4294901760
        %v6175 = vsub.f32 %v6173, %v6174
        %v6176 = vand.u32 %v6175, 4294901760
        %6177 = vmatprep.subr.mxu0 %v6176
        %v6178 = vand.u32 %v959, 4294901760
        %v6179 = vsub.f32 %v959, %v6178
        %v6180 = vand.u32 %v6179, 4294901760
        %v6181 = vsub.f32 %v6179, %v6180
        %v6182 = vand.u32 %v6181, 4294901760
        %6183 = vmatpush1.msra.mxu0 %v6182
        %v6184 = vand.u32 %v1155, 4294901760
        %v6185 = vsub.f32 %v1155, %v6184
        %v6186 = vand.u32 %v6185, 4294901760
        %v6187 = vsub.f32 %v6185, %v6186
        %v6188 = vand.u32 %v6187, 4294901760
        %6189 = vmatprep.subr.mxu0 %v6188
        %v6190 = vand.u32 %v958, 4294901760
        %v6191 = vsub.f32 %v958, %v6190
        %v6192 = vand.u32 %v6191, 4294901760
        %v6193 = vsub.f32 %v6191, %v6192
        %v6194 = vand.u32 %v6193, 4294901760
        %6195 = vmatpush1.msra.mxu0 %v6194
        %v6196 = vand.u32 %v1154, 4294901760
        %v6197 = vsub.f32 %v1154, %v6196
        %v6198 = vand.u32 %v6197, 4294901760
        %v6199 = vsub.f32 %v6197, %v6198
        %v6200 = vand.u32 %v6199, 4294901760
        %6201 = vmatprep.subr.mxu0 %v6200
        %v6202 = vand.u32 %v957, 4294901760
        %v6203 = vsub.f32 %v957, %v6202
        %v6204 = vand.u32 %v6203, 4294901760
        %v6205 = vsub.f32 %v6203, %v6204
        %v6206 = vand.u32 %v6205, 4294901760
        %6207 = vmatpush1.msra.mxu0 %v6206
        %v6208 = vand.u32 %v1153, 4294901760
        %v6209 = vsub.f32 %v1153, %v6208
        %v6210 = vand.u32 %v6209, 4294901760
        %v6211 = vsub.f32 %v6209, %v6210
        %v6212 = vand.u32 %v6211, 4294901760
        %6213 = vmatprep.subr.mxu0 %v6212
        %v6214 = vand.u32 %v956, 4294901760
        %v6215 = vsub.f32 %v956, %v6214
        %v6216 = vand.u32 %v6215, 4294901760
        %v6217 = vsub.f32 %v6215, %v6216
        %v6218 = vand.u32 %v6217, 4294901760
        %6219 = vmatpush1.msra.mxu0 %v6218
        %v6220 = vand.u32 %v1152, 4294901760
        %v6221 = vsub.f32 %v1152, %v6220
        %v6222 = vand.u32 %v6221, 4294901760
        %v6223 = vsub.f32 %v6221, %v6222
        %v6224 = vand.u32 %v6223, 4294901760
        %6225 = vmatprep.subr.mxu0 %v6224
        %v6226 = vand.u32 %v955, 4294901760
        %v6227 = vsub.f32 %v955, %v6226
        %v6228 = vand.u32 %v6227, 4294901760
        %v6229 = vsub.f32 %v6227, %v6228
        %v6230 = vand.u32 %v6229, 4294901760
        %6231 = vmatpush1.msra.mxu0 %v6230
        %v6232 = vand.u32 %v1151, 4294901760
        %v6233 = vsub.f32 %v1151, %v6232
        %v6234 = vand.u32 %v6233, 4294901760
        %v6235 = vsub.f32 %v6233, %v6234
        %v6236 = vand.u32 %v6235, 4294901760
        %6237 = vmatprep.subr.mxu0 %v6236
        %v6238 = vand.u32 %v954, 4294901760
        %v6239 = vsub.f32 %v954, %v6238
        %v6240 = vand.u32 %v6239, 4294901760
        %v6241 = vsub.f32 %v6239, %v6240
        %v6242 = vand.u32 %v6241, 4294901760
        %6243 = vmatpush1.msra.mxu0 %v6242
        %v6244 = vand.u32 %v1150, 4294901760
        %v6245 = vsub.f32 %v1150, %v6244
        %v6246 = vand.u32 %v6245, 4294901760
        %v6247 = vsub.f32 %v6245, %v6246
        %v6248 = vand.u32 %v6247, 4294901760
        %6249 = vmatprep.subr.mxu0 %v6248
        %v6250 = vand.u32 %v953, 4294901760
        %v6251 = vsub.f32 %v953, %v6250
        %v6252 = vand.u32 %v6251, 4294901760
        %v6253 = vsub.f32 %v6251, %v6252
        %v6254 = vand.u32 %v6253, 4294901760
        %6255 = vmatpush1.msra.mxu0 %v6254
        %v6256 = vand.u32 %v1149, 4294901760
        %v6257 = vsub.f32 %v1149, %v6256
        %v6258 = vand.u32 %v6257, 4294901760
        %v6259 = vsub.f32 %v6257, %v6258
        %v6260 = vand.u32 %v6259, 4294901760
        %6261 = vmatprep.subr.mxu0 %v6260
        %v6262 = vand.u32 %v952, 4294901760
        %v6263 = vsub.f32 %v952, %v6262
        %v6264 = vand.u32 %v6263, 4294901760
        %v6265 = vsub.f32 %v6263, %v6264
        %v6266 = vand.u32 %v6265, 4294901760
        %6267 = vmatpush1.msra.mxu0 %v6266
        %v6268 = vand.u32 %v1148, 4294901760
        %v6269 = vsub.f32 %v1148, %v6268
        %v6270 = vand.u32 %v6269, 4294901760
        %v6271 = vsub.f32 %v6269, %v6270
        %v6272 = vand.u32 %v6271, 4294901760
        %6273 = vmatprep.subr.mxu0 %v6272
        %v6274 = vand.u32 %v951, 4294901760
        %v6275 = vsub.f32 %v951, %v6274
        %v6276 = vand.u32 %v6275, 4294901760
        %v6277 = vsub.f32 %v6275, %v6276
        %v6278 = vand.u32 %v6277, 4294901760
        %6279 = vmatpush1.msra.mxu0 %v6278
        %v6280 = vand.u32 %v1147, 4294901760
        %v6281 = vsub.f32 %v1147, %v6280
        %v6282 = vand.u32 %v6281, 4294901760
        %v6283 = vsub.f32 %v6281, %v6282
        %v6284 = vand.u32 %v6283, 4294901760
        %6285 = vmatprep.subr.mxu0 %v6284
        %v6286 = vand.u32 %v950, 4294901760
        %v6287 = vsub.f32 %v950, %v6286
        %v6288 = vand.u32 %v6287, 4294901760
        %v6289 = vsub.f32 %v6287, %v6288
        %v6290 = vand.u32 %v6289, 4294901760
        %6291 = vmatpush1.msra.mxu0 %v6290
        %v6292 = vand.u32 %v1146, 4294901760
        %v6293 = vsub.f32 %v1146, %v6292
        %v6294 = vand.u32 %v6293, 4294901760
        %v6295 = vsub.f32 %v6293, %v6294
        %v6296 = vand.u32 %v6295, 4294901760
        %6297 = vmatprep.subr.mxu0 %v6296
        %v6298 = vand.u32 %v949, 4294901760
        %v6299 = vsub.f32 %v949, %v6298
        %v6300 = vand.u32 %v6299, 4294901760
        %v6301 = vsub.f32 %v6299, %v6300
        %v6302 = vand.u32 %v6301, 4294901760
        %6303 = vmatpush1.msra.mxu0 %v6302
        %v6304 = vand.u32 %v1145, 4294901760
        %v6305 = vsub.f32 %v1145, %v6304
        %v6306 = vand.u32 %v6305, 4294901760
        %v6307 = vsub.f32 %v6305, %v6306
        %v6308 = vand.u32 %v6307, 4294901760
        %6309 = vmatprep.subr.mxu0 %v6308
        %v6310 = vand.u32 %v948, 4294901760
        %v6311 = vsub.f32 %v948, %v6310
        %v6312 = vand.u32 %v6311, 4294901760
        %v6313 = vsub.f32 %v6311, %v6312
        %v6314 = vand.u32 %v6313, 4294901760
        %6315 = vmatpush1.msra.mxu0 %v6314
        %v6316 = vand.u32 %v1144, 4294901760
        %v6317 = vsub.f32 %v1144, %v6316
        %v6318 = vand.u32 %v6317, 4294901760
        %v6319 = vsub.f32 %v6317, %v6318
        %v6320 = vand.u32 %v6319, 4294901760
        %6321 = vmatprep.subr.mxu0 %v6320
        %v6322 = vand.u32 %v947, 4294901760
        %v6323 = vsub.f32 %v947, %v6322
        %v6324 = vand.u32 %v6323, 4294901760
        %v6325 = vsub.f32 %v6323, %v6324
        %v6326 = vand.u32 %v6325, 4294901760
        %6327 = vmatpush1.msra.mxu0 %v6326
        %v6328 = vand.u32 %v1143, 4294901760
        %v6329 = vsub.f32 %v1143, %v6328
        %v6330 = vand.u32 %v6329, 4294901760
        %v6331 = vsub.f32 %v6329, %v6330
        %v6332 = vand.u32 %v6331, 4294901760
        %6333 = vmatprep.subr.mxu0 %v6332
        %v6334 = vand.u32 %v946, 4294901760
        %v6335 = vsub.f32 %v946, %v6334
        %v6336 = vand.u32 %v6335, 4294901760
        %v6337 = vsub.f32 %v6335, %v6336
        %v6338 = vand.u32 %v6337, 4294901760
        %6339 = vmatpush1.msra.mxu0 %v6338
        %v6340 = vand.u32 %v1174, 4294901760
        %v6341 = vsub.f32 %v1174, %v6340
        %v6342 = vand.u32 %v6341, 4294901760
        %v6343 = vsub.f32 %v6341, %v6342
        %v6344 = vand.u32 %v6343, 4294901760
        %6345 = vmatprep.subr.mxu0 %v6344
        %v6346 = vand.u32 %v977, 4294901760
        %v6347 = vsub.f32 %v977, %v6346
        %v6348 = vand.u32 %v6347, 4294901760
        %v6349 = vsub.f32 %v6347, %v6348
        %v6350 = vand.u32 %v6349, 4294901760
        %6351 = vmatpush2.msra.mxu0 %v6350
        %v6352 = vand.u32 %v1173, 4294901760
        %v6353 = vsub.f32 %v1173, %v6352
        %v6354 = vand.u32 %v6353, 4294901760
        %v6355 = vsub.f32 %v6353, %v6354
        %v6356 = vand.u32 %v6355, 4294901760
        %6357 = vmatprep.subr.mxu0 %v6356
        %v6358 = vand.u32 %v976, 4294901760
        %v6359 = vsub.f32 %v976, %v6358
        %v6360 = vand.u32 %v6359, 4294901760
        %v6361 = vsub.f32 %v6359, %v6360
        %v6362 = vand.u32 %v6361, 4294901760
        %6363 = vmatpush2.msra.mxu0 %v6362
        %v6364 = vand.u32 %v1172, 4294901760
        %v6365 = vsub.f32 %v1172, %v6364
        %v6366 = vand.u32 %v6365, 4294901760
        %v6367 = vsub.f32 %v6365, %v6366
        %v6368 = vand.u32 %v6367, 4294901760
        %6369 = vmatprep.subr.mxu0 %v6368
        %v6370 = vand.u32 %v975, 4294901760
        %v6371 = vsub.f32 %v975, %v6370
        %v6372 = vand.u32 %v6371, 4294901760
        %v6373 = vsub.f32 %v6371, %v6372
        %v6374 = vand.u32 %v6373, 4294901760
        %6375 = vmatpush2.msra.mxu0 %v6374
        %v6376 = vand.u32 %v1171, 4294901760
        %v6377 = vsub.f32 %v1171, %v6376
        %v6378 = vand.u32 %v6377, 4294901760
        %v6379 = vsub.f32 %v6377, %v6378
        %v6380 = vand.u32 %v6379, 4294901760
        %6381 = vmatprep.subr.mxu0 %v6380
        %v6382 = vand.u32 %v974, 4294901760
        %v6383 = vsub.f32 %v974, %v6382
        %v6384 = vand.u32 %v6383, 4294901760
        %v6385 = vsub.f32 %v6383, %v6384
        %v6386 = vand.u32 %v6385, 4294901760
        %6387 = vmatpush2.msra.mxu0 %v6386
        %v6388 = vand.u32 %v1170, 4294901760
        %v6389 = vsub.f32 %v1170, %v6388
        %v6390 = vand.u32 %v6389, 4294901760
        %v6391 = vsub.f32 %v6389, %v6390
        %v6392 = vand.u32 %v6391, 4294901760
        %6393 = vmatprep.subr.mxu0 %v6392
        %v6394 = vand.u32 %v973, 4294901760
        %v6395 = vsub.f32 %v973, %v6394
        %v6396 = vand.u32 %v6395, 4294901760
        %v6397 = vsub.f32 %v6395, %v6396
        %v6398 = vand.u32 %v6397, 4294901760
        %6399 = vmatpush2.msra.mxu0 %v6398
        %v6400 = vand.u32 %v1169, 4294901760
        %v6401 = vsub.f32 %v1169, %v6400
        %v6402 = vand.u32 %v6401, 4294901760
        %v6403 = vsub.f32 %v6401, %v6402
        %v6404 = vand.u32 %v6403, 4294901760
        %6405 = vmatprep.subr.mxu0 %v6404
        %v6406 = vand.u32 %v972, 4294901760
        %v6407 = vsub.f32 %v972, %v6406
        %v6408 = vand.u32 %v6407, 4294901760
        %v6409 = vsub.f32 %v6407, %v6408
        %v6410 = vand.u32 %v6409, 4294901760
        %6411 = vmatpush2.msra.mxu0 %v6410
        %v6412 = vand.u32 %v1168, 4294901760
        %v6413 = vsub.f32 %v1168, %v6412
        %v6414 = vand.u32 %v6413, 4294901760
        %v6415 = vsub.f32 %v6413, %v6414
        %v6416 = vand.u32 %v6415, 4294901760
        %6417 = vmatprep.subr.mxu0 %v6416
        %v6418 = vand.u32 %v971, 4294901760
        %v6419 = vsub.f32 %v971, %v6418
        %v6420 = vand.u32 %v6419, 4294901760
        %v6421 = vsub.f32 %v6419, %v6420
        %v6422 = vand.u32 %v6421, 4294901760
        %6423 = vmatpush2.msra.mxu0 %v6422
        %v6424 = vand.u32 %v1167, 4294901760
        %v6425 = vsub.f32 %v1167, %v6424
        %v6426 = vand.u32 %v6425, 4294901760
        %v6427 = vsub.f32 %v6425, %v6426
        %v6428 = vand.u32 %v6427, 4294901760
        %6429 = vmatprep.subr.mxu0 %v6428
        %v6430 = vand.u32 %v970, 4294901760
        %v6431 = vsub.f32 %v970, %v6430
        %v6432 = vand.u32 %v6431, 4294901760
        %v6433 = vsub.f32 %v6431, %v6432
        %v6434 = vand.u32 %v6433, 4294901760
        %6435 = vmatpush2.msra.mxu0 %v6434
        %v6436 = vand.u32 %v1166, 4294901760
        %v6437 = vsub.f32 %v1166, %v6436
        %v6438 = vand.u32 %v6437, 4294901760
        %v6439 = vsub.f32 %v6437, %v6438
        %v6440 = vand.u32 %v6439, 4294901760
        %6441 = vmatprep.subr.mxu0 %v6440
        %v6442 = vand.u32 %v969, 4294901760
        %v6443 = vsub.f32 %v969, %v6442
        %v6444 = vand.u32 %v6443, 4294901760
        %v6445 = vsub.f32 %v6443, %v6444
        %v6446 = vand.u32 %v6445, 4294901760
        %6447 = vmatpush2.msra.mxu0 %v6446
        %v6448 = vand.u32 %v1165, 4294901760
        %v6449 = vsub.f32 %v1165, %v6448
        %v6450 = vand.u32 %v6449, 4294901760
        %v6451 = vsub.f32 %v6449, %v6450
        %v6452 = vand.u32 %v6451, 4294901760
        %6453 = vmatprep.subr.mxu0 %v6452
        %v6454 = vand.u32 %v968, 4294901760
        %v6455 = vsub.f32 %v968, %v6454
        %v6456 = vand.u32 %v6455, 4294901760
        %v6457 = vsub.f32 %v6455, %v6456
        %v6458 = vand.u32 %v6457, 4294901760
        %6459 = vmatpush2.msra.mxu0 %v6458
        %v6460 = vand.u32 %v1164, 4294901760
        %v6461 = vsub.f32 %v1164, %v6460
        %v6462 = vand.u32 %v6461, 4294901760
        %v6463 = vsub.f32 %v6461, %v6462
        %v6464 = vand.u32 %v6463, 4294901760
        %6465 = vmatprep.subr.mxu0 %v6464
        %v6466 = vand.u32 %v967, 4294901760
        %v6467 = vsub.f32 %v967, %v6466
        %v6468 = vand.u32 %v6467, 4294901760
        %v6469 = vsub.f32 %v6467, %v6468
        %v6470 = vand.u32 %v6469, 4294901760
        %6471 = vmatpush2.msra.mxu0 %v6470
        %v6472 = vand.u32 %v1163, 4294901760
        %v6473 = vsub.f32 %v1163, %v6472
        %v6474 = vand.u32 %v6473, 4294901760
        %v6475 = vsub.f32 %v6473, %v6474
        %v6476 = vand.u32 %v6475, 4294901760
        %6477 = vmatprep.subr.mxu0 %v6476
        %v6478 = vand.u32 %v966, 4294901760
        %v6479 = vsub.f32 %v966, %v6478
        %v6480 = vand.u32 %v6479, 4294901760
        %v6481 = vsub.f32 %v6479, %v6480
        %v6482 = vand.u32 %v6481, 4294901760
        %6483 = vmatpush2.msra.mxu0 %v6482
        %v6484 = vand.u32 %v1162, 4294901760
        %v6485 = vsub.f32 %v1162, %v6484
        %v6486 = vand.u32 %v6485, 4294901760
        %v6487 = vsub.f32 %v6485, %v6486
        %v6488 = vand.u32 %v6487, 4294901760
        %6489 = vmatprep.subr.mxu0 %v6488
        %v6490 = vand.u32 %v965, 4294901760
        %v6491 = vsub.f32 %v965, %v6490
        %v6492 = vand.u32 %v6491, 4294901760
        %v6493 = vsub.f32 %v6491, %v6492
        %v6494 = vand.u32 %v6493, 4294901760
        %6495 = vmatpush2.msra.mxu0 %v6494
        %v6496 = vand.u32 %v1161, 4294901760
        %v6497 = vsub.f32 %v1161, %v6496
        %v6498 = vand.u32 %v6497, 4294901760
        %v6499 = vsub.f32 %v6497, %v6498
        %v6500 = vand.u32 %v6499, 4294901760
        %6501 = vmatprep.subr.mxu0 %v6500
        %v6502 = vand.u32 %v964, 4294901760
        %v6503 = vsub.f32 %v964, %v6502
        %v6504 = vand.u32 %v6503, 4294901760
        %v6505 = vsub.f32 %v6503, %v6504
        %v6506 = vand.u32 %v6505, 4294901760
        %6507 = vmatpush2.msra.mxu0 %v6506
        %v6508 = vand.u32 %v1160, 4294901760
        %v6509 = vsub.f32 %v1160, %v6508
        %v6510 = vand.u32 %v6509, 4294901760
        %v6511 = vsub.f32 %v6509, %v6510
        %v6512 = vand.u32 %v6511, 4294901760
        %6513 = vmatprep.subr.mxu0 %v6512
        %v6514 = vand.u32 %v963, 4294901760
        %v6515 = vsub.f32 %v963, %v6514
        %v6516 = vand.u32 %v6515, 4294901760
        %v6517 = vsub.f32 %v6515, %v6516
        %v6518 = vand.u32 %v6517, 4294901760
        %6519 = vmatpush2.msra.mxu0 %v6518
        %v6520 = vand.u32 %v1159, 4294901760
        %v6521 = vsub.f32 %v1159, %v6520
        %v6522 = vand.u32 %v6521, 4294901760
        %v6523 = vsub.f32 %v6521, %v6522
        %v6524 = vand.u32 %v6523, 4294901760
        %6525 = vmatprep.subr.mxu0 %v6524
        %v6526 = vand.u32 %v962, 4294901760
        %v6527 = vsub.f32 %v962, %v6526
        %v6528 = vand.u32 %v6527, 4294901760
        %v6529 = vsub.f32 %v6527, %v6528
        %v6530 = vand.u32 %v6529, 4294901760
        %6531 = vmatpush2.msra.mxu0 %v6530
        %v6532 = vand.u32 %v5700, 4294901760
        %6533 = vmatprep.mubr.f32.mxu0 %v6532
        %v6534 = vand.u32 %v5699, 4294901760
        %6535 = vmatmul.mubr.f32.gmra.mxu0 %v6534
        %v6536 = vpop.f32.mrf.mxu0
        %v6537 = vadd.f32 %v5904, %v6536
        %v6538 = vpop.f32.mrf.mxu0
        %v6539 = vadd.f32 %v5906, %v6538
        %v6540 = vand.u32 %v5704, 4294901760
        %6541 = vmatprep.mubr.f32.mxu0 %v6540
        %v6542 = vand.u32 %v5703, 4294901760
        %6543 = vmatmul.mubr.f32.gmra.mxu0 %v6542
        %v6544 = vpop.f32.mrf.mxu0
        %v6545 = vadd.f32 %v5920, %v6544
        %v6546 = vpop.f32.mrf.mxu0
        %v6547 = vadd.f32 %v5922, %v6546
        %v6548 = vand.u32 %v5708, 4294901760
        %6549 = vmatprep.mubr.f32.mxu0 %v6548
        %v6550 = vand.u32 %v5707, 4294901760
        %6551 = vmatmul.mubr.f32.gmra.mxu0 %v6550
        %v6552 = vpop.f32.mrf.mxu0
        %v6553 = vadd.f32 %v5936, %v6552
        %v6554 = vpop.f32.mrf.mxu0
        %v6555 = vadd.f32 %v5938, %v6554
        %v6556 = vand.u32 %v5712, 4294901760
        %6557 = vmatprep.mubr.f32.mxu0 %v6556
        %v6558 = vand.u32 %v5711, 4294901760
        %6559 = vmatmul.mubr.f32.gmra.mxu0 %v6558
        %v6560 = vpop.f32.mrf.mxu0
        %v6561 = vadd.f32 %v5952, %v6560
        %v6562 = vpop.f32.mrf.mxu0
        %v6563 = vadd.f32 %v5954, %v6562
        %v6564 = vand.u32 %v5716, 4294901760
        %6565 = vmatprep.mubr.f32.mxu0 %v6564
        %v6566 = vand.u32 %v5715, 4294901760
        %6567 = vmatmul.mubr.f32.gmra.mxu0 %v6566
        %v6568 = vpop.f32.mrf.mxu0
        %v6569 = vadd.f32 %v5968, %v6568
        %v6570 = vpop.f32.mrf.mxu0
        %v6571 = vadd.f32 %v5970, %v6570
        %v6572 = vand.u32 %v5720, 4294901760
        %6573 = vmatprep.mubr.f32.mxu0 %v6572
        %v6574 = vand.u32 %v5719, 4294901760
        %6575 = vmatmul.mubr.f32.gmra.mxu0 %v6574
        %v6576 = vpop.f32.mrf.mxu0
        %v6577 = vadd.f32 %v5984, %v6576
        %v6578 = vpop.f32.mrf.mxu0
        %v6579 = vadd.f32 %v5986, %v6578
        %v6580 = vand.u32 %v5724, 4294901760
        %6581 = vmatprep.mubr.f32.mxu0 %v6580
        %v6582 = vand.u32 %v5723, 4294901760
        %6583 = vmatmul.mubr.f32.gmra.mxu0 %v6582
        %v6584 = vpop.f32.mrf.mxu0
        %v6585 = vadd.f32 %v6000, %v6584
        %v6586 = vpop.f32.mrf.mxu0
        %v6587 = vadd.f32 %v6002, %v6586
        %v6588 = vand.u32 %v5728, 4294901760
        %6589 = vmatprep.mubr.f32.mxu0 %v6588
        %v6590 = vand.u32 %v5727, 4294901760
        %6591 = vmatmul.mubr.f32.gmra.mxu0 %v6590
        %v6592 = vpop.f32.mrf.mxu0
        %v6593 = vadd.f32 %v6016, %v6592
        %v6594 = vpop.f32.mrf.mxu0
        %v6595 = vadd.f32 %v6018, %v6594
        %v6596 = vand.u32 %v5732, 4294901760
        %6597 = vmatprep.mubr.f32.mxu0 %v6596
        %v6598 = vand.u32 %v5731, 4294901760
        %6599 = vmatmul.mubr.f32.gmra.mxu0 %v6598
        %v6600 = vpop.f32.mrf.mxu0
        %v6601 = vadd.f32 %v6032, %v6600
        %v6602 = vpop.f32.mrf.mxu0
        %v6603 = vadd.f32 %v6034, %v6602
        %v6604 = vand.u32 %v5736, 4294901760
        %6605 = vmatprep.mubr.f32.mxu0 %v6604
        %v6606 = vand.u32 %v5735, 4294901760
        %6607 = vmatmul.mubr.f32.gmra.mxu0 %v6606
        %v6608 = vpop.f32.mrf.mxu0
        %v6609 = vadd.f32 %v6048, %v6608
        %v6610 = vpop.f32.mrf.mxu0
        %v6611 = vadd.f32 %v6050, %v6610
        %v6612 = vand.u32 %v5740, 4294901760
        %6613 = vmatprep.mubr.f32.mxu0 %v6612
        %v6614 = vand.u32 %v5739, 4294901760
        %6615 = vmatmul.mubr.f32.gmra.mxu0 %v6614
        %v6616 = vpop.f32.mrf.mxu0
        %v6617 = vadd.f32 %v6064, %v6616
        %v6618 = vpop.f32.mrf.mxu0
        %v6619 = vadd.f32 %v6066, %v6618
        %v6620 = vand.u32 %v5744, 4294901760
        %6621 = vmatprep.mubr.f32.mxu0 %v6620
        %v6622 = vand.u32 %v5743, 4294901760
        %6623 = vmatmul.mubr.f32.gmra.mxu0 %v6622
        %v6624 = vpop.f32.mrf.mxu0
        %v6625 = vadd.f32 %v6080, %v6624
        %v6626 = vpop.f32.mrf.mxu0
        %v6627 = vadd.f32 %v6082, %v6626
        %v6628 = vand.u32 %v5748, 4294901760
        %6629 = vmatprep.mubr.f32.mxu0 %v6628
        %v6630 = vand.u32 %v5747, 4294901760
        %6631 = vmatmul.mubr.f32.gmra.mxu0 %v6630
        %v6632 = vpop.f32.mrf.mxu0
        %v6633 = vadd.f32 %v6096, %v6632
        %v6634 = vpop.f32.mrf.mxu0
        %v6635 = vadd.f32 %v6098, %v6634
        %v6636 = vand.u32 %v5752, 4294901760
        %6637 = vmatprep.mubr.f32.mxu0 %v6636
        %v6638 = vand.u32 %v5751, 4294901760
        %6639 = vmatmul.mubr.f32.gmra.mxu0 %v6638
        %v6640 = vpop.f32.mrf.mxu0
        %v6641 = vadd.f32 %v6112, %v6640
        %v6642 = vpop.f32.mrf.mxu0
        %v6643 = vadd.f32 %v6114, %v6642
        %v6644 = vand.u32 %v5756, 4294901760
        %6645 = vmatprep.mubr.f32.mxu0 %v6644
        %v6646 = vand.u32 %v5755, 4294901760
        %6647 = vmatmul.mubr.f32.gmra.mxu0 %v6646
        %v6648 = vpop.f32.mrf.mxu0
        %v6649 = vadd.f32 %v6128, %v6648
        %v6650 = vpop.f32.mrf.mxu0
        %v6651 = vadd.f32 %v6130, %v6650
        %v6652 = vand.u32 %v5760, 4294901760
        %6653 = vmatprep.mubr.f32.mxu0 %v6652
        %v6654 = vand.u32 %v5759, 4294901760
        %6655 = vmatmul.mubr.f32.gmra.mxu0 %v6654
        %v6656 = vpop.f32.mrf.mxu0
        %v6657 = vadd.f32 %v6144, %v6656
        %v6658 = vpop.f32.mrf.mxu0
        %v6659 = vadd.f32 %v6146, %v6658
        %6660 = vdwg.mxu0
        %v6661 = vand.u32 %v1158, 4294901760
        %v6662 = vsub.f32 %v1158, %v6661
        %6663 = vmatprep.subr.mxu0 %v6662
        %v6664 = vand.u32 %v961, 4294901760
        %v6665 = vsub.f32 %v961, %v6664
        %6666 = vmatpush1.msra.mxu0 %v6665
        %v6667 = vand.u32 %v1157, 4294901760
        %v6668 = vsub.f32 %v1157, %v6667
        %6669 = vmatprep.subr.mxu0 %v6668
        %v6670 = vand.u32 %v960, 4294901760
        %v6671 = vsub.f32 %v960, %v6670
        %6672 = vmatpush1.msra.mxu0 %v6671
        %v6673 = vand.u32 %v1156, 4294901760
        %v6674 = vsub.f32 %v1156, %v6673
        %6675 = vmatprep.subr.mxu0 %v6674
        %v6676 = vand.u32 %v959, 4294901760
        %v6677 = vsub.f32 %v959, %v6676
        %6678 = vmatpush1.msra.mxu0 %v6677
        %v6679 = vand.u32 %v1155, 4294901760
        %v6680 = vsub.f32 %v1155, %v6679
        %6681 = vmatprep.subr.mxu0 %v6680
        %v6682 = vand.u32 %v958, 4294901760
        %v6683 = vsub.f32 %v958, %v6682
        %6684 = vmatpush1.msra.mxu0 %v6683
        %v6685 = vand.u32 %v1154, 4294901760
        %v6686 = vsub.f32 %v1154, %v6685
        %6687 = vmatprep.subr.mxu0 %v6686
        %v6688 = vand.u32 %v957, 4294901760
        %v6689 = vsub.f32 %v957, %v6688
        %6690 = vmatpush1.msra.mxu0 %v6689
        %v6691 = vand.u32 %v1153, 4294901760
        %v6692 = vsub.f32 %v1153, %v6691
        %6693 = vmatprep.subr.mxu0 %v6692
        %v6694 = vand.u32 %v956, 4294901760
        %v6695 = vsub.f32 %v956, %v6694
        %6696 = vmatpush1.msra.mxu0 %v6695
        %v6697 = vand.u32 %v1152, 4294901760
        %v6698 = vsub.f32 %v1152, %v6697
        %6699 = vmatprep.subr.mxu0 %v6698
        %v6700 = vand.u32 %v955, 4294901760
        %v6701 = vsub.f32 %v955, %v6700
        %6702 = vmatpush1.msra.mxu0 %v6701
        %v6703 = vand.u32 %v1151, 4294901760
        %v6704 = vsub.f32 %v1151, %v6703
        %6705 = vmatprep.subr.mxu0 %v6704
        %v6706 = vand.u32 %v954, 4294901760
        %v6707 = vsub.f32 %v954, %v6706
        %6708 = vmatpush1.msra.mxu0 %v6707
        %v6709 = vand.u32 %v1150, 4294901760
        %v6710 = vsub.f32 %v1150, %v6709
        %6711 = vmatprep.subr.mxu0 %v6710
        %v6712 = vand.u32 %v953, 4294901760
        %v6713 = vsub.f32 %v953, %v6712
        %6714 = vmatpush1.msra.mxu0 %v6713
        %v6715 = vand.u32 %v1149, 4294901760
        %v6716 = vsub.f32 %v1149, %v6715
        %6717 = vmatprep.subr.mxu0 %v6716
        %v6718 = vand.u32 %v952, 4294901760
        %v6719 = vsub.f32 %v952, %v6718
        %6720 = vmatpush1.msra.mxu0 %v6719
        %v6721 = vand.u32 %v1148, 4294901760
        %v6722 = vsub.f32 %v1148, %v6721
        %6723 = vmatprep.subr.mxu0 %v6722
        %v6724 = vand.u32 %v951, 4294901760
        %v6725 = vsub.f32 %v951, %v6724
        %6726 = vmatpush1.msra.mxu0 %v6725
        %v6727 = vand.u32 %v1147, 4294901760
        %v6728 = vsub.f32 %v1147, %v6727
        %6729 = vmatprep.subr.mxu0 %v6728
        %v6730 = vand.u32 %v950, 4294901760
        %v6731 = vsub.f32 %v950, %v6730
        %6732 = vmatpush1.msra.mxu0 %v6731
        %v6733 = vand.u32 %v1146, 4294901760
        %v6734 = vsub.f32 %v1146, %v6733
        %6735 = vmatprep.subr.mxu0 %v6734
        %v6736 = vand.u32 %v949, 4294901760
        %v6737 = vsub.f32 %v949, %v6736
        %6738 = vmatpush1.msra.mxu0 %v6737
        %v6739 = vand.u32 %v1145, 4294901760
        %v6740 = vsub.f32 %v1145, %v6739
        %6741 = vmatprep.subr.mxu0 %v6740
        %v6742 = vand.u32 %v948, 4294901760
        %v6743 = vsub.f32 %v948, %v6742
        %6744 = vmatpush1.msra.mxu0 %v6743
        %v6745 = vand.u32 %v1144, 4294901760
        %v6746 = vsub.f32 %v1144, %v6745
        %6747 = vmatprep.subr.mxu0 %v6746
        %v6748 = vand.u32 %v947, 4294901760
        %v6749 = vsub.f32 %v947, %v6748
        %6750 = vmatpush1.msra.mxu0 %v6749
        %v6751 = vand.u32 %v1143, 4294901760
        %v6752 = vsub.f32 %v1143, %v6751
        %6753 = vmatprep.subr.mxu0 %v6752
        %v6754 = vand.u32 %v946, 4294901760
        %v6755 = vsub.f32 %v946, %v6754
        %6756 = vmatpush1.msra.mxu0 %v6755
        %v6757 = vand.u32 %v1174, 4294901760
        %v6758 = vsub.f32 %v1174, %v6757
        %6759 = vmatprep.subr.mxu0 %v6758
        %v6760 = vand.u32 %v977, 4294901760
        %v6761 = vsub.f32 %v977, %v6760
        %6762 = vmatpush2.msra.mxu0 %v6761
        %v6763 = vand.u32 %v1173, 4294901760
        %v6764 = vsub.f32 %v1173, %v6763
        %6765 = vmatprep.subr.mxu0 %v6764
        %v6766 = vand.u32 %v976, 4294901760
        %v6767 = vsub.f32 %v976, %v6766
        %6768 = vmatpush2.msra.mxu0 %v6767
        %v6769 = vand.u32 %v1172, 4294901760
        %v6770 = vsub.f32 %v1172, %v6769
        %6771 = vmatprep.subr.mxu0 %v6770
        %v6772 = vand.u32 %v975, 4294901760
        %v6773 = vsub.f32 %v975, %v6772
        %6774 = vmatpush2.msra.mxu0 %v6773
        %v6775 = vand.u32 %v1171, 4294901760
        %v6776 = vsub.f32 %v1171, %v6775
        %6777 = vmatprep.subr.mxu0 %v6776
        %v6778 = vand.u32 %v974, 4294901760
        %v6779 = vsub.f32 %v974, %v6778
        %6780 = vmatpush2.msra.mxu0 %v6779
        %v6781 = vand.u32 %v1170, 4294901760
        %v6782 = vsub.f32 %v1170, %v6781
        %6783 = vmatprep.subr.mxu0 %v6782
        %v6784 = vand.u32 %v973, 4294901760
        %v6785 = vsub.f32 %v973, %v6784
        %6786 = vmatpush2.msra.mxu0 %v6785
        %v6787 = vand.u32 %v1169, 4294901760
        %v6788 = vsub.f32 %v1169, %v6787
        %6789 = vmatprep.subr.mxu0 %v6788
        %v6790 = vand.u32 %v972, 4294901760
        %v6791 = vsub.f32 %v972, %v6790
        %6792 = vmatpush2.msra.mxu0 %v6791
        %v6793 = vand.u32 %v1168, 4294901760
        %v6794 = vsub.f32 %v1168, %v6793
        %6795 = vmatprep.subr.mxu0 %v6794
        %v6796 = vand.u32 %v971, 4294901760
        %v6797 = vsub.f32 %v971, %v6796
        %6798 = vmatpush2.msra.mxu0 %v6797
        %v6799 = vand.u32 %v1167, 4294901760
        %v6800 = vsub.f32 %v1167, %v6799
        %6801 = vmatprep.subr.mxu0 %v6800
        %v6802 = vand.u32 %v970, 4294901760
        %v6803 = vsub.f32 %v970, %v6802
        %6804 = vmatpush2.msra.mxu0 %v6803
        %v6805 = vand.u32 %v1166, 4294901760
        %v6806 = vsub.f32 %v1166, %v6805
        %6807 = vmatprep.subr.mxu0 %v6806
        %v6808 = vand.u32 %v969, 4294901760
        %v6809 = vsub.f32 %v969, %v6808
        %6810 = vmatpush2.msra.mxu0 %v6809
        %v6811 = vand.u32 %v1165, 4294901760
        %v6812 = vsub.f32 %v1165, %v6811
        %6813 = vmatprep.subr.mxu0 %v6812
        %v6814 = vand.u32 %v968, 4294901760
        %v6815 = vsub.f32 %v968, %v6814
        %6816 = vmatpush2.msra.mxu0 %v6815
        %v6817 = vand.u32 %v1164, 4294901760
        %v6818 = vsub.f32 %v1164, %v6817
        %6819 = vmatprep.subr.mxu0 %v6818
        %v6820 = vand.u32 %v967, 4294901760
        %v6821 = vsub.f32 %v967, %v6820
        %6822 = vmatpush2.msra.mxu0 %v6821
        %v6823 = vand.u32 %v1163, 4294901760
        %v6824 = vsub.f32 %v1163, %v6823
        %6825 = vmatprep.subr.mxu0 %v6824
        %v6826 = vand.u32 %v966, 4294901760
        %v6827 = vsub.f32 %v966, %v6826
        %6828 = vmatpush2.msra.mxu0 %v6827
        %v6829 = vand.u32 %v1162, 4294901760
        %v6830 = vsub.f32 %v1162, %v6829
        %6831 = vmatprep.subr.mxu0 %v6830
        %v6832 = vand.u32 %v965, 4294901760
        %v6833 = vsub.f32 %v965, %v6832
        %6834 = vmatpush2.msra.mxu0 %v6833
        %v6835 = vand.u32 %v1161, 4294901760
        %v6836 = vsub.f32 %v1161, %v6835
        %6837 = vmatprep.subr.mxu0 %v6836
        %v6838 = vand.u32 %v964, 4294901760
        %v6839 = vsub.f32 %v964, %v6838
        %6840 = vmatpush2.msra.mxu0 %v6839
        %v6841 = vand.u32 %v1160, 4294901760
        %v6842 = vsub.f32 %v1160, %v6841
        %6843 = vmatprep.subr.mxu0 %v6842
        %v6844 = vand.u32 %v963, 4294901760
        %v6845 = vsub.f32 %v963, %v6844
        %6846 = vmatpush2.msra.mxu0 %v6845
        %v6847 = vand.u32 %v1159, 4294901760
        %v6848 = vsub.f32 %v1159, %v6847
        %6849 = vmatprep.subr.mxu0 %v6848
        %v6850 = vand.u32 %v962, 4294901760
        %v6851 = vsub.f32 %v962, %v6850
        %6852 = vmatpush2.msra.mxu0 %v6851
        %v6853 = vand.u32 %v5700, 4294901760
        %v6854 = vsub.f32 %v5700, %v6853
        %6855 = vmatprep.mubr.f32.mxu0 %v6854
        %v6856 = vand.u32 %v5699, 4294901760
        %v6857 = vsub.f32 %v5699, %v6856
        %6858 = vmatmul.mubr.f32.gmra.mxu0 %v6857
        %v6859 = vpop.f32.mrf.mxu0
        %v6860 = vadd.f32 %v6537, %v6859
        %v6861 = vpop.f32.mrf.mxu0
        %v6862 = vadd.f32 %v6539, %v6861
        %v6863 = vand.u32 %v5704, 4294901760
        %v6864 = vsub.f32 %v5704, %v6863
        %6865 = vmatprep.mubr.f32.mxu0 %v6864
        %v6866 = vand.u32 %v5703, 4294901760
        %v6867 = vsub.f32 %v5703, %v6866
        %6868 = vmatmul.mubr.f32.gmra.mxu0 %v6867
        %v6869 = vpop.f32.mrf.mxu0
        %v6870 = vadd.f32 %v6545, %v6869
        %v6871 = vpop.f32.mrf.mxu0
        %v6872 = vadd.f32 %v6547, %v6871
        %v6873 = vand.u32 %v5708, 4294901760
        %v6874 = vsub.f32 %v5708, %v6873
        %6875 = vmatprep.mubr.f32.mxu0 %v6874
        %v6876 = vand.u32 %v5707, 4294901760
        %v6877 = vsub.f32 %v5707, %v6876
        %6878 = vmatmul.mubr.f32.gmra.mxu0 %v6877
        %v6879 = vpop.f32.mrf.mxu0
        %v6880 = vadd.f32 %v6553, %v6879
        %v6881 = vpop.f32.mrf.mxu0
        %v6882 = vadd.f32 %v6555, %v6881
        %v6883 = vand.u32 %v5712, 4294901760
        %v6884 = vsub.f32 %v5712, %v6883
        %6885 = vmatprep.mubr.f32.mxu0 %v6884
        %v6886 = vand.u32 %v5711, 4294901760
        %v6887 = vsub.f32 %v5711, %v6886
        %6888 = vmatmul.mubr.f32.gmra.mxu0 %v6887
        %v6889 = vpop.f32.mrf.mxu0
        %v6890 = vadd.f32 %v6561, %v6889
        %v6891 = vpop.f32.mrf.mxu0
        %v6892 = vadd.f32 %v6563, %v6891
        %v6893 = vand.u32 %v5716, 4294901760
        %v6894 = vsub.f32 %v5716, %v6893
        %6895 = vmatprep.mubr.f32.mxu0 %v6894
        %v6896 = vand.u32 %v5715, 4294901760
        %v6897 = vsub.f32 %v5715, %v6896
        %6898 = vmatmul.mubr.f32.gmra.mxu0 %v6897
        %v6899 = vpop.f32.mrf.mxu0
        %v6900 = vadd.f32 %v6569, %v6899
        %v6901 = vpop.f32.mrf.mxu0
        %v6902 = vadd.f32 %v6571, %v6901
        %v6903 = vand.u32 %v5720, 4294901760
        %v6904 = vsub.f32 %v5720, %v6903
        %6905 = vmatprep.mubr.f32.mxu0 %v6904
        %v6906 = vand.u32 %v5719, 4294901760
        %v6907 = vsub.f32 %v5719, %v6906
        %6908 = vmatmul.mubr.f32.gmra.mxu0 %v6907
        %v6909 = vpop.f32.mrf.mxu0
        %v6910 = vadd.f32 %v6577, %v6909
        %v6911 = vpop.f32.mrf.mxu0
        %v6912 = vadd.f32 %v6579, %v6911
        %v6913 = vand.u32 %v5724, 4294901760
        %v6914 = vsub.f32 %v5724, %v6913
        %6915 = vmatprep.mubr.f32.mxu0 %v6914
        %v6916 = vand.u32 %v5723, 4294901760
        %v6917 = vsub.f32 %v5723, %v6916
        %6918 = vmatmul.mubr.f32.gmra.mxu0 %v6917
        %v6919 = vpop.f32.mrf.mxu0
        %v6920 = vadd.f32 %v6585, %v6919
        %v6921 = vpop.f32.mrf.mxu0
        %v6922 = vadd.f32 %v6587, %v6921
        %v6923 = vand.u32 %v5728, 4294901760
        %v6924 = vsub.f32 %v5728, %v6923
        %6925 = vmatprep.mubr.f32.mxu0 %v6924
        %v6926 = vand.u32 %v5727, 4294901760
        %v6927 = vsub.f32 %v5727, %v6926
        %6928 = vmatmul.mubr.f32.gmra.mxu0 %v6927
        %v6929 = vpop.f32.mrf.mxu0
        %v6930 = vadd.f32 %v6593, %v6929
        %v6931 = vpop.f32.mrf.mxu0
        %v6932 = vadd.f32 %v6595, %v6931
        %v6933 = vand.u32 %v5732, 4294901760
        %v6934 = vsub.f32 %v5732, %v6933
        %6935 = vmatprep.mubr.f32.mxu0 %v6934
        %v6936 = vand.u32 %v5731, 4294901760
        %v6937 = vsub.f32 %v5731, %v6936
        %6938 = vmatmul.mubr.f32.gmra.mxu0 %v6937
        %v6939 = vpop.f32.mrf.mxu0
        %v6940 = vadd.f32 %v6601, %v6939
        %v6941 = vpop.f32.mrf.mxu0
        %v6942 = vadd.f32 %v6603, %v6941
        %v6943 = vand.u32 %v5736, 4294901760
        %v6944 = vsub.f32 %v5736, %v6943
        %6945 = vmatprep.mubr.f32.mxu0 %v6944
        %v6946 = vand.u32 %v5735, 4294901760
        %v6947 = vsub.f32 %v5735, %v6946
        %6948 = vmatmul.mubr.f32.gmra.mxu0 %v6947
        %v6949 = vpop.f32.mrf.mxu0
        %v6950 = vadd.f32 %v6609, %v6949
        %v6951 = vpop.f32.mrf.mxu0
        %v6952 = vadd.f32 %v6611, %v6951
        %v6953 = vand.u32 %v5740, 4294901760
        %v6954 = vsub.f32 %v5740, %v6953
        %6955 = vmatprep.mubr.f32.mxu0 %v6954
        %v6956 = vand.u32 %v5739, 4294901760
        %v6957 = vsub.f32 %v5739, %v6956
        %6958 = vmatmul.mubr.f32.gmra.mxu0 %v6957
        %v6959 = vpop.f32.mrf.mxu0
        %v6960 = vadd.f32 %v6617, %v6959
        %v6961 = vpop.f32.mrf.mxu0
        %v6962 = vadd.f32 %v6619, %v6961
        %v6963 = vand.u32 %v5744, 4294901760
        %v6964 = vsub.f32 %v5744, %v6963
        %6965 = vmatprep.mubr.f32.mxu0 %v6964
        %v6966 = vand.u32 %v5743, 4294901760
        %v6967 = vsub.f32 %v5743, %v6966
        %6968 = vmatmul.mubr.f32.gmra.mxu0 %v6967
        %v6969 = vpop.f32.mrf.mxu0
        %v6970 = vadd.f32 %v6625, %v6969
        %v6971 = vpop.f32.mrf.mxu0
        %v6972 = vadd.f32 %v6627, %v6971
        %v6973 = vand.u32 %v5748, 4294901760
        %v6974 = vsub.f32 %v5748, %v6973
        %6975 = vmatprep.mubr.f32.mxu0 %v6974
        %v6976 = vand.u32 %v5747, 4294901760
        %v6977 = vsub.f32 %v5747, %v6976
        %6978 = vmatmul.mubr.f32.gmra.mxu0 %v6977
        %v6979 = vpop.f32.mrf.mxu0
        %v6980 = vadd.f32 %v6633, %v6979
        %v6981 = vpop.f32.mrf.mxu0
        %v6982 = vadd.f32 %v6635, %v6981
        %v6983 = vand.u32 %v5752, 4294901760
        %v6984 = vsub.f32 %v5752, %v6983
        %6985 = vmatprep.mubr.f32.mxu0 %v6984
        %v6986 = vand.u32 %v5751, 4294901760
        %v6987 = vsub.f32 %v5751, %v6986
        %6988 = vmatmul.mubr.f32.gmra.mxu0 %v6987
        %v6989 = vpop.f32.mrf.mxu0
        %v6990 = vadd.f32 %v6641, %v6989
        %v6991 = vpop.f32.mrf.mxu0
        %v6992 = vadd.f32 %v6643, %v6991
        %v6993 = vand.u32 %v5756, 4294901760
        %v6994 = vsub.f32 %v5756, %v6993
        %6995 = vmatprep.mubr.f32.mxu0 %v6994
        %v6996 = vand.u32 %v5755, 4294901760
        %v6997 = vsub.f32 %v5755, %v6996
        %6998 = vmatmul.mubr.f32.gmra.mxu0 %v6997
        %v6999 = vpop.f32.mrf.mxu0
        %v7000 = vadd.f32 %v6649, %v6999
        %v7001 = vpop.f32.mrf.mxu0
        %v7002 = vadd.f32 %v6651, %v7001
        %v7003 = vand.u32 %v5760, 4294901760
        %v7004 = vsub.f32 %v5760, %v7003
        %7005 = vmatprep.mubr.f32.mxu0 %v7004
        %v7006 = vand.u32 %v5759, 4294901760
        %v7007 = vsub.f32 %v5759, %v7006
        %7008 = vmatmul.mubr.f32.gmra.mxu0 %v7007
        %v7009 = vpop.f32.mrf.mxu0
        %v7010 = vadd.f32 %v6657, %v7009
        %v7011 = vpop.f32.mrf.mxu0
        %v7012 = vadd.f32 %v6659, %v7011
        %7013 = vdwg.mxu0
        %v7014 = vand.u32 %v1158, 4294901760
        %7015 = vmatprep.subr.mxu0 %v7014
        %v7016 = vand.u32 %v961, 4294901760
        %7017 = vmatpush1.msra.mxu0 %v7016
        %v7018 = vand.u32 %v1157, 4294901760
        %7019 = vmatprep.subr.mxu0 %v7018
        %v7020 = vand.u32 %v960, 4294901760
        %7021 = vmatpush1.msra.mxu0 %v7020
        %v7022 = vand.u32 %v1156, 4294901760
        %7023 = vmatprep.subr.mxu0 %v7022
        %v7024 = vand.u32 %v959, 4294901760
        %7025 = vmatpush1.msra.mxu0 %v7024
        %v7026 = vand.u32 %v1155, 4294901760
        %7027 = vmatprep.subr.mxu0 %v7026
        %v7028 = vand.u32 %v958, 4294901760
        %7029 = vmatpush1.msra.mxu0 %v7028
        %v7030 = vand.u32 %v1154, 4294901760
        %7031 = vmatprep.subr.mxu0 %v7030
        %v7032 = vand.u32 %v957, 4294901760
        %7033 = vmatpush1.msra.mxu0 %v7032
        %v7034 = vand.u32 %v1153, 4294901760
        %7035 = vmatprep.subr.mxu0 %v7034
        %v7036 = vand.u32 %v956, 4294901760
        %7037 = vmatpush1.msra.mxu0 %v7036
        %v7038 = vand.u32 %v1152, 4294901760
        %7039 = vmatprep.subr.mxu0 %v7038
        %v7040 = vand.u32 %v955, 4294901760
        %7041 = vmatpush1.msra.mxu0 %v7040
        %v7042 = vand.u32 %v1151, 4294901760
        %7043 = vmatprep.subr.mxu0 %v7042
        %v7044 = vand.u32 %v954, 4294901760
        %7045 = vmatpush1.msra.mxu0 %v7044
        %v7046 = vand.u32 %v1150, 4294901760
        %7047 = vmatprep.subr.mxu0 %v7046
        %v7048 = vand.u32 %v953, 4294901760
        %7049 = vmatpush1.msra.mxu0 %v7048
        %v7050 = vand.u32 %v1149, 4294901760
        %7051 = vmatprep.subr.mxu0 %v7050
        %v7052 = vand.u32 %v952, 4294901760
        %7053 = vmatpush1.msra.mxu0 %v7052
        %v7054 = vand.u32 %v1148, 4294901760
        %7055 = vmatprep.subr.mxu0 %v7054
        %v7056 = vand.u32 %v951, 4294901760
        %7057 = vmatpush1.msra.mxu0 %v7056
        %v7058 = vand.u32 %v1147, 4294901760
        %7059 = vmatprep.subr.mxu0 %v7058
        %v7060 = vand.u32 %v950, 4294901760
        %7061 = vmatpush1.msra.mxu0 %v7060
        %v7062 = vand.u32 %v1146, 4294901760
        %7063 = vmatprep.subr.mxu0 %v7062
        %v7064 = vand.u32 %v949, 4294901760
        %7065 = vmatpush1.msra.mxu0 %v7064
        %v7066 = vand.u32 %v1145, 4294901760
        %7067 = vmatprep.subr.mxu0 %v7066
        %v7068 = vand.u32 %v948, 4294901760
        %7069 = vmatpush1.msra.mxu0 %v7068
        %v7070 = vand.u32 %v1144, 4294901760
        %7071 = vmatprep.subr.mxu0 %v7070
        %v7072 = vand.u32 %v947, 4294901760
        %7073 = vmatpush1.msra.mxu0 %v7072
        %v7074 = vand.u32 %v1143, 4294901760
        %7075 = vmatprep.subr.mxu0 %v7074
        %v7076 = vand.u32 %v946, 4294901760
        %7077 = vmatpush1.msra.mxu0 %v7076
        %v7078 = vand.u32 %v1174, 4294901760
        %7079 = vmatprep.subr.mxu0 %v7078
        %v7080 = vand.u32 %v977, 4294901760
        %7081 = vmatpush2.msra.mxu0 %v7080
        %v7082 = vand.u32 %v1173, 4294901760
        %7083 = vmatprep.subr.mxu0 %v7082
        %v7084 = vand.u32 %v976, 4294901760
        %7085 = vmatpush2.msra.mxu0 %v7084
        %v7086 = vand.u32 %v1172, 4294901760
        %7087 = vmatprep.subr.mxu0 %v7086
        %v7088 = vand.u32 %v975, 4294901760
        %7089 = vmatpush2.msra.mxu0 %v7088
        %v7090 = vand.u32 %v1171, 4294901760
        %7091 = vmatprep.subr.mxu0 %v7090
        %v7092 = vand.u32 %v974, 4294901760
        %7093 = vmatpush2.msra.mxu0 %v7092
        %v7094 = vand.u32 %v1170, 4294901760
        %7095 = vmatprep.subr.mxu0 %v7094
        %v7096 = vand.u32 %v973, 4294901760
        %7097 = vmatpush2.msra.mxu0 %v7096
        %v7098 = vand.u32 %v1169, 4294901760
        %7099 = vmatprep.subr.mxu0 %v7098
        %v7100 = vand.u32 %v972, 4294901760
        %7101 = vmatpush2.msra.mxu0 %v7100
        %v7102 = vand.u32 %v1168, 4294901760
        %7103 = vmatprep.subr.mxu0 %v7102
        %v7104 = vand.u32 %v971, 4294901760
        %7105 = vmatpush2.msra.mxu0 %v7104
        %v7106 = vand.u32 %v1167, 4294901760
        %7107 = vmatprep.subr.mxu0 %v7106
        %v7108 = vand.u32 %v970, 4294901760
        %7109 = vmatpush2.msra.mxu0 %v7108
        %v7110 = vand.u32 %v1166, 4294901760
        %7111 = vmatprep.subr.mxu0 %v7110
        %v7112 = vand.u32 %v969, 4294901760
        %7113 = vmatpush2.msra.mxu0 %v7112
        %v7114 = vand.u32 %v1165, 4294901760
        %7115 = vmatprep.subr.mxu0 %v7114
        %v7116 = vand.u32 %v968, 4294901760
        %7117 = vmatpush2.msra.mxu0 %v7116
        %v7118 = vand.u32 %v1164, 4294901760
        %7119 = vmatprep.subr.mxu0 %v7118
        %v7120 = vand.u32 %v967, 4294901760
        %7121 = vmatpush2.msra.mxu0 %v7120
        %v7122 = vand.u32 %v1163, 4294901760
        %7123 = vmatprep.subr.mxu0 %v7122
        %v7124 = vand.u32 %v966, 4294901760
        %7125 = vmatpush2.msra.mxu0 %v7124
        %v7126 = vand.u32 %v1162, 4294901760
        %7127 = vmatprep.subr.mxu0 %v7126
        %v7128 = vand.u32 %v965, 4294901760
        %7129 = vmatpush2.msra.mxu0 %v7128
        %v7130 = vand.u32 %v1161, 4294901760
        %7131 = vmatprep.subr.mxu0 %v7130
        %v7132 = vand.u32 %v964, 4294901760
        %7133 = vmatpush2.msra.mxu0 %v7132
        %v7134 = vand.u32 %v1160, 4294901760
        %7135 = vmatprep.subr.mxu0 %v7134
        %v7136 = vand.u32 %v963, 4294901760
        %7137 = vmatpush2.msra.mxu0 %v7136
        %v7138 = vand.u32 %v1159, 4294901760
        %7139 = vmatprep.subr.mxu0 %v7138
        %v7140 = vand.u32 %v962, 4294901760
        %7141 = vmatpush2.msra.mxu0 %v7140
        %v7142 = vand.u32 %v5700, 4294901760
        %v7143 = vsub.f32 %v5700, %v7142
        %v7144 = vand.u32 %v7143, 4294901760
        %7145 = vmatprep.mubr.f32.mxu0 %v7144
        %v7146 = vand.u32 %v5699, 4294901760
        %v7147 = vsub.f32 %v5699, %v7146
        %v7148 = vand.u32 %v7147, 4294901760
        %7149 = vmatmul.mubr.f32.gmra.mxu0 %v7148
        %v7150 = vpop.f32.mrf.mxu0
        %v7151 = vadd.f32 %v6860, %v7150
        %v7152 = vpop.f32.mrf.mxu0
        %v7153 = vadd.f32 %v6862, %v7152
        %v7154 = vand.u32 %v5704, 4294901760
        %v7155 = vsub.f32 %v5704, %v7154
        %v7156 = vand.u32 %v7155, 4294901760
        %7157 = vmatprep.mubr.f32.mxu0 %v7156
        %v7158 = vand.u32 %v5703, 4294901760
        %v7159 = vsub.f32 %v5703, %v7158
        %v7160 = vand.u32 %v7159, 4294901760
        %7161 = vmatmul.mubr.f32.gmra.mxu0 %v7160
        %v7162 = vpop.f32.mrf.mxu0
        %v7163 = vadd.f32 %v6870, %v7162
        %v7164 = vpop.f32.mrf.mxu0
        %v7165 = vadd.f32 %v6872, %v7164
        %v7166 = vand.u32 %v5708, 4294901760
        %v7167 = vsub.f32 %v5708, %v7166
        %v7168 = vand.u32 %v7167, 4294901760
        %7169 = vmatprep.mubr.f32.mxu0 %v7168
        %v7170 = vand.u32 %v5707, 4294901760
        %v7171 = vsub.f32 %v5707, %v7170
        %v7172 = vand.u32 %v7171, 4294901760
        %7173 = vmatmul.mubr.f32.gmra.mxu0 %v7172
        %v7174 = vpop.f32.mrf.mxu0
        %v7175 = vadd.f32 %v6880, %v7174
        %v7176 = vpop.f32.mrf.mxu0
        %v7177 = vadd.f32 %v6882, %v7176
        %v7178 = vand.u32 %v5712, 4294901760
        %v7179 = vsub.f32 %v5712, %v7178
        %v7180 = vand.u32 %v7179, 4294901760
        %7181 = vmatprep.mubr.f32.mxu0 %v7180
        %v7182 = vand.u32 %v5711, 4294901760
        %v7183 = vsub.f32 %v5711, %v7182
        %v7184 = vand.u32 %v7183, 4294901760
        %7185 = vmatmul.mubr.f32.gmra.mxu0 %v7184
        %v7186 = vpop.f32.mrf.mxu0
        %v7187 = vadd.f32 %v6890, %v7186
        %v7188 = vpop.f32.mrf.mxu0
        %v7189 = vadd.f32 %v6892, %v7188
        %v7190 = vand.u32 %v5716, 4294901760
        %v7191 = vsub.f32 %v5716, %v7190
        %v7192 = vand.u32 %v7191, 4294901760
        %7193 = vmatprep.mubr.f32.mxu0 %v7192
        %v7194 = vand.u32 %v5715, 4294901760
        %v7195 = vsub.f32 %v5715, %v7194
        %v7196 = vand.u32 %v7195, 4294901760
        %7197 = vmatmul.mubr.f32.gmra.mxu0 %v7196
        %v7198 = vpop.f32.mrf.mxu0
        %v7199 = vadd.f32 %v6900, %v7198
        %v7200 = vpop.f32.mrf.mxu0
        %v7201 = vadd.f32 %v6902, %v7200
        %v7202 = vand.u32 %v5720, 4294901760
        %v7203 = vsub.f32 %v5720, %v7202
        %v7204 = vand.u32 %v7203, 4294901760
        %7205 = vmatprep.mubr.f32.mxu0 %v7204
        %v7206 = vand.u32 %v5719, 4294901760
        %v7207 = vsub.f32 %v5719, %v7206
        %v7208 = vand.u32 %v7207, 4294901760
        %7209 = vmatmul.mubr.f32.gmra.mxu0 %v7208
        %v7210 = vpop.f32.mrf.mxu0
        %v7211 = vadd.f32 %v6910, %v7210
        %v7212 = vpop.f32.mrf.mxu0
        %v7213 = vadd.f32 %v6912, %v7212
        %v7214 = vand.u32 %v5724, 4294901760
        %v7215 = vsub.f32 %v5724, %v7214
        %v7216 = vand.u32 %v7215, 4294901760
        %7217 = vmatprep.mubr.f32.mxu0 %v7216
        %v7218 = vand.u32 %v5723, 4294901760
        %v7219 = vsub.f32 %v5723, %v7218
        %v7220 = vand.u32 %v7219, 4294901760
        %7221 = vmatmul.mubr.f32.gmra.mxu0 %v7220
        %v7222 = vpop.f32.mrf.mxu0
        %v7223 = vadd.f32 %v6920, %v7222
        %v7224 = vpop.f32.mrf.mxu0
        %v7225 = vadd.f32 %v6922, %v7224
        %v7226 = vand.u32 %v5728, 4294901760
        %v7227 = vsub.f32 %v5728, %v7226
        %v7228 = vand.u32 %v7227, 4294901760
        %7229 = vmatprep.mubr.f32.mxu0 %v7228
        %v7230 = vand.u32 %v5727, 4294901760
        %v7231 = vsub.f32 %v5727, %v7230
        %v7232 = vand.u32 %v7231, 4294901760
        %7233 = vmatmul.mubr.f32.gmra.mxu0 %v7232
        %v7234 = vpop.f32.mrf.mxu0
        %v7235 = vadd.f32 %v6930, %v7234
        %v7236 = vpop.f32.mrf.mxu0
        %v7237 = vadd.f32 %v6932, %v7236
        %v7238 = vand.u32 %v5732, 4294901760
        %v7239 = vsub.f32 %v5732, %v7238
        %v7240 = vand.u32 %v7239, 4294901760
        %7241 = vmatprep.mubr.f32.mxu0 %v7240
        %v7242 = vand.u32 %v5731, 4294901760
        %v7243 = vsub.f32 %v5731, %v7242
        %v7244 = vand.u32 %v7243, 4294901760
        %7245 = vmatmul.mubr.f32.gmra.mxu0 %v7244
        %v7246 = vpop.f32.mrf.mxu0
        %v7247 = vadd.f32 %v6940, %v7246
        %v7248 = vpop.f32.mrf.mxu0
        %v7249 = vadd.f32 %v6942, %v7248
        %v7250 = vand.u32 %v5736, 4294901760
        %v7251 = vsub.f32 %v5736, %v7250
        %v7252 = vand.u32 %v7251, 4294901760
        %7253 = vmatprep.mubr.f32.mxu0 %v7252
        %v7254 = vand.u32 %v5735, 4294901760
        %v7255 = vsub.f32 %v5735, %v7254
        %v7256 = vand.u32 %v7255, 4294901760
        %7257 = vmatmul.mubr.f32.gmra.mxu0 %v7256
        %v7258 = vpop.f32.mrf.mxu0
        %v7259 = vadd.f32 %v6950, %v7258
        %v7260 = vpop.f32.mrf.mxu0
        %v7261 = vadd.f32 %v6952, %v7260
        %v7262 = vand.u32 %v5740, 4294901760
        %v7263 = vsub.f32 %v5740, %v7262
        %v7264 = vand.u32 %v7263, 4294901760
        %7265 = vmatprep.mubr.f32.mxu0 %v7264
        %v7266 = vand.u32 %v5739, 4294901760
        %v7267 = vsub.f32 %v5739, %v7266
        %v7268 = vand.u32 %v7267, 4294901760
        %7269 = vmatmul.mubr.f32.gmra.mxu0 %v7268
        %v7270 = vpop.f32.mrf.mxu0
        %v7271 = vadd.f32 %v6960, %v7270
        %v7272 = vpop.f32.mrf.mxu0
        %v7273 = vadd.f32 %v6962, %v7272
        %v7274 = vand.u32 %v5744, 4294901760
        %v7275 = vsub.f32 %v5744, %v7274
        %v7276 = vand.u32 %v7275, 4294901760
        %7277 = vmatprep.mubr.f32.mxu0 %v7276
        %v7278 = vand.u32 %v5743, 4294901760
        %v7279 = vsub.f32 %v5743, %v7278
        %v7280 = vand.u32 %v7279, 4294901760
        %7281 = vmatmul.mubr.f32.gmra.mxu0 %v7280
        %v7282 = vpop.f32.mrf.mxu0
        %v7283 = vadd.f32 %v6970, %v7282
        %v7284 = vpop.f32.mrf.mxu0
        %v7285 = vadd.f32 %v6972, %v7284
        %v7286 = vand.u32 %v5748, 4294901760
        %v7287 = vsub.f32 %v5748, %v7286
        %v7288 = vand.u32 %v7287, 4294901760
        %7289 = vmatprep.mubr.f32.mxu0 %v7288
        %v7290 = vand.u32 %v5747, 4294901760
        %v7291 = vsub.f32 %v5747, %v7290
        %v7292 = vand.u32 %v7291, 4294901760
        %7293 = vmatmul.mubr.f32.gmra.mxu0 %v7292
        %v7294 = vpop.f32.mrf.mxu0
        %v7295 = vadd.f32 %v6980, %v7294
        %v7296 = vpop.f32.mrf.mxu0
        %v7297 = vadd.f32 %v6982, %v7296
        %v7298 = vand.u32 %v5752, 4294901760
        %v7299 = vsub.f32 %v5752, %v7298
        %v7300 = vand.u32 %v7299, 4294901760
        %7301 = vmatprep.mubr.f32.mxu0 %v7300
        %v7302 = vand.u32 %v5751, 4294901760
        %v7303 = vsub.f32 %v5751, %v7302
        %v7304 = vand.u32 %v7303, 4294901760
        %7305 = vmatmul.mubr.f32.gmra.mxu0 %v7304
        %v7306 = vpop.f32.mrf.mxu0
        %v7307 = vadd.f32 %v6990, %v7306
        %v7308 = vpop.f32.mrf.mxu0
        %v7309 = vadd.f32 %v6992, %v7308
        %v7310 = vand.u32 %v5756, 4294901760
        %v7311 = vsub.f32 %v5756, %v7310
        %v7312 = vand.u32 %v7311, 4294901760
        %7313 = vmatprep.mubr.f32.mxu0 %v7312
        %v7314 = vand.u32 %v5755, 4294901760
        %v7315 = vsub.f32 %v5755, %v7314
        %v7316 = vand.u32 %v7315, 4294901760
        %7317 = vmatmul.mubr.f32.gmra.mxu0 %v7316
        %v7318 = vpop.f32.mrf.mxu0
        %v7319 = vadd.f32 %v7000, %v7318
        %v7320 = vpop.f32.mrf.mxu0
        %v7321 = vadd.f32 %v7002, %v7320
        %v7322 = vand.u32 %v5760, 4294901760
        %v7323 = vsub.f32 %v5760, %v7322
        %v7324 = vand.u32 %v7323, 4294901760
        %7325 = vmatprep.mubr.f32.mxu0 %v7324
        %v7326 = vand.u32 %v5759, 4294901760
        %v7327 = vsub.f32 %v5759, %v7326
        %v7328 = vand.u32 %v7327, 4294901760
        %7329 = vmatmul.mubr.f32.gmra.mxu0 %v7328
        %v7330 = vpop.f32.mrf.mxu0
        %v7331 = vadd.f32 %v7010, %v7330
        %v7332 = vpop.f32.mrf.mxu0
        %v7333 = vadd.f32 %v7012, %v7332
        %7334 = vdwg.mxu0
        %v7335 = vand.u32 %v1158, 4294901760
        %v7336 = vsub.f32 %v1158, %v7335
        %v7337 = vand.u32 %v7336, 4294901760
        %7338 = vmatprep.subr.mxu0 %v7337
        %v7339 = vand.u32 %v961, 4294901760
        %v7340 = vsub.f32 %v961, %v7339
        %v7341 = vand.u32 %v7340, 4294901760
        %7342 = vmatpush1.msra.mxu0 %v7341
        %v7343 = vand.u32 %v1157, 4294901760
        %v7344 = vsub.f32 %v1157, %v7343
        %v7345 = vand.u32 %v7344, 4294901760
        %7346 = vmatprep.subr.mxu0 %v7345
        %v7347 = vand.u32 %v960, 4294901760
        %v7348 = vsub.f32 %v960, %v7347
        %v7349 = vand.u32 %v7348, 4294901760
        %7350 = vmatpush1.msra.mxu0 %v7349
        %v7351 = vand.u32 %v1156, 4294901760
        %v7352 = vsub.f32 %v1156, %v7351
        %v7353 = vand.u32 %v7352, 4294901760
        %7354 = vmatprep.subr.mxu0 %v7353
        %v7355 = vand.u32 %v959, 4294901760
        %v7356 = vsub.f32 %v959, %v7355
        %v7357 = vand.u32 %v7356, 4294901760
        %7358 = vmatpush1.msra.mxu0 %v7357
        %v7359 = vand.u32 %v1155, 4294901760
        %v7360 = vsub.f32 %v1155, %v7359
        %v7361 = vand.u32 %v7360, 4294901760
        %7362 = vmatprep.subr.mxu0 %v7361
        %v7363 = vand.u32 %v958, 4294901760
        %v7364 = vsub.f32 %v958, %v7363
        %v7365 = vand.u32 %v7364, 4294901760
        %7366 = vmatpush1.msra.mxu0 %v7365
        %v7367 = vand.u32 %v1154, 4294901760
        %v7368 = vsub.f32 %v1154, %v7367
        %v7369 = vand.u32 %v7368, 4294901760
        %7370 = vmatprep.subr.mxu0 %v7369
        %v7371 = vand.u32 %v957, 4294901760
        %v7372 = vsub.f32 %v957, %v7371
        %v7373 = vand.u32 %v7372, 4294901760
        %7374 = vmatpush1.msra.mxu0 %v7373
        %v7375 = vand.u32 %v1153, 4294901760
        %v7376 = vsub.f32 %v1153, %v7375
        %v7377 = vand.u32 %v7376, 4294901760
        %7378 = vmatprep.subr.mxu0 %v7377
        %v7379 = vand.u32 %v956, 4294901760
        %v7380 = vsub.f32 %v956, %v7379
        %v7381 = vand.u32 %v7380, 4294901760
        %7382 = vmatpush1.msra.mxu0 %v7381
        %v7383 = vand.u32 %v1152, 4294901760
        %v7384 = vsub.f32 %v1152, %v7383
        %v7385 = vand.u32 %v7384, 4294901760
        %7386 = vmatprep.subr.mxu0 %v7385
        %v7387 = vand.u32 %v955, 4294901760
        %v7388 = vsub.f32 %v955, %v7387
        %v7389 = vand.u32 %v7388, 4294901760
        %7390 = vmatpush1.msra.mxu0 %v7389
        %v7391 = vand.u32 %v1151, 4294901760
        %v7392 = vsub.f32 %v1151, %v7391
        %v7393 = vand.u32 %v7392, 4294901760
        %7394 = vmatprep.subr.mxu0 %v7393
        %v7395 = vand.u32 %v954, 4294901760
        %v7396 = vsub.f32 %v954, %v7395
        %v7397 = vand.u32 %v7396, 4294901760
        %7398 = vmatpush1.msra.mxu0 %v7397
        %v7399 = vand.u32 %v1150, 4294901760
        %v7400 = vsub.f32 %v1150, %v7399
        %v7401 = vand.u32 %v7400, 4294901760
        %7402 = vmatprep.subr.mxu0 %v7401
        %v7403 = vand.u32 %v953, 4294901760
        %v7404 = vsub.f32 %v953, %v7403
        %v7405 = vand.u32 %v7404, 4294901760
        %7406 = vmatpush1.msra.mxu0 %v7405
        %v7407 = vand.u32 %v1149, 4294901760
        %v7408 = vsub.f32 %v1149, %v7407
        %v7409 = vand.u32 %v7408, 4294901760
        %7410 = vmatprep.subr.mxu0 %v7409
        %v7411 = vand.u32 %v952, 4294901760
        %v7412 = vsub.f32 %v952, %v7411
        %v7413 = vand.u32 %v7412, 4294901760
        %7414 = vmatpush1.msra.mxu0 %v7413
        %v7415 = vand.u32 %v1148, 4294901760
        %v7416 = vsub.f32 %v1148, %v7415
        %v7417 = vand.u32 %v7416, 4294901760
        %7418 = vmatprep.subr.mxu0 %v7417
        %v7419 = vand.u32 %v951, 4294901760
        %v7420 = vsub.f32 %v951, %v7419
        %v7421 = vand.u32 %v7420, 4294901760
        %7422 = vmatpush1.msra.mxu0 %v7421
        %v7423 = vand.u32 %v1147, 4294901760
        %v7424 = vsub.f32 %v1147, %v7423
        %v7425 = vand.u32 %v7424, 4294901760
        %7426 = vmatprep.subr.mxu0 %v7425
        %v7427 = vand.u32 %v950, 4294901760
        %v7428 = vsub.f32 %v950, %v7427
        %v7429 = vand.u32 %v7428, 4294901760
        %7430 = vmatpush1.msra.mxu0 %v7429
        %v7431 = vand.u32 %v1146, 4294901760
        %v7432 = vsub.f32 %v1146, %v7431
        %v7433 = vand.u32 %v7432, 4294901760
        %7434 = vmatprep.subr.mxu0 %v7433
        %v7435 = vand.u32 %v949, 4294901760
        %v7436 = vsub.f32 %v949, %v7435
        %v7437 = vand.u32 %v7436, 4294901760
        %7438 = vmatpush1.msra.mxu0 %v7437
        %v7439 = vand.u32 %v1145, 4294901760
        %v7440 = vsub.f32 %v1145, %v7439
        %v7441 = vand.u32 %v7440, 4294901760
        %7442 = vmatprep.subr.mxu0 %v7441
        %v7443 = vand.u32 %v948, 4294901760
        %v7444 = vsub.f32 %v948, %v7443
        %v7445 = vand.u32 %v7444, 4294901760
        %7446 = vmatpush1.msra.mxu0 %v7445
        %v7447 = vand.u32 %v1144, 4294901760
        %v7448 = vsub.f32 %v1144, %v7447
        %v7449 = vand.u32 %v7448, 4294901760
        %7450 = vmatprep.subr.mxu0 %v7449
        %v7451 = vand.u32 %v947, 4294901760
        %v7452 = vsub.f32 %v947, %v7451
        %v7453 = vand.u32 %v7452, 4294901760
        %7454 = vmatpush1.msra.mxu0 %v7453
        %v7455 = vand.u32 %v1143, 4294901760
        %v7456 = vsub.f32 %v1143, %v7455
        %v7457 = vand.u32 %v7456, 4294901760
        %7458 = vmatprep.subr.mxu0 %v7457
        %v7459 = vand.u32 %v946, 4294901760
        %v7460 = vsub.f32 %v946, %v7459
        %v7461 = vand.u32 %v7460, 4294901760
        %7462 = vmatpush1.msra.mxu0 %v7461
        %v7463 = vand.u32 %v1174, 4294901760
        %v7464 = vsub.f32 %v1174, %v7463
        %v7465 = vand.u32 %v7464, 4294901760
        %7466 = vmatprep.subr.mxu0 %v7465
        %v7467 = vand.u32 %v977, 4294901760
        %v7468 = vsub.f32 %v977, %v7467
        %v7469 = vand.u32 %v7468, 4294901760
        %7470 = vmatpush2.msra.mxu0 %v7469
        %v7471 = vand.u32 %v1173, 4294901760
        %v7472 = vsub.f32 %v1173, %v7471
        %v7473 = vand.u32 %v7472, 4294901760
        %7474 = vmatprep.subr.mxu0 %v7473
        %v7475 = vand.u32 %v976, 4294901760
        %v7476 = vsub.f32 %v976, %v7475
        %v7477 = vand.u32 %v7476, 4294901760
        %7478 = vmatpush2.msra.mxu0 %v7477
        %v7479 = vand.u32 %v1172, 4294901760
        %v7480 = vsub.f32 %v1172, %v7479
        %v7481 = vand.u32 %v7480, 4294901760
        %7482 = vmatprep.subr.mxu0 %v7481
        %v7483 = vand.u32 %v975, 4294901760
        %v7484 = vsub.f32 %v975, %v7483
        %v7485 = vand.u32 %v7484, 4294901760
        %7486 = vmatpush2.msra.mxu0 %v7485
        %v7487 = vand.u32 %v1171, 4294901760
        %v7488 = vsub.f32 %v1171, %v7487
        %v7489 = vand.u32 %v7488, 4294901760
        %7490 = vmatprep.subr.mxu0 %v7489
        %v7491 = vand.u32 %v974, 4294901760
        %v7492 = vsub.f32 %v974, %v7491
        %v7493 = vand.u32 %v7492, 4294901760
        %7494 = vmatpush2.msra.mxu0 %v7493
        %v7495 = vand.u32 %v1170, 4294901760
        %v7496 = vsub.f32 %v1170, %v7495
        %v7497 = vand.u32 %v7496, 4294901760
        %7498 = vmatprep.subr.mxu0 %v7497
        %v7499 = vand.u32 %v973, 4294901760
        %v7500 = vsub.f32 %v973, %v7499
        %v7501 = vand.u32 %v7500, 4294901760
        %7502 = vmatpush2.msra.mxu0 %v7501
        %v7503 = vand.u32 %v1169, 4294901760
        %v7504 = vsub.f32 %v1169, %v7503
        %v7505 = vand.u32 %v7504, 4294901760
        %7506 = vmatprep.subr.mxu0 %v7505
        %v7507 = vand.u32 %v972, 4294901760
        %v7508 = vsub.f32 %v972, %v7507
        %v7509 = vand.u32 %v7508, 4294901760
        %7510 = vmatpush2.msra.mxu0 %v7509
        %v7511 = vand.u32 %v1168, 4294901760
        %v7512 = vsub.f32 %v1168, %v7511
        %v7513 = vand.u32 %v7512, 4294901760
        %7514 = vmatprep.subr.mxu0 %v7513
        %v7515 = vand.u32 %v971, 4294901760
        %v7516 = vsub.f32 %v971, %v7515
        %v7517 = vand.u32 %v7516, 4294901760
        %7518 = vmatpush2.msra.mxu0 %v7517
        %v7519 = vand.u32 %v1167, 4294901760
        %v7520 = vsub.f32 %v1167, %v7519
        %v7521 = vand.u32 %v7520, 4294901760
        %7522 = vmatprep.subr.mxu0 %v7521
        %v7523 = vand.u32 %v970, 4294901760
        %v7524 = vsub.f32 %v970, %v7523
        %v7525 = vand.u32 %v7524, 4294901760
        %7526 = vmatpush2.msra.mxu0 %v7525
        %v7527 = vand.u32 %v1166, 4294901760
        %v7528 = vsub.f32 %v1166, %v7527
        %v7529 = vand.u32 %v7528, 4294901760
        %7530 = vmatprep.subr.mxu0 %v7529
        %v7531 = vand.u32 %v969, 4294901760
        %v7532 = vsub.f32 %v969, %v7531
        %v7533 = vand.u32 %v7532, 4294901760
        %7534 = vmatpush2.msra.mxu0 %v7533
        %v7535 = vand.u32 %v1165, 4294901760
        %v7536 = vsub.f32 %v1165, %v7535
        %v7537 = vand.u32 %v7536, 4294901760
        %7538 = vmatprep.subr.mxu0 %v7537
        %v7539 = vand.u32 %v968, 4294901760
        %v7540 = vsub.f32 %v968, %v7539
        %v7541 = vand.u32 %v7540, 4294901760
        %7542 = vmatpush2.msra.mxu0 %v7541
        %v7543 = vand.u32 %v1164, 4294901760
        %v7544 = vsub.f32 %v1164, %v7543
        %v7545 = vand.u32 %v7544, 4294901760
        %7546 = vmatprep.subr.mxu0 %v7545
        %v7547 = vand.u32 %v967, 4294901760
        %v7548 = vsub.f32 %v967, %v7547
        %v7549 = vand.u32 %v7548, 4294901760
        %7550 = vmatpush2.msra.mxu0 %v7549
        %v7551 = vand.u32 %v1163, 4294901760
        %v7552 = vsub.f32 %v1163, %v7551
        %v7553 = vand.u32 %v7552, 4294901760
        %7554 = vmatprep.subr.mxu0 %v7553
        %v7555 = vand.u32 %v966, 4294901760
        %v7556 = vsub.f32 %v966, %v7555
        %v7557 = vand.u32 %v7556, 4294901760
        %7558 = vmatpush2.msra.mxu0 %v7557
        %v7559 = vand.u32 %v1162, 4294901760
        %v7560 = vsub.f32 %v1162, %v7559
        %v7561 = vand.u32 %v7560, 4294901760
        %7562 = vmatprep.subr.mxu0 %v7561
        %v7563 = vand.u32 %v965, 4294901760
        %v7564 = vsub.f32 %v965, %v7563
        %v7565 = vand.u32 %v7564, 4294901760
        %7566 = vmatpush2.msra.mxu0 %v7565
        %v7567 = vand.u32 %v1161, 4294901760
        %v7568 = vsub.f32 %v1161, %v7567
        %v7569 = vand.u32 %v7568, 4294901760
        %7570 = vmatprep.subr.mxu0 %v7569
        %v7571 = vand.u32 %v964, 4294901760
        %v7572 = vsub.f32 %v964, %v7571
        %v7573 = vand.u32 %v7572, 4294901760
        %7574 = vmatpush2.msra.mxu0 %v7573
        %v7575 = vand.u32 %v1160, 4294901760
        %v7576 = vsub.f32 %v1160, %v7575
        %v7577 = vand.u32 %v7576, 4294901760
        %7578 = vmatprep.subr.mxu0 %v7577
        %v7579 = vand.u32 %v963, 4294901760
        %v7580 = vsub.f32 %v963, %v7579
        %v7581 = vand.u32 %v7580, 4294901760
        %7582 = vmatpush2.msra.mxu0 %v7581
        %v7583 = vand.u32 %v1159, 4294901760
        %v7584 = vsub.f32 %v1159, %v7583
        %v7585 = vand.u32 %v7584, 4294901760
        %7586 = vmatprep.subr.mxu0 %v7585
        %v7587 = vand.u32 %v962, 4294901760
        %v7588 = vsub.f32 %v962, %v7587
        %v7589 = vand.u32 %v7588, 4294901760
        %7590 = vmatpush2.msra.mxu0 %v7589
        %v7591 = vand.u32 %v5700, 4294901760
        %7592 = vmatprep.mubr.f32.mxu0 %v7591
        %v7593 = vand.u32 %v5699, 4294901760
        %7594 = vmatmul.mubr.f32.gmra.mxu0 %v7593
        %v7595 = vpop.f32.mrf.mxu0
        %v7596 = vadd.f32 %v7151, %v7595
        %v7597 = vpop.f32.mrf.mxu0
        %v7598 = vadd.f32 %v7153, %v7597
        %v7599 = vand.u32 %v5704, 4294901760
        %7600 = vmatprep.mubr.f32.mxu0 %v7599
        %v7601 = vand.u32 %v5703, 4294901760
        %7602 = vmatmul.mubr.f32.gmra.mxu0 %v7601
        %v7603 = vpop.f32.mrf.mxu0
        %v7604 = vadd.f32 %v7163, %v7603
        %v7605 = vpop.f32.mrf.mxu0
        %v7606 = vadd.f32 %v7165, %v7605
        %v7607 = vand.u32 %v5708, 4294901760
        %7608 = vmatprep.mubr.f32.mxu0 %v7607
        %v7609 = vand.u32 %v5707, 4294901760
        %7610 = vmatmul.mubr.f32.gmra.mxu0 %v7609
        %v7611 = vpop.f32.mrf.mxu0
        %v7612 = vadd.f32 %v7175, %v7611
        %v7613 = vpop.f32.mrf.mxu0
        %v7614 = vadd.f32 %v7177, %v7613
        %v7615 = vand.u32 %v5712, 4294901760
        %7616 = vmatprep.mubr.f32.mxu0 %v7615
        %v7617 = vand.u32 %v5711, 4294901760
        %7618 = vmatmul.mubr.f32.gmra.mxu0 %v7617
        %v7619 = vpop.f32.mrf.mxu0
        %v7620 = vadd.f32 %v7187, %v7619
        %v7621 = vpop.f32.mrf.mxu0
        %v7622 = vadd.f32 %v7189, %v7621
        %v7623 = vand.u32 %v5716, 4294901760
        %7624 = vmatprep.mubr.f32.mxu0 %v7623
        %v7625 = vand.u32 %v5715, 4294901760
        %7626 = vmatmul.mubr.f32.gmra.mxu0 %v7625
        %v7627 = vpop.f32.mrf.mxu0
        %v7628 = vadd.f32 %v7199, %v7627
        %v7629 = vpop.f32.mrf.mxu0
        %v7630 = vadd.f32 %v7201, %v7629
        %v7631 = vand.u32 %v5720, 4294901760
        %7632 = vmatprep.mubr.f32.mxu0 %v7631
        %v7633 = vand.u32 %v5719, 4294901760
        %7634 = vmatmul.mubr.f32.gmra.mxu0 %v7633
        %v7635 = vpop.f32.mrf.mxu0
        %v7636 = vadd.f32 %v7211, %v7635
        %v7637 = vpop.f32.mrf.mxu0
        %v7638 = vadd.f32 %v7213, %v7637
        %v7639 = vand.u32 %v5724, 4294901760
        %7640 = vmatprep.mubr.f32.mxu0 %v7639
        %v7641 = vand.u32 %v5723, 4294901760
        %7642 = vmatmul.mubr.f32.gmra.mxu0 %v7641
        %v7643 = vpop.f32.mrf.mxu0
        %v7644 = vadd.f32 %v7223, %v7643
        %v7645 = vpop.f32.mrf.mxu0
        %v7646 = vadd.f32 %v7225, %v7645
        %v7647 = vand.u32 %v5728, 4294901760
        %7648 = vmatprep.mubr.f32.mxu0 %v7647
        %v7649 = vand.u32 %v5727, 4294901760
        %7650 = vmatmul.mubr.f32.gmra.mxu0 %v7649
        %v7651 = vpop.f32.mrf.mxu0
        %v7652 = vadd.f32 %v7235, %v7651
        %v7653 = vpop.f32.mrf.mxu0
        %v7654 = vadd.f32 %v7237, %v7653
        %v7655 = vand.u32 %v5732, 4294901760
        %7656 = vmatprep.mubr.f32.mxu0 %v7655
        %v7657 = vand.u32 %v5731, 4294901760
        %7658 = vmatmul.mubr.f32.gmra.mxu0 %v7657
        %v7659 = vpop.f32.mrf.mxu0
        %v7660 = vadd.f32 %v7247, %v7659
        %v7661 = vpop.f32.mrf.mxu0
        %v7662 = vadd.f32 %v7249, %v7661
        %v7663 = vand.u32 %v5736, 4294901760
        %7664 = vmatprep.mubr.f32.mxu0 %v7663
        %v7665 = vand.u32 %v5735, 4294901760
        %7666 = vmatmul.mubr.f32.gmra.mxu0 %v7665
        %v7667 = vpop.f32.mrf.mxu0
        %v7668 = vadd.f32 %v7259, %v7667
        %v7669 = vpop.f32.mrf.mxu0
        %v7670 = vadd.f32 %v7261, %v7669
        %v7671 = vand.u32 %v5740, 4294901760
        %7672 = vmatprep.mubr.f32.mxu0 %v7671
        %v7673 = vand.u32 %v5739, 4294901760
        %7674 = vmatmul.mubr.f32.gmra.mxu0 %v7673
        %v7675 = vpop.f32.mrf.mxu0
        %v7676 = vadd.f32 %v7271, %v7675
        %v7677 = vpop.f32.mrf.mxu0
        %v7678 = vadd.f32 %v7273, %v7677
        %v7679 = vand.u32 %v5744, 4294901760
        %7680 = vmatprep.mubr.f32.mxu0 %v7679
        %v7681 = vand.u32 %v5743, 4294901760
        %7682 = vmatmul.mubr.f32.gmra.mxu0 %v7681
        %v7683 = vpop.f32.mrf.mxu0
        %v7684 = vadd.f32 %v7283, %v7683
        %v7685 = vpop.f32.mrf.mxu0
        %v7686 = vadd.f32 %v7285, %v7685
        %v7687 = vand.u32 %v5748, 4294901760
        %7688 = vmatprep.mubr.f32.mxu0 %v7687
        %v7689 = vand.u32 %v5747, 4294901760
        %7690 = vmatmul.mubr.f32.gmra.mxu0 %v7689
        %v7691 = vpop.f32.mrf.mxu0
        %v7692 = vadd.f32 %v7295, %v7691
        %v7693 = vpop.f32.mrf.mxu0
        %v7694 = vadd.f32 %v7297, %v7693
        %v7695 = vand.u32 %v5752, 4294901760
        %7696 = vmatprep.mubr.f32.mxu0 %v7695
        %v7697 = vand.u32 %v5751, 4294901760
        %7698 = vmatmul.mubr.f32.gmra.mxu0 %v7697
        %v7699 = vpop.f32.mrf.mxu0
        %v7700 = vadd.f32 %v7307, %v7699
        %v7701 = vpop.f32.mrf.mxu0
        %v7702 = vadd.f32 %v7309, %v7701
        %v7703 = vand.u32 %v5756, 4294901760
        %7704 = vmatprep.mubr.f32.mxu0 %v7703
        %v7705 = vand.u32 %v5755, 4294901760
        %7706 = vmatmul.mubr.f32.gmra.mxu0 %v7705
        %v7707 = vpop.f32.mrf.mxu0
        %v7708 = vadd.f32 %v7319, %v7707
        %v7709 = vpop.f32.mrf.mxu0
        %v7710 = vadd.f32 %v7321, %v7709
        %v7711 = vand.u32 %v5760, 4294901760
        %7712 = vmatprep.mubr.f32.mxu0 %v7711
        %v7713 = vand.u32 %v5759, 4294901760
        %7714 = vmatmul.mubr.f32.gmra.mxu0 %v7713
        %v7715 = vpop.f32.mrf.mxu0
        %v7716 = vadd.f32 %v7331, %v7715
        %v7717 = vpop.f32.mrf.mxu0
        %v7718 = vadd.f32 %v7333, %v7717
        %7719 = vdwg.mxu0
        %v7720 = vand.u32 %v1158, 4294901760
        %7721 = vmatprep.subr.mxu0 %v7720
        %v7722 = vand.u32 %v961, 4294901760
        %7723 = vmatpush1.msra.mxu0 %v7722
        %v7724 = vand.u32 %v1157, 4294901760
        %7725 = vmatprep.subr.mxu0 %v7724
        %v7726 = vand.u32 %v960, 4294901760
        %7727 = vmatpush1.msra.mxu0 %v7726
        %v7728 = vand.u32 %v1156, 4294901760
        %7729 = vmatprep.subr.mxu0 %v7728
        %v7730 = vand.u32 %v959, 4294901760
        %7731 = vmatpush1.msra.mxu0 %v7730
        %v7732 = vand.u32 %v1155, 4294901760
        %7733 = vmatprep.subr.mxu0 %v7732
        %v7734 = vand.u32 %v958, 4294901760
        %7735 = vmatpush1.msra.mxu0 %v7734
        %v7736 = vand.u32 %v1154, 4294901760
        %7737 = vmatprep.subr.mxu0 %v7736
        %v7738 = vand.u32 %v957, 4294901760
        %7739 = vmatpush1.msra.mxu0 %v7738
        %v7740 = vand.u32 %v1153, 4294901760
        %7741 = vmatprep.subr.mxu0 %v7740
        %v7742 = vand.u32 %v956, 4294901760
        %7743 = vmatpush1.msra.mxu0 %v7742
        %v7744 = vand.u32 %v1152, 4294901760
        %7745 = vmatprep.subr.mxu0 %v7744
        %v7746 = vand.u32 %v955, 4294901760
        %7747 = vmatpush1.msra.mxu0 %v7746
        %v7748 = vand.u32 %v1151, 4294901760
        %7749 = vmatprep.subr.mxu0 %v7748
        %v7750 = vand.u32 %v954, 4294901760
        %7751 = vmatpush1.msra.mxu0 %v7750
        %v7752 = vand.u32 %v1150, 4294901760
        %7753 = vmatprep.subr.mxu0 %v7752
        %v7754 = vand.u32 %v953, 4294901760
        %7755 = vmatpush1.msra.mxu0 %v7754
        %v7756 = vand.u32 %v1149, 4294901760
        %7757 = vmatprep.subr.mxu0 %v7756
        %v7758 = vand.u32 %v952, 4294901760
        %7759 = vmatpush1.msra.mxu0 %v7758
        %v7760 = vand.u32 %v1148, 4294901760
        %7761 = vmatprep.subr.mxu0 %v7760
        %v7762 = vand.u32 %v951, 4294901760
        %7763 = vmatpush1.msra.mxu0 %v7762
        %v7764 = vand.u32 %v1147, 4294901760
        %7765 = vmatprep.subr.mxu0 %v7764
        %v7766 = vand.u32 %v950, 4294901760
        %7767 = vmatpush1.msra.mxu0 %v7766
        %v7768 = vand.u32 %v1146, 4294901760
        %7769 = vmatprep.subr.mxu0 %v7768
        %v7770 = vand.u32 %v949, 4294901760
        %7771 = vmatpush1.msra.mxu0 %v7770
        %v7772 = vand.u32 %v1145, 4294901760
        %7773 = vmatprep.subr.mxu0 %v7772
        %v7774 = vand.u32 %v948, 4294901760
        %7775 = vmatpush1.msra.mxu0 %v7774
        %v7776 = vand.u32 %v1144, 4294901760
        %7777 = vmatprep.subr.mxu0 %v7776
        %v7778 = vand.u32 %v947, 4294901760
        %7779 = vmatpush1.msra.mxu0 %v7778
        %v7780 = vand.u32 %v1143, 4294901760
        %7781 = vmatprep.subr.mxu0 %v7780
        %v7782 = vand.u32 %v946, 4294901760
        %7783 = vmatpush1.msra.mxu0 %v7782
        %v7784 = vand.u32 %v1174, 4294901760
        %7785 = vmatprep.subr.mxu0 %v7784
        %v7786 = vand.u32 %v977, 4294901760
        %7787 = vmatpush2.msra.mxu0 %v7786
        %v7788 = vand.u32 %v1173, 4294901760
        %7789 = vmatprep.subr.mxu0 %v7788
        %v7790 = vand.u32 %v976, 4294901760
        %7791 = vmatpush2.msra.mxu0 %v7790
        %v7792 = vand.u32 %v1172, 4294901760
        %7793 = vmatprep.subr.mxu0 %v7792
        %v7794 = vand.u32 %v975, 4294901760
        %7795 = vmatpush2.msra.mxu0 %v7794
        %v7796 = vand.u32 %v1171, 4294901760
        %7797 = vmatprep.subr.mxu0 %v7796
        %v7798 = vand.u32 %v974, 4294901760
        %7799 = vmatpush2.msra.mxu0 %v7798
        %v7800 = vand.u32 %v1170, 4294901760
        %7801 = vmatprep.subr.mxu0 %v7800
        %v7802 = vand.u32 %v973, 4294901760
        %7803 = vmatpush2.msra.mxu0 %v7802
        %v7804 = vand.u32 %v1169, 4294901760
        %7805 = vmatprep.subr.mxu0 %v7804
        %v7806 = vand.u32 %v972, 4294901760
        %7807 = vmatpush2.msra.mxu0 %v7806
        %v7808 = vand.u32 %v1168, 4294901760
        %7809 = vmatprep.subr.mxu0 %v7808
        %v7810 = vand.u32 %v971, 4294901760
        %7811 = vmatpush2.msra.mxu0 %v7810
        %v7812 = vand.u32 %v1167, 4294901760
        %7813 = vmatprep.subr.mxu0 %v7812
        %v7814 = vand.u32 %v970, 4294901760
        %7815 = vmatpush2.msra.mxu0 %v7814
        %v7816 = vand.u32 %v1166, 4294901760
        %7817 = vmatprep.subr.mxu0 %v7816
        %v7818 = vand.u32 %v969, 4294901760
        %7819 = vmatpush2.msra.mxu0 %v7818
        %v7820 = vand.u32 %v1165, 4294901760
        %7821 = vmatprep.subr.mxu0 %v7820
        %v7822 = vand.u32 %v968, 4294901760
        %7823 = vmatpush2.msra.mxu0 %v7822
        %v7824 = vand.u32 %v1164, 4294901760
        %7825 = vmatprep.subr.mxu0 %v7824
        %v7826 = vand.u32 %v967, 4294901760
        %7827 = vmatpush2.msra.mxu0 %v7826
        %v7828 = vand.u32 %v1163, 4294901760
        %7829 = vmatprep.subr.mxu0 %v7828
        %v7830 = vand.u32 %v966, 4294901760
        %7831 = vmatpush2.msra.mxu0 %v7830
        %v7832 = vand.u32 %v1162, 4294901760
        %7833 = vmatprep.subr.mxu0 %v7832
        %v7834 = vand.u32 %v965, 4294901760
        %7835 = vmatpush2.msra.mxu0 %v7834
        %v7836 = vand.u32 %v1161, 4294901760
        %7837 = vmatprep.subr.mxu0 %v7836
        %v7838 = vand.u32 %v964, 4294901760
        %7839 = vmatpush2.msra.mxu0 %v7838
        %v7840 = vand.u32 %v1160, 4294901760
        %7841 = vmatprep.subr.mxu0 %v7840
        %v7842 = vand.u32 %v963, 4294901760
        %7843 = vmatpush2.msra.mxu0 %v7842
        %v7844 = vand.u32 %v1159, 4294901760
        %7845 = vmatprep.subr.mxu0 %v7844
        %v7846 = vand.u32 %v962, 4294901760
        %7847 = vmatpush2.msra.mxu0 %v7846
        %v7848 = vand.u32 %v5700, 4294901760
        %7849 = vmatprep.mubr.f32.mxu0 %v7848
        %v7850 = vand.u32 %v5699, 4294901760
        %7851 = vmatmul.mubr.f32.gmra.mxu0 %v7850
        %v7852 = vpop.f32.mrf.mxu0
        %v7853 = vadd.f32 %v7596, %v7852
        %v7854 = vpop.f32.mrf.mxu0
        %v7855 = vadd.f32 %v7598, %v7854
        %v7856 = vand.u32 %v5704, 4294901760
        %7857 = vmatprep.mubr.f32.mxu0 %v7856
        %v7858 = vand.u32 %v5703, 4294901760
        %7859 = vmatmul.mubr.f32.gmra.mxu0 %v7858
        %v7860 = vpop.f32.mrf.mxu0
        %v7861 = vadd.f32 %v7604, %v7860
        %v7862 = vpop.f32.mrf.mxu0
        %v7863 = vadd.f32 %v7606, %v7862
        %v7864 = vand.u32 %v5708, 4294901760
        %7865 = vmatprep.mubr.f32.mxu0 %v7864
        %v7866 = vand.u32 %v5707, 4294901760
        %7867 = vmatmul.mubr.f32.gmra.mxu0 %v7866
        %v7868 = vpop.f32.mrf.mxu0
        %v7869 = vadd.f32 %v7612, %v7868
        %v7870 = vpop.f32.mrf.mxu0
        %v7871 = vadd.f32 %v7614, %v7870
        %v7872 = vand.u32 %v5712, 4294901760
        %7873 = vmatprep.mubr.f32.mxu0 %v7872
        %v7874 = vand.u32 %v5711, 4294901760
        %7875 = vmatmul.mubr.f32.gmra.mxu0 %v7874
        %v7876 = vpop.f32.mrf.mxu0
        %v7877 = vadd.f32 %v7620, %v7876
        %v7878 = vpop.f32.mrf.mxu0
        %v7879 = vadd.f32 %v7622, %v7878
        %v7880 = vand.u32 %v5716, 4294901760
        %7881 = vmatprep.mubr.f32.mxu0 %v7880
        %v7882 = vand.u32 %v5715, 4294901760
        %7883 = vmatmul.mubr.f32.gmra.mxu0 %v7882
        %v7884 = vpop.f32.mrf.mxu0
        %v7885 = vadd.f32 %v7628, %v7884
        %v7886 = vpop.f32.mrf.mxu0
        %v7887 = vadd.f32 %v7630, %v7886
        %v7888 = vand.u32 %v5720, 4294901760
        %7889 = vmatprep.mubr.f32.mxu0 %v7888
        %v7890 = vand.u32 %v5719, 4294901760
        %7891 = vmatmul.mubr.f32.gmra.mxu0 %v7890
        %v7892 = vpop.f32.mrf.mxu0
        %v7893 = vadd.f32 %v7636, %v7892
        %v7894 = vpop.f32.mrf.mxu0
        %v7895 = vadd.f32 %v7638, %v7894
        %v7896 = vand.u32 %v5724, 4294901760
        %7897 = vmatprep.mubr.f32.mxu0 %v7896
        %v7898 = vand.u32 %v5723, 4294901760
        %7899 = vmatmul.mubr.f32.gmra.mxu0 %v7898
        %v7900 = vpop.f32.mrf.mxu0
        %v7901 = vadd.f32 %v7644, %v7900
        %v7902 = vpop.f32.mrf.mxu0
        %v7903 = vadd.f32 %v7646, %v7902
        %v7904 = vand.u32 %v5728, 4294901760
        %7905 = vmatprep.mubr.f32.mxu0 %v7904
        %v7906 = vand.u32 %v5727, 4294901760
        %7907 = vmatmul.mubr.f32.gmra.mxu0 %v7906
        %v7908 = vpop.f32.mrf.mxu0
        %v7909 = vadd.f32 %v7652, %v7908
        %v7910 = vpop.f32.mrf.mxu0
        %v7911 = vadd.f32 %v7654, %v7910
        %v7912 = vand.u32 %v5732, 4294901760
        %7913 = vmatprep.mubr.f32.mxu0 %v7912
        %v7914 = vand.u32 %v5731, 4294901760
        %7915 = vmatmul.mubr.f32.gmra.mxu0 %v7914
        %v7916 = vpop.f32.mrf.mxu0
        %v7917 = vadd.f32 %v7660, %v7916
        %v7918 = vpop.f32.mrf.mxu0
        %v7919 = vadd.f32 %v7662, %v7918
        %v7920 = vand.u32 %v5736, 4294901760
        %7921 = vmatprep.mubr.f32.mxu0 %v7920
        %v7922 = vand.u32 %v5735, 4294901760
        %7923 = vmatmul.mubr.f32.gmra.mxu0 %v7922
        %v7924 = vpop.f32.mrf.mxu0
        %v7925 = vadd.f32 %v7668, %v7924
        %v7926 = vpop.f32.mrf.mxu0
        %v7927 = vadd.f32 %v7670, %v7926
        %v7928 = vand.u32 %v5740, 4294901760
        %7929 = vmatprep.mubr.f32.mxu0 %v7928
        %v7930 = vand.u32 %v5739, 4294901760
        %7931 = vmatmul.mubr.f32.gmra.mxu0 %v7930
        %v7932 = vpop.f32.mrf.mxu0
        %v7933 = vadd.f32 %v7676, %v7932
        %v7934 = vpop.f32.mrf.mxu0
        %v7935 = vadd.f32 %v7678, %v7934
        %v7936 = vand.u32 %v5744, 4294901760
        %7937 = vmatprep.mubr.f32.mxu0 %v7936
        %v7938 = vand.u32 %v5743, 4294901760
        %7939 = vmatmul.mubr.f32.gmra.mxu0 %v7938
        %v7940 = vpop.f32.mrf.mxu0
        %v7941 = vadd.f32 %v7684, %v7940
        %v7942 = vpop.f32.mrf.mxu0
        %v7943 = vadd.f32 %v7686, %v7942
        %v7944 = vand.u32 %v5748, 4294901760
        %7945 = vmatprep.mubr.f32.mxu0 %v7944
        %v7946 = vand.u32 %v5747, 4294901760
        %7947 = vmatmul.mubr.f32.gmra.mxu0 %v7946
        %v7948 = vpop.f32.mrf.mxu0
        %v7949 = vadd.f32 %v7692, %v7948
        %v7950 = vpop.f32.mrf.mxu0
        %v7951 = vadd.f32 %v7694, %v7950
        %v7952 = vand.u32 %v5752, 4294901760
        %7953 = vmatprep.mubr.f32.mxu0 %v7952
        %v7954 = vand.u32 %v5751, 4294901760
        %7955 = vmatmul.mubr.f32.gmra.mxu0 %v7954
        %v7956 = vpop.f32.mrf.mxu0
        %v7957 = vadd.f32 %v7700, %v7956
        %v7958 = vpop.f32.mrf.mxu0
        %v7959 = vadd.f32 %v7702, %v7958
        %v7960 = vand.u32 %v5756, 4294901760
        %7961 = vmatprep.mubr.f32.mxu0 %v7960
        %v7962 = vand.u32 %v5755, 4294901760
        %7963 = vmatmul.mubr.f32.gmra.mxu0 %v7962
        %v7964 = vpop.f32.mrf.mxu0
        %v7965 = vadd.f32 %v7708, %v7964
        %v7966 = vpop.f32.mrf.mxu0
        %v7967 = vadd.f32 %v7710, %v7966
        %v7968 = vand.u32 %v5760, 4294901760
        %7969 = vmatprep.mubr.f32.mxu0 %v7968
        %v7970 = vand.u32 %v5759, 4294901760
        %7971 = vmatmul.mubr.f32.gmra.mxu0 %v7970
        %v7972 = vpop.f32.mrf.mxu0
        %v7973 = vadd.f32 %v7716, %v7972
        %v7974 = vpop.f32.mrf.mxu0
        %v7975 = vadd.f32 %v7718, %v7974
        %7976 = vdwg.mxu0
        %v7977 = vand.u32 %v1190, 4294901760
        %7978 = vmatprep.subr.mxu0 %v7977
        %v7979 = vand.u32 %v993, 4294901760
        %7980 = vmatpush1.msra.mxu0 %v7979
        %v7981 = vand.u32 %v1189, 4294901760
        %7982 = vmatprep.subr.mxu0 %v7981
        %v7983 = vand.u32 %v992, 4294901760
        %7984 = vmatpush1.msra.mxu0 %v7983
        %v7985 = vand.u32 %v1188, 4294901760
        %7986 = vmatprep.subr.mxu0 %v7985
        %v7987 = vand.u32 %v991, 4294901760
        %7988 = vmatpush1.msra.mxu0 %v7987
        %v7989 = vand.u32 %v1187, 4294901760
        %7990 = vmatprep.subr.mxu0 %v7989
        %v7991 = vand.u32 %v990, 4294901760
        %7992 = vmatpush1.msra.mxu0 %v7991
        %v7993 = vand.u32 %v1186, 4294901760
        %7994 = vmatprep.subr.mxu0 %v7993
        %v7995 = vand.u32 %v989, 4294901760
        %7996 = vmatpush1.msra.mxu0 %v7995
        %v7997 = vand.u32 %v1185, 4294901760
        %7998 = vmatprep.subr.mxu0 %v7997
        %v7999 = vand.u32 %v988, 4294901760
        %8000 = vmatpush1.msra.mxu0 %v7999
        %v8001 = vand.u32 %v1184, 4294901760
        %8002 = vmatprep.subr.mxu0 %v8001
        %v8003 = vand.u32 %v987, 4294901760
        %8004 = vmatpush1.msra.mxu0 %v8003
        %v8005 = vand.u32 %v1183, 4294901760
        %8006 = vmatprep.subr.mxu0 %v8005
        %v8007 = vand.u32 %v986, 4294901760
        %8008 = vmatpush1.msra.mxu0 %v8007
        %v8009 = vand.u32 %v1182, 4294901760
        %8010 = vmatprep.subr.mxu0 %v8009
        %v8011 = vand.u32 %v985, 4294901760
        %8012 = vmatpush1.msra.mxu0 %v8011
        %v8013 = vand.u32 %v1181, 4294901760
        %8014 = vmatprep.subr.mxu0 %v8013
        %v8015 = vand.u32 %v984, 4294901760
        %8016 = vmatpush1.msra.mxu0 %v8015
        %v8017 = vand.u32 %v1180, 4294901760
        %8018 = vmatprep.subr.mxu0 %v8017
        %v8019 = vand.u32 %v983, 4294901760
        %8020 = vmatpush1.msra.mxu0 %v8019
        %v8021 = vand.u32 %v1179, 4294901760
        %8022 = vmatprep.subr.mxu0 %v8021
        %v8023 = vand.u32 %v982, 4294901760
        %8024 = vmatpush1.msra.mxu0 %v8023
        %v8025 = vand.u32 %v1178, 4294901760
        %8026 = vmatprep.subr.mxu0 %v8025
        %v8027 = vand.u32 %v981, 4294901760
        %8028 = vmatpush1.msra.mxu0 %v8027
        %v8029 = vand.u32 %v1177, 4294901760
        %8030 = vmatprep.subr.mxu0 %v8029
        %v8031 = vand.u32 %v980, 4294901760
        %8032 = vmatpush1.msra.mxu0 %v8031
        %v8033 = vand.u32 %v1176, 4294901760
        %8034 = vmatprep.subr.mxu0 %v8033
        %v8035 = vand.u32 %v979, 4294901760
        %8036 = vmatpush1.msra.mxu0 %v8035
        %v8037 = vand.u32 %v1175, 4294901760
        %8038 = vmatprep.subr.mxu0 %v8037
        %v8039 = vand.u32 %v978, 4294901760
        %8040 = vmatpush1.msra.mxu0 %v8039
        %v8041 = vand.u32 %v1206, 4294901760
        %8042 = vmatprep.subr.mxu0 %v8041
        %v8043 = vand.u32 %v1009, 4294901760
        %8044 = vmatpush2.msra.mxu0 %v8043
        %v8045 = vand.u32 %v1205, 4294901760
        %8046 = vmatprep.subr.mxu0 %v8045
        %v8047 = vand.u32 %v1008, 4294901760
        %8048 = vmatpush2.msra.mxu0 %v8047
        %v8049 = vand.u32 %v1204, 4294901760
        %8050 = vmatprep.subr.mxu0 %v8049
        %v8051 = vand.u32 %v1007, 4294901760
        %8052 = vmatpush2.msra.mxu0 %v8051
        %v8053 = vand.u32 %v1203, 4294901760
        %8054 = vmatprep.subr.mxu0 %v8053
        %v8055 = vand.u32 %v1006, 4294901760
        %8056 = vmatpush2.msra.mxu0 %v8055
        %v8057 = vand.u32 %v1202, 4294901760
        %8058 = vmatprep.subr.mxu0 %v8057
        %v8059 = vand.u32 %v1005, 4294901760
        %8060 = vmatpush2.msra.mxu0 %v8059
        %v8061 = vand.u32 %v1201, 4294901760
        %8062 = vmatprep.subr.mxu0 %v8061
        %v8063 = vand.u32 %v1004, 4294901760
        %8064 = vmatpush2.msra.mxu0 %v8063
        %v8065 = vand.u32 %v1200, 4294901760
        %8066 = vmatprep.subr.mxu0 %v8065
        %v8067 = vand.u32 %v1003, 4294901760
        %8068 = vmatpush2.msra.mxu0 %v8067
        %v8069 = vand.u32 %v1199, 4294901760
        %8070 = vmatprep.subr.mxu0 %v8069
        %v8071 = vand.u32 %v1002, 4294901760
        %8072 = vmatpush2.msra.mxu0 %v8071
        %v8073 = vand.u32 %v1198, 4294901760
        %8074 = vmatprep.subr.mxu0 %v8073
        %v8075 = vand.u32 %v1001, 4294901760
        %8076 = vmatpush2.msra.mxu0 %v8075
        %v8077 = vand.u32 %v1197, 4294901760
        %8078 = vmatprep.subr.mxu0 %v8077
        %v8079 = vand.u32 %v1000, 4294901760
        %8080 = vmatpush2.msra.mxu0 %v8079
        %v8081 = vand.u32 %v1196, 4294901760
        %8082 = vmatprep.subr.mxu0 %v8081
        %v8083 = vand.u32 %v999, 4294901760
        %8084 = vmatpush2.msra.mxu0 %v8083
        %v8085 = vand.u32 %v1195, 4294901760
        %8086 = vmatprep.subr.mxu0 %v8085
        %v8087 = vand.u32 %v998, 4294901760
        %8088 = vmatpush2.msra.mxu0 %v8087
        %v8089 = vand.u32 %v1194, 4294901760
        %8090 = vmatprep.subr.mxu0 %v8089
        %v8091 = vand.u32 %v997, 4294901760
        %8092 = vmatpush2.msra.mxu0 %v8091
        %v8093 = vand.u32 %v1193, 4294901760
        %8094 = vmatprep.subr.mxu0 %v8093
        %v8095 = vand.u32 %v996, 4294901760
        %8096 = vmatpush2.msra.mxu0 %v8095
        %v8097 = vand.u32 %v1192, 4294901760
        %8098 = vmatprep.subr.mxu0 %v8097
        %v8099 = vand.u32 %v995, 4294901760
        %8100 = vmatpush2.msra.mxu0 %v8099
        %v8101 = vand.u32 %v1191, 4294901760
        %8102 = vmatprep.subr.mxu0 %v8101
        %v8103 = vand.u32 %v994, 4294901760
        %8104 = vmatpush2.msra.mxu0 %v8103
        %v8105 = vand.u32 %v5702, 4294901760
        %v8106 = vsub.f32 %v5702, %v8105
        %v8107 = vand.u32 %v8106, 4294901760
        %v8108 = vsub.f32 %v8106, %v8107
        %v8109 = vand.u32 %v8108, 4294901760
        %8110 = vmatprep.mubr.f32.mxu0 %v8109
        %v8111 = vand.u32 %v5701, 4294901760
        %v8112 = vsub.f32 %v5701, %v8111
        %v8113 = vand.u32 %v8112, 4294901760
        %v8114 = vsub.f32 %v8112, %v8113
        %v8115 = vand.u32 %v8114, 4294901760
        %8116 = vmatmul.mubr.f32.gmra.mxu0 %v8115
        %v8117 = vpop.f32.mrf.mxu0
        %v8118 = vadd.f32 %v7853, %v8117
        %v8119 = vpop.f32.mrf.mxu0
        %v8120 = vadd.f32 %v7855, %v8119
        %v8121 = vand.u32 %v5706, 4294901760
        %v8122 = vsub.f32 %v5706, %v8121
        %v8123 = vand.u32 %v8122, 4294901760
        %v8124 = vsub.f32 %v8122, %v8123
        %v8125 = vand.u32 %v8124, 4294901760
        %8126 = vmatprep.mubr.f32.mxu0 %v8125
        %v8127 = vand.u32 %v5705, 4294901760
        %v8128 = vsub.f32 %v5705, %v8127
        %v8129 = vand.u32 %v8128, 4294901760
        %v8130 = vsub.f32 %v8128, %v8129
        %v8131 = vand.u32 %v8130, 4294901760
        %8132 = vmatmul.mubr.f32.gmra.mxu0 %v8131
        %v8133 = vpop.f32.mrf.mxu0
        %v8134 = vadd.f32 %v7861, %v8133
        %v8135 = vpop.f32.mrf.mxu0
        %v8136 = vadd.f32 %v7863, %v8135
        %v8137 = vand.u32 %v5710, 4294901760
        %v8138 = vsub.f32 %v5710, %v8137
        %v8139 = vand.u32 %v8138, 4294901760
        %v8140 = vsub.f32 %v8138, %v8139
        %v8141 = vand.u32 %v8140, 4294901760
        %8142 = vmatprep.mubr.f32.mxu0 %v8141
        %v8143 = vand.u32 %v5709, 4294901760
        %v8144 = vsub.f32 %v5709, %v8143
        %v8145 = vand.u32 %v8144, 4294901760
        %v8146 = vsub.f32 %v8144, %v8145
        %v8147 = vand.u32 %v8146, 4294901760
        %8148 = vmatmul.mubr.f32.gmra.mxu0 %v8147
        %v8149 = vpop.f32.mrf.mxu0
        %v8150 = vadd.f32 %v7869, %v8149
        %v8151 = vpop.f32.mrf.mxu0
        %v8152 = vadd.f32 %v7871, %v8151
        %v8153 = vand.u32 %v5714, 4294901760
        %v8154 = vsub.f32 %v5714, %v8153
        %v8155 = vand.u32 %v8154, 4294901760
        %v8156 = vsub.f32 %v8154, %v8155
        %v8157 = vand.u32 %v8156, 4294901760
        %8158 = vmatprep.mubr.f32.mxu0 %v8157
        %v8159 = vand.u32 %v5713, 4294901760
        %v8160 = vsub.f32 %v5713, %v8159
        %v8161 = vand.u32 %v8160, 4294901760
        %v8162 = vsub.f32 %v8160, %v8161
        %v8163 = vand.u32 %v8162, 4294901760
        %8164 = vmatmul.mubr.f32.gmra.mxu0 %v8163
        %v8165 = vpop.f32.mrf.mxu0
        %v8166 = vadd.f32 %v7877, %v8165
        %v8167 = vpop.f32.mrf.mxu0
        %v8168 = vadd.f32 %v7879, %v8167
        %v8169 = vand.u32 %v5718, 4294901760
        %v8170 = vsub.f32 %v5718, %v8169
        %v8171 = vand.u32 %v8170, 4294901760
        %v8172 = vsub.f32 %v8170, %v8171
        %v8173 = vand.u32 %v8172, 4294901760
        %8174 = vmatprep.mubr.f32.mxu0 %v8173
        %v8175 = vand.u32 %v5717, 4294901760
        %v8176 = vsub.f32 %v5717, %v8175
        %v8177 = vand.u32 %v8176, 4294901760
        %v8178 = vsub.f32 %v8176, %v8177
        %v8179 = vand.u32 %v8178, 4294901760
        %8180 = vmatmul.mubr.f32.gmra.mxu0 %v8179
        %v8181 = vpop.f32.mrf.mxu0
        %v8182 = vadd.f32 %v7885, %v8181
        %v8183 = vpop.f32.mrf.mxu0
        %v8184 = vadd.f32 %v7887, %v8183
        %v8185 = vand.u32 %v5722, 4294901760
        %v8186 = vsub.f32 %v5722, %v8185
        %v8187 = vand.u32 %v8186, 4294901760
        %v8188 = vsub.f32 %v8186, %v8187
        %v8189 = vand.u32 %v8188, 4294901760
        %8190 = vmatprep.mubr.f32.mxu0 %v8189
        %v8191 = vand.u32 %v5721, 4294901760
        %v8192 = vsub.f32 %v5721, %v8191
        %v8193 = vand.u32 %v8192, 4294901760
        %v8194 = vsub.f32 %v8192, %v8193
        %v8195 = vand.u32 %v8194, 4294901760
        %8196 = vmatmul.mubr.f32.gmra.mxu0 %v8195
        %v8197 = vpop.f32.mrf.mxu0
        %v8198 = vadd.f32 %v7893, %v8197
        %v8199 = vpop.f32.mrf.mxu0
        %v8200 = vadd.f32 %v7895, %v8199
        %v8201 = vand.u32 %v5726, 4294901760
        %v8202 = vsub.f32 %v5726, %v8201
        %v8203 = vand.u32 %v8202, 4294901760
        %v8204 = vsub.f32 %v8202, %v8203
        %v8205 = vand.u32 %v8204, 4294901760
        %8206 = vmatprep.mubr.f32.mxu0 %v8205
        %v8207 = vand.u32 %v5725, 4294901760
        %v8208 = vsub.f32 %v5725, %v8207
        %v8209 = vand.u32 %v8208, 4294901760
        %v8210 = vsub.f32 %v8208, %v8209
        %v8211 = vand.u32 %v8210, 4294901760
        %8212 = vmatmul.mubr.f32.gmra.mxu0 %v8211
        %v8213 = vpop.f32.mrf.mxu0
        %v8214 = vadd.f32 %v7901, %v8213
        %v8215 = vpop.f32.mrf.mxu0
        %v8216 = vadd.f32 %v7903, %v8215
        %v8217 = vand.u32 %v5730, 4294901760
        %v8218 = vsub.f32 %v5730, %v8217
        %v8219 = vand.u32 %v8218, 4294901760
        %v8220 = vsub.f32 %v8218, %v8219
        %v8221 = vand.u32 %v8220, 4294901760
        %8222 = vmatprep.mubr.f32.mxu0 %v8221
        %v8223 = vand.u32 %v5729, 4294901760
        %v8224 = vsub.f32 %v5729, %v8223
        %v8225 = vand.u32 %v8224, 4294901760
        %v8226 = vsub.f32 %v8224, %v8225
        %v8227 = vand.u32 %v8226, 4294901760
        %8228 = vmatmul.mubr.f32.gmra.mxu0 %v8227
        %v8229 = vpop.f32.mrf.mxu0
        %v8230 = vadd.f32 %v7909, %v8229
        %v8231 = vpop.f32.mrf.mxu0
        %v8232 = vadd.f32 %v7911, %v8231
        %v8233 = vand.u32 %v5734, 4294901760
        %v8234 = vsub.f32 %v5734, %v8233
        %v8235 = vand.u32 %v8234, 4294901760
        %v8236 = vsub.f32 %v8234, %v8235
        %v8237 = vand.u32 %v8236, 4294901760
        %8238 = vmatprep.mubr.f32.mxu0 %v8237
        %v8239 = vand.u32 %v5733, 4294901760
        %v8240 = vsub.f32 %v5733, %v8239
        %v8241 = vand.u32 %v8240, 4294901760
        %v8242 = vsub.f32 %v8240, %v8241
        %v8243 = vand.u32 %v8242, 4294901760
        %8244 = vmatmul.mubr.f32.gmra.mxu0 %v8243
        %v8245 = vpop.f32.mrf.mxu0
        %v8246 = vadd.f32 %v7917, %v8245
        %v8247 = vpop.f32.mrf.mxu0
        %v8248 = vadd.f32 %v7919, %v8247
        %v8249 = vand.u32 %v5738, 4294901760
        %v8250 = vsub.f32 %v5738, %v8249
        %v8251 = vand.u32 %v8250, 4294901760
        %v8252 = vsub.f32 %v8250, %v8251
        %v8253 = vand.u32 %v8252, 4294901760
        %8254 = vmatprep.mubr.f32.mxu0 %v8253
        %v8255 = vand.u32 %v5737, 4294901760
        %v8256 = vsub.f32 %v5737, %v8255
        %v8257 = vand.u32 %v8256, 4294901760
        %v8258 = vsub.f32 %v8256, %v8257
        %v8259 = vand.u32 %v8258, 4294901760
        %8260 = vmatmul.mubr.f32.gmra.mxu0 %v8259
        %v8261 = vpop.f32.mrf.mxu0
        %v8262 = vadd.f32 %v7925, %v8261
        %v8263 = vpop.f32.mrf.mxu0
        %v8264 = vadd.f32 %v7927, %v8263
        %v8265 = vand.u32 %v5742, 4294901760
        %v8266 = vsub.f32 %v5742, %v8265
        %v8267 = vand.u32 %v8266, 4294901760
        %v8268 = vsub.f32 %v8266, %v8267
        %v8269 = vand.u32 %v8268, 4294901760
        %8270 = vmatprep.mubr.f32.mxu0 %v8269
        %v8271 = vand.u32 %v5741, 4294901760
        %v8272 = vsub.f32 %v5741, %v8271
        %v8273 = vand.u32 %v8272, 4294901760
        %v8274 = vsub.f32 %v8272, %v8273
        %v8275 = vand.u32 %v8274, 4294901760
        %8276 = vmatmul.mubr.f32.gmra.mxu0 %v8275
        %v8277 = vpop.f32.mrf.mxu0
        %v8278 = vadd.f32 %v7933, %v8277
        %v8279 = vpop.f32.mrf.mxu0
        %v8280 = vadd.f32 %v7935, %v8279
        %v8281 = vand.u32 %v5746, 4294901760
        %v8282 = vsub.f32 %v5746, %v8281
        %v8283 = vand.u32 %v8282, 4294901760
        %v8284 = vsub.f32 %v8282, %v8283
        %v8285 = vand.u32 %v8284, 4294901760
        %8286 = vmatprep.mubr.f32.mxu0 %v8285
        %v8287 = vand.u32 %v5745, 4294901760
        %v8288 = vsub.f32 %v5745, %v8287
        %v8289 = vand.u32 %v8288, 4294901760
        %v8290 = vsub.f32 %v8288, %v8289
        %v8291 = vand.u32 %v8290, 4294901760
        %8292 = vmatmul.mubr.f32.gmra.mxu0 %v8291
        %v8293 = vpop.f32.mrf.mxu0
        %v8294 = vadd.f32 %v7941, %v8293
        %v8295 = vpop.f32.mrf.mxu0
        %v8296 = vadd.f32 %v7943, %v8295
        %v8297 = vand.u32 %v5750, 4294901760
        %v8298 = vsub.f32 %v5750, %v8297
        %v8299 = vand.u32 %v8298, 4294901760
        %v8300 = vsub.f32 %v8298, %v8299
        %v8301 = vand.u32 %v8300, 4294901760
        %8302 = vmatprep.mubr.f32.mxu0 %v8301
        %v8303 = vand.u32 %v5749, 4294901760
        %v8304 = vsub.f32 %v5749, %v8303
        %v8305 = vand.u32 %v8304, 4294901760
        %v8306 = vsub.f32 %v8304, %v8305
        %v8307 = vand.u32 %v8306, 4294901760
        %8308 = vmatmul.mubr.f32.gmra.mxu0 %v8307
        %v8309 = vpop.f32.mrf.mxu0
        %v8310 = vadd.f32 %v7949, %v8309
        %v8311 = vpop.f32.mrf.mxu0
        %v8312 = vadd.f32 %v7951, %v8311
        %v8313 = vand.u32 %v5754, 4294901760
        %v8314 = vsub.f32 %v5754, %v8313
        %v8315 = vand.u32 %v8314, 4294901760
        %v8316 = vsub.f32 %v8314, %v8315
        %v8317 = vand.u32 %v8316, 4294901760
        %8318 = vmatprep.mubr.f32.mxu0 %v8317
        %v8319 = vand.u32 %v5753, 4294901760
        %v8320 = vsub.f32 %v5753, %v8319
        %v8321 = vand.u32 %v8320, 4294901760
        %v8322 = vsub.f32 %v8320, %v8321
        %v8323 = vand.u32 %v8322, 4294901760
        %8324 = vmatmul.mubr.f32.gmra.mxu0 %v8323
        %v8325 = vpop.f32.mrf.mxu0
        %v8326 = vadd.f32 %v7957, %v8325
        %v8327 = vpop.f32.mrf.mxu0
        %v8328 = vadd.f32 %v7959, %v8327
        %v8329 = vand.u32 %v5758, 4294901760
        %v8330 = vsub.f32 %v5758, %v8329
        %v8331 = vand.u32 %v8330, 4294901760
        %v8332 = vsub.f32 %v8330, %v8331
        %v8333 = vand.u32 %v8332, 4294901760
        %8334 = vmatprep.mubr.f32.mxu0 %v8333
        %v8335 = vand.u32 %v5757, 4294901760
        %v8336 = vsub.f32 %v5757, %v8335
        %v8337 = vand.u32 %v8336, 4294901760
        %v8338 = vsub.f32 %v8336, %v8337
        %v8339 = vand.u32 %v8338, 4294901760
        %8340 = vmatmul.mubr.f32.gmra.mxu0 %v8339
        %v8341 = vpop.f32.mrf.mxu0
        %v8342 = vadd.f32 %v7965, %v8341
        %v8343 = vpop.f32.mrf.mxu0
        %v8344 = vadd.f32 %v7967, %v8343
        %v8345 = vand.u32 %v5762, 4294901760
        %v8346 = vsub.f32 %v5762, %v8345
        %v8347 = vand.u32 %v8346, 4294901760
        %v8348 = vsub.f32 %v8346, %v8347
        %v8349 = vand.u32 %v8348, 4294901760
        %8350 = vmatprep.mubr.f32.mxu0 %v8349
        %v8351 = vand.u32 %v5761, 4294901760
        %v8352 = vsub.f32 %v5761, %v8351
        %v8353 = vand.u32 %v8352, 4294901760
        %v8354 = vsub.f32 %v8352, %v8353
        %v8355 = vand.u32 %v8354, 4294901760
        %8356 = vmatmul.mubr.f32.gmra.mxu0 %v8355
        %v8357 = vpop.f32.mrf.mxu0
        %v8358 = vadd.f32 %v7973, %v8357
        %v8359 = vpop.f32.mrf.mxu0
        %v8360 = vadd.f32 %v7975, %v8359
        %8361 = vdwg.mxu0
        %v8362 = vand.u32 %v1190, 4294901760
        %v8363 = vsub.f32 %v1190, %v8362
        %v8364 = vand.u32 %v8363, 4294901760
        %v8365 = vsub.f32 %v8363, %v8364
        %v8366 = vand.u32 %v8365, 4294901760
        %8367 = vmatprep.subr.mxu0 %v8366
        %v8368 = vand.u32 %v993, 4294901760
        %v8369 = vsub.f32 %v993, %v8368
        %v8370 = vand.u32 %v8369, 4294901760
        %v8371 = vsub.f32 %v8369, %v8370
        %v8372 = vand.u32 %v8371, 4294901760
        %8373 = vmatpush1.msra.mxu0 %v8372
        %v8374 = vand.u32 %v1189, 4294901760
        %v8375 = vsub.f32 %v1189, %v8374
        %v8376 = vand.u32 %v8375, 4294901760
        %v8377 = vsub.f32 %v8375, %v8376
        %v8378 = vand.u32 %v8377, 4294901760
        %8379 = vmatprep.subr.mxu0 %v8378
        %v8380 = vand.u32 %v992, 4294901760
        %v8381 = vsub.f32 %v992, %v8380
        %v8382 = vand.u32 %v8381, 4294901760
        %v8383 = vsub.f32 %v8381, %v8382
        %v8384 = vand.u32 %v8383, 4294901760
        %8385 = vmatpush1.msra.mxu0 %v8384
        %v8386 = vand.u32 %v1188, 4294901760
        %v8387 = vsub.f32 %v1188, %v8386
        %v8388 = vand.u32 %v8387, 4294901760
        %v8389 = vsub.f32 %v8387, %v8388
        %v8390 = vand.u32 %v8389, 4294901760
        %8391 = vmatprep.subr.mxu0 %v8390
        %v8392 = vand.u32 %v991, 4294901760
        %v8393 = vsub.f32 %v991, %v8392
        %v8394 = vand.u32 %v8393, 4294901760
        %v8395 = vsub.f32 %v8393, %v8394
        %v8396 = vand.u32 %v8395, 4294901760
        %8397 = vmatpush1.msra.mxu0 %v8396
        %v8398 = vand.u32 %v1187, 4294901760
        %v8399 = vsub.f32 %v1187, %v8398
        %v8400 = vand.u32 %v8399, 4294901760
        %v8401 = vsub.f32 %v8399, %v8400
        %v8402 = vand.u32 %v8401, 4294901760
        %8403 = vmatprep.subr.mxu0 %v8402
        %v8404 = vand.u32 %v990, 4294901760
        %v8405 = vsub.f32 %v990, %v8404
        %v8406 = vand.u32 %v8405, 4294901760
        %v8407 = vsub.f32 %v8405, %v8406
        %v8408 = vand.u32 %v8407, 4294901760
        %8409 = vmatpush1.msra.mxu0 %v8408
        %v8410 = vand.u32 %v1186, 4294901760
        %v8411 = vsub.f32 %v1186, %v8410
        %v8412 = vand.u32 %v8411, 4294901760
        %v8413 = vsub.f32 %v8411, %v8412
        %v8414 = vand.u32 %v8413, 4294901760
        %8415 = vmatprep.subr.mxu0 %v8414
        %v8416 = vand.u32 %v989, 4294901760
        %v8417 = vsub.f32 %v989, %v8416
        %v8418 = vand.u32 %v8417, 4294901760
        %v8419 = vsub.f32 %v8417, %v8418
        %v8420 = vand.u32 %v8419, 4294901760
        %8421 = vmatpush1.msra.mxu0 %v8420
        %v8422 = vand.u32 %v1185, 4294901760
        %v8423 = vsub.f32 %v1185, %v8422
        %v8424 = vand.u32 %v8423, 4294901760
        %v8425 = vsub.f32 %v8423, %v8424
        %v8426 = vand.u32 %v8425, 4294901760
        %8427 = vmatprep.subr.mxu0 %v8426
        %v8428 = vand.u32 %v988, 4294901760
        %v8429 = vsub.f32 %v988, %v8428
        %v8430 = vand.u32 %v8429, 4294901760
        %v8431 = vsub.f32 %v8429, %v8430
        %v8432 = vand.u32 %v8431, 4294901760
        %8433 = vmatpush1.msra.mxu0 %v8432
        %v8434 = vand.u32 %v1184, 4294901760
        %v8435 = vsub.f32 %v1184, %v8434
        %v8436 = vand.u32 %v8435, 4294901760
        %v8437 = vsub.f32 %v8435, %v8436
        %v8438 = vand.u32 %v8437, 4294901760
        %8439 = vmatprep.subr.mxu0 %v8438
        %v8440 = vand.u32 %v987, 4294901760
        %v8441 = vsub.f32 %v987, %v8440
        %v8442 = vand.u32 %v8441, 4294901760
        %v8443 = vsub.f32 %v8441, %v8442
        %v8444 = vand.u32 %v8443, 4294901760
        %8445 = vmatpush1.msra.mxu0 %v8444
        %v8446 = vand.u32 %v1183, 4294901760
        %v8447 = vsub.f32 %v1183, %v8446
        %v8448 = vand.u32 %v8447, 4294901760
        %v8449 = vsub.f32 %v8447, %v8448
        %v8450 = vand.u32 %v8449, 4294901760
        %8451 = vmatprep.subr.mxu0 %v8450
        %v8452 = vand.u32 %v986, 4294901760
        %v8453 = vsub.f32 %v986, %v8452
        %v8454 = vand.u32 %v8453, 4294901760
        %v8455 = vsub.f32 %v8453, %v8454
        %v8456 = vand.u32 %v8455, 4294901760
        %8457 = vmatpush1.msra.mxu0 %v8456
        %v8458 = vand.u32 %v1182, 4294901760
        %v8459 = vsub.f32 %v1182, %v8458
        %v8460 = vand.u32 %v8459, 4294901760
        %v8461 = vsub.f32 %v8459, %v8460
        %v8462 = vand.u32 %v8461, 4294901760
        %8463 = vmatprep.subr.mxu0 %v8462
        %v8464 = vand.u32 %v985, 4294901760
        %v8465 = vsub.f32 %v985, %v8464
        %v8466 = vand.u32 %v8465, 4294901760
        %v8467 = vsub.f32 %v8465, %v8466
        %v8468 = vand.u32 %v8467, 4294901760
        %8469 = vmatpush1.msra.mxu0 %v8468
        %v8470 = vand.u32 %v1181, 4294901760
        %v8471 = vsub.f32 %v1181, %v8470
        %v8472 = vand.u32 %v8471, 4294901760
        %v8473 = vsub.f32 %v8471, %v8472
        %v8474 = vand.u32 %v8473, 4294901760
        %8475 = vmatprep.subr.mxu0 %v8474
        %v8476 = vand.u32 %v984, 4294901760
        %v8477 = vsub.f32 %v984, %v8476
        %v8478 = vand.u32 %v8477, 4294901760
        %v8479 = vsub.f32 %v8477, %v8478
        %v8480 = vand.u32 %v8479, 4294901760
        %8481 = vmatpush1.msra.mxu0 %v8480
        %v8482 = vand.u32 %v1180, 4294901760
        %v8483 = vsub.f32 %v1180, %v8482
        %v8484 = vand.u32 %v8483, 4294901760
        %v8485 = vsub.f32 %v8483, %v8484
        %v8486 = vand.u32 %v8485, 4294901760
        %8487 = vmatprep.subr.mxu0 %v8486
        %v8488 = vand.u32 %v983, 4294901760
        %v8489 = vsub.f32 %v983, %v8488
        %v8490 = vand.u32 %v8489, 4294901760
        %v8491 = vsub.f32 %v8489, %v8490
        %v8492 = vand.u32 %v8491, 4294901760
        %8493 = vmatpush1.msra.mxu0 %v8492
        %v8494 = vand.u32 %v1179, 4294901760
        %v8495 = vsub.f32 %v1179, %v8494
        %v8496 = vand.u32 %v8495, 4294901760
        %v8497 = vsub.f32 %v8495, %v8496
        %v8498 = vand.u32 %v8497, 4294901760
        %8499 = vmatprep.subr.mxu0 %v8498
        %v8500 = vand.u32 %v982, 4294901760
        %v8501 = vsub.f32 %v982, %v8500
        %v8502 = vand.u32 %v8501, 4294901760
        %v8503 = vsub.f32 %v8501, %v8502
        %v8504 = vand.u32 %v8503, 4294901760
        %8505 = vmatpush1.msra.mxu0 %v8504
        %v8506 = vand.u32 %v1178, 4294901760
        %v8507 = vsub.f32 %v1178, %v8506
        %v8508 = vand.u32 %v8507, 4294901760
        %v8509 = vsub.f32 %v8507, %v8508
        %v8510 = vand.u32 %v8509, 4294901760
        %8511 = vmatprep.subr.mxu0 %v8510
        %v8512 = vand.u32 %v981, 4294901760
        %v8513 = vsub.f32 %v981, %v8512
        %v8514 = vand.u32 %v8513, 4294901760
        %v8515 = vsub.f32 %v8513, %v8514
        %v8516 = vand.u32 %v8515, 4294901760
        %8517 = vmatpush1.msra.mxu0 %v8516
        %v8518 = vand.u32 %v1177, 4294901760
        %v8519 = vsub.f32 %v1177, %v8518
        %v8520 = vand.u32 %v8519, 4294901760
        %v8521 = vsub.f32 %v8519, %v8520
        %v8522 = vand.u32 %v8521, 4294901760
        %8523 = vmatprep.subr.mxu0 %v8522
        %v8524 = vand.u32 %v980, 4294901760
        %v8525 = vsub.f32 %v980, %v8524
        %v8526 = vand.u32 %v8525, 4294901760
        %v8527 = vsub.f32 %v8525, %v8526
        %v8528 = vand.u32 %v8527, 4294901760
        %8529 = vmatpush1.msra.mxu0 %v8528
        %v8530 = vand.u32 %v1176, 4294901760
        %v8531 = vsub.f32 %v1176, %v8530
        %v8532 = vand.u32 %v8531, 4294901760
        %v8533 = vsub.f32 %v8531, %v8532
        %v8534 = vand.u32 %v8533, 4294901760
        %8535 = vmatprep.subr.mxu0 %v8534
        %v8536 = vand.u32 %v979, 4294901760
        %v8537 = vsub.f32 %v979, %v8536
        %v8538 = vand.u32 %v8537, 4294901760
        %v8539 = vsub.f32 %v8537, %v8538
        %v8540 = vand.u32 %v8539, 4294901760
        %8541 = vmatpush1.msra.mxu0 %v8540
        %v8542 = vand.u32 %v1175, 4294901760
        %v8543 = vsub.f32 %v1175, %v8542
        %v8544 = vand.u32 %v8543, 4294901760
        %v8545 = vsub.f32 %v8543, %v8544
        %v8546 = vand.u32 %v8545, 4294901760
        %8547 = vmatprep.subr.mxu0 %v8546
        %v8548 = vand.u32 %v978, 4294901760
        %v8549 = vsub.f32 %v978, %v8548
        %v8550 = vand.u32 %v8549, 4294901760
        %v8551 = vsub.f32 %v8549, %v8550
        %v8552 = vand.u32 %v8551, 4294901760
        %8553 = vmatpush1.msra.mxu0 %v8552
        %v8554 = vand.u32 %v1206, 4294901760
        %v8555 = vsub.f32 %v1206, %v8554
        %v8556 = vand.u32 %v8555, 4294901760
        %v8557 = vsub.f32 %v8555, %v8556
        %v8558 = vand.u32 %v8557, 4294901760
        %8559 = vmatprep.subr.mxu0 %v8558
        %v8560 = vand.u32 %v1009, 4294901760
        %v8561 = vsub.f32 %v1009, %v8560
        %v8562 = vand.u32 %v8561, 4294901760
        %v8563 = vsub.f32 %v8561, %v8562
        %v8564 = vand.u32 %v8563, 4294901760
        %8565 = vmatpush2.msra.mxu0 %v8564
        %v8566 = vand.u32 %v1205, 4294901760
        %v8567 = vsub.f32 %v1205, %v8566
        %v8568 = vand.u32 %v8567, 4294901760
        %v8569 = vsub.f32 %v8567, %v8568
        %v8570 = vand.u32 %v8569, 4294901760
        %8571 = vmatprep.subr.mxu0 %v8570
        %v8572 = vand.u32 %v1008, 4294901760
        %v8573 = vsub.f32 %v1008, %v8572
        %v8574 = vand.u32 %v8573, 4294901760
        %v8575 = vsub.f32 %v8573, %v8574
        %v8576 = vand.u32 %v8575, 4294901760
        %8577 = vmatpush2.msra.mxu0 %v8576
        %v8578 = vand.u32 %v1204, 4294901760
        %v8579 = vsub.f32 %v1204, %v8578
        %v8580 = vand.u32 %v8579, 4294901760
        %v8581 = vsub.f32 %v8579, %v8580
        %v8582 = vand.u32 %v8581, 4294901760
        %8583 = vmatprep.subr.mxu0 %v8582
        %v8584 = vand.u32 %v1007, 4294901760
        %v8585 = vsub.f32 %v1007, %v8584
        %v8586 = vand.u32 %v8585, 4294901760
        %v8587 = vsub.f32 %v8585, %v8586
        %v8588 = vand.u32 %v8587, 4294901760
        %8589 = vmatpush2.msra.mxu0 %v8588
        %v8590 = vand.u32 %v1203, 4294901760
        %v8591 = vsub.f32 %v1203, %v8590
        %v8592 = vand.u32 %v8591, 4294901760
        %v8593 = vsub.f32 %v8591, %v8592
        %v8594 = vand.u32 %v8593, 4294901760
        %8595 = vmatprep.subr.mxu0 %v8594
        %v8596 = vand.u32 %v1006, 4294901760
        %v8597 = vsub.f32 %v1006, %v8596
        %v8598 = vand.u32 %v8597, 4294901760
        %v8599 = vsub.f32 %v8597, %v8598
        %v8600 = vand.u32 %v8599, 4294901760
        %8601 = vmatpush2.msra.mxu0 %v8600
        %v8602 = vand.u32 %v1202, 4294901760
        %v8603 = vsub.f32 %v1202, %v8602
        %v8604 = vand.u32 %v8603, 4294901760
        %v8605 = vsub.f32 %v8603, %v8604
        %v8606 = vand.u32 %v8605, 4294901760
        %8607 = vmatprep.subr.mxu0 %v8606
        %v8608 = vand.u32 %v1005, 4294901760
        %v8609 = vsub.f32 %v1005, %v8608
        %v8610 = vand.u32 %v8609, 4294901760
        %v8611 = vsub.f32 %v8609, %v8610
        %v8612 = vand.u32 %v8611, 4294901760
        %8613 = vmatpush2.msra.mxu0 %v8612
        %v8614 = vand.u32 %v1201, 4294901760
        %v8615 = vsub.f32 %v1201, %v8614
        %v8616 = vand.u32 %v8615, 4294901760
        %v8617 = vsub.f32 %v8615, %v8616
        %v8618 = vand.u32 %v8617, 4294901760
        %8619 = vmatprep.subr.mxu0 %v8618
        %v8620 = vand.u32 %v1004, 4294901760
        %v8621 = vsub.f32 %v1004, %v8620
        %v8622 = vand.u32 %v8621, 4294901760
        %v8623 = vsub.f32 %v8621, %v8622
        %v8624 = vand.u32 %v8623, 4294901760
        %8625 = vmatpush2.msra.mxu0 %v8624
        %v8626 = vand.u32 %v1200, 4294901760
        %v8627 = vsub.f32 %v1200, %v8626
        %v8628 = vand.u32 %v8627, 4294901760
        %v8629 = vsub.f32 %v8627, %v8628
        %v8630 = vand.u32 %v8629, 4294901760
        %8631 = vmatprep.subr.mxu0 %v8630
        %v8632 = vand.u32 %v1003, 4294901760
        %v8633 = vsub.f32 %v1003, %v8632
        %v8634 = vand.u32 %v8633, 4294901760
        %v8635 = vsub.f32 %v8633, %v8634
        %v8636 = vand.u32 %v8635, 4294901760
        %8637 = vmatpush2.msra.mxu0 %v8636
        %v8638 = vand.u32 %v1199, 4294901760
        %v8639 = vsub.f32 %v1199, %v8638
        %v8640 = vand.u32 %v8639, 4294901760
        %v8641 = vsub.f32 %v8639, %v8640
        %v8642 = vand.u32 %v8641, 4294901760
        %8643 = vmatprep.subr.mxu0 %v8642
        %v8644 = vand.u32 %v1002, 4294901760
        %v8645 = vsub.f32 %v1002, %v8644
        %v8646 = vand.u32 %v8645, 4294901760
        %v8647 = vsub.f32 %v8645, %v8646
        %v8648 = vand.u32 %v8647, 4294901760
        %8649 = vmatpush2.msra.mxu0 %v8648
        %v8650 = vand.u32 %v1198, 4294901760
        %v8651 = vsub.f32 %v1198, %v8650
        %v8652 = vand.u32 %v8651, 4294901760
        %v8653 = vsub.f32 %v8651, %v8652
        %v8654 = vand.u32 %v8653, 4294901760
        %8655 = vmatprep.subr.mxu0 %v8654
        %v8656 = vand.u32 %v1001, 4294901760
        %v8657 = vsub.f32 %v1001, %v8656
        %v8658 = vand.u32 %v8657, 4294901760
        %v8659 = vsub.f32 %v8657, %v8658
        %v8660 = vand.u32 %v8659, 4294901760
        %8661 = vmatpush2.msra.mxu0 %v8660
        %v8662 = vand.u32 %v1197, 4294901760
        %v8663 = vsub.f32 %v1197, %v8662
        %v8664 = vand.u32 %v8663, 4294901760
        %v8665 = vsub.f32 %v8663, %v8664
        %v8666 = vand.u32 %v8665, 4294901760
        %8667 = vmatprep.subr.mxu0 %v8666
        %v8668 = vand.u32 %v1000, 4294901760
        %v8669 = vsub.f32 %v1000, %v8668
        %v8670 = vand.u32 %v8669, 4294901760
        %v8671 = vsub.f32 %v8669, %v8670
        %v8672 = vand.u32 %v8671, 4294901760
        %8673 = vmatpush2.msra.mxu0 %v8672
        %v8674 = vand.u32 %v1196, 4294901760
        %v8675 = vsub.f32 %v1196, %v8674
        %v8676 = vand.u32 %v8675, 4294901760
        %v8677 = vsub.f32 %v8675, %v8676
        %v8678 = vand.u32 %v8677, 4294901760
        %8679 = vmatprep.subr.mxu0 %v8678
        %v8680 = vand.u32 %v999, 4294901760
        %v8681 = vsub.f32 %v999, %v8680
        %v8682 = vand.u32 %v8681, 4294901760
        %v8683 = vsub.f32 %v8681, %v8682
        %v8684 = vand.u32 %v8683, 4294901760
        %8685 = vmatpush2.msra.mxu0 %v8684
        %v8686 = vand.u32 %v1195, 4294901760
        %v8687 = vsub.f32 %v1195, %v8686
        %v8688 = vand.u32 %v8687, 4294901760
        %v8689 = vsub.f32 %v8687, %v8688
        %v8690 = vand.u32 %v8689, 4294901760
        %8691 = vmatprep.subr.mxu0 %v8690
        %v8692 = vand.u32 %v998, 4294901760
        %v8693 = vsub.f32 %v998, %v8692
        %v8694 = vand.u32 %v8693, 4294901760
        %v8695 = vsub.f32 %v8693, %v8694
        %v8696 = vand.u32 %v8695, 4294901760
        %8697 = vmatpush2.msra.mxu0 %v8696
        %v8698 = vand.u32 %v1194, 4294901760
        %v8699 = vsub.f32 %v1194, %v8698
        %v8700 = vand.u32 %v8699, 4294901760
        %v8701 = vsub.f32 %v8699, %v8700
        %v8702 = vand.u32 %v8701, 4294901760
        %8703 = vmatprep.subr.mxu0 %v8702
        %v8704 = vand.u32 %v997, 4294901760
        %v8705 = vsub.f32 %v997, %v8704
        %v8706 = vand.u32 %v8705, 4294901760
        %v8707 = vsub.f32 %v8705, %v8706
        %v8708 = vand.u32 %v8707, 4294901760
        %8709 = vmatpush2.msra.mxu0 %v8708
        %v8710 = vand.u32 %v1193, 4294901760
        %v8711 = vsub.f32 %v1193, %v8710
        %v8712 = vand.u32 %v8711, 4294901760
        %v8713 = vsub.f32 %v8711, %v8712
        %v8714 = vand.u32 %v8713, 4294901760
        %8715 = vmatprep.subr.mxu0 %v8714
        %v8716 = vand.u32 %v996, 4294901760
        %v8717 = vsub.f32 %v996, %v8716
        %v8718 = vand.u32 %v8717, 4294901760
        %v8719 = vsub.f32 %v8717, %v8718
        %v8720 = vand.u32 %v8719, 4294901760
        %8721 = vmatpush2.msra.mxu0 %v8720
        %v8722 = vand.u32 %v1192, 4294901760
        %v8723 = vsub.f32 %v1192, %v8722
        %v8724 = vand.u32 %v8723, 4294901760
        %v8725 = vsub.f32 %v8723, %v8724
        %v8726 = vand.u32 %v8725, 4294901760
        %8727 = vmatprep.subr.mxu0 %v8726
        %v8728 = vand.u32 %v995, 4294901760
        %v8729 = vsub.f32 %v995, %v8728
        %v8730 = vand.u32 %v8729, 4294901760
        %v8731 = vsub.f32 %v8729, %v8730
        %v8732 = vand.u32 %v8731, 4294901760
        %8733 = vmatpush2.msra.mxu0 %v8732
        %v8734 = vand.u32 %v1191, 4294901760
        %v8735 = vsub.f32 %v1191, %v8734
        %v8736 = vand.u32 %v8735, 4294901760
        %v8737 = vsub.f32 %v8735, %v8736
        %v8738 = vand.u32 %v8737, 4294901760
        %8739 = vmatprep.subr.mxu0 %v8738
        %v8740 = vand.u32 %v994, 4294901760
        %v8741 = vsub.f32 %v994, %v8740
        %v8742 = vand.u32 %v8741, 4294901760
        %v8743 = vsub.f32 %v8741, %v8742
        %v8744 = vand.u32 %v8743, 4294901760
        %8745 = vmatpush2.msra.mxu0 %v8744
        %v8746 = vand.u32 %v5702, 4294901760
        %8747 = vmatprep.mubr.f32.mxu0 %v8746
        %v8748 = vand.u32 %v5701, 4294901760
        %8749 = vmatmul.mubr.f32.gmra.mxu0 %v8748
        %v8750 = vpop.f32.mrf.mxu0
        %v8751 = vadd.f32 %v8118, %v8750
        %v8752 = vpop.f32.mrf.mxu0
        %v8753 = vadd.f32 %v8120, %v8752
        %v8754 = vand.u32 %v5706, 4294901760
        %8755 = vmatprep.mubr.f32.mxu0 %v8754
        %v8756 = vand.u32 %v5705, 4294901760
        %8757 = vmatmul.mubr.f32.gmra.mxu0 %v8756
        %v8758 = vpop.f32.mrf.mxu0
        %v8759 = vadd.f32 %v8134, %v8758
        %v8760 = vpop.f32.mrf.mxu0
        %v8761 = vadd.f32 %v8136, %v8760
        %v8762 = vand.u32 %v5710, 4294901760
        %8763 = vmatprep.mubr.f32.mxu0 %v8762
        %v8764 = vand.u32 %v5709, 4294901760
        %8765 = vmatmul.mubr.f32.gmra.mxu0 %v8764
        %v8766 = vpop.f32.mrf.mxu0
        %v8767 = vadd.f32 %v8150, %v8766
        %v8768 = vpop.f32.mrf.mxu0
        %v8769 = vadd.f32 %v8152, %v8768
        %v8770 = vand.u32 %v5714, 4294901760
        %8771 = vmatprep.mubr.f32.mxu0 %v8770
        %v8772 = vand.u32 %v5713, 4294901760
        %8773 = vmatmul.mubr.f32.gmra.mxu0 %v8772
        %v8774 = vpop.f32.mrf.mxu0
        %v8775 = vadd.f32 %v8166, %v8774
        %v8776 = vpop.f32.mrf.mxu0
        %v8777 = vadd.f32 %v8168, %v8776
        %v8778 = vand.u32 %v5718, 4294901760
        %8779 = vmatprep.mubr.f32.mxu0 %v8778
        %v8780 = vand.u32 %v5717, 4294901760
        %8781 = vmatmul.mubr.f32.gmra.mxu0 %v8780
        %v8782 = vpop.f32.mrf.mxu0
        %v8783 = vadd.f32 %v8182, %v8782
        %v8784 = vpop.f32.mrf.mxu0
        %v8785 = vadd.f32 %v8184, %v8784
        %v8786 = vand.u32 %v5722, 4294901760
        %8787 = vmatprep.mubr.f32.mxu0 %v8786
        %v8788 = vand.u32 %v5721, 4294901760
        %8789 = vmatmul.mubr.f32.gmra.mxu0 %v8788
        %v8790 = vpop.f32.mrf.mxu0
        %v8791 = vadd.f32 %v8198, %v8790
        %v8792 = vpop.f32.mrf.mxu0
        %v8793 = vadd.f32 %v8200, %v8792
        %v8794 = vand.u32 %v5726, 4294901760
        %8795 = vmatprep.mubr.f32.mxu0 %v8794
        %v8796 = vand.u32 %v5725, 4294901760
        %8797 = vmatmul.mubr.f32.gmra.mxu0 %v8796
        %v8798 = vpop.f32.mrf.mxu0
        %v8799 = vadd.f32 %v8214, %v8798
        %v8800 = vpop.f32.mrf.mxu0
        %v8801 = vadd.f32 %v8216, %v8800
        %v8802 = vand.u32 %v5730, 4294901760
        %8803 = vmatprep.mubr.f32.mxu0 %v8802
        %v8804 = vand.u32 %v5729, 4294901760
        %8805 = vmatmul.mubr.f32.gmra.mxu0 %v8804
        %v8806 = vpop.f32.mrf.mxu0
        %v8807 = vadd.f32 %v8230, %v8806
        %v8808 = vpop.f32.mrf.mxu0
        %v8809 = vadd.f32 %v8232, %v8808
        %v8810 = vand.u32 %v5734, 4294901760
        %8811 = vmatprep.mubr.f32.mxu0 %v8810
        %v8812 = vand.u32 %v5733, 4294901760
        %8813 = vmatmul.mubr.f32.gmra.mxu0 %v8812
        %v8814 = vpop.f32.mrf.mxu0
        %v8815 = vadd.f32 %v8246, %v8814
        %v8816 = vpop.f32.mrf.mxu0
        %v8817 = vadd.f32 %v8248, %v8816
        %v8818 = vand.u32 %v5738, 4294901760
        %8819 = vmatprep.mubr.f32.mxu0 %v8818
        %v8820 = vand.u32 %v5737, 4294901760
        %8821 = vmatmul.mubr.f32.gmra.mxu0 %v8820
        %v8822 = vpop.f32.mrf.mxu0
        %v8823 = vadd.f32 %v8262, %v8822
        %v8824 = vpop.f32.mrf.mxu0
        %v8825 = vadd.f32 %v8264, %v8824
        %v8826 = vand.u32 %v5742, 4294901760
        %8827 = vmatprep.mubr.f32.mxu0 %v8826
        %v8828 = vand.u32 %v5741, 4294901760
        %8829 = vmatmul.mubr.f32.gmra.mxu0 %v8828
        %v8830 = vpop.f32.mrf.mxu0
        %v8831 = vadd.f32 %v8278, %v8830
        %v8832 = vpop.f32.mrf.mxu0
        %v8833 = vadd.f32 %v8280, %v8832
        %v8834 = vand.u32 %v5746, 4294901760
        %8835 = vmatprep.mubr.f32.mxu0 %v8834
        %v8836 = vand.u32 %v5745, 4294901760
        %8837 = vmatmul.mubr.f32.gmra.mxu0 %v8836
        %v8838 = vpop.f32.mrf.mxu0
        %v8839 = vadd.f32 %v8294, %v8838
        %v8840 = vpop.f32.mrf.mxu0
        %v8841 = vadd.f32 %v8296, %v8840
        %v8842 = vand.u32 %v5750, 4294901760
        %8843 = vmatprep.mubr.f32.mxu0 %v8842
        %v8844 = vand.u32 %v5749, 4294901760
        %8845 = vmatmul.mubr.f32.gmra.mxu0 %v8844
        %v8846 = vpop.f32.mrf.mxu0
        %v8847 = vadd.f32 %v8310, %v8846
        %v8848 = vpop.f32.mrf.mxu0
        %v8849 = vadd.f32 %v8312, %v8848
        %v8850 = vand.u32 %v5754, 4294901760
        %8851 = vmatprep.mubr.f32.mxu0 %v8850
        %v8852 = vand.u32 %v5753, 4294901760
        %8853 = vmatmul.mubr.f32.gmra.mxu0 %v8852
        %v8854 = vpop.f32.mrf.mxu0
        %v8855 = vadd.f32 %v8326, %v8854
        %v8856 = vpop.f32.mrf.mxu0
        %v8857 = vadd.f32 %v8328, %v8856
        %v8858 = vand.u32 %v5758, 4294901760
        %8859 = vmatprep.mubr.f32.mxu0 %v8858
        %v8860 = vand.u32 %v5757, 4294901760
        %8861 = vmatmul.mubr.f32.gmra.mxu0 %v8860
        %v8862 = vpop.f32.mrf.mxu0
        %v8863 = vadd.f32 %v8342, %v8862
        %v8864 = vpop.f32.mrf.mxu0
        %v8865 = vadd.f32 %v8344, %v8864
        %v8866 = vand.u32 %v5762, 4294901760
        %8867 = vmatprep.mubr.f32.mxu0 %v8866
        %v8868 = vand.u32 %v5761, 4294901760
        %8869 = vmatmul.mubr.f32.gmra.mxu0 %v8868
        %v8870 = vpop.f32.mrf.mxu0
        %v8871 = vadd.f32 %v8358, %v8870
        %v8872 = vpop.f32.mrf.mxu0
        %v8873 = vadd.f32 %v8360, %v8872
        %8874 = vdwg.mxu0
        %v8875 = vand.u32 %v1190, 4294901760
        %v8876 = vsub.f32 %v1190, %v8875
        %8877 = vmatprep.subr.mxu0 %v8876
        %v8878 = vand.u32 %v993, 4294901760
        %v8879 = vsub.f32 %v993, %v8878
        %8880 = vmatpush1.msra.mxu0 %v8879
        %v8881 = vand.u32 %v1189, 4294901760
        %v8882 = vsub.f32 %v1189, %v8881
        %8883 = vmatprep.subr.mxu0 %v8882
        %v8884 = vand.u32 %v992, 4294901760
        %v8885 = vsub.f32 %v992, %v8884
        %8886 = vmatpush1.msra.mxu0 %v8885
        %v8887 = vand.u32 %v1188, 4294901760
        %v8888 = vsub.f32 %v1188, %v8887
        %8889 = vmatprep.subr.mxu0 %v8888
        %v8890 = vand.u32 %v991, 4294901760
        %v8891 = vsub.f32 %v991, %v8890
        %8892 = vmatpush1.msra.mxu0 %v8891
        %v8893 = vand.u32 %v1187, 4294901760
        %v8894 = vsub.f32 %v1187, %v8893
        %8895 = vmatprep.subr.mxu0 %v8894
        %v8896 = vand.u32 %v990, 4294901760
        %v8897 = vsub.f32 %v990, %v8896
        %8898 = vmatpush1.msra.mxu0 %v8897
        %v8899 = vand.u32 %v1186, 4294901760
        %v8900 = vsub.f32 %v1186, %v8899
        %8901 = vmatprep.subr.mxu0 %v8900
        %v8902 = vand.u32 %v989, 4294901760
        %v8903 = vsub.f32 %v989, %v8902
        %8904 = vmatpush1.msra.mxu0 %v8903
        %v8905 = vand.u32 %v1185, 4294901760
        %v8906 = vsub.f32 %v1185, %v8905
        %8907 = vmatprep.subr.mxu0 %v8906
        %v8908 = vand.u32 %v988, 4294901760
        %v8909 = vsub.f32 %v988, %v8908
        %8910 = vmatpush1.msra.mxu0 %v8909
        %v8911 = vand.u32 %v1184, 4294901760
        %v8912 = vsub.f32 %v1184, %v8911
        %8913 = vmatprep.subr.mxu0 %v8912
        %v8914 = vand.u32 %v987, 4294901760
        %v8915 = vsub.f32 %v987, %v8914
        %8916 = vmatpush1.msra.mxu0 %v8915
        %v8917 = vand.u32 %v1183, 4294901760
        %v8918 = vsub.f32 %v1183, %v8917
        %8919 = vmatprep.subr.mxu0 %v8918
        %v8920 = vand.u32 %v986, 4294901760
        %v8921 = vsub.f32 %v986, %v8920
        %8922 = vmatpush1.msra.mxu0 %v8921
        %v8923 = vand.u32 %v1182, 4294901760
        %v8924 = vsub.f32 %v1182, %v8923
        %8925 = vmatprep.subr.mxu0 %v8924
        %v8926 = vand.u32 %v985, 4294901760
        %v8927 = vsub.f32 %v985, %v8926
        %8928 = vmatpush1.msra.mxu0 %v8927
        %v8929 = vand.u32 %v1181, 4294901760
        %v8930 = vsub.f32 %v1181, %v8929
        %8931 = vmatprep.subr.mxu0 %v8930
        %v8932 = vand.u32 %v984, 4294901760
        %v8933 = vsub.f32 %v984, %v8932
        %8934 = vmatpush1.msra.mxu0 %v8933
        %v8935 = vand.u32 %v1180, 4294901760
        %v8936 = vsub.f32 %v1180, %v8935
        %8937 = vmatprep.subr.mxu0 %v8936
        %v8938 = vand.u32 %v983, 4294901760
        %v8939 = vsub.f32 %v983, %v8938
        %8940 = vmatpush1.msra.mxu0 %v8939
        %v8941 = vand.u32 %v1179, 4294901760
        %v8942 = vsub.f32 %v1179, %v8941
        %8943 = vmatprep.subr.mxu0 %v8942
        %v8944 = vand.u32 %v982, 4294901760
        %v8945 = vsub.f32 %v982, %v8944
        %8946 = vmatpush1.msra.mxu0 %v8945
        %v8947 = vand.u32 %v1178, 4294901760
        %v8948 = vsub.f32 %v1178, %v8947
        %8949 = vmatprep.subr.mxu0 %v8948
        %v8950 = vand.u32 %v981, 4294901760
        %v8951 = vsub.f32 %v981, %v8950
        %8952 = vmatpush1.msra.mxu0 %v8951
        %v8953 = vand.u32 %v1177, 4294901760
        %v8954 = vsub.f32 %v1177, %v8953
        %8955 = vmatprep.subr.mxu0 %v8954
        %v8956 = vand.u32 %v980, 4294901760
        %v8957 = vsub.f32 %v980, %v8956
        %8958 = vmatpush1.msra.mxu0 %v8957
        %v8959 = vand.u32 %v1176, 4294901760
        %v8960 = vsub.f32 %v1176, %v8959
        %8961 = vmatprep.subr.mxu0 %v8960
        %v8962 = vand.u32 %v979, 4294901760
        %v8963 = vsub.f32 %v979, %v8962
        %8964 = vmatpush1.msra.mxu0 %v8963
        %v8965 = vand.u32 %v1175, 4294901760
        %v8966 = vsub.f32 %v1175, %v8965
        %8967 = vmatprep.subr.mxu0 %v8966
        %v8968 = vand.u32 %v978, 4294901760
        %v8969 = vsub.f32 %v978, %v8968
        %8970 = vmatpush1.msra.mxu0 %v8969
        %v8971 = vand.u32 %v1206, 4294901760
        %v8972 = vsub.f32 %v1206, %v8971
        %8973 = vmatprep.subr.mxu0 %v8972
        %v8974 = vand.u32 %v1009, 4294901760
        %v8975 = vsub.f32 %v1009, %v8974
        %8976 = vmatpush2.msra.mxu0 %v8975
        %v8977 = vand.u32 %v1205, 4294901760
        %v8978 = vsub.f32 %v1205, %v8977
        %8979 = vmatprep.subr.mxu0 %v8978
        %v8980 = vand.u32 %v1008, 4294901760
        %v8981 = vsub.f32 %v1008, %v8980
        %8982 = vmatpush2.msra.mxu0 %v8981
        %v8983 = vand.u32 %v1204, 4294901760
        %v8984 = vsub.f32 %v1204, %v8983
        %8985 = vmatprep.subr.mxu0 %v8984
        %v8986 = vand.u32 %v1007, 4294901760
        %v8987 = vsub.f32 %v1007, %v8986
        %8988 = vmatpush2.msra.mxu0 %v8987
        %v8989 = vand.u32 %v1203, 4294901760
        %v8990 = vsub.f32 %v1203, %v8989
        %8991 = vmatprep.subr.mxu0 %v8990
        %v8992 = vand.u32 %v1006, 4294901760
        %v8993 = vsub.f32 %v1006, %v8992
        %8994 = vmatpush2.msra.mxu0 %v8993
        %v8995 = vand.u32 %v1202, 4294901760
        %v8996 = vsub.f32 %v1202, %v8995
        %8997 = vmatprep.subr.mxu0 %v8996
        %v8998 = vand.u32 %v1005, 4294901760
        %v8999 = vsub.f32 %v1005, %v8998
        %9000 = vmatpush2.msra.mxu0 %v8999
        %v9001 = vand.u32 %v1201, 4294901760
        %v9002 = vsub.f32 %v1201, %v9001
        %9003 = vmatprep.subr.mxu0 %v9002
        %v9004 = vand.u32 %v1004, 4294901760
        %v9005 = vsub.f32 %v1004, %v9004
        %9006 = vmatpush2.msra.mxu0 %v9005
        %v9007 = vand.u32 %v1200, 4294901760
        %v9008 = vsub.f32 %v1200, %v9007
        %9009 = vmatprep.subr.mxu0 %v9008
        %v9010 = vand.u32 %v1003, 4294901760
        %v9011 = vsub.f32 %v1003, %v9010
        %9012 = vmatpush2.msra.mxu0 %v9011
        %v9013 = vand.u32 %v1199, 4294901760
        %v9014 = vsub.f32 %v1199, %v9013
        %9015 = vmatprep.subr.mxu0 %v9014
        %v9016 = vand.u32 %v1002, 4294901760
        %v9017 = vsub.f32 %v1002, %v9016
        %9018 = vmatpush2.msra.mxu0 %v9017
        %v9019 = vand.u32 %v1198, 4294901760
        %v9020 = vsub.f32 %v1198, %v9019
        %9021 = vmatprep.subr.mxu0 %v9020
        %v9022 = vand.u32 %v1001, 4294901760
        %v9023 = vsub.f32 %v1001, %v9022
        %9024 = vmatpush2.msra.mxu0 %v9023
        %v9025 = vand.u32 %v1197, 4294901760
        %v9026 = vsub.f32 %v1197, %v9025
        %9027 = vmatprep.subr.mxu0 %v9026
        %v9028 = vand.u32 %v1000, 4294901760
        %v9029 = vsub.f32 %v1000, %v9028
        %9030 = vmatpush2.msra.mxu0 %v9029
        %v9031 = vand.u32 %v1196, 4294901760
        %v9032 = vsub.f32 %v1196, %v9031
        %9033 = vmatprep.subr.mxu0 %v9032
        %v9034 = vand.u32 %v999, 4294901760
        %v9035 = vsub.f32 %v999, %v9034
        %9036 = vmatpush2.msra.mxu0 %v9035
        %v9037 = vand.u32 %v1195, 4294901760
        %v9038 = vsub.f32 %v1195, %v9037
        %9039 = vmatprep.subr.mxu0 %v9038
        %v9040 = vand.u32 %v998, 4294901760
        %v9041 = vsub.f32 %v998, %v9040
        %9042 = vmatpush2.msra.mxu0 %v9041
        %v9043 = vand.u32 %v1194, 4294901760
        %v9044 = vsub.f32 %v1194, %v9043
        %9045 = vmatprep.subr.mxu0 %v9044
        %v9046 = vand.u32 %v997, 4294901760
        %v9047 = vsub.f32 %v997, %v9046
        %9048 = vmatpush2.msra.mxu0 %v9047
        %v9049 = vand.u32 %v1193, 4294901760
        %v9050 = vsub.f32 %v1193, %v9049
        %9051 = vmatprep.subr.mxu0 %v9050
        %v9052 = vand.u32 %v996, 4294901760
        %v9053 = vsub.f32 %v996, %v9052
        %9054 = vmatpush2.msra.mxu0 %v9053
        %v9055 = vand.u32 %v1192, 4294901760
        %v9056 = vsub.f32 %v1192, %v9055
        %9057 = vmatprep.subr.mxu0 %v9056
        %v9058 = vand.u32 %v995, 4294901760
        %v9059 = vsub.f32 %v995, %v9058
        %9060 = vmatpush2.msra.mxu0 %v9059
        %v9061 = vand.u32 %v1191, 4294901760
        %v9062 = vsub.f32 %v1191, %v9061
        %9063 = vmatprep.subr.mxu0 %v9062
        %v9064 = vand.u32 %v994, 4294901760
        %v9065 = vsub.f32 %v994, %v9064
        %9066 = vmatpush2.msra.mxu0 %v9065
        %v9067 = vand.u32 %v5702, 4294901760
        %v9068 = vsub.f32 %v5702, %v9067
        %9069 = vmatprep.mubr.f32.mxu0 %v9068
        %v9070 = vand.u32 %v5701, 4294901760
        %v9071 = vsub.f32 %v5701, %v9070
        %9072 = vmatmul.mubr.f32.gmra.mxu0 %v9071
        %v9073 = vpop.f32.mrf.mxu0
        %v9074 = vadd.f32 %v8751, %v9073
        %v9075 = vpop.f32.mrf.mxu0
        %v9076 = vadd.f32 %v8753, %v9075
        %v9077 = vand.u32 %v5706, 4294901760
        %v9078 = vsub.f32 %v5706, %v9077
        %9079 = vmatprep.mubr.f32.mxu0 %v9078
        %v9080 = vand.u32 %v5705, 4294901760
        %v9081 = vsub.f32 %v5705, %v9080
        %9082 = vmatmul.mubr.f32.gmra.mxu0 %v9081
        %v9083 = vpop.f32.mrf.mxu0
        %v9084 = vadd.f32 %v8759, %v9083
        %v9085 = vpop.f32.mrf.mxu0
        %v9086 = vadd.f32 %v8761, %v9085
        %v9087 = vand.u32 %v5710, 4294901760
        %v9088 = vsub.f32 %v5710, %v9087
        %9089 = vmatprep.mubr.f32.mxu0 %v9088
        %v9090 = vand.u32 %v5709, 4294901760
        %v9091 = vsub.f32 %v5709, %v9090
        %9092 = vmatmul.mubr.f32.gmra.mxu0 %v9091
        %v9093 = vpop.f32.mrf.mxu0
        %v9094 = vadd.f32 %v8767, %v9093
        %v9095 = vpop.f32.mrf.mxu0
        %v9096 = vadd.f32 %v8769, %v9095
        %v9097 = vand.u32 %v5714, 4294901760
        %v9098 = vsub.f32 %v5714, %v9097
        %9099 = vmatprep.mubr.f32.mxu0 %v9098
        %v9100 = vand.u32 %v5713, 4294901760
        %v9101 = vsub.f32 %v5713, %v9100
        %9102 = vmatmul.mubr.f32.gmra.mxu0 %v9101
        %v9103 = vpop.f32.mrf.mxu0
        %v9104 = vadd.f32 %v8775, %v9103
        %v9105 = vpop.f32.mrf.mxu0
        %v9106 = vadd.f32 %v8777, %v9105
        %v9107 = vand.u32 %v5718, 4294901760
        %v9108 = vsub.f32 %v5718, %v9107
        %9109 = vmatprep.mubr.f32.mxu0 %v9108
        %v9110 = vand.u32 %v5717, 4294901760
        %v9111 = vsub.f32 %v5717, %v9110
        %9112 = vmatmul.mubr.f32.gmra.mxu0 %v9111
        %v9113 = vpop.f32.mrf.mxu0
        %v9114 = vadd.f32 %v8783, %v9113
        %v9115 = vpop.f32.mrf.mxu0
        %v9116 = vadd.f32 %v8785, %v9115
        %v9117 = vand.u32 %v5722, 4294901760
        %v9118 = vsub.f32 %v5722, %v9117
        %9119 = vmatprep.mubr.f32.mxu0 %v9118
        %v9120 = vand.u32 %v5721, 4294901760
        %v9121 = vsub.f32 %v5721, %v9120
        %9122 = vmatmul.mubr.f32.gmra.mxu0 %v9121
        %v9123 = vpop.f32.mrf.mxu0
        %v9124 = vadd.f32 %v8791, %v9123
        %v9125 = vpop.f32.mrf.mxu0
        %v9126 = vadd.f32 %v8793, %v9125
        %v9127 = vand.u32 %v5726, 4294901760
        %v9128 = vsub.f32 %v5726, %v9127
        %9129 = vmatprep.mubr.f32.mxu0 %v9128
        %v9130 = vand.u32 %v5725, 4294901760
        %v9131 = vsub.f32 %v5725, %v9130
        %9132 = vmatmul.mubr.f32.gmra.mxu0 %v9131
        %v9133 = vpop.f32.mrf.mxu0
        %v9134 = vadd.f32 %v8799, %v9133
        %v9135 = vpop.f32.mrf.mxu0
        %v9136 = vadd.f32 %v8801, %v9135
        %v9137 = vand.u32 %v5730, 4294901760
        %v9138 = vsub.f32 %v5730, %v9137
        %9139 = vmatprep.mubr.f32.mxu0 %v9138
        %v9140 = vand.u32 %v5729, 4294901760
        %v9141 = vsub.f32 %v5729, %v9140
        %9142 = vmatmul.mubr.f32.gmra.mxu0 %v9141
        %v9143 = vpop.f32.mrf.mxu0
        %v9144 = vadd.f32 %v8807, %v9143
        %v9145 = vpop.f32.mrf.mxu0
        %v9146 = vadd.f32 %v8809, %v9145
        %v9147 = vand.u32 %v5734, 4294901760
        %v9148 = vsub.f32 %v5734, %v9147
        %9149 = vmatprep.mubr.f32.mxu0 %v9148
        %v9150 = vand.u32 %v5733, 4294901760
        %v9151 = vsub.f32 %v5733, %v9150
        %9152 = vmatmul.mubr.f32.gmra.mxu0 %v9151
        %v9153 = vpop.f32.mrf.mxu0
        %v9154 = vadd.f32 %v8815, %v9153
        %v9155 = vpop.f32.mrf.mxu0
        %v9156 = vadd.f32 %v8817, %v9155
        %v9157 = vand.u32 %v5738, 4294901760
        %v9158 = vsub.f32 %v5738, %v9157
        %9159 = vmatprep.mubr.f32.mxu0 %v9158
        %v9160 = vand.u32 %v5737, 4294901760
        %v9161 = vsub.f32 %v5737, %v9160
        %9162 = vmatmul.mubr.f32.gmra.mxu0 %v9161
        %v9163 = vpop.f32.mrf.mxu0
        %v9164 = vadd.f32 %v8823, %v9163
        %v9165 = vpop.f32.mrf.mxu0
        %v9166 = vadd.f32 %v8825, %v9165
        %v9167 = vand.u32 %v5742, 4294901760
        %v9168 = vsub.f32 %v5742, %v9167
        %9169 = vmatprep.mubr.f32.mxu0 %v9168
        %v9170 = vand.u32 %v5741, 4294901760
        %v9171 = vsub.f32 %v5741, %v9170
        %9172 = vmatmul.mubr.f32.gmra.mxu0 %v9171
        %v9173 = vpop.f32.mrf.mxu0
        %v9174 = vadd.f32 %v8831, %v9173
        %v9175 = vpop.f32.mrf.mxu0
        %v9176 = vadd.f32 %v8833, %v9175
        %v9177 = vand.u32 %v5746, 4294901760
        %v9178 = vsub.f32 %v5746, %v9177
        %9179 = vmatprep.mubr.f32.mxu0 %v9178
        %v9180 = vand.u32 %v5745, 4294901760
        %v9181 = vsub.f32 %v5745, %v9180
        %9182 = vmatmul.mubr.f32.gmra.mxu0 %v9181
        %v9183 = vpop.f32.mrf.mxu0
        %v9184 = vadd.f32 %v8839, %v9183
        %v9185 = vpop.f32.mrf.mxu0
        %v9186 = vadd.f32 %v8841, %v9185
        %v9187 = vand.u32 %v5750, 4294901760
        %v9188 = vsub.f32 %v5750, %v9187
        %9189 = vmatprep.mubr.f32.mxu0 %v9188
        %v9190 = vand.u32 %v5749, 4294901760
        %v9191 = vsub.f32 %v5749, %v9190
        %9192 = vmatmul.mubr.f32.gmra.mxu0 %v9191
        %v9193 = vpop.f32.mrf.mxu0
        %v9194 = vadd.f32 %v8847, %v9193
        %v9195 = vpop.f32.mrf.mxu0
        %v9196 = vadd.f32 %v8849, %v9195
        %v9197 = vand.u32 %v5754, 4294901760
        %v9198 = vsub.f32 %v5754, %v9197
        %9199 = vmatprep.mubr.f32.mxu0 %v9198
        %v9200 = vand.u32 %v5753, 4294901760
        %v9201 = vsub.f32 %v5753, %v9200
        %9202 = vmatmul.mubr.f32.gmra.mxu0 %v9201
        %v9203 = vpop.f32.mrf.mxu0
        %v9204 = vadd.f32 %v8855, %v9203
        %v9205 = vpop.f32.mrf.mxu0
        %v9206 = vadd.f32 %v8857, %v9205
        %v9207 = vand.u32 %v5758, 4294901760
        %v9208 = vsub.f32 %v5758, %v9207
        %9209 = vmatprep.mubr.f32.mxu0 %v9208
        %v9210 = vand.u32 %v5757, 4294901760
        %v9211 = vsub.f32 %v5757, %v9210
        %9212 = vmatmul.mubr.f32.gmra.mxu0 %v9211
        %v9213 = vpop.f32.mrf.mxu0
        %v9214 = vadd.f32 %v8863, %v9213
        %v9215 = vpop.f32.mrf.mxu0
        %v9216 = vadd.f32 %v8865, %v9215
        %v9217 = vand.u32 %v5762, 4294901760
        %v9218 = vsub.f32 %v5762, %v9217
        %9219 = vmatprep.mubr.f32.mxu0 %v9218
        %v9220 = vand.u32 %v5761, 4294901760
        %v9221 = vsub.f32 %v5761, %v9220
        %9222 = vmatmul.mubr.f32.gmra.mxu0 %v9221
        %v9223 = vpop.f32.mrf.mxu0
        %v9224 = vadd.f32 %v8871, %v9223
        %v9225 = vpop.f32.mrf.mxu0
        %v9226 = vadd.f32 %v8873, %v9225
        %9227 = vdwg.mxu0
        %v9228 = vand.u32 %v1190, 4294901760
        %9229 = vmatprep.subr.mxu0 %v9228
        %v9230 = vand.u32 %v993, 4294901760
        %9231 = vmatpush1.msra.mxu0 %v9230
        %v9232 = vand.u32 %v1189, 4294901760
        %9233 = vmatprep.subr.mxu0 %v9232
        %v9234 = vand.u32 %v992, 4294901760
        %9235 = vmatpush1.msra.mxu0 %v9234
        %v9236 = vand.u32 %v1188, 4294901760
        %9237 = vmatprep.subr.mxu0 %v9236
        %v9238 = vand.u32 %v991, 4294901760
        %9239 = vmatpush1.msra.mxu0 %v9238
        %v9240 = vand.u32 %v1187, 4294901760
        %9241 = vmatprep.subr.mxu0 %v9240
        %v9242 = vand.u32 %v990, 4294901760
        %9243 = vmatpush1.msra.mxu0 %v9242
        %v9244 = vand.u32 %v1186, 4294901760
        %9245 = vmatprep.subr.mxu0 %v9244
        %v9246 = vand.u32 %v989, 4294901760
        %9247 = vmatpush1.msra.mxu0 %v9246
        %v9248 = vand.u32 %v1185, 4294901760
        %9249 = vmatprep.subr.mxu0 %v9248
        %v9250 = vand.u32 %v988, 4294901760
        %9251 = vmatpush1.msra.mxu0 %v9250
        %v9252 = vand.u32 %v1184, 4294901760
        %9253 = vmatprep.subr.mxu0 %v9252
        %v9254 = vand.u32 %v987, 4294901760
        %9255 = vmatpush1.msra.mxu0 %v9254
        %v9256 = vand.u32 %v1183, 4294901760
        %9257 = vmatprep.subr.mxu0 %v9256
        %v9258 = vand.u32 %v986, 4294901760
        %9259 = vmatpush1.msra.mxu0 %v9258
        %v9260 = vand.u32 %v1182, 4294901760
        %9261 = vmatprep.subr.mxu0 %v9260
        %v9262 = vand.u32 %v985, 4294901760
        %9263 = vmatpush1.msra.mxu0 %v9262
        %v9264 = vand.u32 %v1181, 4294901760
        %9265 = vmatprep.subr.mxu0 %v9264
        %v9266 = vand.u32 %v984, 4294901760
        %9267 = vmatpush1.msra.mxu0 %v9266
        %v9268 = vand.u32 %v1180, 4294901760
        %9269 = vmatprep.subr.mxu0 %v9268
        %v9270 = vand.u32 %v983, 4294901760
        %9271 = vmatpush1.msra.mxu0 %v9270
        %v9272 = vand.u32 %v1179, 4294901760
        %9273 = vmatprep.subr.mxu0 %v9272
        %v9274 = vand.u32 %v982, 4294901760
        %9275 = vmatpush1.msra.mxu0 %v9274
        %v9276 = vand.u32 %v1178, 4294901760
        %9277 = vmatprep.subr.mxu0 %v9276
        %v9278 = vand.u32 %v981, 4294901760
        %9279 = vmatpush1.msra.mxu0 %v9278
        %v9280 = vand.u32 %v1177, 4294901760
        %9281 = vmatprep.subr.mxu0 %v9280
        %v9282 = vand.u32 %v980, 4294901760
        %9283 = vmatpush1.msra.mxu0 %v9282
        %v9284 = vand.u32 %v1176, 4294901760
        %9285 = vmatprep.subr.mxu0 %v9284
        %v9286 = vand.u32 %v979, 4294901760
        %9287 = vmatpush1.msra.mxu0 %v9286
        %v9288 = vand.u32 %v1175, 4294901760
        %9289 = vmatprep.subr.mxu0 %v9288
        %v9290 = vand.u32 %v978, 4294901760
        %9291 = vmatpush1.msra.mxu0 %v9290
        %v9292 = vand.u32 %v1206, 4294901760
        %9293 = vmatprep.subr.mxu0 %v9292
        %v9294 = vand.u32 %v1009, 4294901760
        %9295 = vmatpush2.msra.mxu0 %v9294
        %v9296 = vand.u32 %v1205, 4294901760
        %9297 = vmatprep.subr.mxu0 %v9296
        %v9298 = vand.u32 %v1008, 4294901760
        %9299 = vmatpush2.msra.mxu0 %v9298
        %v9300 = vand.u32 %v1204, 4294901760
        %9301 = vmatprep.subr.mxu0 %v9300
        %v9302 = vand.u32 %v1007, 4294901760
        %9303 = vmatpush2.msra.mxu0 %v9302
        %v9304 = vand.u32 %v1203, 4294901760
        %9305 = vmatprep.subr.mxu0 %v9304
        %v9306 = vand.u32 %v1006, 4294901760
        %9307 = vmatpush2.msra.mxu0 %v9306
        %v9308 = vand.u32 %v1202, 4294901760
        %9309 = vmatprep.subr.mxu0 %v9308
        %v9310 = vand.u32 %v1005, 4294901760
        %9311 = vmatpush2.msra.mxu0 %v9310
        %v9312 = vand.u32 %v1201, 4294901760
        %9313 = vmatprep.subr.mxu0 %v9312
        %v9314 = vand.u32 %v1004, 4294901760
        %9315 = vmatpush2.msra.mxu0 %v9314
        %v9316 = vand.u32 %v1200, 4294901760
        %9317 = vmatprep.subr.mxu0 %v9316
        %v9318 = vand.u32 %v1003, 4294901760
        %9319 = vmatpush2.msra.mxu0 %v9318
        %v9320 = vand.u32 %v1199, 4294901760
        %9321 = vmatprep.subr.mxu0 %v9320
        %v9322 = vand.u32 %v1002, 4294901760
        %9323 = vmatpush2.msra.mxu0 %v9322
        %v9324 = vand.u32 %v1198, 4294901760
        %9325 = vmatprep.subr.mxu0 %v9324
        %v9326 = vand.u32 %v1001, 4294901760
        %9327 = vmatpush2.msra.mxu0 %v9326
        %v9328 = vand.u32 %v1197, 4294901760
        %9329 = vmatprep.subr.mxu0 %v9328
        %v9330 = vand.u32 %v1000, 4294901760
        %9331 = vmatpush2.msra.mxu0 %v9330
        %v9332 = vand.u32 %v1196, 4294901760
        %9333 = vmatprep.subr.mxu0 %v9332
        %v9334 = vand.u32 %v999, 4294901760
        %9335 = vmatpush2.msra.mxu0 %v9334
        %v9336 = vand.u32 %v1195, 4294901760
        %9337 = vmatprep.subr.mxu0 %v9336
        %v9338 = vand.u32 %v998, 4294901760
        %9339 = vmatpush2.msra.mxu0 %v9338
        %v9340 = vand.u32 %v1194, 4294901760
        %9341 = vmatprep.subr.mxu0 %v9340
        %v9342 = vand.u32 %v997, 4294901760
        %9343 = vmatpush2.msra.mxu0 %v9342
        %v9344 = vand.u32 %v1193, 4294901760
        %9345 = vmatprep.subr.mxu0 %v9344
        %v9346 = vand.u32 %v996, 4294901760
        %9347 = vmatpush2.msra.mxu0 %v9346
        %v9348 = vand.u32 %v1192, 4294901760
        %9349 = vmatprep.subr.mxu0 %v9348
        %v9350 = vand.u32 %v995, 4294901760
        %9351 = vmatpush2.msra.mxu0 %v9350
        %v9352 = vand.u32 %v1191, 4294901760
        %9353 = vmatprep.subr.mxu0 %v9352
        %v9354 = vand.u32 %v994, 4294901760
        %9355 = vmatpush2.msra.mxu0 %v9354
        %v9356 = vand.u32 %v5702, 4294901760
        %v9357 = vsub.f32 %v5702, %v9356
        %v9358 = vand.u32 %v9357, 4294901760
        %9359 = vmatprep.mubr.f32.mxu0 %v9358
        %v9360 = vand.u32 %v5701, 4294901760
        %v9361 = vsub.f32 %v5701, %v9360
        %v9362 = vand.u32 %v9361, 4294901760
        %9363 = vmatmul.mubr.f32.gmra.mxu0 %v9362
        %v9364 = vpop.f32.mrf.mxu0
        %v9365 = vadd.f32 %v9074, %v9364
        %v9366 = vpop.f32.mrf.mxu0
        %v9367 = vadd.f32 %v9076, %v9366
        %v9368 = vand.u32 %v5706, 4294901760
        %v9369 = vsub.f32 %v5706, %v9368
        %v9370 = vand.u32 %v9369, 4294901760
        %9371 = vmatprep.mubr.f32.mxu0 %v9370
        %v9372 = vand.u32 %v5705, 4294901760
        %v9373 = vsub.f32 %v5705, %v9372
        %v9374 = vand.u32 %v9373, 4294901760
        %9375 = vmatmul.mubr.f32.gmra.mxu0 %v9374
        %v9376 = vpop.f32.mrf.mxu0
        %v9377 = vadd.f32 %v9084, %v9376
        %v9378 = vpop.f32.mrf.mxu0
        %v9379 = vadd.f32 %v9086, %v9378
        %v9380 = vand.u32 %v5710, 4294901760
        %v9381 = vsub.f32 %v5710, %v9380
        %v9382 = vand.u32 %v9381, 4294901760
        %9383 = vmatprep.mubr.f32.mxu0 %v9382
        %v9384 = vand.u32 %v5709, 4294901760
        %v9385 = vsub.f32 %v5709, %v9384
        %v9386 = vand.u32 %v9385, 4294901760
        %9387 = vmatmul.mubr.f32.gmra.mxu0 %v9386
        %v9388 = vpop.f32.mrf.mxu0
        %v9389 = vadd.f32 %v9094, %v9388
        %v9390 = vpop.f32.mrf.mxu0
        %v9391 = vadd.f32 %v9096, %v9390
        %v9392 = vand.u32 %v5714, 4294901760
        %v9393 = vsub.f32 %v5714, %v9392
        %v9394 = vand.u32 %v9393, 4294901760
        %9395 = vmatprep.mubr.f32.mxu0 %v9394
        %v9396 = vand.u32 %v5713, 4294901760
        %v9397 = vsub.f32 %v5713, %v9396
        %v9398 = vand.u32 %v9397, 4294901760
        %9399 = vmatmul.mubr.f32.gmra.mxu0 %v9398
        %v9400 = vpop.f32.mrf.mxu0
        %v9401 = vadd.f32 %v9104, %v9400
        %v9402 = vpop.f32.mrf.mxu0
        %v9403 = vadd.f32 %v9106, %v9402
        %v9404 = vand.u32 %v5718, 4294901760
        %v9405 = vsub.f32 %v5718, %v9404
        %v9406 = vand.u32 %v9405, 4294901760
        %9407 = vmatprep.mubr.f32.mxu0 %v9406
        %v9408 = vand.u32 %v5717, 4294901760
        %v9409 = vsub.f32 %v5717, %v9408
        %v9410 = vand.u32 %v9409, 4294901760
        %9411 = vmatmul.mubr.f32.gmra.mxu0 %v9410
        %v9412 = vpop.f32.mrf.mxu0
        %v9413 = vadd.f32 %v9114, %v9412
        %v9414 = vpop.f32.mrf.mxu0
        %v9415 = vadd.f32 %v9116, %v9414
        %v9416 = vand.u32 %v5722, 4294901760
        %v9417 = vsub.f32 %v5722, %v9416
        %v9418 = vand.u32 %v9417, 4294901760
        %9419 = vmatprep.mubr.f32.mxu0 %v9418
        %v9420 = vand.u32 %v5721, 4294901760
        %v9421 = vsub.f32 %v5721, %v9420
        %v9422 = vand.u32 %v9421, 4294901760
        %9423 = vmatmul.mubr.f32.gmra.mxu0 %v9422
        %v9424 = vpop.f32.mrf.mxu0
        %v9425 = vadd.f32 %v9124, %v9424
        %v9426 = vpop.f32.mrf.mxu0
        %v9427 = vadd.f32 %v9126, %v9426
        %v9428 = vand.u32 %v5726, 4294901760
        %v9429 = vsub.f32 %v5726, %v9428
        %v9430 = vand.u32 %v9429, 4294901760
        %9431 = vmatprep.mubr.f32.mxu0 %v9430
        %v9432 = vand.u32 %v5725, 4294901760
        %v9433 = vsub.f32 %v5725, %v9432
        %v9434 = vand.u32 %v9433, 4294901760
        %9435 = vmatmul.mubr.f32.gmra.mxu0 %v9434
        %v9436 = vpop.f32.mrf.mxu0
        %v9437 = vadd.f32 %v9134, %v9436
        %v9438 = vpop.f32.mrf.mxu0
        %v9439 = vadd.f32 %v9136, %v9438
        %v9440 = vand.u32 %v5730, 4294901760
        %v9441 = vsub.f32 %v5730, %v9440
        %v9442 = vand.u32 %v9441, 4294901760
        %9443 = vmatprep.mubr.f32.mxu0 %v9442
        %v9444 = vand.u32 %v5729, 4294901760
        %v9445 = vsub.f32 %v5729, %v9444
        %v9446 = vand.u32 %v9445, 4294901760
        %9447 = vmatmul.mubr.f32.gmra.mxu0 %v9446
        %v9448 = vpop.f32.mrf.mxu0
        %v9449 = vadd.f32 %v9144, %v9448
        %v9450 = vpop.f32.mrf.mxu0
        %v9451 = vadd.f32 %v9146, %v9450
        %v9452 = vand.u32 %v5734, 4294901760
        %v9453 = vsub.f32 %v5734, %v9452
        %v9454 = vand.u32 %v9453, 4294901760
        %9455 = vmatprep.mubr.f32.mxu0 %v9454
        %v9456 = vand.u32 %v5733, 4294901760
        %v9457 = vsub.f32 %v5733, %v9456
        %v9458 = vand.u32 %v9457, 4294901760
        %9459 = vmatmul.mubr.f32.gmra.mxu0 %v9458
        %v9460 = vpop.f32.mrf.mxu0
        %v9461 = vadd.f32 %v9154, %v9460
        %v9462 = vpop.f32.mrf.mxu0
        %v9463 = vadd.f32 %v9156, %v9462
        %v9464 = vand.u32 %v5738, 4294901760
        %v9465 = vsub.f32 %v5738, %v9464
        %v9466 = vand.u32 %v9465, 4294901760
        %9467 = vmatprep.mubr.f32.mxu0 %v9466
        %v9468 = vand.u32 %v5737, 4294901760
        %v9469 = vsub.f32 %v5737, %v9468
        %v9470 = vand.u32 %v9469, 4294901760
        %9471 = vmatmul.mubr.f32.gmra.mxu0 %v9470
        %v9472 = vpop.f32.mrf.mxu0
        %v9473 = vadd.f32 %v9164, %v9472
        %v9474 = vpop.f32.mrf.mxu0
        %v9475 = vadd.f32 %v9166, %v9474
        %v9476 = vand.u32 %v5742, 4294901760
        %v9477 = vsub.f32 %v5742, %v9476
        %v9478 = vand.u32 %v9477, 4294901760
        %9479 = vmatprep.mubr.f32.mxu0 %v9478
        %v9480 = vand.u32 %v5741, 4294901760
        %v9481 = vsub.f32 %v5741, %v9480
        %v9482 = vand.u32 %v9481, 4294901760
        %9483 = vmatmul.mubr.f32.gmra.mxu0 %v9482
        %v9484 = vpop.f32.mrf.mxu0
        %v9485 = vadd.f32 %v9174, %v9484
        %v9486 = vpop.f32.mrf.mxu0
        %v9487 = vadd.f32 %v9176, %v9486
        %v9488 = vand.u32 %v5746, 4294901760
        %v9489 = vsub.f32 %v5746, %v9488
        %v9490 = vand.u32 %v9489, 4294901760
        %9491 = vmatprep.mubr.f32.mxu0 %v9490
        %v9492 = vand.u32 %v5745, 4294901760
        %v9493 = vsub.f32 %v5745, %v9492
        %v9494 = vand.u32 %v9493, 4294901760
        %9495 = vmatmul.mubr.f32.gmra.mxu0 %v9494
        %v9496 = vpop.f32.mrf.mxu0
        %v9497 = vadd.f32 %v9184, %v9496
        %v9498 = vpop.f32.mrf.mxu0
        %v9499 = vadd.f32 %v9186, %v9498
        %v9500 = vand.u32 %v5750, 4294901760
        %v9501 = vsub.f32 %v5750, %v9500
        %v9502 = vand.u32 %v9501, 4294901760
        %9503 = vmatprep.mubr.f32.mxu0 %v9502
        %v9504 = vand.u32 %v5749, 4294901760
        %v9505 = vsub.f32 %v5749, %v9504
        %v9506 = vand.u32 %v9505, 4294901760
        %9507 = vmatmul.mubr.f32.gmra.mxu0 %v9506
        %v9508 = vpop.f32.mrf.mxu0
        %v9509 = vadd.f32 %v9194, %v9508
        %v9510 = vpop.f32.mrf.mxu0
        %v9511 = vadd.f32 %v9196, %v9510
        %v9512 = vand.u32 %v5754, 4294901760
        %v9513 = vsub.f32 %v5754, %v9512
        %v9514 = vand.u32 %v9513, 4294901760
        %9515 = vmatprep.mubr.f32.mxu0 %v9514
        %v9516 = vand.u32 %v5753, 4294901760
        %v9517 = vsub.f32 %v5753, %v9516
        %v9518 = vand.u32 %v9517, 4294901760
        %9519 = vmatmul.mubr.f32.gmra.mxu0 %v9518
        %v9520 = vpop.f32.mrf.mxu0
        %v9521 = vadd.f32 %v9204, %v9520
        %v9522 = vpop.f32.mrf.mxu0
        %v9523 = vadd.f32 %v9206, %v9522
        %v9524 = vand.u32 %v5758, 4294901760
        %v9525 = vsub.f32 %v5758, %v9524
        %v9526 = vand.u32 %v9525, 4294901760
        %9527 = vmatprep.mubr.f32.mxu0 %v9526
        %v9528 = vand.u32 %v5757, 4294901760
        %v9529 = vsub.f32 %v5757, %v9528
        %v9530 = vand.u32 %v9529, 4294901760
        %9531 = vmatmul.mubr.f32.gmra.mxu0 %v9530
        %v9532 = vpop.f32.mrf.mxu0
        %v9533 = vadd.f32 %v9214, %v9532
        %v9534 = vpop.f32.mrf.mxu0
        %v9535 = vadd.f32 %v9216, %v9534
        %v9536 = vand.u32 %v5762, 4294901760
        %v9537 = vsub.f32 %v5762, %v9536
        %v9538 = vand.u32 %v9537, 4294901760
        %9539 = vmatprep.mubr.f32.mxu0 %v9538
        %v9540 = vand.u32 %v5761, 4294901760
        %v9541 = vsub.f32 %v5761, %v9540
        %v9542 = vand.u32 %v9541, 4294901760
        %9543 = vmatmul.mubr.f32.gmra.mxu0 %v9542
        %v9544 = vpop.f32.mrf.mxu0
        %v9545 = vadd.f32 %v9224, %v9544
        %v9546 = vpop.f32.mrf.mxu0
        %v9547 = vadd.f32 %v9226, %v9546
        %9548 = vdwg.mxu0
        %v9549 = vand.u32 %v1190, 4294901760
        %v9550 = vsub.f32 %v1190, %v9549
        %v9551 = vand.u32 %v9550, 4294901760
        %9552 = vmatprep.subr.mxu0 %v9551
        %v9553 = vand.u32 %v993, 4294901760
        %v9554 = vsub.f32 %v993, %v9553
        %v9555 = vand.u32 %v9554, 4294901760
        %9556 = vmatpush1.msra.mxu0 %v9555
        %v9557 = vand.u32 %v1189, 4294901760
        %v9558 = vsub.f32 %v1189, %v9557
        %v9559 = vand.u32 %v9558, 4294901760
        %9560 = vmatprep.subr.mxu0 %v9559
        %v9561 = vand.u32 %v992, 4294901760
        %v9562 = vsub.f32 %v992, %v9561
        %v9563 = vand.u32 %v9562, 4294901760
        %9564 = vmatpush1.msra.mxu0 %v9563
        %v9565 = vand.u32 %v1188, 4294901760
        %v9566 = vsub.f32 %v1188, %v9565
        %v9567 = vand.u32 %v9566, 4294901760
        %9568 = vmatprep.subr.mxu0 %v9567
        %v9569 = vand.u32 %v991, 4294901760
        %v9570 = vsub.f32 %v991, %v9569
        %v9571 = vand.u32 %v9570, 4294901760
        %9572 = vmatpush1.msra.mxu0 %v9571
        %v9573 = vand.u32 %v1187, 4294901760
        %v9574 = vsub.f32 %v1187, %v9573
        %v9575 = vand.u32 %v9574, 4294901760
        %9576 = vmatprep.subr.mxu0 %v9575
        %v9577 = vand.u32 %v990, 4294901760
        %v9578 = vsub.f32 %v990, %v9577
        %v9579 = vand.u32 %v9578, 4294901760
        %9580 = vmatpush1.msra.mxu0 %v9579
        %v9581 = vand.u32 %v1186, 4294901760
        %v9582 = vsub.f32 %v1186, %v9581
        %v9583 = vand.u32 %v9582, 4294901760
        %9584 = vmatprep.subr.mxu0 %v9583
        %v9585 = vand.u32 %v989, 4294901760
        %v9586 = vsub.f32 %v989, %v9585
        %v9587 = vand.u32 %v9586, 4294901760
        %9588 = vmatpush1.msra.mxu0 %v9587
        %v9589 = vand.u32 %v1185, 4294901760
        %v9590 = vsub.f32 %v1185, %v9589
        %v9591 = vand.u32 %v9590, 4294901760
        %9592 = vmatprep.subr.mxu0 %v9591
        %v9593 = vand.u32 %v988, 4294901760
        %v9594 = vsub.f32 %v988, %v9593
        %v9595 = vand.u32 %v9594, 4294901760
        %9596 = vmatpush1.msra.mxu0 %v9595
        %v9597 = vand.u32 %v1184, 4294901760
        %v9598 = vsub.f32 %v1184, %v9597
        %v9599 = vand.u32 %v9598, 4294901760
        %9600 = vmatprep.subr.mxu0 %v9599
        %v9601 = vand.u32 %v987, 4294901760
        %v9602 = vsub.f32 %v987, %v9601
        %v9603 = vand.u32 %v9602, 4294901760
        %9604 = vmatpush1.msra.mxu0 %v9603
        %v9605 = vand.u32 %v1183, 4294901760
        %v9606 = vsub.f32 %v1183, %v9605
        %v9607 = vand.u32 %v9606, 4294901760
        %9608 = vmatprep.subr.mxu0 %v9607
        %v9609 = vand.u32 %v986, 4294901760
        %v9610 = vsub.f32 %v986, %v9609
        %v9611 = vand.u32 %v9610, 4294901760
        %9612 = vmatpush1.msra.mxu0 %v9611
        %v9613 = vand.u32 %v1182, 4294901760
        %v9614 = vsub.f32 %v1182, %v9613
        %v9615 = vand.u32 %v9614, 4294901760
        %9616 = vmatprep.subr.mxu0 %v9615
        %v9617 = vand.u32 %v985, 4294901760
        %v9618 = vsub.f32 %v985, %v9617
        %v9619 = vand.u32 %v9618, 4294901760
        %9620 = vmatpush1.msra.mxu0 %v9619
        %v9621 = vand.u32 %v1181, 4294901760
        %v9622 = vsub.f32 %v1181, %v9621
        %v9623 = vand.u32 %v9622, 4294901760
        %9624 = vmatprep.subr.mxu0 %v9623
        %v9625 = vand.u32 %v984, 4294901760
        %v9626 = vsub.f32 %v984, %v9625
        %v9627 = vand.u32 %v9626, 4294901760
        %9628 = vmatpush1.msra.mxu0 %v9627
        %v9629 = vand.u32 %v1180, 4294901760
        %v9630 = vsub.f32 %v1180, %v9629
        %v9631 = vand.u32 %v9630, 4294901760
        %9632 = vmatprep.subr.mxu0 %v9631
        %v9633 = vand.u32 %v983, 4294901760
        %v9634 = vsub.f32 %v983, %v9633
        %v9635 = vand.u32 %v9634, 4294901760
        %9636 = vmatpush1.msra.mxu0 %v9635
        %v9637 = vand.u32 %v1179, 4294901760
        %v9638 = vsub.f32 %v1179, %v9637
        %v9639 = vand.u32 %v9638, 4294901760
        %9640 = vmatprep.subr.mxu0 %v9639
        %v9641 = vand.u32 %v982, 4294901760
        %v9642 = vsub.f32 %v982, %v9641
        %v9643 = vand.u32 %v9642, 4294901760
        %9644 = vmatpush1.msra.mxu0 %v9643
        %v9645 = vand.u32 %v1178, 4294901760
        %v9646 = vsub.f32 %v1178, %v9645
        %v9647 = vand.u32 %v9646, 4294901760
        %9648 = vmatprep.subr.mxu0 %v9647
        %v9649 = vand.u32 %v981, 4294901760
        %v9650 = vsub.f32 %v981, %v9649
        %v9651 = vand.u32 %v9650, 4294901760
        %9652 = vmatpush1.msra.mxu0 %v9651
        %v9653 = vand.u32 %v1177, 4294901760
        %v9654 = vsub.f32 %v1177, %v9653
        %v9655 = vand.u32 %v9654, 4294901760
        %9656 = vmatprep.subr.mxu0 %v9655
        %v9657 = vand.u32 %v980, 4294901760
        %v9658 = vsub.f32 %v980, %v9657
        %v9659 = vand.u32 %v9658, 4294901760
        %9660 = vmatpush1.msra.mxu0 %v9659
        %v9661 = vand.u32 %v1176, 4294901760
        %v9662 = vsub.f32 %v1176, %v9661
        %v9663 = vand.u32 %v9662, 4294901760
        %9664 = vmatprep.subr.mxu0 %v9663
        %v9665 = vand.u32 %v979, 4294901760
        %v9666 = vsub.f32 %v979, %v9665
        %v9667 = vand.u32 %v9666, 4294901760
        %9668 = vmatpush1.msra.mxu0 %v9667
        %v9669 = vand.u32 %v1175, 4294901760
        %v9670 = vsub.f32 %v1175, %v9669
        %v9671 = vand.u32 %v9670, 4294901760
        %9672 = vmatprep.subr.mxu0 %v9671
        %v9673 = vand.u32 %v978, 4294901760
        %v9674 = vsub.f32 %v978, %v9673
        %v9675 = vand.u32 %v9674, 4294901760
        %9676 = vmatpush1.msra.mxu0 %v9675
        %v9677 = vand.u32 %v1206, 4294901760
        %v9678 = vsub.f32 %v1206, %v9677
        %v9679 = vand.u32 %v9678, 4294901760
        %9680 = vmatprep.subr.mxu0 %v9679
        %v9681 = vand.u32 %v1009, 4294901760
        %v9682 = vsub.f32 %v1009, %v9681
        %v9683 = vand.u32 %v9682, 4294901760
        %9684 = vmatpush2.msra.mxu0 %v9683
        %v9685 = vand.u32 %v1205, 4294901760
        %v9686 = vsub.f32 %v1205, %v9685
        %v9687 = vand.u32 %v9686, 4294901760
        %9688 = vmatprep.subr.mxu0 %v9687
        %v9689 = vand.u32 %v1008, 4294901760
        %v9690 = vsub.f32 %v1008, %v9689
        %v9691 = vand.u32 %v9690, 4294901760
        %9692 = vmatpush2.msra.mxu0 %v9691
        %v9693 = vand.u32 %v1204, 4294901760
        %v9694 = vsub.f32 %v1204, %v9693
        %v9695 = vand.u32 %v9694, 4294901760
        %9696 = vmatprep.subr.mxu0 %v9695
        %v9697 = vand.u32 %v1007, 4294901760
        %v9698 = vsub.f32 %v1007, %v9697
        %v9699 = vand.u32 %v9698, 4294901760
        %9700 = vmatpush2.msra.mxu0 %v9699
        %v9701 = vand.u32 %v1203, 4294901760
        %v9702 = vsub.f32 %v1203, %v9701
        %v9703 = vand.u32 %v9702, 4294901760
        %9704 = vmatprep.subr.mxu0 %v9703
        %v9705 = vand.u32 %v1006, 4294901760
        %v9706 = vsub.f32 %v1006, %v9705
        %v9707 = vand.u32 %v9706, 4294901760
        %9708 = vmatpush2.msra.mxu0 %v9707
        %v9709 = vand.u32 %v1202, 4294901760
        %v9710 = vsub.f32 %v1202, %v9709
        %v9711 = vand.u32 %v9710, 4294901760
        %9712 = vmatprep.subr.mxu0 %v9711
        %v9713 = vand.u32 %v1005, 4294901760
        %v9714 = vsub.f32 %v1005, %v9713
        %v9715 = vand.u32 %v9714, 4294901760
        %9716 = vmatpush2.msra.mxu0 %v9715
        %v9717 = vand.u32 %v1201, 4294901760
        %v9718 = vsub.f32 %v1201, %v9717
        %v9719 = vand.u32 %v9718, 4294901760
        %9720 = vmatprep.subr.mxu0 %v9719
        %v9721 = vand.u32 %v1004, 4294901760
        %v9722 = vsub.f32 %v1004, %v9721
        %v9723 = vand.u32 %v9722, 4294901760
        %9724 = vmatpush2.msra.mxu0 %v9723
        %v9725 = vand.u32 %v1200, 4294901760
        %v9726 = vsub.f32 %v1200, %v9725
        %v9727 = vand.u32 %v9726, 4294901760
        %9728 = vmatprep.subr.mxu0 %v9727
        %v9729 = vand.u32 %v1003, 4294901760
        %v9730 = vsub.f32 %v1003, %v9729
        %v9731 = vand.u32 %v9730, 4294901760
        %9732 = vmatpush2.msra.mxu0 %v9731
        %v9733 = vand.u32 %v1199, 4294901760
        %v9734 = vsub.f32 %v1199, %v9733
        %v9735 = vand.u32 %v9734, 4294901760
        %9736 = vmatprep.subr.mxu0 %v9735
        %v9737 = vand.u32 %v1002, 4294901760
        %v9738 = vsub.f32 %v1002, %v9737
        %v9739 = vand.u32 %v9738, 4294901760
        %9740 = vmatpush2.msra.mxu0 %v9739
        %v9741 = vand.u32 %v1198, 4294901760
        %v9742 = vsub.f32 %v1198, %v9741
        %v9743 = vand.u32 %v9742, 4294901760
        %9744 = vmatprep.subr.mxu0 %v9743
        %v9745 = vand.u32 %v1001, 4294901760
        %v9746 = vsub.f32 %v1001, %v9745
        %v9747 = vand.u32 %v9746, 4294901760
        %9748 = vmatpush2.msra.mxu0 %v9747
        %v9749 = vand.u32 %v1197, 4294901760
        %v9750 = vsub.f32 %v1197, %v9749
        %v9751 = vand.u32 %v9750, 4294901760
        %9752 = vmatprep.subr.mxu0 %v9751
        %v9753 = vand.u32 %v1000, 4294901760
        %v9754 = vsub.f32 %v1000, %v9753
        %v9755 = vand.u32 %v9754, 4294901760
        %9756 = vmatpush2.msra.mxu0 %v9755
        %v9757 = vand.u32 %v1196, 4294901760
        %v9758 = vsub.f32 %v1196, %v9757
        %v9759 = vand.u32 %v9758, 4294901760
        %9760 = vmatprep.subr.mxu0 %v9759
        %v9761 = vand.u32 %v999, 4294901760
        %v9762 = vsub.f32 %v999, %v9761
        %v9763 = vand.u32 %v9762, 4294901760
        %9764 = vmatpush2.msra.mxu0 %v9763
        %v9765 = vand.u32 %v1195, 4294901760
        %v9766 = vsub.f32 %v1195, %v9765
        %v9767 = vand.u32 %v9766, 4294901760
        %9768 = vmatprep.subr.mxu0 %v9767
        %v9769 = vand.u32 %v998, 4294901760
        %v9770 = vsub.f32 %v998, %v9769
        %v9771 = vand.u32 %v9770, 4294901760
        %9772 = vmatpush2.msra.mxu0 %v9771
        %v9773 = vand.u32 %v1194, 4294901760
        %v9774 = vsub.f32 %v1194, %v9773
        %v9775 = vand.u32 %v9774, 4294901760
        %9776 = vmatprep.subr.mxu0 %v9775
        %v9777 = vand.u32 %v997, 4294901760
        %v9778 = vsub.f32 %v997, %v9777
        %v9779 = vand.u32 %v9778, 4294901760
        %9780 = vmatpush2.msra.mxu0 %v9779
        %v9781 = vand.u32 %v1193, 4294901760
        %v9782 = vsub.f32 %v1193, %v9781
        %v9783 = vand.u32 %v9782, 4294901760
        %9784 = vmatprep.subr.mxu0 %v9783
        %v9785 = vand.u32 %v996, 4294901760
        %v9786 = vsub.f32 %v996, %v9785
        %v9787 = vand.u32 %v9786, 4294901760
        %9788 = vmatpush2.msra.mxu0 %v9787
        %v9789 = vand.u32 %v1192, 4294901760
        %v9790 = vsub.f32 %v1192, %v9789
        %v9791 = vand.u32 %v9790, 4294901760
        %9792 = vmatprep.subr.mxu0 %v9791
        %v9793 = vand.u32 %v995, 4294901760
        %v9794 = vsub.f32 %v995, %v9793
        %v9795 = vand.u32 %v9794, 4294901760
        %9796 = vmatpush2.msra.mxu0 %v9795
        %v9797 = vand.u32 %v1191, 4294901760
        %v9798 = vsub.f32 %v1191, %v9797
        %v9799 = vand.u32 %v9798, 4294901760
        %9800 = vmatprep.subr.mxu0 %v9799
        %v9801 = vand.u32 %v994, 4294901760
        %v9802 = vsub.f32 %v994, %v9801
        %v9803 = vand.u32 %v9802, 4294901760
        %9804 = vmatpush2.msra.mxu0 %v9803
        %v9805 = vand.u32 %v5702, 4294901760
        %9806 = vmatprep.mubr.f32.mxu0 %v9805
        %v9807 = vand.u32 %v5701, 4294901760
        %9808 = vmatmul.mubr.f32.gmra.mxu0 %v9807
        %v9809 = vpop.f32.mrf.mxu0
        %v9810 = vadd.f32 %v9365, %v9809
        %v9811 = vpop.f32.mrf.mxu0
        %v9812 = vadd.f32 %v9367, %v9811
        %v9813 = vand.u32 %v5706, 4294901760
        %9814 = vmatprep.mubr.f32.mxu0 %v9813
        %v9815 = vand.u32 %v5705, 4294901760
        %9816 = vmatmul.mubr.f32.gmra.mxu0 %v9815
        %v9817 = vpop.f32.mrf.mxu0
        %v9818 = vadd.f32 %v9377, %v9817
        %v9819 = vpop.f32.mrf.mxu0
        %v9820 = vadd.f32 %v9379, %v9819
        %v9821 = vand.u32 %v5710, 4294901760
        %9822 = vmatprep.mubr.f32.mxu0 %v9821
        %v9823 = vand.u32 %v5709, 4294901760
        %9824 = vmatmul.mubr.f32.gmra.mxu0 %v9823
        %v9825 = vpop.f32.mrf.mxu0
        %v9826 = vadd.f32 %v9389, %v9825
        %v9827 = vpop.f32.mrf.mxu0
        %v9828 = vadd.f32 %v9391, %v9827
        %v9829 = vand.u32 %v5714, 4294901760
        %9830 = vmatprep.mubr.f32.mxu0 %v9829
        %v9831 = vand.u32 %v5713, 4294901760
        %9832 = vmatmul.mubr.f32.gmra.mxu0 %v9831
        %v9833 = vpop.f32.mrf.mxu0
        %v9834 = vadd.f32 %v9401, %v9833
        %v9835 = vpop.f32.mrf.mxu0
        %v9836 = vadd.f32 %v9403, %v9835
        %v9837 = vand.u32 %v5718, 4294901760
        %9838 = vmatprep.mubr.f32.mxu0 %v9837
        %v9839 = vand.u32 %v5717, 4294901760
        %9840 = vmatmul.mubr.f32.gmra.mxu0 %v9839
        %v9841 = vpop.f32.mrf.mxu0
        %v9842 = vadd.f32 %v9413, %v9841
        %v9843 = vpop.f32.mrf.mxu0
        %v9844 = vadd.f32 %v9415, %v9843
        %v9845 = vand.u32 %v5722, 4294901760
        %9846 = vmatprep.mubr.f32.mxu0 %v9845
        %v9847 = vand.u32 %v5721, 4294901760
        %9848 = vmatmul.mubr.f32.gmra.mxu0 %v9847
        %v9849 = vpop.f32.mrf.mxu0
        %v9850 = vadd.f32 %v9425, %v9849
        %v9851 = vpop.f32.mrf.mxu0
        %v9852 = vadd.f32 %v9427, %v9851
        %v9853 = vand.u32 %v5726, 4294901760
        %9854 = vmatprep.mubr.f32.mxu0 %v9853
        %v9855 = vand.u32 %v5725, 4294901760
        %9856 = vmatmul.mubr.f32.gmra.mxu0 %v9855
        %v9857 = vpop.f32.mrf.mxu0
        %v9858 = vadd.f32 %v9437, %v9857
        %v9859 = vpop.f32.mrf.mxu0
        %v9860 = vadd.f32 %v9439, %v9859
        %v9861 = vand.u32 %v5730, 4294901760
        %9862 = vmatprep.mubr.f32.mxu0 %v9861
        %v9863 = vand.u32 %v5729, 4294901760
        %9864 = vmatmul.mubr.f32.gmra.mxu0 %v9863
        %v9865 = vpop.f32.mrf.mxu0
        %v9866 = vadd.f32 %v9449, %v9865
        %v9867 = vpop.f32.mrf.mxu0
        %v9868 = vadd.f32 %v9451, %v9867
        %v9869 = vand.u32 %v5734, 4294901760
        %9870 = vmatprep.mubr.f32.mxu0 %v9869
        %v9871 = vand.u32 %v5733, 4294901760
        %9872 = vmatmul.mubr.f32.gmra.mxu0 %v9871
        %v9873 = vpop.f32.mrf.mxu0
        %v9874 = vadd.f32 %v9461, %v9873
        %v9875 = vpop.f32.mrf.mxu0
        %v9876 = vadd.f32 %v9463, %v9875
        %v9877 = vand.u32 %v5738, 4294901760
        %9878 = vmatprep.mubr.f32.mxu0 %v9877
        %v9879 = vand.u32 %v5737, 4294901760
        %9880 = vmatmul.mubr.f32.gmra.mxu0 %v9879
        %v9881 = vpop.f32.mrf.mxu0
        %v9882 = vadd.f32 %v9473, %v9881
        %v9883 = vpop.f32.mrf.mxu0
        %v9884 = vadd.f32 %v9475, %v9883
        %v9885 = vand.u32 %v5742, 4294901760
        %9886 = vmatprep.mubr.f32.mxu0 %v9885
        %v9887 = vand.u32 %v5741, 4294901760
        %9888 = vmatmul.mubr.f32.gmra.mxu0 %v9887
        %v9889 = vpop.f32.mrf.mxu0
        %v9890 = vadd.f32 %v9485, %v9889
        %v9891 = vpop.f32.mrf.mxu0
        %v9892 = vadd.f32 %v9487, %v9891
        %v9893 = vand.u32 %v5746, 4294901760
        %9894 = vmatprep.mubr.f32.mxu0 %v9893
        %v9895 = vand.u32 %v5745, 4294901760
        %9896 = vmatmul.mubr.f32.gmra.mxu0 %v9895
        %v9897 = vpop.f32.mrf.mxu0
        %v9898 = vadd.f32 %v9497, %v9897
        %v9899 = vpop.f32.mrf.mxu0
        %v9900 = vadd.f32 %v9499, %v9899
        %v9901 = vand.u32 %v5750, 4294901760
        %9902 = vmatprep.mubr.f32.mxu0 %v9901
        %v9903 = vand.u32 %v5749, 4294901760
        %9904 = vmatmul.mubr.f32.gmra.mxu0 %v9903
        %v9905 = vpop.f32.mrf.mxu0
        %v9906 = vadd.f32 %v9509, %v9905
        %v9907 = vpop.f32.mrf.mxu0
        %v9908 = vadd.f32 %v9511, %v9907
        %v9909 = vand.u32 %v5754, 4294901760
        %9910 = vmatprep.mubr.f32.mxu0 %v9909
        %v9911 = vand.u32 %v5753, 4294901760
        %9912 = vmatmul.mubr.f32.gmra.mxu0 %v9911
        %v9913 = vpop.f32.mrf.mxu0
        %v9914 = vadd.f32 %v9521, %v9913
        %v9915 = vpop.f32.mrf.mxu0
        %v9916 = vadd.f32 %v9523, %v9915
        %v9917 = vand.u32 %v5758, 4294901760
        %9918 = vmatprep.mubr.f32.mxu0 %v9917
        %v9919 = vand.u32 %v5757, 4294901760
        %9920 = vmatmul.mubr.f32.gmra.mxu0 %v9919
        %v9921 = vpop.f32.mrf.mxu0
        %v9922 = vadd.f32 %v9533, %v9921
        %v9923 = vpop.f32.mrf.mxu0
        %v9924 = vadd.f32 %v9535, %v9923
        %v9925 = vand.u32 %v5762, 4294901760
        %9926 = vmatprep.mubr.f32.mxu0 %v9925
        %v9927 = vand.u32 %v5761, 4294901760
        %9928 = vmatmul.mubr.f32.gmra.mxu0 %v9927
        %v9929 = vpop.f32.mrf.mxu0
        %v9930 = vadd.f32 %v9545, %v9929
        %v9931 = vpop.f32.mrf.mxu0
        %v9932 = vadd.f32 %v9547, %v9931
        %9933 = vdwg.mxu0
        %v9934 = vand.u32 %v1190, 4294901760
        %9935 = vmatprep.subr.mxu0 %v9934
        %v9936 = vand.u32 %v993, 4294901760
        %9937 = vmatpush1.msra.mxu0 %v9936
        %v9938 = vand.u32 %v1189, 4294901760
        %9939 = vmatprep.subr.mxu0 %v9938
        %v9940 = vand.u32 %v992, 4294901760
        %9941 = vmatpush1.msra.mxu0 %v9940
        %v9942 = vand.u32 %v1188, 4294901760
        %9943 = vmatprep.subr.mxu0 %v9942
        %v9944 = vand.u32 %v991, 4294901760
        %9945 = vmatpush1.msra.mxu0 %v9944
        %v9946 = vand.u32 %v1187, 4294901760
        %9947 = vmatprep.subr.mxu0 %v9946
        %v9948 = vand.u32 %v990, 4294901760
        %9949 = vmatpush1.msra.mxu0 %v9948
        %v9950 = vand.u32 %v1186, 4294901760
        %9951 = vmatprep.subr.mxu0 %v9950
        %v9952 = vand.u32 %v989, 4294901760
        %9953 = vmatpush1.msra.mxu0 %v9952
        %v9954 = vand.u32 %v1185, 4294901760
        %9955 = vmatprep.subr.mxu0 %v9954
        %v9956 = vand.u32 %v988, 4294901760
        %9957 = vmatpush1.msra.mxu0 %v9956
        %v9958 = vand.u32 %v1184, 4294901760
        %9959 = vmatprep.subr.mxu0 %v9958
        %v9960 = vand.u32 %v987, 4294901760
        %9961 = vmatpush1.msra.mxu0 %v9960
        %v9962 = vand.u32 %v1183, 4294901760
        %9963 = vmatprep.subr.mxu0 %v9962
        %v9964 = vand.u32 %v986, 4294901760
        %9965 = vmatpush1.msra.mxu0 %v9964
        %v9966 = vand.u32 %v1182, 4294901760
        %9967 = vmatprep.subr.mxu0 %v9966
        %v9968 = vand.u32 %v985, 4294901760
        %9969 = vmatpush1.msra.mxu0 %v9968
        %v9970 = vand.u32 %v1181, 4294901760
        %9971 = vmatprep.subr.mxu0 %v9970
        %v9972 = vand.u32 %v984, 4294901760
        %9973 = vmatpush1.msra.mxu0 %v9972
        %v9974 = vand.u32 %v1180, 4294901760
        %9975 = vmatprep.subr.mxu0 %v9974
        %v9976 = vand.u32 %v983, 4294901760
        %9977 = vmatpush1.msra.mxu0 %v9976
        %v9978 = vand.u32 %v1179, 4294901760
        %9979 = vmatprep.subr.mxu0 %v9978
        %v9980 = vand.u32 %v982, 4294901760
        %9981 = vmatpush1.msra.mxu0 %v9980
        %v9982 = vand.u32 %v1178, 4294901760
        %9983 = vmatprep.subr.mxu0 %v9982
        %v9984 = vand.u32 %v981, 4294901760
        %9985 = vmatpush1.msra.mxu0 %v9984
        %v9986 = vand.u32 %v1177, 4294901760
        %9987 = vmatprep.subr.mxu0 %v9986
        %v9988 = vand.u32 %v980, 4294901760
        %9989 = vmatpush1.msra.mxu0 %v9988
        %v9990 = vand.u32 %v1176, 4294901760
        %9991 = vmatprep.subr.mxu0 %v9990
        %v9992 = vand.u32 %v979, 4294901760
        %9993 = vmatpush1.msra.mxu0 %v9992
        %v9994 = vand.u32 %v1175, 4294901760
        %9995 = vmatprep.subr.mxu0 %v9994
        %v9996 = vand.u32 %v978, 4294901760
        %9997 = vmatpush1.msra.mxu0 %v9996
        %v9998 = vand.u32 %v1206, 4294901760
        %9999 = vmatprep.subr.mxu0 %v9998
        %v10000 = vand.u32 %v1009, 4294901760
        %10001 = vmatpush2.msra.mxu0 %v10000
        %v10002 = vand.u32 %v1205, 4294901760
        %10003 = vmatprep.subr.mxu0 %v10002
        %v10004 = vand.u32 %v1008, 4294901760
        %10005 = vmatpush2.msra.mxu0 %v10004
        %v10006 = vand.u32 %v1204, 4294901760
        %10007 = vmatprep.subr.mxu0 %v10006
        %v10008 = vand.u32 %v1007, 4294901760
        %10009 = vmatpush2.msra.mxu0 %v10008
        %v10010 = vand.u32 %v1203, 4294901760
        %10011 = vmatprep.subr.mxu0 %v10010
        %v10012 = vand.u32 %v1006, 4294901760
        %10013 = vmatpush2.msra.mxu0 %v10012
        %v10014 = vand.u32 %v1202, 4294901760
        %10015 = vmatprep.subr.mxu0 %v10014
        %v10016 = vand.u32 %v1005, 4294901760
        %10017 = vmatpush2.msra.mxu0 %v10016
        %v10018 = vand.u32 %v1201, 4294901760
        %10019 = vmatprep.subr.mxu0 %v10018
        %v10020 = vand.u32 %v1004, 4294901760
        %10021 = vmatpush2.msra.mxu0 %v10020
        %v10022 = vand.u32 %v1200, 4294901760
        %10023 = vmatprep.subr.mxu0 %v10022
        %v10024 = vand.u32 %v1003, 4294901760
        %10025 = vmatpush2.msra.mxu0 %v10024
        %v10026 = vand.u32 %v1199, 4294901760
        %10027 = vmatprep.subr.mxu0 %v10026
        %v10028 = vand.u32 %v1002, 4294901760
        %10029 = vmatpush2.msra.mxu0 %v10028
        %v10030 = vand.u32 %v1198, 4294901760
        %10031 = vmatprep.subr.mxu0 %v10030
        %v10032 = vand.u32 %v1001, 4294901760
        %10033 = vmatpush2.msra.mxu0 %v10032
        %v10034 = vand.u32 %v1197, 4294901760
        %10035 = vmatprep.subr.mxu0 %v10034
        %v10036 = vand.u32 %v1000, 4294901760
        %10037 = vmatpush2.msra.mxu0 %v10036
        %v10038 = vand.u32 %v1196, 4294901760
        %10039 = vmatprep.subr.mxu0 %v10038
        %v10040 = vand.u32 %v999, 4294901760
        %10041 = vmatpush2.msra.mxu0 %v10040
        %v10042 = vand.u32 %v1195, 4294901760
        %10043 = vmatprep.subr.mxu0 %v10042
        %v10044 = vand.u32 %v998, 4294901760
        %10045 = vmatpush2.msra.mxu0 %v10044
        %v10046 = vand.u32 %v1194, 4294901760
        %10047 = vmatprep.subr.mxu0 %v10046
        %v10048 = vand.u32 %v997, 4294901760
        %10049 = vmatpush2.msra.mxu0 %v10048
        %v10050 = vand.u32 %v1193, 4294901760
        %10051 = vmatprep.subr.mxu0 %v10050
        %v10052 = vand.u32 %v996, 4294901760
        %10053 = vmatpush2.msra.mxu0 %v10052
        %v10054 = vand.u32 %v1192, 4294901760
        %10055 = vmatprep.subr.mxu0 %v10054
        %v10056 = vand.u32 %v995, 4294901760
        %10057 = vmatpush2.msra.mxu0 %v10056
        %v10058 = vand.u32 %v1191, 4294901760
        %10059 = vmatprep.subr.mxu0 %v10058
        %v10060 = vand.u32 %v994, 4294901760
        %10061 = vmatpush2.msra.mxu0 %v10060
        %v10062 = vand.u32 %v5702, 4294901760
        %10063 = vmatprep.mubr.f32.mxu0 %v10062
        %v10064 = vand.u32 %v5701, 4294901760
        %10065 = vmatmul.mubr.f32.gmra.mxu0 %v10064
        %v10066 = vpop.f32.mrf.mxu0
        %v10067 = vadd.f32 %v9810, %v10066
        %v10068 = vpop.f32.mrf.mxu0
        %v10069 = vadd.f32 %v9812, %v10068
        %v10070 = vand.u32 %v5706, 4294901760
        %10071 = vmatprep.mubr.f32.mxu0 %v10070
        %v10072 = vand.u32 %v5705, 4294901760
        %10073 = vmatmul.mubr.f32.gmra.mxu0 %v10072
        %v10074 = vpop.f32.mrf.mxu0
        %v10075 = vadd.f32 %v9818, %v10074
        %v10076 = vpop.f32.mrf.mxu0
        %v10077 = vadd.f32 %v9820, %v10076
        %v10078 = vand.u32 %v5710, 4294901760
        %10079 = vmatprep.mubr.f32.mxu0 %v10078
        %v10080 = vand.u32 %v5709, 4294901760
        %10081 = vmatmul.mubr.f32.gmra.mxu0 %v10080
        %v10082 = vpop.f32.mrf.mxu0
        %v10083 = vadd.f32 %v9826, %v10082
        %v10084 = vpop.f32.mrf.mxu0
        %v10085 = vadd.f32 %v9828, %v10084
        %v10086 = vand.u32 %v5714, 4294901760
        %10087 = vmatprep.mubr.f32.mxu0 %v10086
        %v10088 = vand.u32 %v5713, 4294901760
        %10089 = vmatmul.mubr.f32.gmra.mxu0 %v10088
        %v10090 = vpop.f32.mrf.mxu0
        %v10091 = vadd.f32 %v9834, %v10090
        %v10092 = vpop.f32.mrf.mxu0
        %v10093 = vadd.f32 %v9836, %v10092
        %v10094 = vand.u32 %v5718, 4294901760
        %10095 = vmatprep.mubr.f32.mxu0 %v10094
        %v10096 = vand.u32 %v5717, 4294901760
        %10097 = vmatmul.mubr.f32.gmra.mxu0 %v10096
        %v10098 = vpop.f32.mrf.mxu0
        %v10099 = vadd.f32 %v9842, %v10098
        %v10100 = vpop.f32.mrf.mxu0
        %v10101 = vadd.f32 %v9844, %v10100
        %v10102 = vand.u32 %v5722, 4294901760
        %10103 = vmatprep.mubr.f32.mxu0 %v10102
        %v10104 = vand.u32 %v5721, 4294901760
        %10105 = vmatmul.mubr.f32.gmra.mxu0 %v10104
        %v10106 = vpop.f32.mrf.mxu0
        %v10107 = vadd.f32 %v9850, %v10106
        %v10108 = vpop.f32.mrf.mxu0
        %v10109 = vadd.f32 %v9852, %v10108
        %v10110 = vand.u32 %v5726, 4294901760
        %10111 = vmatprep.mubr.f32.mxu0 %v10110
        %v10112 = vand.u32 %v5725, 4294901760
        %10113 = vmatmul.mubr.f32.gmra.mxu0 %v10112
        %v10114 = vpop.f32.mrf.mxu0
        %v10115 = vadd.f32 %v9858, %v10114
        %v10116 = vpop.f32.mrf.mxu0
        %v10117 = vadd.f32 %v9860, %v10116
        %v10118 = vand.u32 %v5730, 4294901760
        %10119 = vmatprep.mubr.f32.mxu0 %v10118
        %v10120 = vand.u32 %v5729, 4294901760
        %10121 = vmatmul.mubr.f32.gmra.mxu0 %v10120
        %v10122 = vpop.f32.mrf.mxu0
        %v10123 = vadd.f32 %v9866, %v10122
        %v10124 = vpop.f32.mrf.mxu0
        %v10125 = vadd.f32 %v9868, %v10124
        %v10126 = vand.u32 %v5734, 4294901760
        %10127 = vmatprep.mubr.f32.mxu0 %v10126
        %v10128 = vand.u32 %v5733, 4294901760
        %10129 = vmatmul.mubr.f32.gmra.mxu0 %v10128
        %v10130 = vpop.f32.mrf.mxu0
        %v10131 = vadd.f32 %v9874, %v10130
        %v10132 = vpop.f32.mrf.mxu0
        %v10133 = vadd.f32 %v9876, %v10132
        %v10134 = vand.u32 %v5738, 4294901760
        %10135 = vmatprep.mubr.f32.mxu0 %v10134
        %v10136 = vand.u32 %v5737, 4294901760
        %10137 = vmatmul.mubr.f32.gmra.mxu0 %v10136
        %v10138 = vpop.f32.mrf.mxu0
        %v10139 = vadd.f32 %v9882, %v10138
        %v10140 = vpop.f32.mrf.mxu0
        %v10141 = vadd.f32 %v9884, %v10140
        %v10142 = vand.u32 %v5742, 4294901760
        %10143 = vmatprep.mubr.f32.mxu0 %v10142
        %v10144 = vand.u32 %v5741, 4294901760
        %10145 = vmatmul.mubr.f32.gmra.mxu0 %v10144
        %v10146 = vpop.f32.mrf.mxu0
        %v10147 = vadd.f32 %v9890, %v10146
        %v10148 = vpop.f32.mrf.mxu0
        %v10149 = vadd.f32 %v9892, %v10148
        %v10150 = vand.u32 %v5746, 4294901760
        %10151 = vmatprep.mubr.f32.mxu0 %v10150
        %v10152 = vand.u32 %v5745, 4294901760
        %10153 = vmatmul.mubr.f32.gmra.mxu0 %v10152
        %v10154 = vpop.f32.mrf.mxu0
        %v10155 = vadd.f32 %v9898, %v10154
        %v10156 = vpop.f32.mrf.mxu0
        %v10157 = vadd.f32 %v9900, %v10156
        %v10158 = vand.u32 %v5750, 4294901760
        %10159 = vmatprep.mubr.f32.mxu0 %v10158
        %v10160 = vand.u32 %v5749, 4294901760
        %10161 = vmatmul.mubr.f32.gmra.mxu0 %v10160
        %v10162 = vpop.f32.mrf.mxu0
        %v10163 = vadd.f32 %v9906, %v10162
        %v10164 = vpop.f32.mrf.mxu0
        %v10165 = vadd.f32 %v9908, %v10164
        %v10166 = vand.u32 %v5754, 4294901760
        %10167 = vmatprep.mubr.f32.mxu0 %v10166
        %v10168 = vand.u32 %v5753, 4294901760
        %10169 = vmatmul.mubr.f32.gmra.mxu0 %v10168
        %v10170 = vpop.f32.mrf.mxu0
        %v10171 = vadd.f32 %v9914, %v10170
        %v10172 = vpop.f32.mrf.mxu0
        %v10173 = vadd.f32 %v9916, %v10172
        %v10174 = vand.u32 %v5758, 4294901760
        %10175 = vmatprep.mubr.f32.mxu0 %v10174
        %v10176 = vand.u32 %v5757, 4294901760
        %10177 = vmatmul.mubr.f32.gmra.mxu0 %v10176
        %v10178 = vpop.f32.mrf.mxu0
        %v10179 = vadd.f32 %v9922, %v10178
        %v10180 = vpop.f32.mrf.mxu0
        %v10181 = vadd.f32 %v9924, %v10180
        %v10182 = vand.u32 %v5762, 4294901760
        %10183 = vmatprep.mubr.f32.mxu0 %v10182
        %v10184 = vand.u32 %v5761, 4294901760
        %10185 = vmatmul.mubr.f32.gmra.mxu0 %v10184
        %v10186 = vpop.f32.mrf.mxu0
        %v10187 = vadd.f32 %v9930, %v10186
        %v10188 = vpop.f32.mrf.mxu0
        %v10189 = vadd.f32 %v9932, %v10188
        %10190 = vdwg.mxu0
        %v10191 = vmul.f32 %v5575, %v10067
        %v10192 = vmul.f32 %v5577, %v10069
        %v10193 = vmul.f32 %v5583, %v10075
        %v10194 = vmul.f32 %v5585, %v10077
        %v10195 = vmul.f32 %v5591, %v10083
        %v10196 = vmul.f32 %v5593, %v10085
        %v10197 = vmul.f32 %v5599, %v10091
        %v10198 = vmul.f32 %v5601, %v10093
        %v10199 = vmul.f32 %v5607, %v10099
        %v10200 = vmul.f32 %v5609, %v10101
        %v10201 = vmul.f32 %v5615, %v10107
        %v10202 = vmul.f32 %v5617, %v10109
        %v10203 = vmul.f32 %v5623, %v10115
        %v10204 = vmul.f32 %v5625, %v10117
        %v10205 = vmul.f32 %v5631, %v10123
        %v10206 = vmul.f32 %v5633, %v10125
        %v10207 = vmul.f32 %v5639, %v10131
        %v10208 = vmul.f32 %v5641, %v10133
        %v10209 = vmul.f32 %v5647, %v10139
        %v10210 = vmul.f32 %v5649, %v10141
        %v10211 = vmul.f32 %v5655, %v10147
        %v10212 = vmul.f32 %v5657, %v10149
        %v10213 = vmul.f32 %v5663, %v10155
        %v10214 = vmul.f32 %v5665, %v10157
        %v10215 = vmul.f32 %v5671, %v10163
        %v10216 = vmul.f32 %v5673, %v10165
        %v10217 = vmul.f32 %v5679, %v10171
        %v10218 = vmul.f32 %v5681, %v10173
        %v10219 = vmul.f32 %v5687, %v10179
        %v10220 = vmul.f32 %v5689, %v10181
        %v10221 = vmul.f32 %v5695, %v10187
        %v10222 = vmul.f32 %v5697, %v10189
        %v10223 = vadd.f32 %v10191, %v10193
        %v10224 = vadd.f32 %v10223, %v10195
        %v10225 = vadd.f32 %v10224, %v10197
        %v10226 = vadd.f32 %v10225, %v10199
        %v10227 = vadd.f32 %v10226, %v10201
        %v10228 = vadd.f32 %v10227, %v10203
        %v10229 = vadd.f32 %v10228, %v10205
        %v10230 = vadd.f32 %v10229, %v10207
        %v10231 = vadd.f32 %v10230, %v10209
        %v10232 = vadd.f32 %v10231, %v10211
        %v10233 = vadd.f32 %v10232, %v10213
        %v10234 = vadd.f32 %v10233, %v10215
        %v10235 = vadd.f32 %v10234, %v10217
        %v10236 = vadd.f32 %v10235, %v10219
        %v10237 = vadd.f32 %v10236, %v10221
        %v10238 = vrot.slane %v10237, 4
        %v10239 = vadd.f32 %v10237, %v10238
        %v10240 = vrot.slane %v10239, 2
        %v10241 = vadd.f32 %v10239, %v10240
        %v10242 = vrot.slane %v10241, 1
        %v10243 = vadd.f32 %v10241, %v10242
        %v10244 = vadd.f32 %v10192, %v10194
        %v10245 = vadd.f32 %v10244, %v10196
        %v10246 = vadd.f32 %v10245, %v10198
        %v10247 = vadd.f32 %v10246, %v10200
        %v10248 = vadd.f32 %v10247, %v10202
        %v10249 = vadd.f32 %v10248, %v10204
        %v10250 = vadd.f32 %v10249, %v10206
        %v10251 = vadd.f32 %v10250, %v10208
        %v10252 = vadd.f32 %v10251, %v10210
        %v10253 = vadd.f32 %v10252, %v10212
        %v10254 = vadd.f32 %v10253, %v10214
        %v10255 = vadd.f32 %v10254, %v10216
        %v10256 = vadd.f32 %v10255, %v10218
        %v10257 = vadd.f32 %v10256, %v10220
        %v10258 = vadd.f32 %v10257, %v10222
        %v10259 = vrot.slane %v10258, 4
        %v10260 = vadd.f32 %v10258, %v10259
        %v10261 = vrot.slane %v10260, 2
        %v10262 = vadd.f32 %v10260, %v10261
        %v10263 = vrot.slane %v10262, 1
        %v10264 = vadd.f32 %v10262, %v10263
        %v10265 = vmax.f32 %v10243, -10.0
        %v10266 = vmax.f32 %v10264, -10.0
        %v10267 = vmin.f32 %v10265, 10.0
        %v10268 = vmin.f32 %v10266, 10.0
        %v10269 = vmin.f32 %v10267, 0.0
        %v10270 = vand.u32 2147483647, %v10267
        %v10271 = vsub.f32 0.0, %v10270
        %v10272 = vmul.f32 %v10271, 1.442695
        %v10273 = vpow.pop %v10272
        %v10274 = vadd.f32 %v10273, 1.0
        %v10275 = vlog2.pop %v10274
        %v10276 = vmul.f32 %v10275, 0.6931472
        %v10277 = vmul.f32 -0.5, %v10273
        %v10278 = vadd.f32 %v10277, 1.0
        %v10279 = vmul.f32 %v10278, %v10273
        %v10280 = vand.u32 2147483647, %v10273
        %vm10281 = vcmp.lt.f32.partialorder %v10280, 0.0004427343
        %v10282 = vsel %vm10281, %v10279, %v10276
        %v10283 = vsub.f32 %v10269, %v10282
        %v10284 = vsub.f32 0.0, %v10268
        %v10285 = vmin.f32 %v10284, 0.0
        %v10286 = vand.u32 2147483647, %v10284
        %v10287 = vsub.f32 0.0, %v10286
        %v10288 = vmul.f32 %v10287, 1.442695
        %v10289 = vpow.pop %v10288
        %v10290 = vadd.f32 %v10289, 1.0
        %v10291 = vlog2.pop %v10290
        %v10292 = vmul.f32 %v10291, 0.6931472
        %v10293 = vmul.f32 -0.5, %v10289
        %v10294 = vadd.f32 %v10293, 1.0
        %v10295 = vmul.f32 %v10294, %v10289
        %v10296 = vand.u32 2147483647, %v10289
        %vm10297 = vcmp.lt.f32.partialorder %v10296, 0.0004427343
        %v10298 = vsel %vm10297, %v10295, %v10292
        %v10299 = vsub.f32 %v10285, %v10298
        %v10300 = vadd.f32 %v10283, %v10299
        %v10301 = vsub.f32 0.0, %v10300
        %10302 = vst [vmem:[%s347] sm:$0x1] %v10301
        %s10303 = sand.u32 %s181, 1
        %s10304 = scalar_lea.sflag [#allocation4], %s10303
        %s10305 = sand.u32 %s181, 1
        %s10306 = scalar_lea.vmem [#allocation10], %s10305
        // Predicated region
        $region61: #{tpu_custom_call.1} parent=43 // pred_check
          %p10307 = pneg %p191
        $region62: #{tpu_custom_call.1} parent=43 // pred_check_branch
          %10309 = sbr.rel (%p10307) target = $region64
        $region63: #{tpu_custom_call.1} parent=43 // pred_region
          %s10311 = ssub.s32 16, 16
          %10312 = vsyncadd %s10304, %s10311
          %s10313 = smul.addr %s27, 16
          %s10314 = scalar_lea.hbm %s6, %s10313
          %s10316 = sshll.u32 %s10306, 4
          %s10317 = int_to_ptr.vmem [resolvable:$true] %s10316
          %10319 = dma.vmem_to_hbm [thread:$0]  %s10317, 16, %s10314, %s10304
        $region64: #{tpu_custom_call.1} parent=43 // pred_fallthru
          _
      $region44: #{tpu_custom_call.1} parent=5 // pred_fallthru
        _
      %p10320 = scmp.le.s32.totalorder 2, %s22
      // Predicated region
      $region65: #{tpu_custom_call.1} parent=5 // pred_check
        %p10321 = pneg %p10320
      $region66: #{tpu_custom_call.1} parent=5 // pred_check_branch
        %10323 = sbr.rel (%p10321) target = $region68
      $region67: #{tpu_custom_call.1} parent=5 // pred_region
        %s10324 = ssub.s32 %s22, 2
        // Predicated region
        $region69: #{tpu_custom_call.1} parent=67 // pred_check
          %p10325 = pneg %p197
        $region70: #{tpu_custom_call.1} parent=67 // pred_check_branch
          %10327 = sbr.rel (%p10325) target = $region72
        $region71: #{tpu_custom_call.1} parent=67 // pred_region
          %s10328 = sand.u32 %s182, 1
          %s10329 = scalar_lea.sflag [#allocation4], %s10328
          %s10330 = sand.u32 %s182, 1
          %s10331 = scalar_lea.vmem [#allocation10], %s10330
          %10332 = dma.done %s10329, 16
        $region72: #{tpu_custom_call.1} parent=67 // pred_fallthru
          _
      $region68: #{tpu_custom_call.1} parent=5 // pred_fallthru
        _
    $region6: #{tpu_custom_call.1} parent=1 // loop_footer
      %s26 = sadd.s32 1, %s22
    $region7: #{tpu_custom_call.1} parent=1 // loop_footer_branch
      %21 = sbr.rel target = $region3
    $region8: #{tpu_custom_call.1} parent=1 // loop_exit
      _
    %10333 = vsyncpa [#allocation3], 1
    %s10334 = scalar_lea.sflag [#allocation3], 1
    %10335 = vsyncpa %s10334, 1
    %10336 = vsyncpa [#allocation6], 1
    %s10337 = scalar_lea.sflag [#allocation6], 1
    %10338 = vsyncpa %s10337, 1
    %10339 = vsyncpa [#allocation9], 1
    %10340 = vsyncpa [#allocation4], 1
    %s10341 = scalar_lea.sflag [#allocation4], 1
    %10342 = vsyncpa %s10341, 1

</llo_original>
